<compile_context>
chip_gen: v6e
topology: v6e:2x2x1
jax: 0.10.0
libtpu: 0.0.40
codegen_flags: <defaults>
</compile_context>

<pallas_src>
import math
import functools

import numpy as np
import jax
import jax.numpy as jnp
from jax.experimental import pallas as pl

# -------------------- model config (small, consistent with the module) ------
BASE_SIZE = 8          # PatchEmbed img_size == H == W of a window
PATCH_SIZE = 4
IN_CHANNELS = 4
HIDDEN_SIZE = 32
DEPTH = 2
NUM_HEADS = 4
MLP_RATIO = 4
OUT_CHANNELS = 4
STRIDE = 4
FREQ_EMBED_SIZE = 256  # TimestepEmbedder frequency_embedding_size
LN_EPS = 1e-6

HEAD_DIM = HIDDEN_SIZE // NUM_HEADS
MLP_HIDDEN = MLP_RATIO * HIDDEN_SIZE
PATCH_DIM = IN_CHANNELS * PATCH_SIZE * PATCH_SIZE
OUT_PATCH_DIM = PATCH_SIZE * PATCH_SIZE * OUT_CHANNELS
NEG_INF = -1e9


# -------------------- trace-time math helpers (f32 VPU/EUP paths) -----------
def _silu(x):
    return x * jax.nn.sigmoid(x)


def _gelu_tanh(x):
    # nn.GELU(approximate="tanh")
    c = math.sqrt(2.0 / math.pi)
    return 0.5 * x * (1.0 + jnp.tanh(c * (x + 0.044715 * x * x * x)))


def _layernorm(x, eps):
    # LayerNorm(elementwise_affine=False)
    mu = jnp.mean(x, axis=-1, keepdims=True)
    xc = x - mu
    var = jnp.mean(xc * xc, axis=-1, keepdims=True)
    return xc * jax.lax.rsqrt(var + eps)


# -------------------- fused DiTi Pallas kernel --------------------------------
def _diti_fused_kernel(
        patches_ref, pos_ref, tfreq_ref, mask_ref,
        pw_ref, pb_ref,
        tw1_ref, tb1_ref, tw2_ref, tb2_ref,
        wada_ref, bada_ref,
        wq_ref, bq_ref, wk_ref, bk_ref, wv_ref, bv_ref,
        wpr_ref, bpr_ref,
        wfc1_ref, bfc1_ref, wfc2_ref, bfc2_ref,
        fwada_ref, fbada_ref, fwlin_ref, fblin_ref,
        out_ref,
        *, depth, num_heads, batch, seq, eps):
    f32 = jnp.float32
    bf16 = jnp.bfloat16
    d_model = pos_ref.shape[-1]
    head_dim = d_model // num_heads
    attn_scale = head_dim ** -0.5

    def mm(a, w, b=None):
        # MXU matmul: bf16 operands, f32 accumulation.
        r = jnp.dot(a.astype(bf16), w.astype(bf16), preferred_element_type=f32)
        return r if b is None else r + b

    # ---- patch embed + positional embedding (fused add, no extra HBM trip) ----
    x = mm(patches_ref[...], pw_ref[...], pb_ref[...]) + pos_ref[...]     # (R, D)

    # ---- timestep embedder MLP + shared adaLN conditioning ----
    t1 = mm(tfreq_ref[...], tw1_ref[...], tb1_ref[...])                   # (N, D)
    c = _silu(mm(_silu(t1), tw2_ref[...], tb2_ref[...]))                  # SiLU(t_emb)
    # Broadcast the per-sample conditioning to per-token rows ONCE (hoisted;
    # reused by every adaLN matmul in every block and by the final layer).
    c_rows = jnp.concatenate(
        [jnp.broadcast_to(c[i:i + 1, :], (seq, d_model)) for i in range(batch)],
        axis=0)                                                            # (R, D)
    c_bf = c_rows.astype(bf16)

    mask = mask_ref[...]                                                   # (R, R)

    for blk in range(depth):
        # adaLN modulation: one small (R,D)@(D,D) matmul per chunk -> each chunk
        # is already per-token; no (.,6D) lane-offset slicing, no re-broadcast.
        shift_msa = mm(c_bf, wada_ref[blk, 0], bada_ref[blk, 0])
        scale_msa = mm(c_bf, wada_ref[blk, 1], bada_ref[blk, 1])
        gate_msa = mm(c_bf, wada_ref[blk, 2], bada_ref[blk, 2])
        shift_mlp = mm(c_bf, wada_ref[blk, 3], bada_ref[blk, 3])
        scale_mlp = mm(c_bf, wada_ref[blk, 4], bada_ref[blk, 4])
        gate_mlp = mm(c_bf, wada_ref[blk, 5], bada_ref[blk, 5])

        # ---- attention branch ----
        hb = (_layernorm(x, eps) * (1.0 + scale_msa) + shift_msa).astype(bf16)
        attn = None
        for h in range(num_heads):
            # Per-head weight slabs -> q/k/v come out already per head; no
            # lane-misaligned slicing of a (R, 3D) tensor, no head concat.
            q = mm(hb, wq_ref[blk, h], bq_ref[blk, h])                     # (R, hd)
            k = mm(hb, wk_ref[blk, h], bk_ref[blk, h])
            v = mm(hb, wv_ref[blk, h], bv_ref[blk, h])
            s = jax.lax.dot_general(q.astype(bf16), k.astype(bf16),
                                    (((1,), (1,)), ((), ())),
                                    preferred_element_type=f32)            # (R, R)
            # Block-diagonal mask keeps attention strictly within each sample.
            s = s * attn_scale + mask
            s = s - jnp.max(s, axis=-1, keepdims=True)
            p = jnp.exp(s)
            p = p * pl.reciprocal(jnp.sum(p, axis=-1, keepdims=True), approx=True)
            o = mm(p, v)                                                   # (R, hd)
            # Fold the head back via its slice of the output projection.
            term = mm(o, wpr_ref[blk, h])                                  # (R, D)
            attn = term if attn is None else attn + term
        x = x + gate_msa * (attn + bpr_ref[blk])

        # ---- MLP branch ----
        hm = _layernorm(x, eps) * (1.0 + scale_mlp) + shift_mlp
        hm = _gelu_tanh(mm(hm, wfc1_ref[blk], bfc1_ref[blk]))              # (R, Dh)
        x = x + gate_mlp * mm(hm, wfc2_ref[blk], bfc2_ref[blk])

    # ---- final layer ----
    shift_f = mm(c_bf, fwada_ref[0], fbada_ref[0])
    scale_f = mm(c_bf, fwada_ref[1], fbada_ref[1])
    hf = _layernorm(x, eps) * (1.0 + scale_f) + shift_f
    out_ref[...] = mm(hf, fwlin_ref[...], fblin_ref[...])                  # (R, p*p*c)


def _diti_fused_call(patches, pos_rows, tfreq, mask, pk):
    rows = patches.shape[0]
    batch = tfreq.shape[0]
    seq = rows // batch
    kernel = functools.partial(
        _diti_fused_kernel, depth=DEPTH, num_heads=NUM_HEADS,
        batch=batch, seq=seq, eps=LN_EPS)
    # Single invocation, whole arrays VMEM-resident (total footprint << 1 MiB),
    # so there is no grid / pipeline / double-buffering overhead at all.
    return pl.pallas_call(
        kernel,
        out_shape=jax.ShapeDtypeStruct((rows, OUT_PATCH_DIM), jnp.float32),
    )(patches, pos_rows, tfreq, mask,
      pk['proj_w'], pk['proj_b'],
      pk['t_w1'], pk['t_b1'], pk['t_w2'], pk['t_b2'],
      pk['wada'], pk['bada'],
      pk['wq'], pk['bq'], pk['wk'], pk['bk'], pk['wv'], pk['bv'],
      pk['wproj'], pk['bproj'],
      pk['wfc1'], pk['bfc1'], pk['wfc2'], pk['bfc2'],
      pk['f_wada'], pk['f_bada'], pk['f_wlin'], pk['f_blin'])


# -------------------- host-side (glue) helpers --------------------------------
def _get_1d_sincos_pos_embed_from_grid(embed_dim, pos):
    omega = np.arange(embed_dim // 2, dtype=np.float64)
    omega /= embed_dim / 2.0
    omega = 1.0 / 10000 ** omega
    pos = pos.reshape(-1)
    out = np.einsum('m,d->md', pos, omega)
    return np.concatenate([np.sin(out), np.cos(out)], axis=1)


def get_2d_sincos_pos_embed(embed_dim, grid_size, shift=(0, 0)):
    # TODO(synk): exact shifted pos-embed source not given; standard DiT sincos
    # grid with an additive per-window shift is assumed.
    grid_h = np.arange(grid_size, dtype=np.float32) + shift[0]
    grid_w = np.arange(grid_size, dtype=np.float32) + shift[1]
    grid = np.meshgrid(grid_w, grid_h)          # w goes first (DiT convention)
    grid = np.stack(grid, axis=0).reshape([2, 1, grid_size, grid_size])
    emb_h = _get_1d_sincos_pos_embed_from_grid(embed_dim // 2, grid[0])
    emb_w = _get_1d_sincos_pos_embed_from_grid(embed_dim // 2, grid[1])
    return np.concatenate([emb_h, emb_w], axis=1)   # (grid_size**2, embed_dim)


def timestep_embedding(t, dim, max_period=10000):
    half = dim // 2
    freqs = jnp.exp(-math.log(max_period) *
                    jnp.arange(half, dtype=jnp.float32) / half)
    args = t.astype(jnp.float32)[:, None] * freqs[None]
    return jnp.concatenate([jnp.cos(args), jnp.sin(args)], axis=-1)


# -------------------- full DiTi forward ---------------------------------------
@jax.jit
def diti_forward(x, t, pk):
    N, MH, MW, C, H, W = x.shape
    M = MH * MW
    p = PATCH_SIZE
    D = HIDDEN_SIZE
    gh, gw = H // p, W // p
    T = gh * gw
    L = M * T
    R = N * L

    # --- patch extraction (layout glue inside the same jit) ---
    patches = x.reshape(N * M, C, gh, p, gw, p)
    patches = jnp.transpose(patches, (0, 2, 4, 1, 3, 5)).reshape(R, C * p * p)

    # --- shifted 2D sincos positional embedding (compile-time numpy constant) ---
    pos_list = [get_2d_sincos_pos_embed(D, gh, shift=(i * BASE_SIZE, j * BASE_SIZE))
                for i in range(MH) for j in range(MW)]
    pos_np = np.stack(pos_list, axis=0).reshape(M * T, D).astype(np.float32)
    pos_rows = jnp.asarray(np.tile(pos_np, (N, 1)), dtype=jnp.float32)      # (R, D)

    # --- block-diagonal attention mask: tokens attend only within their sample ---
    sample_id = np.arange(R) // L
    mask = jnp.asarray(
        np.where(sample_id[:, None] == sample_id[None, :], 0.0, NEG_INF),
        dtype=jnp.float32)                                                  # (R, R)

    # --- timestep sinusoidal features ---
    tfreq = timestep_embedding(t, FREQ_EMBED_SIZE)                          # (N, 256)

    # --- everything else: one fused Pallas kernel ---
    out = _diti_fused_call(patches, pos_rows, tfreq, mask, pk)              # (R, ppc)

    # --- unpatchify: (N, M, T, p*p*c) -> (N, M, c, gh*p, gw*p) ---
    c = OUT_CHANNELS
    out = out.reshape(N, M, gh, gw, p, p, c)
    out = jnp.einsum('nmhwpqc->nmchpwq', out)
    imgs = out.reshape(N, M, c, gh * p, gw * p)

    # --- overlap-add stitching of the MH x MW windows ---
    H_out = STRIDE * (MH - 1) + BASE_SIZE
    W_out = STRIDE * (MW - 1) + BASE_SIZE
    res = jnp.zeros((N, c, H_out, W_out), jnp.float32)
    wsum = jnp.zeros((N, c, H_out, W_out), jnp.float32)
    ptr = 0
    for i in range(MH):
        for j in range(MW):
            L1, L2 = i * STRIDE, j * STRIDE
            res = res.at[:, :, L1:L1 + BASE_SIZE, L2:L2 + BASE_SIZE].add(imgs[:, ptr])
            wsum = wsum.at[:, :, L1:L1 + BASE_SIZE, L2:L2 + BASE_SIZE].add(1.0)
            ptr += 1
    return res / wsum


# -------------------- deterministic parameter init ---------------------------
def init_params(key):
    D = HIDDEN_SIZE
    Dh = MLP_HIDDEN
    keys = iter(jax.random.split(key, 128))

    def rand(shape, scale=0.02):
        return scale * jax.random.normal(next(keys), shape, dtype=jnp.float32)

    params = {
        'proj_w': rand((PATCH_DIM, D)),     # PatchEmbed conv, flattened (C,ph,pw)
        'proj_b': rand((D,)),
        't_w1': rand((FREQ_EMBED_SIZE, D)), 't_b1': rand((D,)),
        't_w2': rand((D, D)),               't_b2': rand((D,)),
        'blocks': [],
    }
    for _ in range(DEPTH):
        params['blocks'].append({
            'w_q': rand((D, D)), 'b_q': rand((D,)),
            'w_k': rand((D, D)), 'b_k': rand((D,)),
            'w_v': rand((D, D)), 'b_v': rand((D,)),
            'w_proj': rand((D, D)), 'b_proj': rand((D,)),
            'w_fc1': rand((D, Dh)), 'b_fc1': rand((Dh,)),
            'w_fc2': rand((Dh, D)), 'b_fc2': rand((D,)),
            'w_ada': rand((D, 6 * D)), 'b_ada': rand((6 * D,)),
        })
    params['final'] = {
        'w_ada': rand((D, 2 * D)),         'b_ada': rand((2 * D,)),
        'w_lin': rand((D, OUT_PATCH_DIM)), 'b_lin': rand((OUT_PATCH_DIM,)),
    }
    return params


def pack_params(params):
    """Repack weights for the fused kernel: per-head / per-adaLN-chunk slabs,
    bf16 MXU weights (biases stay f32 and are added post-accumulation)."""
    D, Hh, hd, Dh = HIDDEN_SIZE, NUM_HEADS, HEAD_DIM, MLP_HIDDEN
    bf = jnp.bfloat16

    def head_cols(w):   # (D, D) -> (H, D, hd): per-head output columns of Wq/Wk/Wv
        return jnp.transpose(w.reshape(D, Hh, hd), (1, 0, 2))

    def stack(fn, name):
        return jnp.stack([fn(b[name]) for b in params['blocks']], axis=0)

    return {
        'proj_w': params['proj_w'].astype(bf), 'proj_b': params['proj_b'].reshape(1, -1),
        't_w1': params['t_w1'].astype(bf),     't_b1': params['t_b1'].reshape(1, -1),
        't_w2': params['t_w2'].astype(bf),     't_b2': params['t_b2'].reshape(1, -1),
        # adaLN: (DEPTH, 6, D, D) weights / (DEPTH, 6, 1, D) biases, chunk order
        # = (shift_msa, scale_msa, gate_msa, shift_mlp, scale_mlp, gate_mlp)
        'wada': stack(lambda w: jnp.transpose(w.reshape(D, 6, D), (1, 0, 2)), 'w_ada').astype(bf),
        'bada': stack(lambda b: b.reshape(6, 1, D), 'b_ada'),
        # attention: per-head slabs
        'wq': stack(head_cols, 'w_q').astype(bf), 'bq': stack(lambda b: b.reshape(Hh, 1, hd), 'b_q'),
        'wk': stack(head_cols, 'w_k').astype(bf), 'bk': stack(lambda b: b.reshape(Hh, 1, hd), 'b_k'),
        'wv': stack(head_cols, 'w_v').astype(bf), 'bv': stack(lambda b: b.reshape(Hh, 1, hd), 'b_v'),
        'wproj': stack(lambda w: w.reshape(Hh, hd, D), 'w_proj').astype(bf),
        'bproj': stack(lambda b: b.reshape(1, D), 'b_proj'),
        # MLP
        'wfc1': stack(lambda w: w, 'w_fc1').astype(bf),
        'bfc1': stack(lambda b: b.reshape(1, Dh), 'b_fc1'),
        'wfc2': stack(lambda w: w, 'w_fc2').astype(bf),
        'bfc2': stack(lambda b: b.reshape(1, D), 'b_fc2'),
        # final layer (chunk order = shift, scale)
        'f_wada': jnp.transpose(params['final']['w_ada'].reshape(D, 2, D), (1, 0, 2)).astype(bf),
        'f_bada': params['final']['b_ada'].reshape(2, 1, D),
        'f_wlin': params['final']['w_lin'].astype(bf),
        'f_blin': params['final']['b_lin'].reshape(1, -1),
    }


# -------------------- main ----------------------------------------------------
if __name__ == "__main__":
    key = jax.random.PRNGKey(0)
    kx, kt, kp = jax.random.split(key, 3)

    N, MH, MW = 2, 2, 2
    x = jax.random.normal(
        kx, (N, MH, MW, IN_CHANNELS, BASE_SIZE, BASE_SIZE), dtype=jnp.float32)
    t = jax.random.uniform(kt, (N,), minval=0.0, maxval=1000.0, dtype=jnp.float32)
    params = init_params(kp)
    pk = pack_params(params)

    out = diti_forward(x, t, pk)
    out = jax.block_until_ready(out)

    H_out = STRIDE * (MH - 1) + BASE_SIZE
    W_out = STRIDE * (MW - 1) + BASE_SIZE
    assert out.shape == (N, OUT_CHANNELS, H_out, W_out), out.shape
    assert bool(jnp.all(jnp.isfinite(out)))
    print("KERNEL_OK")
</pallas_src>

<mosaic_0001>
module attributes {stable_mosaic.version = 11 : i64} {
  func.func @_diti_fused_kernel(%arg0: memref<32x64xf32, #tpu.memory_space<vmem>>, %arg1: memref<32x32xf32, #tpu.memory_space<vmem>>, %arg2: memref<2x256xf32, #tpu.memory_space<vmem>>, %arg3: memref<32x32xf32, #tpu.memory_space<vmem>>, %arg4: memref<64x32xbf16, #tpu.memory_space<vmem>>, %arg5: memref<1x32xf32, #tpu.memory_space<vmem>>, %arg6: memref<256x32xbf16, #tpu.memory_space<vmem>>, %arg7: memref<1x32xf32, #tpu.memory_space<vmem>>, %arg8: memref<32x32xbf16, #tpu.memory_space<vmem>>, %arg9: memref<1x32xf32, #tpu.memory_space<vmem>>, %arg10: memref<2x6x32x32xbf16, #tpu.memory_space<vmem>>, %arg11: memref<2x6x1x32xf32, #tpu.memory_space<vmem>>, %arg12: memref<2x4x32x8xbf16, #tpu.memory_space<vmem>>, %arg13: memref<2x4x1x8xf32, #tpu.memory_space<vmem>>, %arg14: memref<2x4x32x8xbf16, #tpu.memory_space<vmem>>, %arg15: memref<2x4x1x8xf32, #tpu.memory_space<vmem>>, %arg16: memref<2x4x32x8xbf16, #tpu.memory_space<vmem>>, %arg17: memref<2x4x1x8xf32, #tpu.memory_space<vmem>>, %arg18: memref<2x4x8x32xbf16, #tpu.memory_space<vmem>>, %arg19: memref<2x1x32xf32, #tpu.memory_space<vmem>>, %arg20: memref<2x32x128xbf16, #tpu.memory_space<vmem>>, %arg21: memref<2x1x128xf32, #tpu.memory_space<vmem>>, %arg22: memref<2x128x32xbf16, #tpu.memory_space<vmem>>, %arg23: memref<2x1x32xf32, #tpu.memory_space<vmem>>, %arg24: memref<2x32x32xbf16, #tpu.memory_space<vmem>>, %arg25: memref<2x1x32xf32, #tpu.memory_space<vmem>>, %arg26: memref<32x64xbf16, #tpu.memory_space<vmem>>, %arg27: memref<1x64xf32, #tpu.memory_space<vmem>>, %arg28: memref<32x64xf32, #tpu.memory_space<vmem>>) attributes {dimension_semantics = [], scalar_prefetch = 0 : i64, scratch_operands = 0 : i64, tpu.core_type = #tpu.core_type<tc>} {
    %c0 = arith.constant 0 : index
    %c0_0 = arith.constant 0 : index
    %0 = vector.load %arg0[%c0, %c0_0] : memref<32x64xf32, #tpu.memory_space<vmem>>, vector<32x64xf32>
    %c0_1 = arith.constant 0 : index
    %c0_2 = arith.constant 0 : index
    %1 = vector.load %arg4[%c0_1, %c0_2] : memref<64x32xbf16, #tpu.memory_space<vmem>>, vector<64x32xbf16>
    %c0_3 = arith.constant 0 : index
    %c0_4 = arith.constant 0 : index
    %2 = vector.load %arg5[%c0_3, %c0_4] : memref<1x32xf32, #tpu.memory_space<vmem>>, vector<1x32xf32>
    %3 = arith.truncf %0 : vector<32x64xf32> to vector<32x64xbf16>
    %cst = arith.constant dense<0.000000e+00> : vector<32x32xf32>
    %4 = tpu.matmul %3, %1, %cst {dimension_numbers = #tpu.dot_dimension_numbers<[1], [0], [0], [1], [0, 0, 1, 1], [], []>} : vector<32x64xbf16>, vector<64x32xbf16>, vector<32x32xf32> -> vector<32x32xf32>
    %5 = vector.broadcast %2 : vector<1x32xf32> to vector<32x32xf32>
    %6 = arith.addf %4, %5 : vector<32x32xf32>
    %c0_5 = arith.constant 0 : index
    %c0_6 = arith.constant 0 : index
    %7 = vector.load %arg1[%c0_5, %c0_6] : memref<32x32xf32, #tpu.memory_space<vmem>>, vector<32x32xf32>
    %8 = arith.addf %6, %7 : vector<32x32xf32>
    %c0_7 = arith.constant 0 : index
    %c0_8 = arith.constant 0 : index
    %9 = vector.load %arg2[%c0_7, %c0_8] : memref<2x256xf32, #tpu.memory_space<vmem>>, vector<2x256xf32>
    %c0_9 = arith.constant 0 : index
    %c0_10 = arith.constant 0 : index
    %10 = vector.load %arg6[%c0_9, %c0_10] : memref<256x32xbf16, #tpu.memory_space<vmem>>, vector<256x32xbf16>
    %c0_11 = arith.constant 0 : index
    %c0_12 = arith.constant 0 : index
    %11 = vector.load %arg7[%c0_11, %c0_12] : memref<1x32xf32, #tpu.memory_space<vmem>>, vector<1x32xf32>
    %12 = arith.truncf %9 : vector<2x256xf32> to vector<2x256xbf16>
    %cst_13 = arith.constant dense<0.000000e+00> : vector<2x32xf32>
    %13 = tpu.matmul %12, %10, %cst_13 {dimension_numbers = #tpu.dot_dimension_numbers<[1], [0], [0], [1], [0, 0, 1, 1], [], []>} : vector<2x256xbf16>, vector<256x32xbf16>, vector<2x32xf32> -> vector<2x32xf32>
    %14 = vector.broadcast %11 : vector<1x32xf32> to vector<2x32xf32>
    %15 = arith.addf %13, %14 : vector<2x32xf32>
    %16 = arith.negf %15 : vector<2x32xf32>
    %17 = math.exp %16 : vector<2x32xf32>
    %cst_14 = arith.constant 1.000000e+00 : f32
    %18 = vector.broadcast %cst_14 : f32 to vector<2x32xf32>
    %19 = arith.addf %18, %17 : vector<2x32xf32>
    %20 = arith.divf %18, %19 : vector<2x32xf32>
    %21 = arith.mulf %15, %20 : vector<2x32xf32>
    %c0_15 = arith.constant 0 : index
    %c0_16 = arith.constant 0 : index
    %22 = vector.load %arg8[%c0_15, %c0_16] : memref<32x32xbf16, #tpu.memory_space<vmem>>, vector<32x32xbf16>
    %c0_17 = arith.constant 0 : index
    %c0_18 = arith.constant 0 : index
    %23 = vector.load %arg9[%c0_17, %c0_18] : memref<1x32xf32, #tpu.memory_space<vmem>>, vector<1x32xf32>
    %24 = arith.truncf %21 : vector<2x32xf32> to vector<2x32xbf16>
    %cst_19 = arith.constant dense<0.000000e+00> : vector<2x32xf32>
    %25 = tpu.matmul %24, %22, %cst_19 {dimension_numbers = #tpu.dot_dimension_numbers<[1], [0], [0], [1], [0, 0, 1, 1], [], []>} : vector<2x32xbf16>, vector<32x32xbf16>, vector<2x32xf32> -> vector<2x32xf32>
    %26 = vector.broadcast %23 : vector<1x32xf32> to vector<2x32xf32>
    %27 = arith.addf %25, %26 : vector<2x32xf32>
    %28 = arith.negf %27 : vector<2x32xf32>
    %29 = math.exp %28 : vector<2x32xf32>
    %cst_20 = arith.constant 1.000000e+00 : f32
    %30 = vector.broadcast %cst_20 : f32 to vector<2x32xf32>
    %31 = arith.addf %30, %29 : vector<2x32xf32>
    %32 = arith.divf %30, %31 : vector<2x32xf32>
    %33 = arith.mulf %27, %32 : vector<2x32xf32>
    %34 = vector.extract_strided_slice %33 {offsets = [0, 0], sizes = [1, 32], strides = [1, 1]} : vector<2x32xf32> to vector<1x32xf32>
    %35 = vector.shape_cast %34 : vector<1x32xf32> to vector<1x32xf32>
    %36 = vector.broadcast %35 : vector<1x32xf32> to vector<16x32xf32>
    %37 = vector.extract_strided_slice %33 {offsets = [1, 0], sizes = [1, 32], strides = [1, 1]} : vector<2x32xf32> to vector<1x32xf32>
    %38 = vector.shape_cast %37 : vector<1x32xf32> to vector<1x32xf32>
    %39 = vector.broadcast %38 : vector<1x32xf32> to vector<16x32xf32>
    %40 = tpu.concatenate %36, %39 in 0 : vector<16x32xf32>, vector<16x32xf32> -> vector<32x32xf32>
    %41 = arith.truncf %40 : vector<32x32xf32> to vector<32x32xbf16>
    %c0_21 = arith.constant 0 : index
    %c0_22 = arith.constant 0 : index
    %42 = vector.load %arg3[%c0_21, %c0_22] : memref<32x32xf32, #tpu.memory_space<vmem>>, vector<32x32xf32>
    %c0_23 = arith.constant 0 : index
    %c0_24 = arith.constant 0 : index
    %c0_25 = arith.constant 0 : index
    %c0_26 = arith.constant 0 : index
    %43 = vector.load %arg10[%c0_23, %c0_24, %c0_25, %c0_26] : memref<2x6x32x32xbf16, #tpu.memory_space<vmem>>, vector<1x1x32x32xbf16>
    %44 = vector.shape_cast %43 : vector<1x1x32x32xbf16> to vector<32x32xbf16>
    %c0_27 = arith.constant 0 : index
    %c0_28 = arith.constant 0 : index
    %c0_29 = arith.constant 0 : index
    %c0_30 = arith.constant 0 : index
    %45 = vector.load %arg11[%c0_27, %c0_28, %c0_29, %c0_30] : memref<2x6x1x32xf32, #tpu.memory_space<vmem>>, vector<1x1x1x32xf32>
    %46 = vector.shape_cast %45 : vector<1x1x1x32xf32> to vector<1x32xf32>
    %cst_31 = arith.constant dense<0.000000e+00> : vector<32x32xf32>
    %47 = tpu.matmul %41, %44, %cst_31 {dimension_numbers = #tpu.dot_dimension_numbers<[1], [0], [0], [1], [0, 0, 1, 1], [], []>} : vector<32x32xbf16>, vector<32x32xbf16>, vector<32x32xf32> -> vector<32x32xf32>
    %48 = vector.broadcast %46 : vector<1x32xf32> to vector<32x32xf32>
    %49 = arith.addf %47, %48 : vector<32x32xf32>
    %c0_32 = arith.constant 0 : index
    %c1 = arith.constant 1 : index
    %c0_33 = arith.constant 0 : index
    %c0_34 = arith.constant 0 : index
    %50 = vector.load %arg10[%c0_32, %c1, %c0_33, %c0_34] : memref<2x6x32x32xbf16, #tpu.memory_space<vmem>>, vector<1x1x32x32xbf16>
    %51 = vector.shape_cast %50 : vector<1x1x32x32xbf16> to vector<32x32xbf16>
    %c0_35 = arith.constant 0 : index
    %c1_36 = arith.constant 1 : index
    %c0_37 = arith.constant 0 : index
    %c0_38 = arith.constant 0 : index
    %52 = vector.load %arg11[%c0_35, %c1_36, %c0_37, %c0_38] : memref<2x6x1x32xf32, #tpu.memory_space<vmem>>, vector<1x1x1x32xf32>
    %53 = vector.shape_cast %52 : vector<1x1x1x32xf32> to vector<1x32xf32>
    %cst_39 = arith.constant dense<0.000000e+00> : vector<32x32xf32>
    %54 = tpu.matmul %41, %51, %cst_39 {dimension_numbers = #tpu.dot_dimension_numbers<[1], [0], [0], [1], [0, 0, 1, 1], [], []>} : vector<32x32xbf16>, vector<32x32xbf16>, vector<32x32xf32> -> vector<32x32xf32>
    %55 = vector.broadcast %53 : vector<1x32xf32> to vector<32x32xf32>
    %56 = arith.addf %54, %55 : vector<32x32xf32>
    %c0_40 = arith.constant 0 : index
    %c2 = arith.constant 2 : index
    %c0_41 = arith.constant 0 : index
    %c0_42 = arith.constant 0 : index
    %57 = vector.load %arg10[%c0_40, %c2, %c0_41, %c0_42] : memref<2x6x32x32xbf16, #tpu.memory_space<vmem>>, vector<1x1x32x32xbf16>
    %58 = vector.shape_cast %57 : vector<1x1x32x32xbf16> to vector<32x32xbf16>
    %c0_43 = arith.constant 0 : index
    %c2_44 = arith.constant 2 : index
    %c0_45 = arith.constant 0 : index
    %c0_46 = arith.constant 0 : index
    %59 = vector.load %arg11[%c0_43, %c2_44, %c0_45, %c0_46] : memref<2x6x1x32xf32, #tpu.memory_space<vmem>>, vector<1x1x1x32xf32>
    %60 = vector.shape_cast %59 : vector<1x1x1x32xf32> to vector<1x32xf32>
    %cst_47 = arith.constant dense<0.000000e+00> : vector<32x32xf32>
    %61 = tpu.matmul %41, %58, %cst_47 {dimension_numbers = #tpu.dot_dimension_numbers<[1], [0], [0], [1], [0, 0, 1, 1], [], []>} : vector<32x32xbf16>, vector<32x32xbf16>, vector<32x32xf32> -> vector<32x32xf32>
    %62 = vector.broadcast %60 : vector<1x32xf32> to vector<32x32xf32>
    %63 = arith.addf %61, %62 : vector<32x32xf32>
    %c0_48 = arith.constant 0 : index
    %c3 = arith.constant 3 : index
    %c0_49 = arith.constant 0 : index
    %c0_50 = arith.constant 0 : index
    %64 = vector.load %arg10[%c0_48, %c3, %c0_49, %c0_50] : memref<2x6x32x32xbf16, #tpu.memory_space<vmem>>, vector<1x1x32x32xbf16>
    %65 = vector.shape_cast %64 : vector<1x1x32x32xbf16> to vector<32x32xbf16>
    %c0_51 = arith.constant 0 : index
    %c3_52 = arith.constant 3 : index
    %c0_53 = arith.constant 0 : index
    %c0_54 = arith.constant 0 : index
    %66 = vector.load %arg11[%c0_51, %c3_52, %c0_53, %c0_54] : memref<2x6x1x32xf32, #tpu.memory_space<vmem>>, vector<1x1x1x32xf32>
    %67 = vector.shape_cast %66 : vector<1x1x1x32xf32> to vector<1x32xf32>
    %cst_55 = arith.constant dense<0.000000e+00> : vector<32x32xf32>
    %68 = tpu.matmul %41, %65, %cst_55 {dimension_numbers = #tpu.dot_dimension_numbers<[1], [0], [0], [1], [0, 0, 1, 1], [], []>} : vector<32x32xbf16>, vector<32x32xbf16>, vector<32x32xf32> -> vector<32x32xf32>
    %69 = vector.broadcast %67 : vector<1x32xf32> to vector<32x32xf32>
    %70 = arith.addf %68, %69 : vector<32x32xf32>
    %c0_56 = arith.constant 0 : index
    %c4 = arith.constant 4 : index
    %c0_57 = arith.constant 0 : index
    %c0_58 = arith.constant 0 : index
    %71 = vector.load %arg10[%c0_56, %c4, %c0_57, %c0_58] : memref<2x6x32x32xbf16, #tpu.memory_space<vmem>>, vector<1x1x32x32xbf16>
    %72 = vector.shape_cast %71 : vector<1x1x32x32xbf16> to vector<32x32xbf16>
    %c0_59 = arith.constant 0 : index
    %c4_60 = arith.constant 4 : index
    %c0_61 = arith.constant 0 : index
    %c0_62 = arith.constant 0 : index
    %73 = vector.load %arg11[%c0_59, %c4_60, %c0_61, %c0_62] : memref<2x6x1x32xf32, #tpu.memory_space<vmem>>, vector<1x1x1x32xf32>
    %74 = vector.shape_cast %73 : vector<1x1x1x32xf32> to vector<1x32xf32>
    %cst_63 = arith.constant dense<0.000000e+00> : vector<32x32xf32>
    %75 = tpu.matmul %41, %72, %cst_63 {dimension_numbers = #tpu.dot_dimension_numbers<[1], [0], [0], [1], [0, 0, 1, 1], [], []>} : vector<32x32xbf16>, vector<32x32xbf16>, vector<32x32xf32> -> vector<32x32xf32>
    %76 = vector.broadcast %74 : vector<1x32xf32> to vector<32x32xf32>
    %77 = arith.addf %75, %76 : vector<32x32xf32>
    %c0_64 = arith.constant 0 : index
    %c5 = arith.constant 5 : index
    %c0_65 = arith.constant 0 : index
    %c0_66 = arith.constant 0 : index
    %78 = vector.load %arg10[%c0_64, %c5, %c0_65, %c0_66] : memref<2x6x32x32xbf16, #tpu.memory_space<vmem>>, vector<1x1x32x32xbf16>
    %79 = vector.shape_cast %78 : vector<1x1x32x32xbf16> to vector<32x32xbf16>
    %c0_67 = arith.constant 0 : index
    %c5_68 = arith.constant 5 : index
    %c0_69 = arith.constant 0 : index
    %c0_70 = arith.constant 0 : index
    %80 = vector.load %arg11[%c0_67, %c5_68, %c0_69, %c0_70] : memref<2x6x1x32xf32, #tpu.memory_space<vmem>>, vector<1x1x1x32xf32>
    %81 = vector.shape_cast %80 : vector<1x1x1x32xf32> to vector<1x32xf32>
    %cst_71 = arith.constant dense<0.000000e+00> : vector<32x32xf32>
    %82 = tpu.matmul %41, %79, %cst_71 {dimension_numbers = #tpu.dot_dimension_numbers<[1], [0], [0], [1], [0, 0, 1, 1], [], []>} : vector<32x32xbf16>, vector<32x32xbf16>, vector<32x32xf32> -> vector<32x32xf32>
    %83 = vector.broadcast %81 : vector<1x32xf32> to vector<32x32xf32>
    %84 = arith.addf %82, %83 : vector<32x32xf32>
    %cst_72 = arith.constant dense<0.000000e+00> : vector<32xf32>
    %85 = vector.multi_reduction <add>, %8, %cst_72 [1] : vector<32x32xf32> to vector<32xf32>
    %86 = vector.shape_cast %85 : vector<32xf32> to vector<32x1xf32>
    %cst_73 = arith.constant 3.200000e+01 : f32
    %87 = vector.broadcast %cst_73 : f32 to vector<32x1xf32>
    %88 = arith.divf %86, %87 : vector<32x1xf32>
    %89 = vector.broadcast %88 : vector<32x1xf32> to vector<32x32xf32>
    %90 = arith.subf %8, %89 : vector<32x32xf32>
    %91 = arith.mulf %90, %90 : vector<32x32xf32>
    %cst_74 = arith.constant dense<0.000000e+00> : vector<32xf32>
    %92 = vector.multi_reduction <add>, %91, %cst_74 [1] : vector<32x32xf32> to vector<32xf32>
    %93 = vector.shape_cast %92 : vector<32xf32> to vector<32x1xf32>
    %cst_75 = arith.constant 3.200000e+01 : f32
    %94 = vector.broadcast %cst_75 : f32 to vector<32x1xf32>
    %95 = arith.divf %93, %94 : vector<32x1xf32>
    %cst_76 = arith.constant 9.99999997E-7 : f32
    %96 = vector.broadcast %cst_76 : f32 to vector<32x1xf32>
    %97 = arith.addf %95, %96 : vector<32x1xf32>
    %98 = math.rsqrt %97 : vector<32x1xf32>
    %99 = vector.broadcast %98 : vector<32x1xf32> to vector<32x32xf32>
    %100 = arith.mulf %90, %99 : vector<32x32xf32>
    %cst_77 = arith.constant 1.000000e+00 : f32
    %101 = vector.broadcast %cst_77 : f32 to vector<32x32xf32>
    %102 = arith.addf %101, %56 : vector<32x32xf32>
    %103 = arith.mulf %100, %102 : vector<32x32xf32>
    %104 = arith.addf %103, %49 : vector<32x32xf32>
    %105 = arith.truncf %104 : vector<32x32xf32> to vector<32x32xbf16>
    %c0_78 = arith.constant 0 : index
    %c0_79 = arith.constant 0 : index
    %c0_80 = arith.constant 0 : index
    %c0_81 = arith.constant 0 : index
    %106 = vector.load %arg12[%c0_78, %c0_79, %c0_80, %c0_81] : memref<2x4x32x8xbf16, #tpu.memory_space<vmem>>, vector<1x1x32x8xbf16>
    %107 = vector.shape_cast %106 : vector<1x1x32x8xbf16> to vector<32x8xbf16>
    %c0_82 = arith.constant 0 : index
    %c0_83 = arith.constant 0 : index
    %c0_84 = arith.constant 0 : index
    %c0_85 = arith.constant 0 : index
    %108 = vector.load %arg13[%c0_82, %c0_83, %c0_84, %c0_85] : memref<2x4x1x8xf32, #tpu.memory_space<vmem>>, vector<1x1x1x8xf32>
    %109 = vector.shape_cast %108 : vector<1x1x1x8xf32> to vector<1x8xf32>
    %cst_86 = arith.constant dense<0.000000e+00> : vector<32x8xf32>
    %110 = tpu.matmul %105, %107, %cst_86 {dimension_numbers = #tpu.dot_dimension_numbers<[1], [0], [0], [1], [0, 0, 1, 1], [], []>} : vector<32x32xbf16>, vector<32x8xbf16>, vector<32x8xf32> -> vector<32x8xf32>
    %111 = vector.broadcast %109 : vector<1x8xf32> to vector<32x8xf32>
    %112 = arith.addf %110, %111 : vector<32x8xf32>
    %c0_87 = arith.constant 0 : index
    %c0_88 = arith.constant 0 : index
    %c0_89 = arith.constant 0 : index
    %c0_90 = arith.constant 0 : index
    %113 = vector.load %arg14[%c0_87, %c0_88, %c0_89, %c0_90] : memref<2x4x32x8xbf16, #tpu.memory_space<vmem>>, vector<1x1x32x8xbf16>
    %114 = vector.shape_cast %113 : vector<1x1x32x8xbf16> to vector<32x8xbf16>
    %c0_91 = arith.constant 0 : index
    %c0_92 = arith.constant 0 : index
    %c0_93 = arith.constant 0 : index
    %c0_94 = arith.constant 0 : index
    %115 = vector.load %arg15[%c0_91, %c0_92, %c0_93, %c0_94] : memref<2x4x1x8xf32, #tpu.memory_space<vmem>>, vector<1x1x1x8xf32>
    %116 = vector.shape_cast %115 : vector<1x1x1x8xf32> to vector<1x8xf32>
    %cst_95 = arith.constant dense<0.000000e+00> : vector<32x8xf32>
    %117 = tpu.matmul %105, %114, %cst_95 {dimension_numbers = #tpu.dot_dimension_numbers<[1], [0], [0], [1], [0, 0, 1, 1], [], []>} : vector<32x32xbf16>, vector<32x8xbf16>, vector<32x8xf32> -> vector<32x8xf32>
    %118 = vector.broadcast %116 : vector<1x8xf32> to vector<32x8xf32>
    %119 = arith.addf %117, %118 : vector<32x8xf32>
    %c0_96 = arith.constant 0 : index
    %c0_97 = arith.constant 0 : index
    %c0_98 = arith.constant 0 : index
    %c0_99 = arith.constant 0 : index
    %120 = vector.load %arg16[%c0_96, %c0_97, %c0_98, %c0_99] : memref<2x4x32x8xbf16, #tpu.memory_space<vmem>>, vector<1x1x32x8xbf16>
    %121 = vector.shape_cast %120 : vector<1x1x32x8xbf16> to vector<32x8xbf16>
    %c0_100 = arith.constant 0 : index
    %c0_101 = arith.constant 0 : index
    %c0_102 = arith.constant 0 : index
    %c0_103 = arith.constant 0 : index
    %122 = vector.load %arg17[%c0_100, %c0_101, %c0_102, %c0_103] : memref<2x4x1x8xf32, #tpu.memory_space<vmem>>, vector<1x1x1x8xf32>
    %123 = vector.shape_cast %122 : vector<1x1x1x8xf32> to vector<1x8xf32>
    %cst_104 = arith.constant dense<0.000000e+00> : vector<32x8xf32>
    %124 = tpu.matmul %105, %121, %cst_104 {dimension_numbers = #tpu.dot_dimension_numbers<[1], [0], [0], [1], [0, 0, 1, 1], [], []>} : vector<32x32xbf16>, vector<32x8xbf16>, vector<32x8xf32> -> vector<32x8xf32>
    %125 = vector.broadcast %123 : vector<1x8xf32> to vector<32x8xf32>
    %126 = arith.addf %124, %125 : vector<32x8xf32>
    %127 = arith.truncf %112 : vector<32x8xf32> to vector<32x8xbf16>
    %128 = arith.truncf %119 : vector<32x8xf32> to vector<32x8xbf16>
    %cst_105 = arith.constant dense<0.000000e+00> : vector<32x32xf32>
    %129 = tpu.matmul %127, %128, %cst_105 {dimension_numbers = #tpu.dot_dimension_numbers<[1], [1], [0], [0], [0, 0, 1, 0], [], []>} : vector<32x8xbf16>, vector<32x8xbf16>, vector<32x32xf32> -> vector<32x32xf32>
    %cst_106 = arith.constant 0.353553385 : f32
    %130 = vector.broadcast %cst_106 : f32 to vector<32x32xf32>
    %131 = arith.mulf %129, %130 : vector<32x32xf32>
    %132 = arith.addf %131, %42 : vector<32x32xf32>
    %cst_107 = arith.constant dense<0xFF800000> : vector<32xf32>
    %133 = vector.multi_reduction <maximumf>, %132, %cst_107 [1] : vector<32x32xf32> to vector<32xf32>
    %134 = vector.shape_cast %133 : vector<32xf32> to vector<32x1xf32>
    %135 = vector.broadcast %134 : vector<32x1xf32> to vector<32x32xf32>
    %136 = arith.subf %132, %135 : vector<32x32xf32>
    %137 = math.exp %136 : vector<32x32xf32>
    %cst_108 = arith.constant dense<0.000000e+00> : vector<32xf32>
    %138 = vector.multi_reduction <add>, %137, %cst_108 [1] : vector<32x32xf32> to vector<32xf32>
    %139 = vector.shape_cast %138 : vector<32xf32> to vector<32x1xf32>
    %140 = tpu.reciprocal %139 {approx = true} : vector<32x1xf32> -> vector<32x1xf32>
    %141 = vector.broadcast %140 : vector<32x1xf32> to vector<32x32xf32>
    %142 = arith.mulf %137, %141 : vector<32x32xf32>
    %143 = arith.truncf %142 : vector<32x32xf32> to vector<32x32xbf16>
    %144 = arith.truncf %126 : vector<32x8xf32> to vector<32x8xbf16>
    %cst_109 = arith.constant dense<0.000000e+00> : vector<32x8xf32>
    %145 = tpu.matmul %143, %144, %cst_109 {dimension_numbers = #tpu.dot_dimension_numbers<[1], [0], [0], [1], [0, 0, 1, 1], [], []>} : vector<32x32xbf16>, vector<32x8xbf16>, vector<32x8xf32> -> vector<32x8xf32>
    %c0_110 = arith.constant 0 : index
    %c0_111 = arith.constant 0 : index
    %c0_112 = arith.constant 0 : index
    %c0_113 = arith.constant 0 : index
    %146 = vector.load %arg18[%c0_110, %c0_111, %c0_112, %c0_113] : memref<2x4x8x32xbf16, #tpu.memory_space<vmem>>, vector<1x1x8x32xbf16>
    %147 = vector.shape_cast %146 : vector<1x1x8x32xbf16> to vector<8x32xbf16>
    %148 = arith.truncf %145 : vector<32x8xf32> to vector<32x8xbf16>
    %cst_114 = arith.constant dense<0.000000e+00> : vector<32x32xf32>
    %149 = tpu.matmul %148, %147, %cst_114 {dimension_numbers = #tpu.dot_dimension_numbers<[1], [0], [0], [1], [0, 0, 1, 1], [], []>} : vector<32x8xbf16>, vector<8x32xbf16>, vector<32x32xf32> -> vector<32x32xf32>
    %c0_115 = arith.constant 0 : index
    %c1_116 = arith.constant 1 : index
    %c0_117 = arith.constant 0 : index
    %c0_118 = arith.constant 0 : index
    %150 = vector.load %arg12[%c0_115, %c1_116, %c0_117, %c0_118] : memref<2x4x32x8xbf16, #tpu.memory_space<vmem>>, vector<1x1x32x8xbf16>
    %151 = vector.shape_cast %150 : vector<1x1x32x8xbf16> to vector<32x8xbf16>
    %c0_119 = arith.constant 0 : index
    %c1_120 = arith.constant 1 : index
    %c0_121 = arith.constant 0 : index
    %c0_122 = arith.constant 0 : index
    %152 = vector.load %arg13[%c0_119, %c1_120, %c0_121, %c0_122] : memref<2x4x1x8xf32, #tpu.memory_space<vmem>>, vector<1x1x1x8xf32>
    %153 = vector.shape_cast %152 : vector<1x1x1x8xf32> to vector<1x8xf32>
    %cst_123 = arith.constant dense<0.000000e+00> : vector<32x8xf32>
    %154 = tpu.matmul %105, %151, %cst_123 {dimension_numbers = #tpu.dot_dimension_numbers<[1], [0], [0], [1], [0, 0, 1, 1], [], []>} : vector<32x32xbf16>, vector<32x8xbf16>, vector<32x8xf32> -> vector<32x8xf32>
    %155 = vector.broadcast %153 : vector<1x8xf32> to vector<32x8xf32>
    %156 = arith.addf %154, %155 : vector<32x8xf32>
    %c0_124 = arith.constant 0 : index
    %c1_125 = arith.constant 1 : index
    %c0_126 = arith.constant 0 : index
    %c0_127 = arith.constant 0 : index
    %157 = vector.load %arg14[%c0_124, %c1_125, %c0_126, %c0_127] : memref<2x4x32x8xbf16, #tpu.memory_space<vmem>>, vector<1x1x32x8xbf16>
    %158 = vector.shape_cast %157 : vector<1x1x32x8xbf16> to vector<32x8xbf16>
    %c0_128 = arith.constant 0 : index
    %c1_129 = arith.constant 1 : index
    %c0_130 = arith.constant 0 : index
    %c0_131 = arith.constant 0 : index
    %159 = vector.load %arg15[%c0_128, %c1_129, %c0_130, %c0_131] : memref<2x4x1x8xf32, #tpu.memory_space<vmem>>, vector<1x1x1x8xf32>
    %160 = vector.shape_cast %159 : vector<1x1x1x8xf32> to vector<1x8xf32>
    %cst_132 = arith.constant dense<0.000000e+00> : vector<32x8xf32>
    %161 = tpu.matmul %105, %158, %cst_132 {dimension_numbers = #tpu.dot_dimension_numbers<[1], [0], [0], [1], [0, 0, 1, 1], [], []>} : vector<32x32xbf16>, vector<32x8xbf16>, vector<32x8xf32> -> vector<32x8xf32>
    %162 = vector.broadcast %160 : vector<1x8xf32> to vector<32x8xf32>
    %163 = arith.addf %161, %162 : vector<32x8xf32>
    %c0_133 = arith.constant 0 : index
    %c1_134 = arith.constant 1 : index
    %c0_135 = arith.constant 0 : index
    %c0_136 = arith.constant 0 : index
    %164 = vector.load %arg16[%c0_133, %c1_134, %c0_135, %c0_136] : memref<2x4x32x8xbf16, #tpu.memory_space<vmem>>, vector<1x1x32x8xbf16>
    %165 = vector.shape_cast %164 : vector<1x1x32x8xbf16> to vector<32x8xbf16>
    %c0_137 = arith.constant 0 : index
    %c1_138 = arith.constant 1 : index
    %c0_139 = arith.constant 0 : index
    %c0_140 = arith.constant 0 : index
    %166 = vector.load %arg17[%c0_137, %c1_138, %c0_139, %c0_140] : memref<2x4x1x8xf32, #tpu.memory_space<vmem>>, vector<1x1x1x8xf32>
    %167 = vector.shape_cast %166 : vector<1x1x1x8xf32> to vector<1x8xf32>
    %cst_141 = arith.constant dense<0.000000e+00> : vector<32x8xf32>
    %168 = tpu.matmul %105, %165, %cst_141 {dimension_numbers = #tpu.dot_dimension_numbers<[1], [0], [0], [1], [0, 0, 1, 1], [], []>} : vector<32x32xbf16>, vector<32x8xbf16>, vector<32x8xf32> -> vector<32x8xf32>
    %169 = vector.broadcast %167 : vector<1x8xf32> to vector<32x8xf32>
    %170 = arith.addf %168, %169 : vector<32x8xf32>
    %171 = arith.truncf %156 : vector<32x8xf32> to vector<32x8xbf16>
    %172 = arith.truncf %163 : vector<32x8xf32> to vector<32x8xbf16>
    %cst_142 = arith.constant dense<0.000000e+00> : vector<32x32xf32>
    %173 = tpu.matmul %171, %172, %cst_142 {dimension_numbers = #tpu.dot_dimension_numbers<[1], [1], [0], [0], [0, 0, 1, 0], [], []>} : vector<32x8xbf16>, vector<32x8xbf16>, vector<32x32xf32> -> vector<32x32xf32>
    %cst_143 = arith.constant 0.353553385 : f32
    %174 = vector.broadcast %cst_143 : f32 to vector<32x32xf32>
    %175 = arith.mulf %173, %174 : vector<32x32xf32>
    %176 = arith.addf %175, %42 : vector<32x32xf32>
    %cst_144 = arith.constant dense<0xFF800000> : vector<32xf32>
    %177 = vector.multi_reduction <maximumf>, %176, %cst_144 [1] : vector<32x32xf32> to vector<32xf32>
    %178 = vector.shape_cast %177 : vector<32xf32> to vector<32x1xf32>
    %179 = vector.broadcast %178 : vector<32x1xf32> to vector<32x32xf32>
    %180 = arith.subf %176, %179 : vector<32x32xf32>
    %181 = math.exp %180 : vector<32x32xf32>
    %cst_145 = arith.constant dense<0.000000e+00> : vector<32xf32>
    %182 = vector.multi_reduction <add>, %181, %cst_145 [1] : vector<32x32xf32> to vector<32xf32>
    %183 = vector.shape_cast %182 : vector<32xf32> to vector<32x1xf32>
    %184 = tpu.reciprocal %183 {approx = true} : vector<32x1xf32> -> vector<32x1xf32>
    %185 = vector.broadcast %184 : vector<32x1xf32> to vector<32x32xf32>
    %186 = arith.mulf %181, %185 : vector<32x32xf32>
    %187 = arith.truncf %186 : vector<32x32xf32> to vector<32x32xbf16>
    %188 = arith.truncf %170 : vector<32x8xf32> to vector<32x8xbf16>
    %cst_146 = arith.constant dense<0.000000e+00> : vector<32x8xf32>
    %189 = tpu.matmul %187, %188, %cst_146 {dimension_numbers = #tpu.dot_dimension_numbers<[1], [0], [0], [1], [0, 0, 1, 1], [], []>} : vector<32x32xbf16>, vector<32x8xbf16>, vector<32x8xf32> -> vector<32x8xf32>
    %c0_147 = arith.constant 0 : index
    %c1_148 = arith.constant 1 : index
    %c0_149 = arith.constant 0 : index
    %c0_150 = arith.constant 0 : index
    %190 = vector.load %arg18[%c0_147, %c1_148, %c0_149, %c0_150] : memref<2x4x8x32xbf16, #tpu.memory_space<vmem>>, vector<1x1x8x32xbf16>
    %191 = vector.shape_cast %190 : vector<1x1x8x32xbf16> to vector<8x32xbf16>
    %192 = arith.truncf %189 : vector<32x8xf32> to vector<32x8xbf16>
    %cst_151 = arith.constant dense<0.000000e+00> : vector<32x32xf32>
    %193 = tpu.matmul %192, %191, %cst_151 {dimension_numbers = #tpu.dot_dimension_numbers<[1], [0], [0], [1], [0, 0, 1, 1], [], []>} : vector<32x8xbf16>, vector<8x32xbf16>, vector<32x32xf32> -> vector<32x32xf32>
    %194 = arith.addf %149, %193 : vector<32x32xf32>
    %c0_152 = arith.constant 0 : index
    %c2_153 = arith.constant 2 : index
    %c0_154 = arith.constant 0 : index
    %c0_155 = arith.constant 0 : index
    %195 = vector.load %arg12[%c0_152, %c2_153, %c0_154, %c0_155] : memref<2x4x32x8xbf16, #tpu.memory_space<vmem>>, vector<1x1x32x8xbf16>
    %196 = vector.shape_cast %195 : vector<1x1x32x8xbf16> to vector<32x8xbf16>
    %c0_156 = arith.constant 0 : index
    %c2_157 = arith.constant 2 : index
    %c0_158 = arith.constant 0 : index
    %c0_159 = arith.constant 0 : index
    %197 = vector.load %arg13[%c0_156, %c2_157, %c0_158, %c0_159] : memref<2x4x1x8xf32, #tpu.memory_space<vmem>>, vector<1x1x1x8xf32>
    %198 = vector.shape_cast %197 : vector<1x1x1x8xf32> to vector<1x8xf32>
    %cst_160 = arith.constant dense<0.000000e+00> : vector<32x8xf32>
    %199 = tpu.matmul %105, %196, %cst_160 {dimension_numbers = #tpu.dot_dimension_numbers<[1], [0], [0], [1], [0, 0, 1, 1], [], []>} : vector<32x32xbf16>, vector<32x8xbf16>, vector<32x8xf32> -> vector<32x8xf32>
    %200 = vector.broadcast %198 : vector<1x8xf32> to vector<32x8xf32>
    %201 = arith.addf %199, %200 : vector<32x8xf32>
    %c0_161 = arith.constant 0 : index
    %c2_162 = arith.constant 2 : index
    %c0_163 = arith.constant 0 : index
    %c0_164 = arith.constant 0 : index
    %202 = vector.load %arg14[%c0_161, %c2_162, %c0_163, %c0_164] : memref<2x4x32x8xbf16, #tpu.memory_space<vmem>>, vector<1x1x32x8xbf16>
    %203 = vector.shape_cast %202 : vector<1x1x32x8xbf16> to vector<32x8xbf16>
    %c0_165 = arith.constant 0 : index
    %c2_166 = arith.constant 2 : index
    %c0_167 = arith.constant 0 : index
    %c0_168 = arith.constant 0 : index
    %204 = vector.load %arg15[%c0_165, %c2_166, %c0_167, %c0_168] : memref<2x4x1x8xf32, #tpu.memory_space<vmem>>, vector<1x1x1x8xf32>
    %205 = vector.shape_cast %204 : vector<1x1x1x8xf32> to vector<1x8xf32>
    %cst_169 = arith.constant dense<0.000000e+00> : vector<32x8xf32>
    %206 = tpu.matmul %105, %203, %cst_169 {dimension_numbers = #tpu.dot_dimension_numbers<[1], [0], [0], [1], [0, 0, 1, 1], [], []>} : vector<32x32xbf16>, vector<32x8xbf16>, vector<32x8xf32> -> vector<32x8xf32>
    %207 = vector.broadcast %205 : vector<1x8xf32> to vector<32x8xf32>
    %208 = arith.addf %206, %207 : vector<32x8xf32>
    %c0_170 = arith.constant 0 : index
    %c2_171 = arith.constant 2 : index
    %c0_172 = arith.constant 0 : index
    %c0_173 = arith.constant 0 : index
    %209 = vector.load %arg16[%c0_170, %c2_171, %c0_172, %c0_173] : memref<2x4x32x8xbf16, #tpu.memory_space<vmem>>, vector<1x1x32x8xbf16>
    %210 = vector.shape_cast %209 : vector<1x1x32x8xbf16> to vector<32x8xbf16>
    %c0_174 = arith.constant 0 : index
    %c2_175 = arith.constant 2 : index
    %c0_176 = arith.constant 0 : index
    %c0_177 = arith.constant 0 : index
    %211 = vector.load %arg17[%c0_174, %c2_175, %c0_176, %c0_177] : memref<2x4x1x8xf32, #tpu.memory_space<vmem>>, vector<1x1x1x8xf32>
    %212 = vector.shape_cast %211 : vector<1x1x1x8xf32> to vector<1x8xf32>
    %cst_178 = arith.constant dense<0.000000e+00> : vector<32x8xf32>
    %213 = tpu.matmul %105, %210, %cst_178 {dimension_numbers = #tpu.dot_dimension_numbers<[1], [0], [0], [1], [0, 0, 1, 1], [], []>} : vector<32x32xbf16>, vector<32x8xbf16>, vector<32x8xf32> -> vector<32x8xf32>
    %214 = vector.broadcast %212 : vector<1x8xf32> to vector<32x8xf32>
    %215 = arith.addf %213, %214 : vector<32x8xf32>
    %216 = arith.truncf %201 : vector<32x8xf32> to vector<32x8xbf16>
    %217 = arith.truncf %208 : vector<32x8xf32> to vector<32x8xbf16>
    %cst_179 = arith.constant dense<0.000000e+00> : vector<32x32xf32>
    %218 = tpu.matmul %216, %217, %cst_179 {dimension_numbers = #tpu.dot_dimension_numbers<[1], [1], [0], [0], [0, 0, 1, 0], [], []>} : vector<32x8xbf16>, vector<32x8xbf16>, vector<32x32xf32> -> vector<32x32xf32>
    %cst_180 = arith.constant 0.353553385 : f32
    %219 = vector.broadcast %cst_180 : f32 to vector<32x32xf32>
    %220 = arith.mulf %218, %219 : vector<32x32xf32>
    %221 = arith.addf %220, %42 : vector<32x32xf32>
    %cst_181 = arith.constant dense<0xFF800000> : vector<32xf32>
    %222 = vector.multi_reduction <maximumf>, %221, %cst_181 [1] : vector<32x32xf32> to vector<32xf32>
    %223 = vector.shape_cast %222 : vector<32xf32> to vector<32x1xf32>
    %224 = vector.broadcast %223 : vector<32x1xf32> to vector<32x32xf32>
    %225 = arith.subf %221, %224 : vector<32x32xf32>
    %226 = math.exp %225 : vector<32x32xf32>
    %cst_182 = arith.constant dense<0.000000e+00> : vector<32xf32>
    %227 = vector.multi_reduction <add>, %226, %cst_182 [1] : vector<32x32xf32> to vector<32xf32>
    %228 = vector.shape_cast %227 : vector<32xf32> to vector<32x1xf32>
    %229 = tpu.reciprocal %228 {approx = true} : vector<32x1xf32> -> vector<32x1xf32>
    %230 = vector.broadcast %229 : vector<32x1xf32> to vector<32x32xf32>
    %231 = arith.mulf %226, %230 : vector<32x32xf32>
    %232 = arith.truncf %231 : vector<32x32xf32> to vector<32x32xbf16>
    %233 = arith.truncf %215 : vector<32x8xf32> to vector<32x8xbf16>
    %cst_183 = arith.constant dense<0.000000e+00> : vector<32x8xf32>
    %234 = tpu.matmul %232, %233, %cst_183 {dimension_numbers = #tpu.dot_dimension_numbers<[1], [0], [0], [1], [0, 0, 1, 1], [], []>} : vector<32x32xbf16>, vector<32x8xbf16>, vector<32x8xf32> -> vector<32x8xf32>
    %c0_184 = arith.constant 0 : index
    %c2_185 = arith.constant 2 : index
    %c0_186 = arith.constant 0 : index
    %c0_187 = arith.constant 0 : index
    %235 = vector.load %arg18[%c0_184, %c2_185, %c0_186, %c0_187] : memref<2x4x8x32xbf16, #tpu.memory_space<vmem>>, vector<1x1x8x32xbf16>
    %236 = vector.shape_cast %235 : vector<1x1x8x32xbf16> to vector<8x32xbf16>
    %237 = arith.truncf %234 : vector<32x8xf32> to vector<32x8xbf16>
    %cst_188 = arith.constant dense<0.000000e+00> : vector<32x32xf32>
    %238 = tpu.matmul %237, %236, %cst_188 {dimension_numbers = #tpu.dot_dimension_numbers<[1], [0], [0], [1], [0, 0, 1, 1], [], []>} : vector<32x8xbf16>, vector<8x32xbf16>, vector<32x32xf32> -> vector<32x32xf32>
    %239 = arith.addf %194, %238 : vector<32x32xf32>
    %c0_189 = arith.constant 0 : index
    %c3_190 = arith.constant 3 : index
    %c0_191 = arith.constant 0 : index
    %c0_192 = arith.constant 0 : index
    %240 = vector.load %arg12[%c0_189, %c3_190, %c0_191, %c0_192] : memref<2x4x32x8xbf16, #tpu.memory_space<vmem>>, vector<1x1x32x8xbf16>
    %241 = vector.shape_cast %240 : vector<1x1x32x8xbf16> to vector<32x8xbf16>
    %c0_193 = arith.constant 0 : index
    %c3_194 = arith.constant 3 : index
    %c0_195 = arith.constant 0 : index
    %c0_196 = arith.constant 0 : index
    %242 = vector.load %arg13[%c0_193, %c3_194, %c0_195, %c0_196] : memref<2x4x1x8xf32, #tpu.memory_space<vmem>>, vector<1x1x1x8xf32>
    %243 = vector.shape_cast %242 : vector<1x1x1x8xf32> to vector<1x8xf32>
    %cst_197 = arith.constant dense<0.000000e+00> : vector<32x8xf32>
    %244 = tpu.matmul %105, %241, %cst_197 {dimension_numbers = #tpu.dot_dimension_numbers<[1], [0], [0], [1], [0, 0, 1, 1], [], []>} : vector<32x32xbf16>, vector<32x8xbf16>, vector<32x8xf32> -> vector<32x8xf32>
    %245 = vector.broadcast %243 : vector<1x8xf32> to vector<32x8xf32>
    %246 = arith.addf %244, %245 : vector<32x8xf32>
    %c0_198 = arith.constant 0 : index
    %c3_199 = arith.constant 3 : index
    %c0_200 = arith.constant 0 : index
    %c0_201 = arith.constant 0 : index
    %247 = vector.load %arg14[%c0_198, %c3_199, %c0_200, %c0_201] : memref<2x4x32x8xbf16, #tpu.memory_space<vmem>>, vector<1x1x32x8xbf16>
    %248 = vector.shape_cast %247 : vector<1x1x32x8xbf16> to vector<32x8xbf16>
    %c0_202 = arith.constant 0 : index
    %c3_203 = arith.constant 3 : index
    %c0_204 = arith.constant 0 : index
    %c0_205 = arith.constant 0 : index
    %249 = vector.load %arg15[%c0_202, %c3_203, %c0_204, %c0_205] : memref<2x4x1x8xf32, #tpu.memory_space<vmem>>, vector<1x1x1x8xf32>
    %250 = vector.shape_cast %249 : vector<1x1x1x8xf32> to vector<1x8xf32>
    %cst_206 = arith.constant dense<0.000000e+00> : vector<32x8xf32>
    %251 = tpu.matmul %105, %248, %cst_206 {dimension_numbers = #tpu.dot_dimension_numbers<[1], [0], [0], [1], [0, 0, 1, 1], [], []>} : vector<32x32xbf16>, vector<32x8xbf16>, vector<32x8xf32> -> vector<32x8xf32>
    %252 = vector.broadcast %250 : vector<1x8xf32> to vector<32x8xf32>
    %253 = arith.addf %251, %252 : vector<32x8xf32>
    %c0_207 = arith.constant 0 : index
    %c3_208 = arith.constant 3 : index
    %c0_209 = arith.constant 0 : index
    %c0_210 = arith.constant 0 : index
    %254 = vector.load %arg16[%c0_207, %c3_208, %c0_209, %c0_210] : memref<2x4x32x8xbf16, #tpu.memory_space<vmem>>, vector<1x1x32x8xbf16>
    %255 = vector.shape_cast %254 : vector<1x1x32x8xbf16> to vector<32x8xbf16>
    %c0_211 = arith.constant 0 : index
    %c3_212 = arith.constant 3 : index
    %c0_213 = arith.constant 0 : index
    %c0_214 = arith.constant 0 : index
    %256 = vector.load %arg17[%c0_211, %c3_212, %c0_213, %c0_214] : memref<2x4x1x8xf32, #tpu.memory_space<vmem>>, vector<1x1x1x8xf32>
    %257 = vector.shape_cast %256 : vector<1x1x1x8xf32> to vector<1x8xf32>
    %cst_215 = arith.constant dense<0.000000e+00> : vector<32x8xf32>
    %258 = tpu.matmul %105, %255, %cst_215 {dimension_numbers = #tpu.dot_dimension_numbers<[1], [0], [0], [1], [0, 0, 1, 1], [], []>} : vector<32x32xbf16>, vector<32x8xbf16>, vector<32x8xf32> -> vector<32x8xf32>
    %259 = vector.broadcast %257 : vector<1x8xf32> to vector<32x8xf32>
    %260 = arith.addf %258, %259 : vector<32x8xf32>
    %261 = arith.truncf %246 : vector<32x8xf32> to vector<32x8xbf16>
    %262 = arith.truncf %253 : vector<32x8xf32> to vector<32x8xbf16>
    %cst_216 = arith.constant dense<0.000000e+00> : vector<32x32xf32>
    %263 = tpu.matmul %261, %262, %cst_216 {dimension_numbers = #tpu.dot_dimension_numbers<[1], [1], [0], [0], [0, 0, 1, 0], [], []>} : vector<32x8xbf16>, vector<32x8xbf16>, vector<32x32xf32> -> vector<32x32xf32>
    %cst_217 = arith.constant 0.353553385 : f32
    %264 = vector.broadcast %cst_217 : f32 to vector<32x32xf32>
    %265 = arith.mulf %263, %264 : vector<32x32xf32>
    %266 = arith.addf %265, %42 : vector<32x32xf32>
    %cst_218 = arith.constant dense<0xFF800000> : vector<32xf32>
    %267 = vector.multi_reduction <maximumf>, %266, %cst_218 [1] : vector<32x32xf32> to vector<32xf32>
    %268 = vector.shape_cast %267 : vector<32xf32> to vector<32x1xf32>
    %269 = vector.broadcast %268 : vector<32x1xf32> to vector<32x32xf32>
    %270 = arith.subf %266, %269 : vector<32x32xf32>
    %271 = math.exp %270 : vector<32x32xf32>
    %cst_219 = arith.constant dense<0.000000e+00> : vector<32xf32>
    %272 = vector.multi_reduction <add>, %271, %cst_219 [1] : vector<32x32xf32> to vector<32xf32>
    %273 = vector.shape_cast %272 : vector<32xf32> to vector<32x1xf32>
    %274 = tpu.reciprocal %273 {approx = true} : vector<32x1xf32> -> vector<32x1xf32>
    %275 = vector.broadcast %274 : vector<32x1xf32> to vector<32x32xf32>
    %276 = arith.mulf %271, %275 : vector<32x32xf32>
    %277 = arith.truncf %276 : vector<32x32xf32> to vector<32x32xbf16>
    %278 = arith.truncf %260 : vector<32x8xf32> to vector<32x8xbf16>
    %cst_220 = arith.constant dense<0.000000e+00> : vector<32x8xf32>
    %279 = tpu.matmul %277, %278, %cst_220 {dimension_numbers = #tpu.dot_dimension_numbers<[1], [0], [0], [1], [0, 0, 1, 1], [], []>} : vector<32x32xbf16>, vector<32x8xbf16>, vector<32x8xf32> -> vector<32x8xf32>
    %c0_221 = arith.constant 0 : index
    %c3_222 = arith.constant 3 : index
    %c0_223 = arith.constant 0 : index
    %c0_224 = arith.constant 0 : index
    %280 = vector.load %arg18[%c0_221, %c3_222, %c0_223, %c0_224] : memref<2x4x8x32xbf16, #tpu.memory_space<vmem>>, vector<1x1x8x32xbf16>
    %281 = vector.shape_cast %280 : vector<1x1x8x32xbf16> to vector<8x32xbf16>
    %282 = arith.truncf %279 : vector<32x8xf32> to vector<32x8xbf16>
    %cst_225 = arith.constant dense<0.000000e+00> : vector<32x32xf32>
    %283 = tpu.matmul %282, %281, %cst_225 {dimension_numbers = #tpu.dot_dimension_numbers<[1], [0], [0], [1], [0, 0, 1, 1], [], []>} : vector<32x8xbf16>, vector<8x32xbf16>, vector<32x32xf32> -> vector<32x32xf32>
    %284 = arith.addf %239, %283 : vector<32x32xf32>
    %c0_226 = arith.constant 0 : index
    %c0_227 = arith.constant 0 : index
    %c0_228 = arith.constant 0 : index
    %285 = vector.load %arg19[%c0_226, %c0_227, %c0_228] : memref<2x1x32xf32, #tpu.memory_space<vmem>>, vector<1x1x32xf32>
    %286 = vector.shape_cast %285 : vector<1x1x32xf32> to vector<1x32xf32>
    %287 = vector.broadcast %286 : vector<1x32xf32> to vector<32x32xf32>
    %288 = arith.addf %284, %287 : vector<32x32xf32>
    %289 = arith.mulf %63, %288 : vector<32x32xf32>
    %290 = arith.addf %8, %289 : vector<32x32xf32>
    %cst_229 = arith.constant dense<0.000000e+00> : vector<32xf32>
    %291 = vector.multi_reduction <add>, %290, %cst_229 [1] : vector<32x32xf32> to vector<32xf32>
    %292 = vector.shape_cast %291 : vector<32xf32> to vector<32x1xf32>
    %cst_230 = arith.constant 3.200000e+01 : f32
    %293 = vector.broadcast %cst_230 : f32 to vector<32x1xf32>
    %294 = arith.divf %292, %293 : vector<32x1xf32>
    %295 = vector.broadcast %294 : vector<32x1xf32> to vector<32x32xf32>
    %296 = arith.subf %290, %295 : vector<32x32xf32>
    %297 = arith.mulf %296, %296 : vector<32x32xf32>
    %cst_231 = arith.constant dense<0.000000e+00> : vector<32xf32>
    %298 = vector.multi_reduction <add>, %297, %cst_231 [1] : vector<32x32xf32> to vector<32xf32>
    %299 = vector.shape_cast %298 : vector<32xf32> to vector<32x1xf32>
    %cst_232 = arith.constant 3.200000e+01 : f32
    %300 = vector.broadcast %cst_232 : f32 to vector<32x1xf32>
    %301 = arith.divf %299, %300 : vector<32x1xf32>
    %cst_233 = arith.constant 9.99999997E-7 : f32
    %302 = vector.broadcast %cst_233 : f32 to vector<32x1xf32>
    %303 = arith.addf %301, %302 : vector<32x1xf32>
    %304 = math.rsqrt %303 : vector<32x1xf32>
    %305 = vector.broadcast %304 : vector<32x1xf32> to vector<32x32xf32>
    %306 = arith.mulf %296, %305 : vector<32x32xf32>
    %cst_234 = arith.constant 1.000000e+00 : f32
    %307 = vector.broadcast %cst_234 : f32 to vector<32x32xf32>
    %308 = arith.addf %307, %77 : vector<32x32xf32>
    %309 = arith.mulf %306, %308 : vector<32x32xf32>
    %310 = arith.addf %309, %70 : vector<32x32xf32>
    %c0_235 = arith.constant 0 : index
    %c0_236 = arith.constant 0 : index
    %c0_237 = arith.constant 0 : index
    %311 = vector.load %arg20[%c0_235, %c0_236, %c0_237] : memref<2x32x128xbf16, #tpu.memory_space<vmem>>, vector<1x32x128xbf16>
    %312 = vector.shape_cast %311 : vector<1x32x128xbf16> to vector<32x128xbf16>
    %c0_238 = arith.constant 0 : index
    %c0_239 = arith.constant 0 : index
    %c0_240 = arith.constant 0 : index
    %313 = vector.load %arg21[%c0_238, %c0_239, %c0_240] : memref<2x1x128xf32, #tpu.memory_space<vmem>>, vector<1x1x128xf32>
    %314 = vector.shape_cast %313 : vector<1x1x128xf32> to vector<1x128xf32>
    %315 = arith.truncf %310 : vector<32x32xf32> to vector<32x32xbf16>
    %cst_241 = arith.constant dense<0.000000e+00> : vector<32x128xf32>
    %316 = tpu.matmul %315, %312, %cst_241 {dimension_numbers = #tpu.dot_dimension_numbers<[1], [0], [0], [1], [0, 0, 1, 1], [], []>} : vector<32x32xbf16>, vector<32x128xbf16>, vector<32x128xf32> -> vector<32x128xf32>
    %317 = vector.broadcast %314 : vector<1x128xf32> to vector<32x128xf32>
    %318 = arith.addf %316, %317 : vector<32x128xf32>
    %cst_242 = arith.constant 5.000000e-01 : f32
    %319 = vector.broadcast %cst_242 : f32 to vector<32x128xf32>
    %320 = arith.mulf %319, %318 : vector<32x128xf32>
    %cst_243 = arith.constant 4.471500e-02 : f32
    %321 = vector.broadcast %cst_243 : f32 to vector<32x128xf32>
    %322 = arith.mulf %321, %318 : vector<32x128xf32>
    %323 = arith.mulf %322, %318 : vector<32x128xf32>
    %324 = arith.mulf %323, %318 : vector<32x128xf32>
    %325 = arith.addf %318, %324 : vector<32x128xf32>
    %cst_244 = arith.constant 0.797884583 : f32
    %326 = vector.broadcast %cst_244 : f32 to vector<32x128xf32>
    %327 = arith.mulf %326, %325 : vector<32x128xf32>
    %328 = math.tanh %327 : vector<32x128xf32>
    %cst_245 = arith.constant 1.000000e+00 : f32
    %329 = vector.broadcast %cst_245 : f32 to vector<32x128xf32>
    %330 = arith.addf %329, %328 : vector<32x128xf32>
    %331 = arith.mulf %320, %330 : vector<32x128xf32>
    %c0_246 = arith.constant 0 : index
    %c0_247 = arith.constant 0 : index
    %c0_248 = arith.constant 0 : index
    %332 = vector.load %arg22[%c0_246, %c0_247, %c0_248] : memref<2x128x32xbf16, #tpu.memory_space<vmem>>, vector<1x128x32xbf16>
    %333 = vector.shape_cast %332 : vector<1x128x32xbf16> to vector<128x32xbf16>
    %c0_249 = arith.constant 0 : index
    %c0_250 = arith.constant 0 : index
    %c0_251 = arith.constant 0 : index
    %334 = vector.load %arg23[%c0_249, %c0_250, %c0_251] : memref<2x1x32xf32, #tpu.memory_space<vmem>>, vector<1x1x32xf32>
    %335 = vector.shape_cast %334 : vector<1x1x32xf32> to vector<1x32xf32>
    %336 = arith.truncf %331 : vector<32x128xf32> to vector<32x128xbf16>
    %cst_252 = arith.constant dense<0.000000e+00> : vector<32x32xf32>
    %337 = tpu.matmul %336, %333, %cst_252 {dimension_numbers = #tpu.dot_dimension_numbers<[1], [0], [0], [1], [0, 0, 1, 1], [], []>} : vector<32x128xbf16>, vector<128x32xbf16>, vector<32x32xf32> -> vector<32x32xf32>
    %338 = vector.broadcast %335 : vector<1x32xf32> to vector<32x32xf32>
    %339 = arith.addf %337, %338 : vector<32x32xf32>
    %340 = arith.mulf %84, %339 : vector<32x32xf32>
    %341 = arith.addf %290, %340 : vector<32x32xf32>
    %c1_253 = arith.constant 1 : index
    %c0_254 = arith.constant 0 : index
    %c0_255 = arith.constant 0 : index
    %c0_256 = arith.constant 0 : index
    %342 = vector.load %arg10[%c1_253, %c0_254, %c0_255, %c0_256] : memref<2x6x32x32xbf16, #tpu.memory_space<vmem>>, vector<1x1x32x32xbf16>
    %343 = vector.shape_cast %342 : vector<1x1x32x32xbf16> to vector<32x32xbf16>
    %c1_257 = arith.constant 1 : index
    %c0_258 = arith.constant 0 : index
    %c0_259 = arith.constant 0 : index
    %c0_260 = arith.constant 0 : index
    %344 = vector.load %arg11[%c1_257, %c0_258, %c0_259, %c0_260] : memref<2x6x1x32xf32, #tpu.memory_space<vmem>>, vector<1x1x1x32xf32>
    %345 = vector.shape_cast %344 : vector<1x1x1x32xf32> to vector<1x32xf32>
    %cst_261 = arith.constant dense<0.000000e+00> : vector<32x32xf32>
    %346 = tpu.matmul %41, %343, %cst_261 {dimension_numbers = #tpu.dot_dimension_numbers<[1], [0], [0], [1], [0, 0, 1, 1], [], []>} : vector<32x32xbf16>, vector<32x32xbf16>, vector<32x32xf32> -> vector<32x32xf32>
    %347 = vector.broadcast %345 : vector<1x32xf32> to vector<32x32xf32>
    %348 = arith.addf %346, %347 : vector<32x32xf32>
    %c1_262 = arith.constant 1 : index
    %c1_263 = arith.constant 1 : index
    %c0_264 = arith.constant 0 : index
    %c0_265 = arith.constant 0 : index
    %349 = vector.load %arg10[%c1_262, %c1_263, %c0_264, %c0_265] : memref<2x6x32x32xbf16, #tpu.memory_space<vmem>>, vector<1x1x32x32xbf16>
    %350 = vector.shape_cast %349 : vector<1x1x32x32xbf16> to vector<32x32xbf16>
    %c1_266 = arith.constant 1 : index
    %c1_267 = arith.constant 1 : index
    %c0_268 = arith.constant 0 : index
    %c0_269 = arith.constant 0 : index
    %351 = vector.load %arg11[%c1_266, %c1_267, %c0_268, %c0_269] : memref<2x6x1x32xf32, #tpu.memory_space<vmem>>, vector<1x1x1x32xf32>
    %352 = vector.shape_cast %351 : vector<1x1x1x32xf32> to vector<1x32xf32>
    %cst_270 = arith.constant dense<0.000000e+00> : vector<32x32xf32>
    %353 = tpu.matmul %41, %350, %cst_270 {dimension_numbers = #tpu.dot_dimension_numbers<[1], [0], [0], [1], [0, 0, 1, 1], [], []>} : vector<32x32xbf16>, vector<32x32xbf16>, vector<32x32xf32> -> vector<32x32xf32>
    %354 = vector.broadcast %352 : vector<1x32xf32> to vector<32x32xf32>
    %355 = arith.addf %353, %354 : vector<32x32xf32>
    %c1_271 = arith.constant 1 : index
    %c2_272 = arith.constant 2 : index
    %c0_273 = arith.constant 0 : index
    %c0_274 = arith.constant 0 : index
    %356 = vector.load %arg10[%c1_271, %c2_272, %c0_273, %c0_274] : memref<2x6x32x32xbf16, #tpu.memory_space<vmem>>, vector<1x1x32x32xbf16>
    %357 = vector.shape_cast %356 : vector<1x1x32x32xbf16> to vector<32x32xbf16>
    %c1_275 = arith.constant 1 : index
    %c2_276 = arith.constant 2 : index
    %c0_277 = arith.constant 0 : index
    %c0_278 = arith.constant 0 : index
    %358 = vector.load %arg11[%c1_275, %c2_276, %c0_277, %c0_278] : memref<2x6x1x32xf32, #tpu.memory_space<vmem>>, vector<1x1x1x32xf32>
    %359 = vector.shape_cast %358 : vector<1x1x1x32xf32> to vector<1x32xf32>
    %cst_279 = arith.constant dense<0.000000e+00> : vector<32x32xf32>
    %360 = tpu.matmul %41, %357, %cst_279 {dimension_numbers = #tpu.dot_dimension_numbers<[1], [0], [0], [1], [0, 0, 1, 1], [], []>} : vector<32x32xbf16>, vector<32x32xbf16>, vector<32x32xf32> -> vector<32x32xf32>
    %361 = vector.broadcast %359 : vector<1x32xf32> to vector<32x32xf32>
    %362 = arith.addf %360, %361 : vector<32x32xf32>
    %c1_280 = arith.constant 1 : index
    %c3_281 = arith.constant 3 : index
    %c0_282 = arith.constant 0 : index
    %c0_283 = arith.constant 0 : index
    %363 = vector.load %arg10[%c1_280, %c3_281, %c0_282, %c0_283] : memref<2x6x32x32xbf16, #tpu.memory_space<vmem>>, vector<1x1x32x32xbf16>
    %364 = vector.shape_cast %363 : vector<1x1x32x32xbf16> to vector<32x32xbf16>
    %c1_284 = arith.constant 1 : index
    %c3_285 = arith.constant 3 : index
    %c0_286 = arith.constant 0 : index
    %c0_287 = arith.constant 0 : index
    %365 = vector.load %arg11[%c1_284, %c3_285, %c0_286, %c0_287] : memref<2x6x1x32xf32, #tpu.memory_space<vmem>>, vector<1x1x1x32xf32>
    %366 = vector.shape_cast %365 : vector<1x1x1x32xf32> to vector<1x32xf32>
    %cst_288 = arith.constant dense<0.000000e+00> : vector<32x32xf32>
    %367 = tpu.matmul %41, %364, %cst_288 {dimension_numbers = #tpu.dot_dimension_numbers<[1], [0], [0], [1], [0, 0, 1, 1], [], []>} : vector<32x32xbf16>, vector<32x32xbf16>, vector<32x32xf32> -> vector<32x32xf32>
    %368 = vector.broadcast %366 : vector<1x32xf32> to vector<32x32xf32>
    %369 = arith.addf %367, %368 : vector<32x32xf32>
    %c1_289 = arith.constant 1 : index
    %c4_290 = arith.constant 4 : index
    %c0_291 = arith.constant 0 : index
    %c0_292 = arith.constant 0 : index
    %370 = vector.load %arg10[%c1_289, %c4_290, %c0_291, %c0_292] : memref<2x6x32x32xbf16, #tpu.memory_space<vmem>>, vector<1x1x32x32xbf16>
    %371 = vector.shape_cast %370 : vector<1x1x32x32xbf16> to vector<32x32xbf16>
    %c1_293 = arith.constant 1 : index
    %c4_294 = arith.constant 4 : index
    %c0_295 = arith.constant 0 : index
    %c0_296 = arith.constant 0 : index
    %372 = vector.load %arg11[%c1_293, %c4_294, %c0_295, %c0_296] : memref<2x6x1x32xf32, #tpu.memory_space<vmem>>, vector<1x1x1x32xf32>
    %373 = vector.shape_cast %372 : vector<1x1x1x32xf32> to vector<1x32xf32>
    %cst_297 = arith.constant dense<0.000000e+00> : vector<32x32xf32>
    %374 = tpu.matmul %41, %371, %cst_297 {dimension_numbers = #tpu.dot_dimension_numbers<[1], [0], [0], [1], [0, 0, 1, 1], [], []>} : vector<32x32xbf16>, vector<32x32xbf16>, vector<32x32xf32> -> vector<32x32xf32>
    %375 = vector.broadcast %373 : vector<1x32xf32> to vector<32x32xf32>
    %376 = arith.addf %374, %375 : vector<32x32xf32>
    %c1_298 = arith.constant 1 : index
    %c5_299 = arith.constant 5 : index
    %c0_300 = arith.constant 0 : index
    %c0_301 = arith.constant 0 : index
    %377 = vector.load %arg10[%c1_298, %c5_299, %c0_300, %c0_301] : memref<2x6x32x32xbf16, #tpu.memory_space<vmem>>, vector<1x1x32x32xbf16>
    %378 = vector.shape_cast %377 : vector<1x1x32x32xbf16> to vector<32x32xbf16>
    %c1_302 = arith.constant 1 : index
    %c5_303 = arith.constant 5 : index
    %c0_304 = arith.constant 0 : index
    %c0_305 = arith.constant 0 : index
    %379 = vector.load %arg11[%c1_302, %c5_303, %c0_304, %c0_305] : memref<2x6x1x32xf32, #tpu.memory_space<vmem>>, vector<1x1x1x32xf32>
    %380 = vector.shape_cast %379 : vector<1x1x1x32xf32> to vector<1x32xf32>
    %cst_306 = arith.constant dense<0.000000e+00> : vector<32x32xf32>
    %381 = tpu.matmul %41, %378, %cst_306 {dimension_numbers = #tpu.dot_dimension_numbers<[1], [0], [0], [1], [0, 0, 1, 1], [], []>} : vector<32x32xbf16>, vector<32x32xbf16>, vector<32x32xf32> -> vector<32x32xf32>
    %382 = vector.broadcast %380 : vector<1x32xf32> to vector<32x32xf32>
    %383 = arith.addf %381, %382 : vector<32x32xf32>
    %cst_307 = arith.constant dense<0.000000e+00> : vector<32xf32>
    %384 = vector.multi_reduction <add>, %341, %cst_307 [1] : vector<32x32xf32> to vector<32xf32>
    %385 = vector.shape_cast %384 : vector<32xf32> to vector<32x1xf32>
    %cst_308 = arith.constant 3.200000e+01 : f32
    %386 = vector.broadcast %cst_308 : f32 to vector<32x1xf32>
    %387 = arith.divf %385, %386 : vector<32x1xf32>
    %388 = vector.broadcast %387 : vector<32x1xf32> to vector<32x32xf32>
    %389 = arith.subf %341, %388 : vector<32x32xf32>
    %390 = arith.mulf %389, %389 : vector<32x32xf32>
    %cst_309 = arith.constant dense<0.000000e+00> : vector<32xf32>
    %391 = vector.multi_reduction <add>, %390, %cst_309 [1] : vector<32x32xf32> to vector<32xf32>
    %392 = vector.shape_cast %391 : vector<32xf32> to vector<32x1xf32>
    %cst_310 = arith.constant 3.200000e+01 : f32
    %393 = vector.broadcast %cst_310 : f32 to vector<32x1xf32>
    %394 = arith.divf %392, %393 : vector<32x1xf32>
    %cst_311 = arith.constant 9.99999997E-7 : f32
    %395 = vector.broadcast %cst_311 : f32 to vector<32x1xf32>
    %396 = arith.addf %394, %395 : vector<32x1xf32>
    %397 = math.rsqrt %396 : vector<32x1xf32>
    %398 = vector.broadcast %397 : vector<32x1xf32> to vector<32x32xf32>
    %399 = arith.mulf %389, %398 : vector<32x32xf32>
    %cst_312 = arith.constant 1.000000e+00 : f32
    %400 = vector.broadcast %cst_312 : f32 to vector<32x32xf32>
    %401 = arith.addf %400, %355 : vector<32x32xf32>
    %402 = arith.mulf %399, %401 : vector<32x32xf32>
    %403 = arith.addf %402, %348 : vector<32x32xf32>
    %404 = arith.truncf %403 : vector<32x32xf32> to vector<32x32xbf16>
    %c1_313 = arith.constant 1 : index
    %c0_314 = arith.constant 0 : index
    %c0_315 = arith.constant 0 : index
    %c0_316 = arith.constant 0 : index
    %405 = vector.load %arg12[%c1_313, %c0_314, %c0_315, %c0_316] : memref<2x4x32x8xbf16, #tpu.memory_space<vmem>>, vector<1x1x32x8xbf16>
    %406 = vector.shape_cast %405 : vector<1x1x32x8xbf16> to vector<32x8xbf16>
    %c1_317 = arith.constant 1 : index
    %c0_318 = arith.constant 0 : index
    %c0_319 = arith.constant 0 : index
    %c0_320 = arith.constant 0 : index
    %407 = vector.load %arg13[%c1_317, %c0_318, %c0_319, %c0_320] : memref<2x4x1x8xf32, #tpu.memory_space<vmem>>, vector<1x1x1x8xf32>
    %408 = vector.shape_cast %407 : vector<1x1x1x8xf32> to vector<1x8xf32>
    %cst_321 = arith.constant dense<0.000000e+00> : vector<32x8xf32>
    %409 = tpu.matmul %404, %406, %cst_321 {dimension_numbers = #tpu.dot_dimension_numbers<[1], [0], [0], [1], [0, 0, 1, 1], [], []>} : vector<32x32xbf16>, vector<32x8xbf16>, vector<32x8xf32> -> vector<32x8xf32>
    %410 = vector.broadcast %408 : vector<1x8xf32> to vector<32x8xf32>
    %411 = arith.addf %409, %410 : vector<32x8xf32>
    %c1_322 = arith.constant 1 : index
    %c0_323 = arith.constant 0 : index
    %c0_324 = arith.constant 0 : index
    %c0_325 = arith.constant 0 : index
    %412 = vector.load %arg14[%c1_322, %c0_323, %c0_324, %c0_325] : memref<2x4x32x8xbf16, #tpu.memory_space<vmem>>, vector<1x1x32x8xbf16>
    %413 = vector.shape_cast %412 : vector<1x1x32x8xbf16> to vector<32x8xbf16>
    %c1_326 = arith.constant 1 : index
    %c0_327 = arith.constant 0 : index
    %c0_328 = arith.constant 0 : index
    %c0_329 = arith.constant 0 : index
    %414 = vector.load %arg15[%c1_326, %c0_327, %c0_328, %c0_329] : memref<2x4x1x8xf32, #tpu.memory_space<vmem>>, vector<1x1x1x8xf32>
    %415 = vector.shape_cast %414 : vector<1x1x1x8xf32> to vector<1x8xf32>
    %cst_330 = arith.constant dense<0.000000e+00> : vector<32x8xf32>
    %416 = tpu.matmul %404, %413, %cst_330 {dimension_numbers = #tpu.dot_dimension_numbers<[1], [0], [0], [1], [0, 0, 1, 1], [], []>} : vector<32x32xbf16>, vector<32x8xbf16>, vector<32x8xf32> -> vector<32x8xf32>
    %417 = vector.broadcast %415 : vector<1x8xf32> to vector<32x8xf32>
    %418 = arith.addf %416, %417 : vector<32x8xf32>
    %c1_331 = arith.constant 1 : index
    %c0_332 = arith.constant 0 : index
    %c0_333 = arith.constant 0 : index
    %c0_334 = arith.constant 0 : index
    %419 = vector.load %arg16[%c1_331, %c0_332, %c0_333, %c0_334] : memref<2x4x32x8xbf16, #tpu.memory_space<vmem>>, vector<1x1x32x8xbf16>
    %420 = vector.shape_cast %419 : vector<1x1x32x8xbf16> to vector<32x8xbf16>
    %c1_335 = arith.constant 1 : index
    %c0_336 = arith.constant 0 : index
    %c0_337 = arith.constant 0 : index
    %c0_338 = arith.constant 0 : index
    %421 = vector.load %arg17[%c1_335, %c0_336, %c0_337, %c0_338] : memref<2x4x1x8xf32, #tpu.memory_space<vmem>>, vector<1x1x1x8xf32>
    %422 = vector.shape_cast %421 : vector<1x1x1x8xf32> to vector<1x8xf32>
    %cst_339 = arith.constant dense<0.000000e+00> : vector<32x8xf32>
    %423 = tpu.matmul %404, %420, %cst_339 {dimension_numbers = #tpu.dot_dimension_numbers<[1], [0], [0], [1], [0, 0, 1, 1], [], []>} : vector<32x32xbf16>, vector<32x8xbf16>, vector<32x8xf32> -> vector<32x8xf32>
    %424 = vector.broadcast %422 : vector<1x8xf32> to vector<32x8xf32>
    %425 = arith.addf %423, %424 : vector<32x8xf32>
    %426 = arith.truncf %411 : vector<32x8xf32> to vector<32x8xbf16>
    %427 = arith.truncf %418 : vector<32x8xf32> to vector<32x8xbf16>
    %cst_340 = arith.constant dense<0.000000e+00> : vector<32x32xf32>
    %428 = tpu.matmul %426, %427, %cst_340 {dimension_numbers = #tpu.dot_dimension_numbers<[1], [1], [0], [0], [0, 0, 1, 0], [], []>} : vector<32x8xbf16>, vector<32x8xbf16>, vector<32x32xf32> -> vector<32x32xf32>
    %cst_341 = arith.constant 0.353553385 : f32
    %429 = vector.broadcast %cst_341 : f32 to vector<32x32xf32>
    %430 = arith.mulf %428, %429 : vector<32x32xf32>
    %431 = arith.addf %430, %42 : vector<32x32xf32>
    %cst_342 = arith.constant dense<0xFF800000> : vector<32xf32>
    %432 = vector.multi_reduction <maximumf>, %431, %cst_342 [1] : vector<32x32xf32> to vector<32xf32>
    %433 = vector.shape_cast %432 : vector<32xf32> to vector<32x1xf32>
    %434 = vector.broadcast %433 : vector<32x1xf32> to vector<32x32xf32>
    %435 = arith.subf %431, %434 : vector<32x32xf32>
    %436 = math.exp %435 : vector<32x32xf32>
    %cst_343 = arith.constant dense<0.000000e+00> : vector<32xf32>
    %437 = vector.multi_reduction <add>, %436, %cst_343 [1] : vector<32x32xf32> to vector<32xf32>
    %438 = vector.shape_cast %437 : vector<32xf32> to vector<32x1xf32>
    %439 = tpu.reciprocal %438 {approx = true} : vector<32x1xf32> -> vector<32x1xf32>
    %440 = vector.broadcast %439 : vector<32x1xf32> to vector<32x32xf32>
    %441 = arith.mulf %436, %440 : vector<32x32xf32>
    %442 = arith.truncf %441 : vector<32x32xf32> to vector<32x32xbf16>
    %443 = arith.truncf %425 : vector<32x8xf32> to vector<32x8xbf16>
    %cst_344 = arith.constant dense<0.000000e+00> : vector<32x8xf32>
    %444 = tpu.matmul %442, %443, %cst_344 {dimension_numbers = #tpu.dot_dimension_numbers<[1], [0], [0], [1], [0, 0, 1, 1], [], []>} : vector<32x32xbf16>, vector<32x8xbf16>, vector<32x8xf32> -> vector<32x8xf32>
    %c1_345 = arith.constant 1 : index
    %c0_346 = arith.constant 0 : index
    %c0_347 = arith.constant 0 : index
    %c0_348 = arith.constant 0 : index
    %445 = vector.load %arg18[%c1_345, %c0_346, %c0_347, %c0_348] : memref<2x4x8x32xbf16, #tpu.memory_space<vmem>>, vector<1x1x8x32xbf16>
    %446 = vector.shape_cast %445 : vector<1x1x8x32xbf16> to vector<8x32xbf16>
    %447 = arith.truncf %444 : vector<32x8xf32> to vector<32x8xbf16>
    %cst_349 = arith.constant dense<0.000000e+00> : vector<32x32xf32>
    %448 = tpu.matmul %447, %446, %cst_349 {dimension_numbers = #tpu.dot_dimension_numbers<[1], [0], [0], [1], [0, 0, 1, 1], [], []>} : vector<32x8xbf16>, vector<8x32xbf16>, vector<32x32xf32> -> vector<32x32xf32>
    %c1_350 = arith.constant 1 : index
    %c1_351 = arith.constant 1 : index
    %c0_352 = arith.constant 0 : index
    %c0_353 = arith.constant 0 : index
    %449 = vector.load %arg12[%c1_350, %c1_351, %c0_352, %c0_353] : memref<2x4x32x8xbf16, #tpu.memory_space<vmem>>, vector<1x1x32x8xbf16>
    %450 = vector.shape_cast %449 : vector<1x1x32x8xbf16> to vector<32x8xbf16>
    %c1_354 = arith.constant 1 : index
    %c1_355 = arith.constant 1 : index
    %c0_356 = arith.constant 0 : index
    %c0_357 = arith.constant 0 : index
    %451 = vector.load %arg13[%c1_354, %c1_355, %c0_356, %c0_357] : memref<2x4x1x8xf32, #tpu.memory_space<vmem>>, vector<1x1x1x8xf32>
    %452 = vector.shape_cast %451 : vector<1x1x1x8xf32> to vector<1x8xf32>
    %cst_358 = arith.constant dense<0.000000e+00> : vector<32x8xf32>
    %453 = tpu.matmul %404, %450, %cst_358 {dimension_numbers = #tpu.dot_dimension_numbers<[1], [0], [0], [1], [0, 0, 1, 1], [], []>} : vector<32x32xbf16>, vector<32x8xbf16>, vector<32x8xf32> -> vector<32x8xf32>
    %454 = vector.broadcast %452 : vector<1x8xf32> to vector<32x8xf32>
    %455 = arith.addf %453, %454 : vector<32x8xf32>
    %c1_359 = arith.constant 1 : index
    %c1_360 = arith.constant 1 : index
    %c0_361 = arith.constant 0 : index
    %c0_362 = arith.constant 0 : index
    %456 = vector.load %arg14[%c1_359, %c1_360, %c0_361, %c0_362] : memref<2x4x32x8xbf16, #tpu.memory_space<vmem>>, vector<1x1x32x8xbf16>
    %457 = vector.shape_cast %456 : vector<1x1x32x8xbf16> to vector<32x8xbf16>
    %c1_363 = arith.constant 1 : index
    %c1_364 = arith.constant 1 : index
    %c0_365 = arith.constant 0 : index
    %c0_366 = arith.constant 0 : index
    %458 = vector.load %arg15[%c1_363, %c1_364, %c0_365, %c0_366] : memref<2x4x1x8xf32, #tpu.memory_space<vmem>>, vector<1x1x1x8xf32>
    %459 = vector.shape_cast %458 : vector<1x1x1x8xf32> to vector<1x8xf32>
    %cst_367 = arith.constant dense<0.000000e+00> : vector<32x8xf32>
    %460 = tpu.matmul %404, %457, %cst_367 {dimension_numbers = #tpu.dot_dimension_numbers<[1], [0], [0], [1], [0, 0, 1, 1], [], []>} : vector<32x32xbf16>, vector<32x8xbf16>, vector<32x8xf32> -> vector<32x8xf32>
    %461 = vector.broadcast %459 : vector<1x8xf32> to vector<32x8xf32>
    %462 = arith.addf %460, %461 : vector<32x8xf32>
    %c1_368 = arith.constant 1 : index
    %c1_369 = arith.constant 1 : index
    %c0_370 = arith.constant 0 : index
    %c0_371 = arith.constant 0 : index
    %463 = vector.load %arg16[%c1_368, %c1_369, %c0_370, %c0_371] : memref<2x4x32x8xbf16, #tpu.memory_space<vmem>>, vector<1x1x32x8xbf16>
    %464 = vector.shape_cast %463 : vector<1x1x32x8xbf16> to vector<32x8xbf16>
    %c1_372 = arith.constant 1 : index
    %c1_373 = arith.constant 1 : index
    %c0_374 = arith.constant 0 : index
    %c0_375 = arith.constant 0 : index
    %465 = vector.load %arg17[%c1_372, %c1_373, %c0_374, %c0_375] : memref<2x4x1x8xf32, #tpu.memory_space<vmem>>, vector<1x1x1x8xf32>
    %466 = vector.shape_cast %465 : vector<1x1x1x8xf32> to vector<1x8xf32>
    %cst_376 = arith.constant dense<0.000000e+00> : vector<32x8xf32>
    %467 = tpu.matmul %404, %464, %cst_376 {dimension_numbers = #tpu.dot_dimension_numbers<[1], [0], [0], [1], [0, 0, 1, 1], [], []>} : vector<32x32xbf16>, vector<32x8xbf16>, vector<32x8xf32> -> vector<32x8xf32>
    %468 = vector.broadcast %466 : vector<1x8xf32> to vector<32x8xf32>
    %469 = arith.addf %467, %468 : vector<32x8xf32>
    %470 = arith.truncf %455 : vector<32x8xf32> to vector<32x8xbf16>
    %471 = arith.truncf %462 : vector<32x8xf32> to vector<32x8xbf16>
    %cst_377 = arith.constant dense<0.000000e+00> : vector<32x32xf32>
    %472 = tpu.matmul %470, %471, %cst_377 {dimension_numbers = #tpu.dot_dimension_numbers<[1], [1], [0], [0], [0, 0, 1, 0], [], []>} : vector<32x8xbf16>, vector<32x8xbf16>, vector<32x32xf32> -> vector<32x32xf32>
    %cst_378 = arith.constant 0.353553385 : f32
    %473 = vector.broadcast %cst_378 : f32 to vector<32x32xf32>
    %474 = arith.mulf %472, %473 : vector<32x32xf32>
    %475 = arith.addf %474, %42 : vector<32x32xf32>
    %cst_379 = arith.constant dense<0xFF800000> : vector<32xf32>
    %476 = vector.multi_reduction <maximumf>, %475, %cst_379 [1] : vector<32x32xf32> to vector<32xf32>
    %477 = vector.shape_cast %476 : vector<32xf32> to vector<32x1xf32>
    %478 = vector.broadcast %477 : vector<32x1xf32> to vector<32x32xf32>
    %479 = arith.subf %475, %478 : vector<32x32xf32>
    %480 = math.exp %479 : vector<32x32xf32>
    %cst_380 = arith.constant dense<0.000000e+00> : vector<32xf32>
    %481 = vector.multi_reduction <add>, %480, %cst_380 [1] : vector<32x32xf32> to vector<32xf32>
    %482 = vector.shape_cast %481 : vector<32xf32> to vector<32x1xf32>
    %483 = tpu.reciprocal %482 {approx = true} : vector<32x1xf32> -> vector<32x1xf32>
    %484 = vector.broadcast %483 : vector<32x1xf32> to vector<32x32xf32>
    %485 = arith.mulf %480, %484 : vector<32x32xf32>
    %486 = arith.truncf %485 : vector<32x32xf32> to vector<32x32xbf16>
    %487 = arith.truncf %469 : vector<32x8xf32> to vector<32x8xbf16>
    %cst_381 = arith.constant dense<0.000000e+00> : vector<32x8xf32>
    %488 = tpu.matmul %486, %487, %cst_381 {dimension_numbers = #tpu.dot_dimension_numbers<[1], [0], [0], [1], [0, 0, 1, 1], [], []>} : vector<32x32xbf16>, vector<32x8xbf16>, vector<32x8xf32> -> vector<32x8xf32>
    %c1_382 = arith.constant 1 : index
    %c1_383 = arith.constant 1 : index
    %c0_384 = arith.constant 0 : index
    %c0_385 = arith.constant 0 : index
    %489 = vector.load %arg18[%c1_382, %c1_383, %c0_384, %c0_385] : memref<2x4x8x32xbf16, #tpu.memory_space<vmem>>, vector<1x1x8x32xbf16>
    %490 = vector.shape_cast %489 : vector<1x1x8x32xbf16> to vector<8x32xbf16>
    %491 = arith.truncf %488 : vector<32x8xf32> to vector<32x8xbf16>
    %cst_386 = arith.constant dense<0.000000e+00> : vector<32x32xf32>
    %492 = tpu.matmul %491, %490, %cst_386 {dimension_numbers = #tpu.dot_dimension_numbers<[1], [0], [0], [1], [0, 0, 1, 1], [], []>} : vector<32x8xbf16>, vector<8x32xbf16>, vector<32x32xf32> -> vector<32x32xf32>
    %493 = arith.addf %448, %492 : vector<32x32xf32>
    %c1_387 = arith.constant 1 : index
    %c2_388 = arith.constant 2 : index
    %c0_389 = arith.constant 0 : index
    %c0_390 = arith.constant 0 : index
    %494 = vector.load %arg12[%c1_387, %c2_388, %c0_389, %c0_390] : memref<2x4x32x8xbf16, #tpu.memory_space<vmem>>, vector<1x1x32x8xbf16>
    %495 = vector.shape_cast %494 : vector<1x1x32x8xbf16> to vector<32x8xbf16>
    %c1_391 = arith.constant 1 : index
    %c2_392 = arith.constant 2 : index
    %c0_393 = arith.constant 0 : index
    %c0_394 = arith.constant 0 : index
    %496 = vector.load %arg13[%c1_391, %c2_392, %c0_393, %c0_394] : memref<2x4x1x8xf32, #tpu.memory_space<vmem>>, vector<1x1x1x8xf32>
    %497 = vector.shape_cast %496 : vector<1x1x1x8xf32> to vector<1x8xf32>
    %cst_395 = arith.constant dense<0.000000e+00> : vector<32x8xf32>
    %498 = tpu.matmul %404, %495, %cst_395 {dimension_numbers = #tpu.dot_dimension_numbers<[1], [0], [0], [1], [0, 0, 1, 1], [], []>} : vector<32x32xbf16>, vector<32x8xbf16>, vector<32x8xf32> -> vector<32x8xf32>
    %499 = vector.broadcast %497 : vector<1x8xf32> to vector<32x8xf32>
    %500 = arith.addf %498, %499 : vector<32x8xf32>
    %c1_396 = arith.constant 1 : index
    %c2_397 = arith.constant 2 : index
    %c0_398 = arith.constant 0 : index
    %c0_399 = arith.constant 0 : index
    %501 = vector.load %arg14[%c1_396, %c2_397, %c0_398, %c0_399] : memref<2x4x32x8xbf16, #tpu.memory_space<vmem>>, vector<1x1x32x8xbf16>
    %502 = vector.shape_cast %501 : vector<1x1x32x8xbf16> to vector<32x8xbf16>
    %c1_400 = arith.constant 1 : index
    %c2_401 = arith.constant 2 : index
    %c0_402 = arith.constant 0 : index
    %c0_403 = arith.constant 0 : index
    %503 = vector.load %arg15[%c1_400, %c2_401, %c0_402, %c0_403] : memref<2x4x1x8xf32, #tpu.memory_space<vmem>>, vector<1x1x1x8xf32>
    %504 = vector.shape_cast %503 : vector<1x1x1x8xf32> to vector<1x8xf32>
    %cst_404 = arith.constant dense<0.000000e+00> : vector<32x8xf32>
    %505 = tpu.matmul %404, %502, %cst_404 {dimension_numbers = #tpu.dot_dimension_numbers<[1], [0], [0], [1], [0, 0, 1, 1], [], []>} : vector<32x32xbf16>, vector<32x8xbf16>, vector<32x8xf32> -> vector<32x8xf32>
    %506 = vector.broadcast %504 : vector<1x8xf32> to vector<32x8xf32>
    %507 = arith.addf %505, %506 : vector<32x8xf32>
    %c1_405 = arith.constant 1 : index
    %c2_406 = arith.constant 2 : index
    %c0_407 = arith.constant 0 : index
    %c0_408 = arith.constant 0 : index
    %508 = vector.load %arg16[%c1_405, %c2_406, %c0_407, %c0_408] : memref<2x4x32x8xbf16, #tpu.memory_space<vmem>>, vector<1x1x32x8xbf16>
    %509 = vector.shape_cast %508 : vector<1x1x32x8xbf16> to vector<32x8xbf16>
    %c1_409 = arith.constant 1 : index
    %c2_410 = arith.constant 2 : index
    %c0_411 = arith.constant 0 : index
    %c0_412 = arith.constant 0 : index
    %510 = vector.load %arg17[%c1_409, %c2_410, %c0_411, %c0_412] : memref<2x4x1x8xf32, #tpu.memory_space<vmem>>, vector<1x1x1x8xf32>
    %511 = vector.shape_cast %510 : vector<1x1x1x8xf32> to vector<1x8xf32>
    %cst_413 = arith.constant dense<0.000000e+00> : vector<32x8xf32>
    %512 = tpu.matmul %404, %509, %cst_413 {dimension_numbers = #tpu.dot_dimension_numbers<[1], [0], [0], [1], [0, 0, 1, 1], [], []>} : vector<32x32xbf16>, vector<32x8xbf16>, vector<32x8xf32> -> vector<32x8xf32>
    %513 = vector.broadcast %511 : vector<1x8xf32> to vector<32x8xf32>
    %514 = arith.addf %512, %513 : vector<32x8xf32>
    %515 = arith.truncf %500 : vector<32x8xf32> to vector<32x8xbf16>
    %516 = arith.truncf %507 : vector<32x8xf32> to vector<32x8xbf16>
    %cst_414 = arith.constant dense<0.000000e+00> : vector<32x32xf32>
    %517 = tpu.matmul %515, %516, %cst_414 {dimension_numbers = #tpu.dot_dimension_numbers<[1], [1], [0], [0], [0, 0, 1, 0], [], []>} : vector<32x8xbf16>, vector<32x8xbf16>, vector<32x32xf32> -> vector<32x32xf32>
    %cst_415 = arith.constant 0.353553385 : f32
    %518 = vector.broadcast %cst_415 : f32 to vector<32x32xf32>
    %519 = arith.mulf %517, %518 : vector<32x32xf32>
    %520 = arith.addf %519, %42 : vector<32x32xf32>
    %cst_416 = arith.constant dense<0xFF800000> : vector<32xf32>
    %521 = vector.multi_reduction <maximumf>, %520, %cst_416 [1] : vector<32x32xf32> to vector<32xf32>
    %522 = vector.shape_cast %521 : vector<32xf32> to vector<32x1xf32>
    %523 = vector.broadcast %522 : vector<32x1xf32> to vector<32x32xf32>
    %524 = arith.subf %520, %523 : vector<32x32xf32>
    %525 = math.exp %524 : vector<32x32xf32>
    %cst_417 = arith.constant dense<0.000000e+00> : vector<32xf32>
    %526 = vector.multi_reduction <add>, %525, %cst_417 [1] : vector<32x32xf32> to vector<32xf32>
    %527 = vector.shape_cast %526 : vector<32xf32> to vector<32x1xf32>
    %528 = tpu.reciprocal %527 {approx = true} : vector<32x1xf32> -> vector<32x1xf32>
    %529 = vector.broadcast %528 : vector<32x1xf32> to vector<32x32xf32>
    %530 = arith.mulf %525, %529 : vector<32x32xf32>
    %531 = arith.truncf %530 : vector<32x32xf32> to vector<32x32xbf16>
    %532 = arith.truncf %514 : vector<32x8xf32> to vector<32x8xbf16>
    %cst_418 = arith.constant dense<0.000000e+00> : vector<32x8xf32>
    %533 = tpu.matmul %531, %532, %cst_418 {dimension_numbers = #tpu.dot_dimension_numbers<[1], [0], [0], [1], [0, 0, 1, 1], [], []>} : vector<32x32xbf16>, vector<32x8xbf16>, vector<32x8xf32> -> vector<32x8xf32>
    %c1_419 = arith.constant 1 : index
    %c2_420 = arith.constant 2 : index
    %c0_421 = arith.constant 0 : index
    %c0_422 = arith.constant 0 : index
    %534 = vector.load %arg18[%c1_419, %c2_420, %c0_421, %c0_422] : memref<2x4x8x32xbf16, #tpu.memory_space<vmem>>, vector<1x1x8x32xbf16>
    %535 = vector.shape_cast %534 : vector<1x1x8x32xbf16> to vector<8x32xbf16>
    %536 = arith.truncf %533 : vector<32x8xf32> to vector<32x8xbf16>
    %cst_423 = arith.constant dense<0.000000e+00> : vector<32x32xf32>
    %537 = tpu.matmul %536, %535, %cst_423 {dimension_numbers = #tpu.dot_dimension_numbers<[1], [0], [0], [1], [0, 0, 1, 1], [], []>} : vector<32x8xbf16>, vector<8x32xbf16>, vector<32x32xf32> -> vector<32x32xf32>
    %538 = arith.addf %493, %537 : vector<32x32xf32>
    %c1_424 = arith.constant 1 : index
    %c3_425 = arith.constant 3 : index
    %c0_426 = arith.constant 0 : index
    %c0_427 = arith.constant 0 : index
    %539 = vector.load %arg12[%c1_424, %c3_425, %c0_426, %c0_427] : memref<2x4x32x8xbf16, #tpu.memory_space<vmem>>, vector<1x1x32x8xbf16>
    %540 = vector.shape_cast %539 : vector<1x1x32x8xbf16> to vector<32x8xbf16>
    %c1_428 = arith.constant 1 : index
    %c3_429 = arith.constant 3 : index
    %c0_430 = arith.constant 0 : index
    %c0_431 = arith.constant 0 : index
    %541 = vector.load %arg13[%c1_428, %c3_429, %c0_430, %c0_431] : memref<2x4x1x8xf32, #tpu.memory_space<vmem>>, vector<1x1x1x8xf32>
    %542 = vector.shape_cast %541 : vector<1x1x1x8xf32> to vector<1x8xf32>
    %cst_432 = arith.constant dense<0.000000e+00> : vector<32x8xf32>
    %543 = tpu.matmul %404, %540, %cst_432 {dimension_numbers = #tpu.dot_dimension_numbers<[1], [0], [0], [1], [0, 0, 1, 1], [], []>} : vector<32x32xbf16>, vector<32x8xbf16>, vector<32x8xf32> -> vector<32x8xf32>
    %544 = vector.broadcast %542 : vector<1x8xf32> to vector<32x8xf32>
    %545 = arith.addf %543, %544 : vector<32x8xf32>
    %c1_433 = arith.constant 1 : index
    %c3_434 = arith.constant 3 : index
    %c0_435 = arith.constant 0 : index
    %c0_436 = arith.constant 0 : index
    %546 = vector.load %arg14[%c1_433, %c3_434, %c0_435, %c0_436] : memref<2x4x32x8xbf16, #tpu.memory_space<vmem>>, vector<1x1x32x8xbf16>
    %547 = vector.shape_cast %546 : vector<1x1x32x8xbf16> to vector<32x8xbf16>
    %c1_437 = arith.constant 1 : index
    %c3_438 = arith.constant 3 : index
    %c0_439 = arith.constant 0 : index
    %c0_440 = arith.constant 0 : index
    %548 = vector.load %arg15[%c1_437, %c3_438, %c0_439, %c0_440] : memref<2x4x1x8xf32, #tpu.memory_space<vmem>>, vector<1x1x1x8xf32>
    %549 = vector.shape_cast %548 : vector<1x1x1x8xf32> to vector<1x8xf32>
    %cst_441 = arith.constant dense<0.000000e+00> : vector<32x8xf32>
    %550 = tpu.matmul %404, %547, %cst_441 {dimension_numbers = #tpu.dot_dimension_numbers<[1], [0], [0], [1], [0, 0, 1, 1], [], []>} : vector<32x32xbf16>, vector<32x8xbf16>, vector<32x8xf32> -> vector<32x8xf32>
    %551 = vector.broadcast %549 : vector<1x8xf32> to vector<32x8xf32>
    %552 = arith.addf %550, %551 : vector<32x8xf32>
    %c1_442 = arith.constant 1 : index
    %c3_443 = arith.constant 3 : index
    %c0_444 = arith.constant 0 : index
    %c0_445 = arith.constant 0 : index
    %553 = vector.load %arg16[%c1_442, %c3_443, %c0_444, %c0_445] : memref<2x4x32x8xbf16, #tpu.memory_space<vmem>>, vector<1x1x32x8xbf16>
    %554 = vector.shape_cast %553 : vector<1x1x32x8xbf16> to vector<32x8xbf16>
    %c1_446 = arith.constant 1 : index
    %c3_447 = arith.constant 3 : index
    %c0_448 = arith.constant 0 : index
    %c0_449 = arith.constant 0 : index
    %555 = vector.load %arg17[%c1_446, %c3_447, %c0_448, %c0_449] : memref<2x4x1x8xf32, #tpu.memory_space<vmem>>, vector<1x1x1x8xf32>
    %556 = vector.shape_cast %555 : vector<1x1x1x8xf32> to vector<1x8xf32>
    %cst_450 = arith.constant dense<0.000000e+00> : vector<32x8xf32>
    %557 = tpu.matmul %404, %554, %cst_450 {dimension_numbers = #tpu.dot_dimension_numbers<[1], [0], [0], [1], [0, 0, 1, 1], [], []>} : vector<32x32xbf16>, vector<32x8xbf16>, vector<32x8xf32> -> vector<32x8xf32>
    %558 = vector.broadcast %556 : vector<1x8xf32> to vector<32x8xf32>
    %559 = arith.addf %557, %558 : vector<32x8xf32>
    %560 = arith.truncf %545 : vector<32x8xf32> to vector<32x8xbf16>
    %561 = arith.truncf %552 : vector<32x8xf32> to vector<32x8xbf16>
    %cst_451 = arith.constant dense<0.000000e+00> : vector<32x32xf32>
    %562 = tpu.matmul %560, %561, %cst_451 {dimension_numbers = #tpu.dot_dimension_numbers<[1], [1], [0], [0], [0, 0, 1, 0], [], []>} : vector<32x8xbf16>, vector<32x8xbf16>, vector<32x32xf32> -> vector<32x32xf32>
    %cst_452 = arith.constant 0.353553385 : f32
    %563 = vector.broadcast %cst_452 : f32 to vector<32x32xf32>
    %564 = arith.mulf %562, %563 : vector<32x32xf32>
    %565 = arith.addf %564, %42 : vector<32x32xf32>
    %cst_453 = arith.constant dense<0xFF800000> : vector<32xf32>
    %566 = vector.multi_reduction <maximumf>, %565, %cst_453 [1] : vector<32x32xf32> to vector<32xf32>
    %567 = vector.shape_cast %566 : vector<32xf32> to vector<32x1xf32>
    %568 = vector.broadcast %567 : vector<32x1xf32> to vector<32x32xf32>
    %569 = arith.subf %565, %568 : vector<32x32xf32>
    %570 = math.exp %569 : vector<32x32xf32>
    %cst_454 = arith.constant dense<0.000000e+00> : vector<32xf32>
    %571 = vector.multi_reduction <add>, %570, %cst_454 [1] : vector<32x32xf32> to vector<32xf32>
    %572 = vector.shape_cast %571 : vector<32xf32> to vector<32x1xf32>
    %573 = tpu.reciprocal %572 {approx = true} : vector<32x1xf32> -> vector<32x1xf32>
    %574 = vector.broadcast %573 : vector<32x1xf32> to vector<32x32xf32>
    %575 = arith.mulf %570, %574 : vector<32x32xf32>
    %576 = arith.truncf %575 : vector<32x32xf32> to vector<32x32xbf16>
    %577 = arith.truncf %559 : vector<32x8xf32> to vector<32x8xbf16>
    %cst_455 = arith.constant dense<0.000000e+00> : vector<32x8xf32>
    %578 = tpu.matmul %576, %577, %cst_455 {dimension_numbers = #tpu.dot_dimension_numbers<[1], [0], [0], [1], [0, 0, 1, 1], [], []>} : vector<32x32xbf16>, vector<32x8xbf16>, vector<32x8xf32> -> vector<32x8xf32>
    %c1_456 = arith.constant 1 : index
    %c3_457 = arith.constant 3 : index
    %c0_458 = arith.constant 0 : index
    %c0_459 = arith.constant 0 : index
    %579 = vector.load %arg18[%c1_456, %c3_457, %c0_458, %c0_459] : memref<2x4x8x32xbf16, #tpu.memory_space<vmem>>, vector<1x1x8x32xbf16>
    %580 = vector.shape_cast %579 : vector<1x1x8x32xbf16> to vector<8x32xbf16>
    %581 = arith.truncf %578 : vector<32x8xf32> to vector<32x8xbf16>
    %cst_460 = arith.constant dense<0.000000e+00> : vector<32x32xf32>
    %582 = tpu.matmul %581, %580, %cst_460 {dimension_numbers = #tpu.dot_dimension_numbers<[1], [0], [0], [1], [0, 0, 1, 1], [], []>} : vector<32x8xbf16>, vector<8x32xbf16>, vector<32x32xf32> -> vector<32x32xf32>
    %583 = arith.addf %538, %582 : vector<32x32xf32>
    %c1_461 = arith.constant 1 : index
    %c0_462 = arith.constant 0 : index
    %c0_463 = arith.constant 0 : index
    %584 = vector.load %arg19[%c1_461, %c0_462, %c0_463] : memref<2x1x32xf32, #tpu.memory_space<vmem>>, vector<1x1x32xf32>
    %585 = vector.shape_cast %584 : vector<1x1x32xf32> to vector<1x32xf32>
    %586 = vector.broadcast %585 : vector<1x32xf32> to vector<32x32xf32>
    %587 = arith.addf %583, %586 : vector<32x32xf32>
    %588 = arith.mulf %362, %587 : vector<32x32xf32>
    %589 = arith.addf %341, %588 : vector<32x32xf32>
    %cst_464 = arith.constant dense<0.000000e+00> : vector<32xf32>
    %590 = vector.multi_reduction <add>, %589, %cst_464 [1] : vector<32x32xf32> to vector<32xf32>
    %591 = vector.shape_cast %590 : vector<32xf32> to vector<32x1xf32>
    %cst_465 = arith.constant 3.200000e+01 : f32
    %592 = vector.broadcast %cst_465 : f32 to vector<32x1xf32>
    %593 = arith.divf %591, %592 : vector<32x1xf32>
    %594 = vector.broadcast %593 : vector<32x1xf32> to vector<32x32xf32>
    %595 = arith.subf %589, %594 : vector<32x32xf32>
    %596 = arith.mulf %595, %595 : vector<32x32xf32>
    %cst_466 = arith.constant dense<0.000000e+00> : vector<32xf32>
    %597 = vector.multi_reduction <add>, %596, %cst_466 [1] : vector<32x32xf32> to vector<32xf32>
    %598 = vector.shape_cast %597 : vector<32xf32> to vector<32x1xf32>
    %cst_467 = arith.constant 3.200000e+01 : f32
    %599 = vector.broadcast %cst_467 : f32 to vector<32x1xf32>
    %600 = arith.divf %598, %599 : vector<32x1xf32>
    %cst_468 = arith.constant 9.99999997E-7 : f32
    %601 = vector.broadcast %cst_468 : f32 to vector<32x1xf32>
    %602 = arith.addf %600, %601 : vector<32x1xf32>
    %603 = math.rsqrt %602 : vector<32x1xf32>
    %604 = vector.broadcast %603 : vector<32x1xf32> to vector<32x32xf32>
    %605 = arith.mulf %595, %604 : vector<32x32xf32>
    %cst_469 = arith.constant 1.000000e+00 : f32
    %606 = vector.broadcast %cst_469 : f32 to vector<32x32xf32>
    %607 = arith.addf %606, %376 : vector<32x32xf32>
    %608 = arith.mulf %605, %607 : vector<32x32xf32>
    %609 = arith.addf %608, %369 : vector<32x32xf32>
    %c1_470 = arith.constant 1 : index
    %c0_471 = arith.constant 0 : index
    %c0_472 = arith.constant 0 : index
    %610 = vector.load %arg20[%c1_470, %c0_471, %c0_472] : memref<2x32x128xbf16, #tpu.memory_space<vmem>>, vector<1x32x128xbf16>
    %611 = vector.shape_cast %610 : vector<1x32x128xbf16> to vector<32x128xbf16>
    %c1_473 = arith.constant 1 : index
    %c0_474 = arith.constant 0 : index
    %c0_475 = arith.constant 0 : index
    %612 = vector.load %arg21[%c1_473, %c0_474, %c0_475] : memref<2x1x128xf32, #tpu.memory_space<vmem>>, vector<1x1x128xf32>
    %613 = vector.shape_cast %612 : vector<1x1x128xf32> to vector<1x128xf32>
    %614 = arith.truncf %609 : vector<32x32xf32> to vector<32x32xbf16>
    %cst_476 = arith.constant dense<0.000000e+00> : vector<32x128xf32>
    %615 = tpu.matmul %614, %611, %cst_476 {dimension_numbers = #tpu.dot_dimension_numbers<[1], [0], [0], [1], [0, 0, 1, 1], [], []>} : vector<32x32xbf16>, vector<32x128xbf16>, vector<32x128xf32> -> vector<32x128xf32>
    %616 = vector.broadcast %613 : vector<1x128xf32> to vector<32x128xf32>
    %617 = arith.addf %615, %616 : vector<32x128xf32>
    %cst_477 = arith.constant 5.000000e-01 : f32
    %618 = vector.broadcast %cst_477 : f32 to vector<32x128xf32>
    %619 = arith.mulf %618, %617 : vector<32x128xf32>
    %cst_478 = arith.constant 4.471500e-02 : f32
    %620 = vector.broadcast %cst_478 : f32 to vector<32x128xf32>
    %621 = arith.mulf %620, %617 : vector<32x128xf32>
    %622 = arith.mulf %621, %617 : vector<32x128xf32>
    %623 = arith.mulf %622, %617 : vector<32x128xf32>
    %624 = arith.addf %617, %623 : vector<32x128xf32>
    %cst_479 = arith.constant 0.797884583 : f32
    %625 = vector.broadcast %cst_479 : f32 to vector<32x128xf32>
    %626 = arith.mulf %625, %624 : vector<32x128xf32>
    %627 = math.tanh %626 : vector<32x128xf32>
    %cst_480 = arith.constant 1.000000e+00 : f32
    %628 = vector.broadcast %cst_480 : f32 to vector<32x128xf32>
    %629 = arith.addf %628, %627 : vector<32x128xf32>
    %630 = arith.mulf %619, %629 : vector<32x128xf32>
    %c1_481 = arith.constant 1 : index
    %c0_482 = arith.constant 0 : index
    %c0_483 = arith.constant 0 : index
    %631 = vector.load %arg22[%c1_481, %c0_482, %c0_483] : memref<2x128x32xbf16, #tpu.memory_space<vmem>>, vector<1x128x32xbf16>
    %632 = vector.shape_cast %631 : vector<1x128x32xbf16> to vector<128x32xbf16>
    %c1_484 = arith.constant 1 : index
    %c0_485 = arith.constant 0 : index
    %c0_486 = arith.constant 0 : index
    %633 = vector.load %arg23[%c1_484, %c0_485, %c0_486] : memref<2x1x32xf32, #tpu.memory_space<vmem>>, vector<1x1x32xf32>
    %634 = vector.shape_cast %633 : vector<1x1x32xf32> to vector<1x32xf32>
    %635 = arith.truncf %630 : vector<32x128xf32> to vector<32x128xbf16>
    %cst_487 = arith.constant dense<0.000000e+00> : vector<32x32xf32>
    %636 = tpu.matmul %635, %632, %cst_487 {dimension_numbers = #tpu.dot_dimension_numbers<[1], [0], [0], [1], [0, 0, 1, 1], [], []>} : vector<32x128xbf16>, vector<128x32xbf16>, vector<32x32xf32> -> vector<32x32xf32>
    %637 = vector.broadcast %634 : vector<1x32xf32> to vector<32x32xf32>
    %638 = arith.addf %636, %637 : vector<32x32xf32>
    %639 = arith.mulf %383, %638 : vector<32x32xf32>
    %640 = arith.addf %589, %639 : vector<32x32xf32>
    %c0_488 = arith.constant 0 : index
    %c0_489 = arith.constant 0 : index
    %c0_490 = arith.constant 0 : index
    %641 = vector.load %arg24[%c0_488, %c0_489, %c0_490] : memref<2x32x32xbf16, #tpu.memory_space<vmem>>, vector<1x32x32xbf16>
    %642 = vector.shape_cast %641 : vector<1x32x32xbf16> to vector<32x32xbf16>
    %c0_491 = arith.constant 0 : index
    %c0_492 = arith.constant 0 : index
    %c0_493 = arith.constant 0 : index
    %643 = vector.load %arg25[%c0_491, %c0_492, %c0_493] : memref<2x1x32xf32, #tpu.memory_space<vmem>>, vector<1x1x32xf32>
    %644 = vector.shape_cast %643 : vector<1x1x32xf32> to vector<1x32xf32>
    %cst_494 = arith.constant dense<0.000000e+00> : vector<32x32xf32>
    %645 = tpu.matmul %41, %642, %cst_494 {dimension_numbers = #tpu.dot_dimension_numbers<[1], [0], [0], [1], [0, 0, 1, 1], [], []>} : vector<32x32xbf16>, vector<32x32xbf16>, vector<32x32xf32> -> vector<32x32xf32>
    %646 = vector.broadcast %644 : vector<1x32xf32> to vector<32x32xf32>
    %647 = arith.addf %645, %646 : vector<32x32xf32>
    %c1_495 = arith.constant 1 : index
    %c0_496 = arith.constant 0 : index
    %c0_497 = arith.constant 0 : index
    %648 = vector.load %arg24[%c1_495, %c0_496, %c0_497] : memref<2x32x32xbf16, #tpu.memory_space<vmem>>, vector<1x32x32xbf16>
    %649 = vector.shape_cast %648 : vector<1x32x32xbf16> to vector<32x32xbf16>
    %c1_498 = arith.constant 1 : index
    %c0_499 = arith.constant 0 : index
    %c0_500 = arith.constant 0 : index
    %650 = vector.load %arg25[%c1_498, %c0_499, %c0_500] : memref<2x1x32xf32, #tpu.memory_space<vmem>>, vector<1x1x32xf32>
    %651 = vector.shape_cast %650 : vector<1x1x32xf32> to vector<1x32xf32>
    %cst_501 = arith.constant dense<0.000000e+00> : vector<32x32xf32>
    %652 = tpu.matmul %41, %649, %cst_501 {dimension_numbers = #tpu.dot_dimension_numbers<[1], [0], [0], [1], [0, 0, 1, 1], [], []>} : vector<32x32xbf16>, vector<32x32xbf16>, vector<32x32xf32> -> vector<32x32xf32>
    %653 = vector.broadcast %651 : vector<1x32xf32> to vector<32x32xf32>
    %654 = arith.addf %652, %653 : vector<32x32xf32>
    %cst_502 = arith.constant dense<0.000000e+00> : vector<32xf32>
    %655 = vector.multi_reduction <add>, %640, %cst_502 [1] : vector<32x32xf32> to vector<32xf32>
    %656 = vector.shape_cast %655 : vector<32xf32> to vector<32x1xf32>
    %cst_503 = arith.constant 3.200000e+01 : f32
    %657 = vector.broadcast %cst_503 : f32 to vector<32x1xf32>
    %658 = arith.divf %656, %657 : vector<32x1xf32>
    %659 = vector.broadcast %658 : vector<32x1xf32> to vector<32x32xf32>
    %660 = arith.subf %640, %659 : vector<32x32xf32>
    %661 = arith.mulf %660, %660 : vector<32x32xf32>
    %cst_504 = arith.constant dense<0.000000e+00> : vector<32xf32>
    %662 = vector.multi_reduction <add>, %661, %cst_504 [1] : vector<32x32xf32> to vector<32xf32>
    %663 = vector.shape_cast %662 : vector<32xf32> to vector<32x1xf32>
    %cst_505 = arith.constant 3.200000e+01 : f32
    %664 = vector.broadcast %cst_505 : f32 to vector<32x1xf32>
    %665 = arith.divf %663, %664 : vector<32x1xf32>
    %cst_506 = arith.constant 9.99999997E-7 : f32
    %666 = vector.broadcast %cst_506 : f32 to vector<32x1xf32>
    %667 = arith.addf %665, %666 : vector<32x1xf32>
    %668 = math.rsqrt %667 : vector<32x1xf32>
    %669 = vector.broadcast %668 : vector<32x1xf32> to vector<32x32xf32>
    %670 = arith.mulf %660, %669 : vector<32x32xf32>
    %cst_507 = arith.constant 1.000000e+00 : f32
    %671 = vector.broadcast %cst_507 : f32 to vector<32x32xf32>
    %672 = arith.addf %671, %654 : vector<32x32xf32>
    %673 = arith.mulf %670, %672 : vector<32x32xf32>
    %674 = arith.addf %673, %647 : vector<32x32xf32>
    %c0_508 = arith.constant 0 : index
    %c0_509 = arith.constant 0 : index
    %675 = vector.load %arg26[%c0_508, %c0_509] : memref<32x64xbf16, #tpu.memory_space<vmem>>, vector<32x64xbf16>
    %c0_510 = arith.constant 0 : index
    %c0_511 = arith.constant 0 : index
    %676 = vector.load %arg27[%c0_510, %c0_511] : memref<1x64xf32, #tpu.memory_space<vmem>>, vector<1x64xf32>
    %677 = arith.truncf %674 : vector<32x32xf32> to vector<32x32xbf16>
    %cst_512 = arith.constant dense<0.000000e+00> : vector<32x64xf32>
    %678 = tpu.matmul %677, %675, %cst_512 {dimension_numbers = #tpu.dot_dimension_numbers<[1], [0], [0], [1], [0, 0, 1, 1], [], []>} : vector<32x32xbf16>, vector<32x64xbf16>, vector<32x64xf32> -> vector<32x64xf32>
    %679 = vector.broadcast %676 : vector<1x64xf32> to vector<32x64xf32>
    %680 = arith.addf %678, %679 : vector<32x64xf32>
    %c0_513 = arith.constant 0 : index
    %c0_514 = arith.constant 0 : index
    %681 = vector.load %arg28[%c0_513, %c0_514] : memref<32x64xf32, #tpu.memory_space<vmem>>, vector<32x64xf32>
    tpu.vector_store %arg28[%c0_513, %c0_514], %680 {strides = array<i32>} : memref<32x64xf32, #tpu.memory_space<vmem>>, vector<32x64xf32>,
    return
  }
}

</mosaic_0001>

<llo_original>
// kernel: div.5
$region0: #{div.5}
  #allocation2 [shape = 's32[1]{0}', space=sflag, size = 0x4, scoped, tag = 'scoped memory for div.5']
  %s0 = inlined_call_operand.vmem [shape: f32[2,4,12,12], index: 0, kind: input, shape index: {}]
  %s1 = inlined_call_operand.vmem [shape: f32[2,4,12,12], index: 1, kind: input, shape index: {}]
  %s2 = inlined_call_operand.hbm [shape: f32[2,4,12,12], index: 2, kind: output, shape index: {}]
  $region1: #{div.5} parent=0
    #allocation0 [shape = 'u8[49152]{0}', space=vmem, size = 0xc000, scoped, tag = 'operand span for operand 2']
    #allocation1 [shape = 's32[1]{0}', space=sflag, size = 0x4, scoped, tag = 'scoped memory for div.5']
    %3 = vsyncpa [#allocation1], 0
    %v4 = vld [vmem:[%s0] sm:$0xf]
    %v5 = vld [vmem:[%s1] sm:$0xf]
    %6 = xla_tuple %v4, %v5
    %7 = xla_tuple %6
    %v8 = vrcp.pop %v5
    %v9 = vmul.f32 %v4, %v8
    %10 = xla_tuple %v9
    %11 = vst [vmem:[#allocation0] sm:$0xf] %v9
    %s12 = scalar_lea.vmem %s0, 48
    %v13 = vld [vmem:[%s12] sm:$0xf]
    %s14 = scalar_lea.vmem %s1, 48
    %v15 = vld [vmem:[%s14] sm:$0xf]
    %16 = xla_tuple %v13, %v15
    %17 = xla_tuple %16
    %v18 = vrcp.pop %v15
    %v19 = vmul.f32 %v13, %v18
    %20 = xla_tuple %v19
    %s21 = scalar_lea.vmem [#allocation0], 48
    %22 = vst [vmem:[%s21] sm:$0xf] %v19
    %s23 = scalar_lea.vmem %s0, 4
    %v24 = vld [vmem:[%s23] sm:$0xf]
    %s25 = scalar_lea.vmem %s1, 4
    %v26 = vld [vmem:[%s25] sm:$0xf]
    %27 = xla_tuple %v24, %v26
    %28 = xla_tuple %27
    %v29 = vrcp.pop %v26
    %v30 = vmul.f32 %v24, %v29
    %31 = xla_tuple %v30
    %s32 = scalar_lea.vmem [#allocation0], 4
    %33 = vst [vmem:[%s32] sm:$0xf] %v30
    %s34 = scalar_lea.vmem %s0, 52
    %v35 = vld [vmem:[%s34] sm:$0xf]
    %s36 = scalar_lea.vmem %s1, 52
    %v37 = vld [vmem:[%s36] sm:$0xf]
    %38 = xla_tuple %v35, %v37
    %39 = xla_tuple %38
    %v40 = vrcp.pop %v37
    %v41 = vmul.f32 %v35, %v40
    %42 = xla_tuple %v41
    %s43 = scalar_lea.vmem [#allocation0], 52
    %44 = vst [vmem:[%s43] sm:$0xf] %v41
    %s45 = scalar_lea.vmem %s0, 8
    %v46 = vld [vmem:[%s45] sm:$0xf]
    %s47 = scalar_lea.vmem %s1, 8
    %v48 = vld [vmem:[%s47] sm:$0xf]
    %49 = xla_tuple %v46, %v48
    %50 = xla_tuple %49
    %v51 = vrcp.pop %v48
    %v52 = vmul.f32 %v46, %v51
    %53 = xla_tuple %v52
    %s54 = scalar_lea.vmem [#allocation0], 8
    %55 = vst [vmem:[%s54] sm:$0xf] %v52
    %s56 = scalar_lea.vmem %s0, 56
    %v57 = vld [vmem:[%s56] sm:$0xf]
    %s58 = scalar_lea.vmem %s1, 56
    %v59 = vld [vmem:[%s58] sm:$0xf]
    %60 = xla_tuple %v57, %v59
    %61 = xla_tuple %60
    %v62 = vrcp.pop %v59
    %v63 = vmul.f32 %v57, %v62
    %64 = xla_tuple %v63
    %s65 = scalar_lea.vmem [#allocation0], 56
    %66 = vst [vmem:[%s65] sm:$0xf] %v63
    %s67 = scalar_lea.vmem %s0, 12
    %v68 = vld [vmem:[%s67] sm:$0xf]
    %s69 = scalar_lea.vmem %s1, 12
    %v70 = vld [vmem:[%s69] sm:$0xf]
    %71 = xla_tuple %v68, %v70
    %72 = xla_tuple %71
    %v73 = vrcp.pop %v70
    %v74 = vmul.f32 %v68, %v73
    %75 = xla_tuple %v74
    %s76 = scalar_lea.vmem [#allocation0], 12
    %77 = vst [vmem:[%s76] sm:$0xf] %v74
    %s78 = scalar_lea.vmem %s0, 60
    %v79 = vld [vmem:[%s78] sm:$0xf]
    %s80 = scalar_lea.vmem %s1, 60
    %v81 = vld [vmem:[%s80] sm:$0xf]
    %82 = xla_tuple %v79, %v81
    %83 = xla_tuple %82
    %v84 = vrcp.pop %v81
    %v85 = vmul.f32 %v79, %v84
    %86 = xla_tuple %v85
    %s87 = scalar_lea.vmem [#allocation0], 60
    %88 = vst [vmem:[%s87] sm:$0xf] %v85
    %s89 = scalar_lea.vmem %s0, 16
    %v90 = vld [vmem:[%s89] sm:$0xf]
    %s91 = scalar_lea.vmem %s1, 16
    %v92 = vld [vmem:[%s91] sm:$0xf]
    %93 = xla_tuple %v90, %v92
    %94 = xla_tuple %93
    %v95 = vrcp.pop %v92
    %v96 = vmul.f32 %v90, %v95
    %97 = xla_tuple %v96
    %s98 = scalar_lea.vmem [#allocation0], 16
    %99 = vst [vmem:[%s98] sm:$0xf] %v96
    %s100 = scalar_lea.vmem %s0, 64
    %v101 = vld [vmem:[%s100] sm:$0xf]
    %s102 = scalar_lea.vmem %s1, 64
    %v103 = vld [vmem:[%s102] sm:$0xf]
    %104 = xla_tuple %v101, %v103
    %105 = xla_tuple %104
    %v106 = vrcp.pop %v103
    %v107 = vmul.f32 %v101, %v106
    %108 = xla_tuple %v107
    %s109 = scalar_lea.vmem [#allocation0], 64
    %110 = vst [vmem:[%s109] sm:$0xf] %v107
    %s111 = scalar_lea.vmem %s0, 20
    %v112 = vld [vmem:[%s111] sm:$0xf]
    %s113 = scalar_lea.vmem %s1, 20
    %v114 = vld [vmem:[%s113] sm:$0xf]
    %115 = xla_tuple %v112, %v114
    %116 = xla_tuple %115
    %v117 = vrcp.pop %v114
    %v118 = vmul.f32 %v112, %v117
    %119 = xla_tuple %v118
    %s120 = scalar_lea.vmem [#allocation0], 20
    %121 = vst [vmem:[%s120] sm:$0xf] %v118
    %s122 = scalar_lea.vmem %s0, 68
    %v123 = vld [vmem:[%s122] sm:$0xf]
    %s124 = scalar_lea.vmem %s1, 68
    %v125 = vld [vmem:[%s124] sm:$0xf]
    %126 = xla_tuple %v123, %v125
    %127 = xla_tuple %126
    %v128 = vrcp.pop %v125
    %v129 = vmul.f32 %v123, %v128
    %130 = xla_tuple %v129
    %s131 = scalar_lea.vmem [#allocation0], 68
    %132 = vst [vmem:[%s131] sm:$0xf] %v129
    %s133 = scalar_lea.vmem %s0, 24
    %v134 = vld [vmem:[%s133] sm:$0xf]
    %s135 = scalar_lea.vmem %s1, 24
    %v136 = vld [vmem:[%s135] sm:$0xf]
    %137 = xla_tuple %v134, %v136
    %138 = xla_tuple %137
    %v139 = vrcp.pop %v136
    %v140 = vmul.f32 %v134, %v139
    %141 = xla_tuple %v140
    %s142 = scalar_lea.vmem [#allocation0], 24
    %143 = vst [vmem:[%s142] sm:$0xf] %v140
    %s144 = scalar_lea.vmem %s0, 72
    %v145 = vld [vmem:[%s144] sm:$0xf]
    %s146 = scalar_lea.vmem %s1, 72
    %v147 = vld [vmem:[%s146] sm:$0xf]
    %148 = xla_tuple %v145, %v147
    %149 = xla_tuple %148
    %v150 = vrcp.pop %v147
    %v151 = vmul.f32 %v145, %v150
    %152 = xla_tuple %v151
    %s153 = scalar_lea.vmem [#allocation0], 72
    %154 = vst [vmem:[%s153] sm:$0xf] %v151
    %s155 = scalar_lea.vmem %s0, 28
    %v156 = vld [vmem:[%s155] sm:$0xf]
    %s157 = scalar_lea.vmem %s1, 28
    %v158 = vld [vmem:[%s157] sm:$0xf]
    %159 = xla_tuple %v156, %v158
    %160 = xla_tuple %159
    %v161 = vrcp.pop %v158
    %v162 = vmul.f32 %v156, %v161
    %163 = xla_tuple %v162
    %s164 = scalar_lea.vmem [#allocation0], 28
    %165 = vst [vmem:[%s164] sm:$0xf] %v162
    %s166 = scalar_lea.vmem %s0, 76
    %v167 = vld [vmem:[%s166] sm:$0xf]
    %s168 = scalar_lea.vmem %s1, 76
    %v169 = vld [vmem:[%s168] sm:$0xf]
    %170 = xla_tuple %v167, %v169
    %171 = xla_tuple %170
    %v172 = vrcp.pop %v169
    %v173 = vmul.f32 %v167, %v172
    %174 = xla_tuple %v173
    %s175 = scalar_lea.vmem [#allocation0], 76
    %176 = vst [vmem:[%s175] sm:$0xf] %v173
    %s177 = scalar_lea.vmem %s0, 32
    %v178 = vld [vmem:[%s177] sm:$0xf]
    %s179 = scalar_lea.vmem %s1, 32
    %v180 = vld [vmem:[%s179] sm:$0xf]
    %181 = xla_tuple %v178, %v180
    %182 = xla_tuple %181
    %v183 = vrcp.pop %v180
    %v184 = vmul.f32 %v178, %v183
    %185 = xla_tuple %v184
    %s186 = scalar_lea.vmem [#allocation0], 32
    %187 = vst [vmem:[%s186] sm:$0xf] %v184
    %s188 = scalar_lea.vmem %s0, 80
    %v189 = vld [vmem:[%s188] sm:$0xf]
    %s190 = scalar_lea.vmem %s1, 80
    %v191 = vld [vmem:[%s190] sm:$0xf]
    %192 = xla_tuple %v189, %v191
    %193 = xla_tuple %192
    %v194 = vrcp.pop %v191
    %v195 = vmul.f32 %v189, %v194
    %196 = xla_tuple %v195
    %s197 = scalar_lea.vmem [#allocation0], 80
    %198 = vst [vmem:[%s197] sm:$0xf] %v195
    %s199 = scalar_lea.vmem %s0, 36
    %v200 = vld [vmem:[%s199] sm:$0xf]
    %s201 = scalar_lea.vmem %s1, 36
    %v202 = vld [vmem:[%s201] sm:$0xf]
    %203 = xla_tuple %v200, %v202
    %204 = xla_tuple %203
    %v205 = vrcp.pop %v202
    %v206 = vmul.f32 %v200, %v205
    %207 = xla_tuple %v206
    %s208 = scalar_lea.vmem [#allocation0], 36
    %209 = vst [vmem:[%s208] sm:$0xf] %v206
    %s210 = scalar_lea.vmem %s0, 84
    %v211 = vld [vmem:[%s210] sm:$0xf]
    %s212 = scalar_lea.vmem %s1, 84
    %v213 = vld [vmem:[%s212] sm:$0xf]
    %214 = xla_tuple %v211, %v213
    %215 = xla_tuple %214
    %v216 = vrcp.pop %v213
    %v217 = vmul.f32 %v211, %v216
    %218 = xla_tuple %v217
    %s219 = scalar_lea.vmem [#allocation0], 84
    %220 = vst [vmem:[%s219] sm:$0xf] %v217
    %s221 = scalar_lea.vmem %s0, 40
    %v222 = vld [vmem:[%s221] sm:$0xf]
    %s223 = scalar_lea.vmem %s1, 40
    %v224 = vld [vmem:[%s223] sm:$0xf]
    %225 = xla_tuple %v222, %v224
    %226 = xla_tuple %225
    %v227 = vrcp.pop %v224
    %v228 = vmul.f32 %v222, %v227
    %229 = xla_tuple %v228
    %s230 = scalar_lea.vmem [#allocation0], 40
    %231 = vst [vmem:[%s230] sm:$0xf] %v228
    %s232 = scalar_lea.vmem %s0, 88
    %v233 = vld [vmem:[%s232] sm:$0xf]
    %s234 = scalar_lea.vmem %s1, 88
    %v235 = vld [vmem:[%s234] sm:$0xf]
    %236 = xla_tuple %v233, %v235
    %237 = xla_tuple %236
    %v238 = vrcp.pop %v235
    %v239 = vmul.f32 %v233, %v238
    %240 = xla_tuple %v239
    %s241 = scalar_lea.vmem [#allocation0], 88
    %242 = vst [vmem:[%s241] sm:$0xf] %v239
    %s243 = scalar_lea.vmem %s0, 44
    %v244 = vld [vmem:[%s243] sm:$0xf]
    %s245 = scalar_lea.vmem %s1, 44
    %v246 = vld [vmem:[%s245] sm:$0xf]
    %247 = xla_tuple %v244, %v246
    %248 = xla_tuple %247
    %v249 = vrcp.pop %v246
    %v250 = vmul.f32 %v244, %v249
    %251 = xla_tuple %v250
    %s252 = scalar_lea.vmem [#allocation0], 44
    %253 = vst [vmem:[%s252] sm:$0xf] %v250
    %s254 = scalar_lea.vmem %s0, 92
    %v255 = vld [vmem:[%s254] sm:$0xf]
    %s256 = scalar_lea.vmem %s1, 92
    %v257 = vld [vmem:[%s256] sm:$0xf]
    %258 = xla_tuple %v255, %v257
    %259 = xla_tuple %258
    %v260 = vrcp.pop %v257
    %v261 = vmul.f32 %v255, %v260
    %262 = xla_tuple %v261
    %s263 = scalar_lea.vmem [#allocation0], 92
    %264 = vst [vmem:[%s263] sm:$0xf] %v261
    %s266 = ssub.s32 1536, 1536
    %267 = vsyncadd [#allocation1], %s266
    %s268 = sshll.u32 [#allocation0], 4
    %s269 = int_to_ptr.vmem [resolvable:$true] %s268
    %274 = dma.vmem_to_hbm [thread:$0]  %s269, 1536, %s2, [#allocation1], 64, 64, 4
    %275 = dma.done [#allocation1], 1536
    %276 = vsyncpa [#allocation1], 1

// kernel: diti_forward.1
$region0: #{diti_forward.1}
  #allocation0 [shape = 'u32[]', space=smem, size = 0x4, offset = 0x4, fixed_abs, tag = 'smem constant byte address 0x4 - core index']
  #allocation1 [shape = 'u32[144,128]{1,0:T(1,128)}', space=vmem, size = 0x12000, scoped, tag = 'internal scratch']
  %s0 = inlined_call_operand.vmem [shape: f32[32,64], index: 0, kind: input, shape index: {}]
  %s1 = inlined_call_operand.vmem [shape: f32[32,32], index: 1, kind: input, shape index: {}]
  %s2 = inlined_call_operand.vmem [shape: f32[2,256], index: 2, kind: input, shape index: {}]
  %s3 = inlined_call_operand.vmem [shape: f32[32,32], index: 3, kind: input, shape index: {}]
  %s4 = inlined_call_operand.vmem [shape: bf16[64,32], index: 4, kind: input, shape index: {}]
  %s5 = inlined_call_operand.vmem [shape: f32[1,32], index: 5, kind: input, shape index: {}]
  %s6 = inlined_call_operand.vmem [shape: bf16[256,32], index: 6, kind: input, shape index: {}]
  %s7 = inlined_call_operand.vmem [shape: f32[1,32], index: 7, kind: input, shape index: {}]
  %s8 = inlined_call_operand.vmem [shape: bf16[32,32], index: 8, kind: input, shape index: {}]
  %s9 = inlined_call_operand.vmem [shape: f32[1,32], index: 9, kind: input, shape index: {}]
  %s10 = inlined_call_operand.vmem [shape: bf16[2,6,32,32], index: 10, kind: input, shape index: {}]
  %s11 = inlined_call_operand.vmem [shape: f32[2,6,1,32], index: 11, kind: input, shape index: {}]
  %s12 = inlined_call_operand.vmem [shape: bf16[2,4,32,8], index: 12, kind: input, shape index: {}]
  %s13 = inlined_call_operand.vmem [shape: f32[2,4,1,8], index: 13, kind: input, shape index: {}]
  %s14 = inlined_call_operand.vmem [shape: bf16[2,4,32,8], index: 14, kind: input, shape index: {}]
  %s15 = inlined_call_operand.vmem [shape: f32[2,4,1,8], index: 15, kind: input, shape index: {}]
  %s16 = inlined_call_operand.vmem [shape: bf16[2,4,32,8], index: 16, kind: input, shape index: {}]
  %s17 = inlined_call_operand.vmem [shape: f32[2,4,1,8], index: 17, kind: input, shape index: {}]
  %s18 = inlined_call_operand.vmem [shape: bf16[2,4,8,32], index: 18, kind: input, shape index: {}]
  %s19 = inlined_call_operand.vmem [shape: f32[2,1,32], index: 19, kind: input, shape index: {}]
  %s20 = inlined_call_operand.vmem [shape: bf16[2,32,128], index: 20, kind: input, shape index: {}]
  %s21 = inlined_call_operand.vmem [shape: f32[2,1,128], index: 21, kind: input, shape index: {}]
  %s22 = inlined_call_operand.vmem [shape: bf16[2,128,32], index: 22, kind: input, shape index: {}]
  %s23 = inlined_call_operand.vmem [shape: f32[2,1,32], index: 23, kind: input, shape index: {}]
  %s24 = inlined_call_operand.vmem [shape: bf16[2,32,32], index: 24, kind: input, shape index: {}]
  %s25 = inlined_call_operand.vmem [shape: f32[2,1,32], index: 25, kind: input, shape index: {}]
  %s26 = inlined_call_operand.vmem [shape: bf16[32,64], index: 26, kind: input, shape index: {}]
  %s27 = inlined_call_operand.vmem [shape: f32[1,64], index: 27, kind: input, shape index: {}]
  %s28 = inlined_call_operand.vmem [shape: f32[32,64], index: 28, kind: output, shape index: {}]
  %s29 = sld [smem:[#allocation0]]
  $region122: #{diti_forward.1} parent=0
    _
  %s31 = ssub.s32 1, %s29
  %s32 = scalar_select 0, %s31, %s29
  // Predicated region
  $region2: #{diti_forward.1} parent=0 // pred_check
    _
  $region3: #{diti_forward.1} parent=0 // pred_check_branch
    %34 = sbr.rel (0) target = $region5
  $region4: #{diti_forward.1} parent=0 // pred_region
    _
  $region5: #{diti_forward.1} parent=0 // pred_fallthru
    _
  // Predicated region
  $region6: #{diti_forward.1} parent=0 // pred_check
    _
  $region7: #{diti_forward.1} parent=0 // pred_check_branch
    %36 = sbr.rel (0) target = $region9
  $region8: #{diti_forward.1} parent=0 // pred_region
    _
  $region9: #{diti_forward.1} parent=0 // pred_fallthru
    _
  // Predicated region
  $region10: #{diti_forward.1} parent=0 // pred_check
    _
  $region11: #{diti_forward.1} parent=0 // pred_check_branch
    %38 = sbr.rel (0) target = $region13
  $region12: #{diti_forward.1} parent=0 // pred_region
    _
  $region13: #{diti_forward.1} parent=0 // pred_fallthru
    _
  // Predicated region
  $region14: #{diti_forward.1} parent=0 // pred_check
    _
  $region15: #{diti_forward.1} parent=0 // pred_check_branch
    %40 = sbr.rel (0) target = $region17
  $region16: #{diti_forward.1} parent=0 // pred_region
    _
  $region17: #{diti_forward.1} parent=0 // pred_fallthru
    _
  // Predicated region
  $region18: #{diti_forward.1} parent=0 // pred_check
    _
  $region19: #{diti_forward.1} parent=0 // pred_check_branch
    %42 = sbr.rel (0) target = $region21
  $region20: #{diti_forward.1} parent=0 // pred_region
    _
  $region21: #{diti_forward.1} parent=0 // pred_fallthru
    _
  // Predicated region
  $region22: #{diti_forward.1} parent=0 // pred_check
    _
  $region23: #{diti_forward.1} parent=0 // pred_check_branch
    %44 = sbr.rel (0) target = $region25
  $region24: #{diti_forward.1} parent=0 // pred_region
    _
  $region25: #{diti_forward.1} parent=0 // pred_fallthru
    _
  // Predicated region
  $region26: #{diti_forward.1} parent=0 // pred_check
    _
  $region27: #{diti_forward.1} parent=0 // pred_check_branch
    %46 = sbr.rel (0) target = $region29
  $region28: #{diti_forward.1} parent=0 // pred_region
    _
  $region29: #{diti_forward.1} parent=0 // pred_fallthru
    _
  // Predicated region
  $region30: #{diti_forward.1} parent=0 // pred_check
    _
  $region31: #{diti_forward.1} parent=0 // pred_check_branch
    %48 = sbr.rel (0) target = $region33
  $region32: #{diti_forward.1} parent=0 // pred_region
    _
  $region33: #{diti_forward.1} parent=0 // pred_fallthru
    _
  // Predicated region
  $region34: #{diti_forward.1} parent=0 // pred_check
    _
  $region35: #{diti_forward.1} parent=0 // pred_check_branch
    %50 = sbr.rel (0) target = $region37
  $region36: #{diti_forward.1} parent=0 // pred_region
    _
  $region37: #{diti_forward.1} parent=0 // pred_fallthru
    _
  // Predicated region
  $region38: #{diti_forward.1} parent=0 // pred_check
    _
  $region39: #{diti_forward.1} parent=0 // pred_check_branch
    %52 = sbr.rel (0) target = $region41
  $region40: #{diti_forward.1} parent=0 // pred_region
    _
  $region41: #{diti_forward.1} parent=0 // pred_fallthru
    _
  // Predicated region
  $region42: #{diti_forward.1} parent=0 // pred_check
    _
  $region43: #{diti_forward.1} parent=0 // pred_check_branch
    %54 = sbr.rel (0) target = $region45
  $region44: #{diti_forward.1} parent=0 // pred_region
    _
  $region45: #{diti_forward.1} parent=0 // pred_fallthru
    _
  // Predicated region
  $region46: #{diti_forward.1} parent=0 // pred_check
    _
  $region47: #{diti_forward.1} parent=0 // pred_check_branch
    %56 = sbr.rel (0) target = $region49
  $region48: #{diti_forward.1} parent=0 // pred_region
    _
  $region49: #{diti_forward.1} parent=0 // pred_fallthru
    _
  // Predicated region
  $region50: #{diti_forward.1} parent=0 // pred_check
    _
  $region51: #{diti_forward.1} parent=0 // pred_check_branch
    %58 = sbr.rel (0) target = $region53
  $region52: #{diti_forward.1} parent=0 // pred_region
    _
  $region53: #{diti_forward.1} parent=0 // pred_fallthru
    _
  // Predicated region
  $region54: #{diti_forward.1} parent=0 // pred_check
    _
  $region55: #{diti_forward.1} parent=0 // pred_check_branch
    %60 = sbr.rel (0) target = $region57
  $region56: #{diti_forward.1} parent=0 // pred_region
    _
  $region57: #{diti_forward.1} parent=0 // pred_fallthru
    _
  // Predicated region
  $region58: #{diti_forward.1} parent=0 // pred_check
    _
  $region59: #{diti_forward.1} parent=0 // pred_check_branch
    %62 = sbr.rel (0) target = $region61
  $region60: #{diti_forward.1} parent=0 // pred_region
    _
  $region61: #{diti_forward.1} parent=0 // pred_fallthru
    _
  // Predicated region
  $region62: #{diti_forward.1} parent=0 // pred_check
    _
  $region63: #{diti_forward.1} parent=0 // pred_check_branch
    %64 = sbr.rel (0) target = $region65
  $region64: #{diti_forward.1} parent=0 // pred_region
    _
  $region65: #{diti_forward.1} parent=0 // pred_fallthru
    _
  // Predicated region
  $region66: #{diti_forward.1} parent=0 // pred_check
    _
  $region67: #{diti_forward.1} parent=0 // pred_check_branch
    %66 = sbr.rel (0) target = $region69
  $region68: #{diti_forward.1} parent=0 // pred_region
    _
  $region69: #{diti_forward.1} parent=0 // pred_fallthru
    _
  // Predicated region
  $region70: #{diti_forward.1} parent=0 // pred_check
    _
  $region71: #{diti_forward.1} parent=0 // pred_check_branch
    %68 = sbr.rel (0) target = $region73
  $region72: #{diti_forward.1} parent=0 // pred_region
    _
  $region73: #{diti_forward.1} parent=0 // pred_fallthru
    _
  // Predicated region
  $region74: #{diti_forward.1} parent=0 // pred_check
    _
  $region75: #{diti_forward.1} parent=0 // pred_check_branch
    %70 = sbr.rel (0) target = $region77
  $region76: #{diti_forward.1} parent=0 // pred_region
    _
  $region77: #{diti_forward.1} parent=0 // pred_fallthru
    _
  // Predicated region
  $region78: #{diti_forward.1} parent=0 // pred_check
    _
  $region79: #{diti_forward.1} parent=0 // pred_check_branch
    %72 = sbr.rel (0) target = $region81
  $region80: #{diti_forward.1} parent=0 // pred_region
    _
  $region81: #{diti_forward.1} parent=0 // pred_fallthru
    _
  // Predicated region
  $region82: #{diti_forward.1} parent=0 // pred_check
    _
  $region83: #{diti_forward.1} parent=0 // pred_check_branch
    %74 = sbr.rel (0) target = $region85
  $region84: #{diti_forward.1} parent=0 // pred_region
    _
  $region85: #{diti_forward.1} parent=0 // pred_fallthru
    _
  // Predicated region
  $region86: #{diti_forward.1} parent=0 // pred_check
    _
  $region87: #{diti_forward.1} parent=0 // pred_check_branch
    %76 = sbr.rel (0) target = $region89
  $region88: #{diti_forward.1} parent=0 // pred_region
    _
  $region89: #{diti_forward.1} parent=0 // pred_fallthru
    _
  // Predicated region
  $region90: #{diti_forward.1} parent=0 // pred_check
    _
  $region91: #{diti_forward.1} parent=0 // pred_check_branch
    %78 = sbr.rel (0) target = $region93
  $region92: #{diti_forward.1} parent=0 // pred_region
    _
  $region93: #{diti_forward.1} parent=0 // pred_fallthru
    _
  // Predicated region
  $region94: #{diti_forward.1} parent=0 // pred_check
    _
  $region95: #{diti_forward.1} parent=0 // pred_check_branch
    %80 = sbr.rel (0) target = $region97
  $region96: #{diti_forward.1} parent=0 // pred_region
    _
  $region97: #{diti_forward.1} parent=0 // pred_fallthru
    _
  // Predicated region
  $region98: #{diti_forward.1} parent=0 // pred_check
    _
  $region99: #{diti_forward.1} parent=0 // pred_check_branch
    %82 = sbr.rel (0) target = $region101
  $region100: #{diti_forward.1} parent=0 // pred_region
    _
  $region101: #{diti_forward.1} parent=0 // pred_fallthru
    _
  // Predicated region
  $region102: #{diti_forward.1} parent=0 // pred_check
    _
  $region103: #{diti_forward.1} parent=0 // pred_check_branch
    %84 = sbr.rel (0) target = $region105
  $region104: #{diti_forward.1} parent=0 // pred_region
    _
  $region105: #{diti_forward.1} parent=0 // pred_fallthru
    _
  // Predicated region
  $region106: #{diti_forward.1} parent=0 // pred_check
    _
  $region107: #{diti_forward.1} parent=0 // pred_check_branch
    %86 = sbr.rel (0) target = $region109
  $region108: #{diti_forward.1} parent=0 // pred_region
    _
  $region109: #{diti_forward.1} parent=0 // pred_fallthru
    _
  // Predicated region
  $region110: #{diti_forward.1} parent=0 // pred_check
    _
  $region111: #{diti_forward.1} parent=0 // pred_check_branch
    %88 = sbr.rel (0) target = $region113
  $region112: #{diti_forward.1} parent=0 // pred_region
    _
  $region113: #{diti_forward.1} parent=0 // pred_fallthru
    _
  %v90 = vld [vmem:[%s0] sm:$0xff]
  %v91 = vld [vmem:[%s0 + $0x8] sm:$0xff]
  %v92 = vld [vmem:[%s0 + $0x10] sm:$0xff]
  %v93 = vld [vmem:[%s0 + $0x18] sm:$0xff]
  %v94 = vld [vmem:[%s4] sm:$0xf]
  %v95 = vld [vmem:[%s4 + $0x4] sm:$0xf]
  %v96 = vld [vmem:[%s4 + $0x8] sm:$0xf]
  %v97 = vld [vmem:[%s4 + $0xc] sm:$0xf]
  %v98 = vld [vmem:[%s4 + $0x10] sm:$0xf]
  %v99 = vld [vmem:[%s4 + $0x14] sm:$0xf]
  %v100 = vld [vmem:[%s4 + $0x18] sm:$0xf]
  %v101 = vld [vmem:[%s4 + $0x1c] sm:$0xf]
  %v102 = vld [vmem:[%s5] sm:$0x1]
  %v103 = vpack.c.bf16 %v91, %v90
  %v104 = vpack.c.bf16 %v93, %v92
  %v106 = vlaneseq
  %v107 = vshrl.u32 %v106, 7
  %v108 = vsub.s32 0, %v107
  %v109 = vrot.slane %v102, %v108
  %v119 = vunpack.c.l.b16 %v94
  %v120 = vunpack.c.l.b16 %v95
  %v121 = vunpack.c.l.b16 %v96
  %v122 = vunpack.c.l.b16 %v97
  %v123 = vunpack.c.l.b16 %v98
  %v124 = vunpack.c.l.b16 %v99
  %v125 = vunpack.c.l.b16 %v100
  %v126 = vunpack.c.l.b16 %v101
  %v127 = vpack.c.b16 %v120, %v119
  %v128 = vpack.c.b16 %v122, %v121
  %v129 = vpack.c.b16 %v124, %v123
  %v130 = vpack.c.b16 %v126, %v125
  %vm135 = vcmask 523264
  %v137 = vsel %vm135, %v103, 0
  %v140 = vsel %vm135, %v104, 0
  %142 = vmatprep.subr.bf16.mxu0 0
  %143 = vmatpush1.bf16.msra.mxu0 0
  %144 = vmatprep.subr.bf16.mxu0 0
  %145 = vmatpush1.bf16.msra.mxu0 0
  %146 = vmatprep.subr.bf16.mxu0 0
  %147 = vmatpush1.bf16.msra.mxu0 0
  %148 = vmatprep.subr.bf16.mxu0 0
  %149 = vmatpush1.bf16.msra.mxu0 0
  %150 = vmatprep.subr.bf16.mxu0 0
  %151 = vmatpush1.bf16.msra.mxu0 %v130
  %152 = vmatprep.subr.bf16.mxu0 0
  %153 = vmatpush1.bf16.msra.mxu0 %v129
  %154 = vmatprep.subr.bf16.mxu0 0
  %155 = vmatpush1.bf16.msra.mxu0 %v128
  %156 = vmatprep.subr.bf16.mxu0 0
  %157 = vmatpush1.bf16.msra.mxu0 %v127
  %158 = vmatprep.subr.bf16.mxu0 0
  %159 = vmatpush2.bf16.msra.mxu0 0
  %160 = vmatprep.subr.bf16.mxu0 0
  %161 = vmatpush2.bf16.msra.mxu0 0
  %162 = vmatprep.subr.bf16.mxu0 0
  %163 = vmatpush2.bf16.msra.mxu0 0
  %164 = vmatprep.subr.bf16.mxu0 0
  %165 = vmatpush2.bf16.msra.mxu0 0
  %166 = vmatprep.subr.bf16.mxu0 0
  %167 = vmatpush2.bf16.msra.mxu0 0
  %168 = vmatprep.subr.bf16.mxu0 0
  %169 = vmatpush2.bf16.msra.mxu0 0
  %170 = vmatprep.subr.bf16.mxu0 0
  %171 = vmatpush2.bf16.msra.mxu0 0
  %172 = vmatprep.subr.bf16.mxu0 0
  %173 = vmatpush2.bf16.msra.mxu0 0
  %174 = vmatprep.mubr.bf16.mxu0 0
  %175 = vmatmul.mubr.bf16.gmra.mxu0 %v137
  %v176 = vpop.f32.mrf.mxu0
  %v177 = vadd.f32 %v109, %v176
  %v178 = vpop.f32.mrf.mxu0
  %v179 = vpop.f32.mrf.mxu0
  %v180 = vadd.f32 %v109, %v179
  %v181 = vpop.f32.mrf.mxu0
  %182 = vmatprep.mubr.bf16.mxu0 0
  %183 = vmatmul.mubr.bf16.gmra.mxu0 %v140
  %v184 = vpop.f32.mrf.mxu0
  %v185 = vadd.f32 %v109, %v184
  %v186 = vpop.f32.mrf.mxu0
  %v187 = vpop.f32.mrf.mxu0
  %v188 = vadd.f32 %v109, %v187
  %v189 = vpop.f32.mrf.mxu0
  %190 = vdwg.mxu0
  %v191 = vld [vmem:[%s1] sm:$0xff]
  %v192 = vld [vmem:[%s1 + $0x8] sm:$0xff]
  %v193 = vld [vmem:[%s1 + $0x10] sm:$0xff]
  %v194 = vld [vmem:[%s1 + $0x18] sm:$0xff]
  %v195 = vadd.f32 %v177, %v191
  %v196 = vadd.f32 %v180, %v192
  %v197 = vadd.f32 %v185, %v193
  %v198 = vadd.f32 %v188, %v194
  %v199 = vld [vmem:[%s2] sm:$0xf]
  %v200 = vld [vmem:[%s6] sm:$0xf]
  %v201 = vld [vmem:[%s6 + $0x4] sm:$0xf]
  %v202 = vld [vmem:[%s6 + $0x8] sm:$0xf]
  %v203 = vld [vmem:[%s6 + $0xc] sm:$0xf]
  %v204 = vld [vmem:[%s6 + $0x10] sm:$0xf]
  %v205 = vld [vmem:[%s6 + $0x14] sm:$0xf]
  %v206 = vld [vmem:[%s6 + $0x18] sm:$0xf]
  %v207 = vld [vmem:[%s6 + $0x1c] sm:$0xf]
  %v208 = vld [vmem:[%s6 + $0x20] sm:$0xf]
  %v209 = vld [vmem:[%s6 + $0x24] sm:$0xf]
  %v210 = vld [vmem:[%s6 + $0x28] sm:$0xf]
  %v211 = vld [vmem:[%s6 + $0x2c] sm:$0xf]
  %v212 = vld [vmem:[%s6 + $0x30] sm:$0xf]
  %v213 = vld [vmem:[%s6 + $0x34] sm:$0xf]
  %v214 = vld [vmem:[%s6 + $0x38] sm:$0xf]
  %v215 = vld [vmem:[%s6 + $0x3c] sm:$0xf]
  %v216 = vld [vmem:[%s6 + $0x40] sm:$0xf]
  %v217 = vld [vmem:[%s6 + $0x44] sm:$0xf]
  %v218 = vld [vmem:[%s6 + $0x48] sm:$0xf]
  %v219 = vld [vmem:[%s6 + $0x4c] sm:$0xf]
  %v220 = vld [vmem:[%s6 + $0x50] sm:$0xf]
  %v221 = vld [vmem:[%s6 + $0x54] sm:$0xf]
  %v222 = vld [vmem:[%s6 + $0x58] sm:$0xf]
  %v223 = vld [vmem:[%s6 + $0x5c] sm:$0xf]
  %v224 = vld [vmem:[%s6 + $0x60] sm:$0xf]
  %v225 = vld [vmem:[%s6 + $0x64] sm:$0xf]
  %v226 = vld [vmem:[%s6 + $0x68] sm:$0xf]
  %v227 = vld [vmem:[%s6 + $0x6c] sm:$0xf]
  %v228 = vld [vmem:[%s6 + $0x70] sm:$0xf]
  %v229 = vld [vmem:[%s6 + $0x74] sm:$0xf]
  %v230 = vld [vmem:[%s6 + $0x78] sm:$0xf]
  %v231 = vld [vmem:[%s6 + $0x7c] sm:$0xf]
  %v232 = vld [vmem:[%s7] sm:$0x1]
  %v235 = vunpack.c.l.s4 1983009808
  %v236 = vunpack.c.0.s8 %v235
  %v237 = vlaneseq
  %v238 = vshrl.u32 %v237, 7
  %v239 = vsub.s32 %v236, %v238
  %v240 = vrot.slane %v199, %v239
  %v241 = vcombine.high %v240, %v240
  %v244 = vpack.c.bf16 %v240, %v240
  %v245 = vpack.c.bf16 %v241, %v241
  %v247 = vlaneseq
  %v248 = vshrl.u32 %v247, 7
  %v249 = vsub.s32 0, %v248
  %v250 = vrot.slane %v232, %v249
  %v284 = vunpack.c.l.b16 %v200
  %v285 = vunpack.c.l.b16 %v201
  %v286 = vunpack.c.l.b16 %v202
  %v287 = vunpack.c.l.b16 %v203
  %v288 = vunpack.c.l.b16 %v204
  %v289 = vunpack.c.l.b16 %v205
  %v290 = vunpack.c.l.b16 %v206
  %v291 = vunpack.c.l.b16 %v207
  %v292 = vunpack.c.l.b16 %v208
  %v293 = vunpack.c.l.b16 %v209
  %v294 = vunpack.c.l.b16 %v210
  %v295 = vunpack.c.l.b16 %v211
  %v296 = vunpack.c.l.b16 %v212
  %v297 = vunpack.c.l.b16 %v213
  %v298 = vunpack.c.l.b16 %v214
  %v299 = vunpack.c.l.b16 %v215
  %v300 = vunpack.c.l.b16 %v216
  %v301 = vunpack.c.l.b16 %v217
  %v302 = vunpack.c.l.b16 %v218
  %v303 = vunpack.c.l.b16 %v219
  %v304 = vunpack.c.l.b16 %v220
  %v305 = vunpack.c.l.b16 %v221
  %v306 = vunpack.c.l.b16 %v222
  %v307 = vunpack.c.l.b16 %v223
  %v308 = vunpack.c.l.b16 %v224
  %v309 = vunpack.c.l.b16 %v225
  %v310 = vunpack.c.l.b16 %v226
  %v311 = vunpack.c.l.b16 %v227
  %v312 = vunpack.c.l.b16 %v228
  %v313 = vunpack.c.l.b16 %v229
  %v314 = vunpack.c.l.b16 %v230
  %v315 = vunpack.c.l.b16 %v231
  %v316 = vpack.c.b16 %v285, %v284
  %v317 = vpack.c.b16 %v287, %v286
  %v318 = vpack.c.b16 %v289, %v288
  %v319 = vpack.c.b16 %v291, %v290
  %v320 = vpack.c.b16 %v293, %v292
  %v321 = vpack.c.b16 %v295, %v294
  %v322 = vpack.c.b16 %v297, %v296
  %v323 = vpack.c.b16 %v299, %v298
  %v324 = vpack.c.b16 %v301, %v300
  %v325 = vpack.c.b16 %v303, %v302
  %v326 = vpack.c.b16 %v305, %v304
  %v327 = vpack.c.b16 %v307, %v306
  %v328 = vpack.c.b16 %v309, %v308
  %v329 = vpack.c.b16 %v311, %v310
  %v330 = vpack.c.b16 %v313, %v312
  %v331 = vpack.c.b16 %v315, %v314
  %348 = vmatprep.subr.bf16.mxu0 0
  %349 = vmatpush1.bf16.msra.mxu0 %v323
  %350 = vmatprep.subr.bf16.mxu0 0
  %351 = vmatpush1.bf16.msra.mxu0 %v322
  %352 = vmatprep.subr.bf16.mxu0 0
  %353 = vmatpush1.bf16.msra.mxu0 %v321
  %354 = vmatprep.subr.bf16.mxu0 0
  %355 = vmatpush1.bf16.msra.mxu0 %v320
  %356 = vmatprep.subr.bf16.mxu0 0
  %357 = vmatpush1.bf16.msra.mxu0 %v319
  %358 = vmatprep.subr.bf16.mxu0 0
  %359 = vmatpush1.bf16.msra.mxu0 %v318
  %360 = vmatprep.subr.bf16.mxu0 0
  %361 = vmatpush1.bf16.msra.mxu0 %v317
  %362 = vmatprep.subr.bf16.mxu0 0
  %363 = vmatpush1.bf16.msra.mxu0 %v316
  %364 = vmatprep.subr.bf16.mxu0 0
  %365 = vmatpush2.bf16.msra.mxu0 %v331
  %366 = vmatprep.subr.bf16.mxu0 0
  %367 = vmatpush2.bf16.msra.mxu0 %v330
  %368 = vmatprep.subr.bf16.mxu0 0
  %369 = vmatpush2.bf16.msra.mxu0 %v329
  %370 = vmatprep.subr.bf16.mxu0 0
  %371 = vmatpush2.bf16.msra.mxu0 %v328
  %372 = vmatprep.subr.bf16.mxu0 0
  %373 = vmatpush2.bf16.msra.mxu0 %v327
  %374 = vmatprep.subr.bf16.mxu0 0
  %375 = vmatpush2.bf16.msra.mxu0 %v326
  %376 = vmatprep.subr.bf16.mxu0 0
  %377 = vmatpush2.bf16.msra.mxu0 %v325
  %378 = vmatprep.subr.bf16.mxu0 0
  %379 = vmatpush2.bf16.msra.mxu0 %v324
  %380 = vmatprep.mubr.bf16.mxu0 %v245
  %381 = vmatmul.mubr.bf16.gmra.mxu0 %v244
  %v382 = vpop.f32.mrf.mxu0
  %v383 = vadd.f32 %v250, %v382
  %v384 = vpop.f32.mrf.mxu0
  %v385 = vpop.f32.mrf.mxu0
  %v386 = vpop.f32.mrf.mxu0
  %387 = vdwg.mxu0
  %v388 = vxor.u32 %v383, 2147483648
  %v389 = vmul.f32 %v388, 1.442695
  %v390 = vpow.pop %v389
  %v391 = vadd.f32 %v390, 1.0
  %v392 = vrcp.pop %v391
  %v393 = vmul.f32 1.0, %v392
  %v394 = vmul.f32 %v383, %v393
  %v395 = vld [vmem:[%s8] sm:$0xf]
  %v396 = vld [vmem:[%s8 + $0x4] sm:$0xf]
  %v397 = vld [vmem:[%s8 + $0x8] sm:$0xf]
  %v398 = vld [vmem:[%s8 + $0xc] sm:$0xf]
  %v399 = vld [vmem:[%s9] sm:$0x1]
  %v400 = vpack.c.bf16 %v394, %v394
  %v402 = vlaneseq
  %v403 = vshrl.u32 %v402, 7
  %v404 = vsub.s32 0, %v403
  %v405 = vrot.slane %v399, %v404
  %v411 = vunpack.c.l.b16 %v395
  %v412 = vunpack.c.l.b16 %v396
  %v413 = vunpack.c.l.b16 %v397
  %v414 = vunpack.c.l.b16 %v398
  %v415 = vpack.c.b16 %v412, %v411
  %v416 = vpack.c.b16 %v414, %v413
  %vm419 = vcmask 261120
  %v421 = vsel %vm419, %v400, 0
  %423 = vmatprep.subr.bf16.mxu0 0
  %424 = vmatpush1.bf16.msra.mxu0 0
  %425 = vmatprep.subr.bf16.mxu0 0
  %426 = vmatpush1.bf16.msra.mxu0 0
  %427 = vmatprep.subr.bf16.mxu0 0
  %428 = vmatpush1.bf16.msra.mxu0 0
  %429 = vmatprep.subr.bf16.mxu0 0
  %430 = vmatpush1.bf16.msra.mxu0 0
  %431 = vmatprep.subr.bf16.mxu0 0
  %432 = vmatpush1.bf16.msra.mxu0 0
  %433 = vmatprep.subr.bf16.mxu0 0
  %434 = vmatpush1.bf16.msra.mxu0 0
  %435 = vmatprep.subr.bf16.mxu0 0
  %436 = vmatpush1.bf16.msra.mxu0 %v416
  %437 = vmatprep.subr.bf16.mxu0 0
  %438 = vmatpush1.bf16.msra.mxu0 %v415
  %439 = vmatprep.subr.bf16.mxu0 0
  %440 = vmatpush2.bf16.msra.mxu0 0
  %441 = vmatprep.subr.bf16.mxu0 0
  %442 = vmatpush2.bf16.msra.mxu0 0
  %443 = vmatprep.subr.bf16.mxu0 0
  %444 = vmatpush2.bf16.msra.mxu0 0
  %445 = vmatprep.subr.bf16.mxu0 0
  %446 = vmatpush2.bf16.msra.mxu0 0
  %447 = vmatprep.subr.bf16.mxu0 0
  %448 = vmatpush2.bf16.msra.mxu0 0
  %449 = vmatprep.subr.bf16.mxu0 0
  %450 = vmatpush2.bf16.msra.mxu0 0
  %451 = vmatprep.subr.bf16.mxu0 0
  %452 = vmatpush2.bf16.msra.mxu0 0
  %453 = vmatprep.subr.bf16.mxu0 0
  %454 = vmatpush2.bf16.msra.mxu0 0
  %455 = vmatprep.mubr.bf16.mxu0 0
  %456 = vmatmul.mubr.bf16.gmra.mxu0 %v421
  %v457 = vpop.f32.mrf.mxu0
  %v458 = vadd.f32 %v405, %v457
  %v459 = vpop.f32.mrf.mxu0
  %v460 = vpop.f32.mrf.mxu0
  %v461 = vpop.f32.mrf.mxu0
  %462 = vdwg.mxu0
  %v463 = vxor.u32 %v458, 2147483648
  %v464 = vmul.f32 %v463, 1.442695
  %v465 = vpow.pop %v464
  %v466 = vadd.f32 %v465, 1.0
  %v467 = vrcp.pop %v466
  %v468 = vmul.f32 1.0, %v467
  %v469 = vmul.f32 %v458, %v468
  %v470 = vlaneseq
  %v471 = vshrl.u32 %v470, 7
  %v472 = vsub.s32 0, %v471
  %v473 = vrot.slane %v469, %v472
  %v474 = vlaneseq
  %v475 = vshrl.u32 %v474, 7
  %v476 = vsub.s32 1, %v475
  %v477 = vrot.slane %v469, %v476
  %v478 = vpack.c.bf16 %v473, %v473
  %v479 = vpack.c.bf16 %v477, %v477
  %v480 = vld [vmem:[%s3] sm:$0xff]
  %v481 = vld [vmem:[%s3 + $0x8] sm:$0xff]
  %v482 = vld [vmem:[%s3 + $0x10] sm:$0xff]
  %v483 = vld [vmem:[%s3 + $0x18] sm:$0xff]
  %v484 = vld [vmem:[%s10] sm:$0xf]
  %v485 = vld [vmem:[%s10 + $0x4] sm:$0xf]
  %v486 = vld [vmem:[%s10 + $0x8] sm:$0xf]
  %v487 = vld [vmem:[%s10 + $0xc] sm:$0xf]
  %v488 = vld [vmem:[%s11] sm:$0x1]
  %v490 = vlaneseq
  %v491 = vshrl.u32 %v490, 7
  %v492 = vsub.s32 0, %v491
  %v493 = vrot.slane %v488, %v492
  %v499 = vunpack.c.l.b16 %v484
  %v500 = vunpack.c.l.b16 %v485
  %v501 = vunpack.c.l.b16 %v486
  %v502 = vunpack.c.l.b16 %v487
  %v503 = vpack.c.b16 %v500, %v499
  %v504 = vpack.c.b16 %v502, %v501
  %v508 = vsel %vm419, %v478, 0
  %v511 = vsel %vm419, %v479, 0
  %513 = vmatprep.subr.bf16.mxu0 0
  %514 = vmatpush1.bf16.msra.mxu0 0
  %515 = vmatprep.subr.bf16.mxu0 0
  %516 = vmatpush1.bf16.msra.mxu0 0
  %517 = vmatprep.subr.bf16.mxu0 0
  %518 = vmatpush1.bf16.msra.mxu0 0
  %519 = vmatprep.subr.bf16.mxu0 0
  %520 = vmatpush1.bf16.msra.mxu0 0
  %521 = vmatprep.subr.bf16.mxu0 0
  %522 = vmatpush1.bf16.msra.mxu0 0
  %523 = vmatprep.subr.bf16.mxu0 0
  %524 = vmatpush1.bf16.msra.mxu0 0
  %525 = vmatprep.subr.bf16.mxu0 0
  %526 = vmatpush1.bf16.msra.mxu0 %v504
  %527 = vmatprep.subr.bf16.mxu0 0
  %528 = vmatpush1.bf16.msra.mxu0 %v503
  %529 = vmatprep.subr.bf16.mxu0 0
  %530 = vmatpush2.bf16.msra.mxu0 0
  %531 = vmatprep.subr.bf16.mxu0 0
  %532 = vmatpush2.bf16.msra.mxu0 0
  %533 = vmatprep.subr.bf16.mxu0 0
  %534 = vmatpush2.bf16.msra.mxu0 0
  %535 = vmatprep.subr.bf16.mxu0 0
  %536 = vmatpush2.bf16.msra.mxu0 0
  %537 = vmatprep.subr.bf16.mxu0 0
  %538 = vmatpush2.bf16.msra.mxu0 0
  %539 = vmatprep.subr.bf16.mxu0 0
  %540 = vmatpush2.bf16.msra.mxu0 0
  %541 = vmatprep.subr.bf16.mxu0 0
  %542 = vmatpush2.bf16.msra.mxu0 0
  %543 = vmatprep.subr.bf16.mxu0 0
  %544 = vmatpush2.bf16.msra.mxu0 0
  %545 = vmatprep.mubr.bf16.mxu0 0
  %546 = vmatmul.mubr.bf16.gmra.mxu0 %v508
  %v547 = vpop.f32.mrf.mxu0
  %v548 = vadd.f32 %v493, %v547
  %v549 = vpop.f32.mrf.mxu0
  %v550 = vpop.f32.mrf.mxu0
  %v551 = vadd.f32 %v493, %v550
  %v552 = vpop.f32.mrf.mxu0
  %553 = vmatprep.mubr.bf16.mxu0 0
  %554 = vmatmul.mubr.bf16.gmra.mxu0 %v511
  %v555 = vpop.f32.mrf.mxu0
  %v556 = vadd.f32 %v493, %v555
  %v557 = vpop.f32.mrf.mxu0
  %v558 = vpop.f32.mrf.mxu0
  %v559 = vadd.f32 %v493, %v558
  %v560 = vpop.f32.mrf.mxu0
  %561 = vdwg.mxu0
  %s562 = scalar_lea.vmem %s10, 16
  %v563 = vld [vmem:[%s562] sm:$0xf]
  %v564 = vld [vmem:[%s562 + $0x4] sm:$0xf]
  %v565 = vld [vmem:[%s562 + $0x8] sm:$0xf]
  %v566 = vld [vmem:[%s562 + $0xc] sm:$0xf]
  %s567 = scalar_lea.vmem %s11, 1
  %v568 = vld [vmem:[%s567] sm:$0x1]
  %v570 = vlaneseq
  %v571 = vshrl.u32 %v570, 7
  %v572 = vsub.s32 0, %v571
  %v573 = vrot.slane %v568, %v572
  %v579 = vunpack.c.l.b16 %v563
  %v580 = vunpack.c.l.b16 %v564
  %v581 = vunpack.c.l.b16 %v565
  %v582 = vunpack.c.l.b16 %v566
  %v583 = vpack.c.b16 %v580, %v579
  %v584 = vpack.c.b16 %v582, %v581
  %587 = vmatprep.subr.bf16.mxu0 0
  %588 = vmatpush1.bf16.msra.mxu0 0
  %589 = vmatprep.subr.bf16.mxu0 0
  %590 = vmatpush1.bf16.msra.mxu0 0
  %591 = vmatprep.subr.bf16.mxu0 0
  %592 = vmatpush1.bf16.msra.mxu0 0
  %593 = vmatprep.subr.bf16.mxu0 0
  %594 = vmatpush1.bf16.msra.mxu0 0
  %595 = vmatprep.subr.bf16.mxu0 0
  %596 = vmatpush1.bf16.msra.mxu0 0
  %597 = vmatprep.subr.bf16.mxu0 0
  %598 = vmatpush1.bf16.msra.mxu0 0
  %599 = vmatprep.subr.bf16.mxu0 0
  %600 = vmatpush1.bf16.msra.mxu0 %v584
  %601 = vmatprep.subr.bf16.mxu0 0
  %602 = vmatpush1.bf16.msra.mxu0 %v583
  %603 = vmatprep.subr.bf16.mxu0 0
  %604 = vmatpush2.bf16.msra.mxu0 0
  %605 = vmatprep.subr.bf16.mxu0 0
  %606 = vmatpush2.bf16.msra.mxu0 0
  %607 = vmatprep.subr.bf16.mxu0 0
  %608 = vmatpush2.bf16.msra.mxu0 0
  %609 = vmatprep.subr.bf16.mxu0 0
  %610 = vmatpush2.bf16.msra.mxu0 0
  %611 = vmatprep.subr.bf16.mxu0 0
  %612 = vmatpush2.bf16.msra.mxu0 0
  %613 = vmatprep.subr.bf16.mxu0 0
  %614 = vmatpush2.bf16.msra.mxu0 0
  %615 = vmatprep.subr.bf16.mxu0 0
  %616 = vmatpush2.bf16.msra.mxu0 0
  %617 = vmatprep.subr.bf16.mxu0 0
  %618 = vmatpush2.bf16.msra.mxu0 0
  %619 = vmatprep.mubr.bf16.mxu0 0
  %620 = vmatmul.mubr.bf16.gmra.mxu0 %v508
  %v621 = vpop.f32.mrf.mxu0
  %v622 = vadd.f32 %v573, %v621
  %v623 = vpop.f32.mrf.mxu0
  %v624 = vpop.f32.mrf.mxu0
  %v625 = vadd.f32 %v573, %v624
  %v626 = vpop.f32.mrf.mxu0
  %627 = vmatprep.mubr.bf16.mxu0 0
  %628 = vmatmul.mubr.bf16.gmra.mxu0 %v511
  %v629 = vpop.f32.mrf.mxu0
  %v630 = vadd.f32 %v573, %v629
  %v631 = vpop.f32.mrf.mxu0
  %v632 = vpop.f32.mrf.mxu0
  %v633 = vadd.f32 %v573, %v632
  %v634 = vpop.f32.mrf.mxu0
  %635 = vdwg.mxu0
  %s636 = scalar_lea.vmem %s10, 32
  %v637 = vld [vmem:[%s636] sm:$0xf]
  %v638 = vld [vmem:[%s636 + $0x4] sm:$0xf]
  %v639 = vld [vmem:[%s636 + $0x8] sm:$0xf]
  %v640 = vld [vmem:[%s636 + $0xc] sm:$0xf]
  %s641 = scalar_lea.vmem %s11, 2
  %v642 = vld [vmem:[%s641] sm:$0x1]
  %v644 = vlaneseq
  %v645 = vshrl.u32 %v644, 7
  %v646 = vsub.s32 0, %v645
  %v647 = vrot.slane %v642, %v646
  %v653 = vunpack.c.l.b16 %v637
  %v654 = vunpack.c.l.b16 %v638
  %v655 = vunpack.c.l.b16 %v639
  %v656 = vunpack.c.l.b16 %v640
  %v657 = vpack.c.b16 %v654, %v653
  %v658 = vpack.c.b16 %v656, %v655
  %661 = vmatprep.subr.bf16.mxu0 0
  %662 = vmatpush1.bf16.msra.mxu0 0
  %663 = vmatprep.subr.bf16.mxu0 0
  %664 = vmatpush1.bf16.msra.mxu0 0
  %665 = vmatprep.subr.bf16.mxu0 0
  %666 = vmatpush1.bf16.msra.mxu0 0
  %667 = vmatprep.subr.bf16.mxu0 0
  %668 = vmatpush1.bf16.msra.mxu0 0
  %669 = vmatprep.subr.bf16.mxu0 0
  %670 = vmatpush1.bf16.msra.mxu0 0
  %671 = vmatprep.subr.bf16.mxu0 0
  %672 = vmatpush1.bf16.msra.mxu0 0
  %673 = vmatprep.subr.bf16.mxu0 0
  %674 = vmatpush1.bf16.msra.mxu0 %v658
  %675 = vmatprep.subr.bf16.mxu0 0
  %676 = vmatpush1.bf16.msra.mxu0 %v657
  %677 = vmatprep.subr.bf16.mxu0 0
  %678 = vmatpush2.bf16.msra.mxu0 0
  %679 = vmatprep.subr.bf16.mxu0 0
  %680 = vmatpush2.bf16.msra.mxu0 0
  %681 = vmatprep.subr.bf16.mxu0 0
  %682 = vmatpush2.bf16.msra.mxu0 0
  %683 = vmatprep.subr.bf16.mxu0 0
  %684 = vmatpush2.bf16.msra.mxu0 0
  %685 = vmatprep.subr.bf16.mxu0 0
  %686 = vmatpush2.bf16.msra.mxu0 0
  %687 = vmatprep.subr.bf16.mxu0 0
  %688 = vmatpush2.bf16.msra.mxu0 0
  %689 = vmatprep.subr.bf16.mxu0 0
  %690 = vmatpush2.bf16.msra.mxu0 0
  %691 = vmatprep.subr.bf16.mxu0 0
  %692 = vmatpush2.bf16.msra.mxu0 0
  %693 = vmatprep.mubr.bf16.mxu0 0
  %694 = vmatmul.mubr.bf16.gmra.mxu0 %v508
  %v695 = vpop.f32.mrf.mxu0
  %v696 = vadd.f32 %v647, %v695
  %v697 = vpop.f32.mrf.mxu0
  %v698 = vpop.f32.mrf.mxu0
  %v699 = vadd.f32 %v647, %v698
  %v700 = vpop.f32.mrf.mxu0
  %701 = vmatprep.mubr.bf16.mxu0 0
  %702 = vmatmul.mubr.bf16.gmra.mxu0 %v511
  %v703 = vpop.f32.mrf.mxu0
  %v704 = vadd.f32 %v647, %v703
  %v705 = vpop.f32.mrf.mxu0
  %v706 = vpop.f32.mrf.mxu0
  %v707 = vadd.f32 %v647, %v706
  %v708 = vpop.f32.mrf.mxu0
  %709 = vdwg.mxu0
  %s710 = scalar_lea.vmem %s10, 48
  %v711 = vld [vmem:[%s710] sm:$0xf]
  %v712 = vld [vmem:[%s710 + $0x4] sm:$0xf]
  %v713 = vld [vmem:[%s710 + $0x8] sm:$0xf]
  %v714 = vld [vmem:[%s710 + $0xc] sm:$0xf]
  %s715 = scalar_lea.vmem %s11, 3
  %v716 = vld [vmem:[%s715] sm:$0x1]
  %v718 = vlaneseq
  %v719 = vshrl.u32 %v718, 7
  %v720 = vsub.s32 0, %v719
  %v721 = vrot.slane %v716, %v720
  %v727 = vunpack.c.l.b16 %v711
  %v728 = vunpack.c.l.b16 %v712
  %v729 = vunpack.c.l.b16 %v713
  %v730 = vunpack.c.l.b16 %v714
  %v731 = vpack.c.b16 %v728, %v727
  %v732 = vpack.c.b16 %v730, %v729
  %735 = vmatprep.subr.bf16.mxu0 0
  %736 = vmatpush1.bf16.msra.mxu0 0
  %737 = vmatprep.subr.bf16.mxu0 0
  %738 = vmatpush1.bf16.msra.mxu0 0
  %739 = vmatprep.subr.bf16.mxu0 0
  %740 = vmatpush1.bf16.msra.mxu0 0
  %741 = vmatprep.subr.bf16.mxu0 0
  %742 = vmatpush1.bf16.msra.mxu0 0
  %743 = vmatprep.subr.bf16.mxu0 0
  %744 = vmatpush1.bf16.msra.mxu0 0
  %745 = vmatprep.subr.bf16.mxu0 0
  %746 = vmatpush1.bf16.msra.mxu0 0
  %747 = vmatprep.subr.bf16.mxu0 0
  %748 = vmatpush1.bf16.msra.mxu0 %v732
  %749 = vmatprep.subr.bf16.mxu0 0
  %750 = vmatpush1.bf16.msra.mxu0 %v731
  %751 = vmatprep.subr.bf16.mxu0 0
  %752 = vmatpush2.bf16.msra.mxu0 0
  %753 = vmatprep.subr.bf16.mxu0 0
  %754 = vmatpush2.bf16.msra.mxu0 0
  %755 = vmatprep.subr.bf16.mxu0 0
  %756 = vmatpush2.bf16.msra.mxu0 0
  %757 = vmatprep.subr.bf16.mxu0 0
  %758 = vmatpush2.bf16.msra.mxu0 0
  %759 = vmatprep.subr.bf16.mxu0 0
  %760 = vmatpush2.bf16.msra.mxu0 0
  %761 = vmatprep.subr.bf16.mxu0 0
  %762 = vmatpush2.bf16.msra.mxu0 0
  %763 = vmatprep.subr.bf16.mxu0 0
  %764 = vmatpush2.bf16.msra.mxu0 0
  %765 = vmatprep.subr.bf16.mxu0 0
  %766 = vmatpush2.bf16.msra.mxu0 0
  %767 = vmatprep.mubr.bf16.mxu0 0
  %768 = vmatmul.mubr.bf16.gmra.mxu0 %v508
  %v769 = vpop.f32.mrf.mxu0
  %v770 = vadd.f32 %v721, %v769
  %v771 = vpop.f32.mrf.mxu0
  %v772 = vpop.f32.mrf.mxu0
  %v773 = vadd.f32 %v721, %v772
  %v774 = vpop.f32.mrf.mxu0
  %775 = vmatprep.mubr.bf16.mxu0 0
  %776 = vmatmul.mubr.bf16.gmra.mxu0 %v511
  %v777 = vpop.f32.mrf.mxu0
  %v778 = vadd.f32 %v721, %v777
  %v779 = vpop.f32.mrf.mxu0
  %v780 = vpop.f32.mrf.mxu0
  %v781 = vadd.f32 %v721, %v780
  %v782 = vpop.f32.mrf.mxu0
  %783 = vdwg.mxu0
  %s784 = scalar_lea.vmem %s10, 64
  %v785 = vld [vmem:[%s784] sm:$0xf]
  %v786 = vld [vmem:[%s784 + $0x4] sm:$0xf]
  %v787 = vld [vmem:[%s784 + $0x8] sm:$0xf]
  %v788 = vld [vmem:[%s784 + $0xc] sm:$0xf]
  %s789 = scalar_lea.vmem %s11, 4
  %v790 = vld [vmem:[%s789] sm:$0x1]
  %v792 = vlaneseq
  %v793 = vshrl.u32 %v792, 7
  %v794 = vsub.s32 0, %v793
  %v795 = vrot.slane %v790, %v794
  %v801 = vunpack.c.l.b16 %v785
  %v802 = vunpack.c.l.b16 %v786
  %v803 = vunpack.c.l.b16 %v787
  %v804 = vunpack.c.l.b16 %v788
  %v805 = vpack.c.b16 %v802, %v801
  %v806 = vpack.c.b16 %v804, %v803
  %809 = vmatprep.subr.bf16.mxu0 0
  %810 = vmatpush1.bf16.msra.mxu0 0
  %811 = vmatprep.subr.bf16.mxu0 0
  %812 = vmatpush1.bf16.msra.mxu0 0
  %813 = vmatprep.subr.bf16.mxu0 0
  %814 = vmatpush1.bf16.msra.mxu0 0
  %815 = vmatprep.subr.bf16.mxu0 0
  %816 = vmatpush1.bf16.msra.mxu0 0
  %817 = vmatprep.subr.bf16.mxu0 0
  %818 = vmatpush1.bf16.msra.mxu0 0
  %819 = vmatprep.subr.bf16.mxu0 0
  %820 = vmatpush1.bf16.msra.mxu0 0
  %821 = vmatprep.subr.bf16.mxu0 0
  %822 = vmatpush1.bf16.msra.mxu0 %v806
  %823 = vmatprep.subr.bf16.mxu0 0
  %824 = vmatpush1.bf16.msra.mxu0 %v805
  %825 = vmatprep.subr.bf16.mxu0 0
  %826 = vmatpush2.bf16.msra.mxu0 0
  %827 = vmatprep.subr.bf16.mxu0 0
  %828 = vmatpush2.bf16.msra.mxu0 0
  %829 = vmatprep.subr.bf16.mxu0 0
  %830 = vmatpush2.bf16.msra.mxu0 0
  %831 = vmatprep.subr.bf16.mxu0 0
  %832 = vmatpush2.bf16.msra.mxu0 0
  %833 = vmatprep.subr.bf16.mxu0 0
  %834 = vmatpush2.bf16.msra.mxu0 0
  %835 = vmatprep.subr.bf16.mxu0 0
  %836 = vmatpush2.bf16.msra.mxu0 0
  %837 = vmatprep.subr.bf16.mxu0 0
  %838 = vmatpush2.bf16.msra.mxu0 0
  %839 = vmatprep.subr.bf16.mxu0 0
  %840 = vmatpush2.bf16.msra.mxu0 0
  %841 = vmatprep.mubr.bf16.mxu0 0
  %842 = vmatmul.mubr.bf16.gmra.mxu0 %v508
  %v843 = vpop.f32.mrf.mxu0
  %v844 = vadd.f32 %v795, %v843
  %v845 = vpop.f32.mrf.mxu0
  %v846 = vpop.f32.mrf.mxu0
  %v847 = vadd.f32 %v795, %v846
  %v848 = vpop.f32.mrf.mxu0
  %849 = vmatprep.mubr.bf16.mxu0 0
  %850 = vmatmul.mubr.bf16.gmra.mxu0 %v511
  %v851 = vpop.f32.mrf.mxu0
  %v852 = vadd.f32 %v795, %v851
  %v853 = vpop.f32.mrf.mxu0
  %v854 = vpop.f32.mrf.mxu0
  %v855 = vadd.f32 %v795, %v854
  %v856 = vpop.f32.mrf.mxu0
  %857 = vdwg.mxu0
  %s858 = scalar_lea.vmem %s10, 80
  %v859 = vld [vmem:[%s858] sm:$0xf]
  %v860 = vld [vmem:[%s858 + $0x4] sm:$0xf]
  %v861 = vld [vmem:[%s858 + $0x8] sm:$0xf]
  %v862 = vld [vmem:[%s858 + $0xc] sm:$0xf]
  %s863 = scalar_lea.vmem %s11, 5
  %v864 = vld [vmem:[%s863] sm:$0x1]
  %v866 = vlaneseq
  %v867 = vshrl.u32 %v866, 7
  %v868 = vsub.s32 0, %v867
  %v869 = vrot.slane %v864, %v868
  %v875 = vunpack.c.l.b16 %v859
  %v876 = vunpack.c.l.b16 %v860
  %v877 = vunpack.c.l.b16 %v861
  %v878 = vunpack.c.l.b16 %v862
  %v879 = vpack.c.b16 %v876, %v875
  %v880 = vpack.c.b16 %v878, %v877
  %883 = vmatprep.subr.bf16.mxu0 0
  %884 = vmatpush1.bf16.msra.mxu0 0
  %885 = vmatprep.subr.bf16.mxu0 0
  %886 = vmatpush1.bf16.msra.mxu0 0
  %887 = vmatprep.subr.bf16.mxu0 0
  %888 = vmatpush1.bf16.msra.mxu0 0
  %889 = vmatprep.subr.bf16.mxu0 0
  %890 = vmatpush1.bf16.msra.mxu0 0
  %891 = vmatprep.subr.bf16.mxu0 0
  %892 = vmatpush1.bf16.msra.mxu0 0
  %893 = vmatprep.subr.bf16.mxu0 0
  %894 = vmatpush1.bf16.msra.mxu0 0
  %895 = vmatprep.subr.bf16.mxu0 0
  %896 = vmatpush1.bf16.msra.mxu0 %v880
  %897 = vmatprep.subr.bf16.mxu0 0
  %898 = vmatpush1.bf16.msra.mxu0 %v879
  %899 = vmatprep.subr.bf16.mxu0 0
  %900 = vmatpush2.bf16.msra.mxu0 0
  %901 = vmatprep.subr.bf16.mxu0 0
  %902 = vmatpush2.bf16.msra.mxu0 0
  %903 = vmatprep.subr.bf16.mxu0 0
  %904 = vmatpush2.bf16.msra.mxu0 0
  %905 = vmatprep.subr.bf16.mxu0 0
  %906 = vmatpush2.bf16.msra.mxu0 0
  %907 = vmatprep.subr.bf16.mxu0 0
  %908 = vmatpush2.bf16.msra.mxu0 0
  %909 = vmatprep.subr.bf16.mxu0 0
  %910 = vmatpush2.bf16.msra.mxu0 0
  %911 = vmatprep.subr.bf16.mxu0 0
  %912 = vmatpush2.bf16.msra.mxu0 0
  %913 = vmatprep.subr.bf16.mxu0 0
  %914 = vmatpush2.bf16.msra.mxu0 0
  %915 = vmatprep.mubr.bf16.mxu0 0
  %916 = vmatmul.mubr.bf16.gmra.mxu0 %v508
  %v917 = vpop.f32.mrf.mxu0
  %v918 = vadd.f32 %v869, %v917
  %v919 = vpop.f32.mrf.mxu0
  %v920 = vpop.f32.mrf.mxu0
  %v921 = vadd.f32 %v869, %v920
  %v922 = vpop.f32.mrf.mxu0
  %923 = vmatprep.mubr.bf16.mxu0 0
  %924 = vmatmul.mubr.bf16.gmra.mxu0 %v511
  %v925 = vpop.f32.mrf.mxu0
  %v926 = vadd.f32 %v869, %v925
  %v927 = vpop.f32.mrf.mxu0
  %v928 = vpop.f32.mrf.mxu0
  %v929 = vadd.f32 %v869, %v928
  %v930 = vpop.f32.mrf.mxu0
  %931 = vdwg.mxu0
  %v932 = vsel %vm419, %v195, 0.0
  %933 = vadd.xlane.f32.xlu0 %v932
  %v934 = vpop.xlane.xlu0 %933
  %v935 = vsel %vm419, %v196, 0.0
  %936 = vadd.xlane.f32.xlu0 %v935
  %v937 = vpop.xlane.xlu0 %936
  %v938 = vsel %vm419, %v197, 0.0
  %939 = vadd.xlane.f32.xlu0 %v938
  %v940 = vpop.xlane.xlu0 %939
  %v941 = vsel %vm419, %v198, 0.0
  %942 = vadd.xlane.f32.xlu0 %v941
  %v943 = vpop.xlane.xlu0 %942
  %v944 = vrcp.pop 32.0
  %v945 = vmul.f32 %v934, %v944
  %v946 = vmul.f32 %v937, %v944
  %v947 = vmul.f32 %v940, %v944
  %v948 = vmul.f32 %v943, %v944
  %v949 = vsub.f32 %v195, %v945
  %v950 = vsub.f32 %v196, %v946
  %v951 = vsub.f32 %v197, %v947
  %v952 = vsub.f32 %v198, %v948
  %v953 = vmul.f32 %v949, %v949
  %v954 = vmul.f32 %v950, %v950
  %v955 = vmul.f32 %v951, %v951
  %v956 = vmul.f32 %v952, %v952
  %v957 = vsel %vm419, %v953, 0.0
  %958 = vadd.xlane.f32.xlu0 %v957
  %v959 = vpop.xlane.xlu0 %958
  %v960 = vsel %vm419, %v954, 0.0
  %961 = vadd.xlane.f32.xlu0 %v960
  %v962 = vpop.xlane.xlu0 %961
  %v963 = vsel %vm419, %v955, 0.0
  %964 = vadd.xlane.f32.xlu0 %v963
  %v965 = vpop.xlane.xlu0 %964
  %v966 = vsel %vm419, %v956, 0.0
  %967 = vadd.xlane.f32.xlu0 %v966
  %v968 = vpop.xlane.xlu0 %967
  %v969 = vmul.f32 %v959, %v944
  %v970 = vmul.f32 %v962, %v944
  %v971 = vmul.f32 %v965, %v944
  %v972 = vmul.f32 %v968, %v944
  %v973 = vadd.f32 %v969, 1e-06
  %v974 = vadd.f32 %v970, 1e-06
  %v975 = vadd.f32 %v971, 1e-06
  %v976 = vadd.f32 %v972, 1e-06
  %v977 = vrsqrt.pop %v973
  %v978 = vrsqrt.pop %v974
  %v979 = vrsqrt.pop %v975
  %v980 = vrsqrt.pop %v976
  %v981 = vmul.f32 %v949, %v977
  %v982 = vmul.f32 %v950, %v978
  %v983 = vmul.f32 %v951, %v979
  %v984 = vmul.f32 %v952, %v980
  %v985 = vadd.f32 %v622, 1.0
  %v986 = vadd.f32 %v625, 1.0
  %v987 = vadd.f32 %v630, 1.0
  %v988 = vadd.f32 %v633, 1.0
  %v989 = vmul.f32 %v981, %v985
  %v990 = vmul.f32 %v982, %v986
  %v991 = vmul.f32 %v983, %v987
  %v992 = vmul.f32 %v984, %v988
  %v993 = vadd.f32 %v989, %v548
  %v994 = vadd.f32 %v990, %v551
  %v995 = vadd.f32 %v991, %v556
  %v996 = vadd.f32 %v992, %v559
  %v997 = vpack.c.bf16 %v994, %v993
  %v998 = vpack.c.bf16 %v996, %v995
  %v999 = vld [vmem:[%s12] sm:$0xf]
  %v1000 = vld [vmem:[%s12 + $0x4] sm:$0xf]
  %v1001 = vld [vmem:[%s12 + $0x8] sm:$0xf]
  %v1002 = vld [vmem:[%s12 + $0xc] sm:$0xf]
  %v1003 = vld [vmem:[%s13] sm:$0x1]
  %v1005 = vlaneseq
  %v1006 = vshrl.u32 %v1005, 7
  %v1007 = vsub.s32 0, %v1006
  %v1008 = vrot.slane %v1003, %v1007
  %v1014 = vunpack.c.l.b16 %v999
  %v1015 = vunpack.c.l.b16 %v1000
  %v1016 = vunpack.c.l.b16 %v1001
  %v1017 = vunpack.c.l.b16 %v1002
  %v1018 = vpack.c.b16 %v1015, %v1014
  %v1019 = vpack.c.b16 %v1017, %v1016
  %v1023 = vsel %vm419, %v997, 0
  %v1026 = vsel %vm419, %v998, 0
  %1028 = vmatprep.subr.bf16.mxu0 0
  %1029 = vmatpush1.bf16.msra.mxu0 0
  %1030 = vmatprep.subr.bf16.mxu0 0
  %1031 = vmatpush1.bf16.msra.mxu0 0
  %1032 = vmatprep.subr.bf16.mxu0 0
  %1033 = vmatpush1.bf16.msra.mxu0 0
  %1034 = vmatprep.subr.bf16.mxu0 0
  %1035 = vmatpush1.bf16.msra.mxu0 0
  %1036 = vmatprep.subr.bf16.mxu0 0
  %1037 = vmatpush1.bf16.msra.mxu0 0
  %1038 = vmatprep.subr.bf16.mxu0 0
  %1039 = vmatpush1.bf16.msra.mxu0 0
  %1040 = vmatprep.subr.bf16.mxu0 0
  %1041 = vmatpush1.bf16.msra.mxu0 %v1019
  %1042 = vmatprep.subr.bf16.mxu0 0
  %1043 = vmatpush1.bf16.msra.mxu0 %v1018
  %1044 = vmatprep.subr.bf16.mxu0 0
  %1045 = vmatpush2.bf16.msra.mxu0 0
  %1046 = vmatprep.subr.bf16.mxu0 0
  %1047 = vmatpush2.bf16.msra.mxu0 0
  %1048 = vmatprep.subr.bf16.mxu0 0
  %1049 = vmatpush2.bf16.msra.mxu0 0
  %1050 = vmatprep.subr.bf16.mxu0 0
  %1051 = vmatpush2.bf16.msra.mxu0 0
  %1052 = vmatprep.subr.bf16.mxu0 0
  %1053 = vmatpush2.bf16.msra.mxu0 0
  %1054 = vmatprep.subr.bf16.mxu0 0
  %1055 = vmatpush2.bf16.msra.mxu0 0
  %1056 = vmatprep.subr.bf16.mxu0 0
  %1057 = vmatpush2.bf16.msra.mxu0 0
  %1058 = vmatprep.subr.bf16.mxu0 0
  %1059 = vmatpush2.bf16.msra.mxu0 0
  %1060 = vmatprep.mubr.bf16.mxu0 0
  %1061 = vmatmul.mubr.bf16.gmra.mxu0 %v1023
  %v1062 = vpop.f32.mrf.mxu0
  %v1063 = vadd.f32 %v1008, %v1062
  %v1064 = vpop.f32.mrf.mxu0
  %v1065 = vpop.f32.mrf.mxu0
  %v1066 = vadd.f32 %v1008, %v1065
  %v1067 = vpop.f32.mrf.mxu0
  %1068 = vmatprep.mubr.bf16.mxu0 0
  %1069 = vmatmul.mubr.bf16.gmra.mxu0 %v1026
  %v1070 = vpop.f32.mrf.mxu0
  %v1071 = vadd.f32 %v1008, %v1070
  %v1072 = vpop.f32.mrf.mxu0
  %v1073 = vpop.f32.mrf.mxu0
  %v1074 = vadd.f32 %v1008, %v1073
  %v1075 = vpop.f32.mrf.mxu0
  %1076 = vdwg.mxu0
  %v1077 = vld [vmem:[%s14] sm:$0xf]
  %v1078 = vld [vmem:[%s14 + $0x4] sm:$0xf]
  %v1079 = vld [vmem:[%s14 + $0x8] sm:$0xf]
  %v1080 = vld [vmem:[%s14 + $0xc] sm:$0xf]
  %v1081 = vld [vmem:[%s15] sm:$0x1]
  %v1083 = vlaneseq
  %v1084 = vshrl.u32 %v1083, 7
  %v1085 = vsub.s32 0, %v1084
  %v1086 = vrot.slane %v1081, %v1085
  %v1092 = vunpack.c.l.b16 %v1077
  %v1093 = vunpack.c.l.b16 %v1078
  %v1094 = vunpack.c.l.b16 %v1079
  %v1095 = vunpack.c.l.b16 %v1080
  %v1096 = vpack.c.b16 %v1093, %v1092
  %v1097 = vpack.c.b16 %v1095, %v1094
  %1100 = vmatprep.subr.bf16.mxu0 0
  %1101 = vmatpush1.bf16.msra.mxu0 0
  %1102 = vmatprep.subr.bf16.mxu0 0
  %1103 = vmatpush1.bf16.msra.mxu0 0
  %1104 = vmatprep.subr.bf16.mxu0 0
  %1105 = vmatpush1.bf16.msra.mxu0 0
  %1106 = vmatprep.subr.bf16.mxu0 0
  %1107 = vmatpush1.bf16.msra.mxu0 0
  %1108 = vmatprep.subr.bf16.mxu0 0
  %1109 = vmatpush1.bf16.msra.mxu0 0
  %1110 = vmatprep.subr.bf16.mxu0 0
  %1111 = vmatpush1.bf16.msra.mxu0 0
  %1112 = vmatprep.subr.bf16.mxu0 0
  %1113 = vmatpush1.bf16.msra.mxu0 %v1097
  %1114 = vmatprep.subr.bf16.mxu0 0
  %1115 = vmatpush1.bf16.msra.mxu0 %v1096
  %1116 = vmatprep.subr.bf16.mxu0 0
  %1117 = vmatpush2.bf16.msra.mxu0 0
  %1118 = vmatprep.subr.bf16.mxu0 0
  %1119 = vmatpush2.bf16.msra.mxu0 0
  %1120 = vmatprep.subr.bf16.mxu0 0
  %1121 = vmatpush2.bf16.msra.mxu0 0
  %1122 = vmatprep.subr.bf16.mxu0 0
  %1123 = vmatpush2.bf16.msra.mxu0 0
  %1124 = vmatprep.subr.bf16.mxu0 0
  %1125 = vmatpush2.bf16.msra.mxu0 0
  %1126 = vmatprep.subr.bf16.mxu0 0
  %1127 = vmatpush2.bf16.msra.mxu0 0
  %1128 = vmatprep.subr.bf16.mxu0 0
  %1129 = vmatpush2.bf16.msra.mxu0 0
  %1130 = vmatprep.subr.bf16.mxu0 0
  %1131 = vmatpush2.bf16.msra.mxu0 0
  %1132 = vmatprep.mubr.bf16.mxu0 0
  %1133 = vmatmul.mubr.bf16.gmra.mxu0 %v1023
  %v1134 = vpop.f32.mrf.mxu0
  %v1135 = vadd.f32 %v1086, %v1134
  %v1136 = vpop.f32.mrf.mxu0
  %v1137 = vpop.f32.mrf.mxu0
  %v1138 = vadd.f32 %v1086, %v1137
  %v1139 = vpop.f32.mrf.mxu0
  %1140 = vmatprep.mubr.bf16.mxu0 0
  %1141 = vmatmul.mubr.bf16.gmra.mxu0 %v1026
  %v1142 = vpop.f32.mrf.mxu0
  %v1143 = vadd.f32 %v1086, %v1142
  %v1144 = vpop.f32.mrf.mxu0
  %v1145 = vpop.f32.mrf.mxu0
  %v1146 = vadd.f32 %v1086, %v1145
  %v1147 = vpop.f32.mrf.mxu0
  %1148 = vdwg.mxu0
  %v1149 = vld [vmem:[%s16] sm:$0xf]
  %v1150 = vld [vmem:[%s16 + $0x4] sm:$0xf]
  %v1151 = vld [vmem:[%s16 + $0x8] sm:$0xf]
  %v1152 = vld [vmem:[%s16 + $0xc] sm:$0xf]
  %v1153 = vld [vmem:[%s17] sm:$0x1]
  %v1155 = vlaneseq
  %v1156 = vshrl.u32 %v1155, 7
  %v1157 = vsub.s32 0, %v1156
  %v1158 = vrot.slane %v1153, %v1157
  %v1164 = vunpack.c.l.b16 %v1149
  %v1165 = vunpack.c.l.b16 %v1150
  %v1166 = vunpack.c.l.b16 %v1151
  %v1167 = vunpack.c.l.b16 %v1152
  %v1168 = vpack.c.b16 %v1165, %v1164
  %v1169 = vpack.c.b16 %v1167, %v1166
  %1172 = vmatprep.subr.bf16.mxu0 0
  %1173 = vmatpush1.bf16.msra.mxu0 0
  %1174 = vmatprep.subr.bf16.mxu0 0
  %1175 = vmatpush1.bf16.msra.mxu0 0
  %1176 = vmatprep.subr.bf16.mxu0 0
  %1177 = vmatpush1.bf16.msra.mxu0 0
  %1178 = vmatprep.subr.bf16.mxu0 0
  %1179 = vmatpush1.bf16.msra.mxu0 0
  %1180 = vmatprep.subr.bf16.mxu0 0
  %1181 = vmatpush1.bf16.msra.mxu0 0
  %1182 = vmatprep.subr.bf16.mxu0 0
  %1183 = vmatpush1.bf16.msra.mxu0 0
  %1184 = vmatprep.subr.bf16.mxu0 0
  %1185 = vmatpush1.bf16.msra.mxu0 %v1169
  %1186 = vmatprep.subr.bf16.mxu0 0
  %1187 = vmatpush1.bf16.msra.mxu0 %v1168
  %1188 = vmatprep.subr.bf16.mxu0 0
  %1189 = vmatpush2.bf16.msra.mxu0 0
  %1190 = vmatprep.subr.bf16.mxu0 0
  %1191 = vmatpush2.bf16.msra.mxu0 0
  %1192 = vmatprep.subr.bf16.mxu0 0
  %1193 = vmatpush2.bf16.msra.mxu0 0
  %1194 = vmatprep.subr.bf16.mxu0 0
  %1195 = vmatpush2.bf16.msra.mxu0 0
  %1196 = vmatprep.subr.bf16.mxu0 0
  %1197 = vmatpush2.bf16.msra.mxu0 0
  %1198 = vmatprep.subr.bf16.mxu0 0
  %1199 = vmatpush2.bf16.msra.mxu0 0
  %1200 = vmatprep.subr.bf16.mxu0 0
  %1201 = vmatpush2.bf16.msra.mxu0 0
  %1202 = vmatprep.subr.bf16.mxu0 0
  %1203 = vmatpush2.bf16.msra.mxu0 0
  %1204 = vmatprep.mubr.bf16.mxu0 0
  %1205 = vmatmul.mubr.bf16.gmra.mxu0 %v1023
  %v1206 = vpop.f32.mrf.mxu0
  %v1207 = vadd.f32 %v1158, %v1206
  %v1208 = vpop.f32.mrf.mxu0
  %v1209 = vpop.f32.mrf.mxu0
  %v1210 = vadd.f32 %v1158, %v1209
  %v1211 = vpop.f32.mrf.mxu0
  %1212 = vmatprep.mubr.bf16.mxu0 0
  %1213 = vmatmul.mubr.bf16.gmra.mxu0 %v1026
  %v1214 = vpop.f32.mrf.mxu0
  %v1215 = vadd.f32 %v1158, %v1214
  %v1216 = vpop.f32.mrf.mxu0
  %v1217 = vpop.f32.mrf.mxu0
  %v1218 = vadd.f32 %v1158, %v1217
  %v1219 = vpop.f32.mrf.mxu0
  %1220 = vdwg.mxu0
  %v1221 = vpack.c.bf16 %v1066, %v1063
  %v1222 = vpack.c.bf16 %v1074, %v1071
  %v1223 = vpack.c.bf16 %v1138, %v1135
  %v1224 = vpack.c.bf16 %v1146, %v1143
  %vm1225 = vcmask 64512
  %v1227 = vsel %vm1225, %v1221, 0
  %v1230 = vsel %vm1225, %v1222, 0
  %v1233 = vsel %vm1225, %v1223, 0
  %v1236 = vsel %vm1225, %v1224, 0
  %1238 = vmatprep.subr.bf16.mxu0 0
  %1239 = vmatpush1.bf16.xpose.msra.mxu0 0
  %1240 = vmatprep.subr.bf16.mxu0 0
  %1241 = vmatpush1.bf16.xpose.msra.mxu0 0
  %1242 = vmatprep.subr.bf16.mxu0 0
  %1243 = vmatpush1.bf16.xpose.msra.mxu0 0
  %1244 = vmatprep.subr.bf16.mxu0 0
  %1245 = vmatpush1.bf16.xpose.msra.mxu0 0
  %1246 = vmatprep.subr.bf16.mxu0 0
  %1247 = vmatpush1.bf16.xpose.msra.mxu0 0
  %1248 = vmatprep.subr.bf16.mxu0 0
  %1249 = vmatpush1.bf16.xpose.msra.mxu0 0
  %1250 = vmatprep.subr.bf16.mxu0 0
  %1251 = vmatpush1.bf16.xpose.msra.mxu0 %v1236
  %1252 = vmatprep.subr.bf16.mxu0 0
  %1253 = vmatpush1.bf16.xpose.msra.mxu0 %v1233
  %1254 = vmatprep.subr.bf16.mxu0 0
  %1255 = vmatpush2.bf16.xpose.msra.mxu0 0
  %1256 = vmatprep.subr.bf16.mxu0 0
  %1257 = vmatpush2.bf16.xpose.msra.mxu0 0
  %1258 = vmatprep.subr.bf16.mxu0 0
  %1259 = vmatpush2.bf16.xpose.msra.mxu0 0
  %1260 = vmatprep.subr.bf16.mxu0 0
  %1261 = vmatpush2.bf16.xpose.msra.mxu0 0
  %1262 = vmatprep.subr.bf16.mxu0 0
  %1263 = vmatpush2.bf16.xpose.msra.mxu0 0
  %1264 = vmatprep.subr.bf16.mxu0 0
  %1265 = vmatpush2.bf16.xpose.msra.mxu0 0
  %1266 = vmatprep.subr.bf16.mxu0 0
  %1267 = vmatpush2.bf16.xpose.msra.mxu0 0
  %1268 = vmatprep.subr.bf16.mxu0 0
  %1269 = vmatpush2.bf16.xpose.msra.mxu0 0
  %1270 = vmatprep.mubr.bf16.mxu0 0
  %1271 = vmatmul.mubr.bf16.gmra.mxu0 %v1227
  %v1272 = vpop.f32.mrf.mxu0
  %v1273 = vadd.f32 0.0, %v1272
  %v1274 = vpop.f32.mrf.mxu0
  %v1275 = vpop.f32.mrf.mxu0
  %v1276 = vadd.f32 0.0, %v1275
  %v1277 = vpop.f32.mrf.mxu0
  %1278 = vmatprep.mubr.bf16.mxu0 0
  %1279 = vmatmul.mubr.bf16.gmra.mxu0 %v1230
  %v1280 = vpop.f32.mrf.mxu0
  %v1281 = vadd.f32 0.0, %v1280
  %v1282 = vpop.f32.mrf.mxu0
  %v1283 = vpop.f32.mrf.mxu0
  %v1284 = vadd.f32 0.0, %v1283
  %v1285 = vpop.f32.mrf.mxu0
  %1286 = vdwg.mxu0
  %v1287 = vmul.f32 %v1273, 0.35355338
  %v1288 = vmul.f32 %v1276, 0.35355338
  %v1289 = vmul.f32 %v1281, 0.35355338
  %v1290 = vmul.f32 %v1284, 0.35355338
  %v1291 = vadd.f32 %v1287, %v480
  %v1292 = vadd.f32 %v1288, %v481
  %v1293 = vadd.f32 %v1289, %v482
  %v1294 = vadd.f32 %v1290, %v483
  %v1295 = vsel %vm419, %v1291, -inf
  %1296 = vmax.xlane.f32.xlu0 %v1295
  %v1297 = vpop.xlane.xlu0 %1296
  %v1298 = vsel %vm419, %v1292, -inf
  %1299 = vmax.xlane.f32.xlu0 %v1298
  %v1300 = vpop.xlane.xlu0 %1299
  %v1301 = vsel %vm419, %v1293, -inf
  %1302 = vmax.xlane.f32.xlu0 %v1301
  %v1303 = vpop.xlane.xlu0 %1302
  %v1304 = vsel %vm419, %v1294, -inf
  %1305 = vmax.xlane.f32.xlu0 %v1304
  %v1306 = vpop.xlane.xlu0 %1305
  %v1307 = vsub.f32 %v1291, %v1297
  %v1308 = vsub.f32 %v1292, %v1300
  %v1309 = vsub.f32 %v1293, %v1303
  %v1310 = vsub.f32 %v1294, %v1306
  %v1311 = vmul.f32 %v1307, 1.442695
  %v1312 = vpow.pop %v1311
  %v1313 = vmul.f32 %v1308, 1.442695
  %v1314 = vpow.pop %v1313
  %v1315 = vmul.f32 %v1309, 1.442695
  %v1316 = vpow.pop %v1315
  %v1317 = vmul.f32 %v1310, 1.442695
  %v1318 = vpow.pop %v1317
  %v1319 = vsel %vm419, %v1312, 0.0
  %1320 = vadd.xlane.f32.xlu0 %v1319
  %v1321 = vpop.xlane.xlu0 %1320
  %v1322 = vsel %vm419, %v1314, 0.0
  %1323 = vadd.xlane.f32.xlu0 %v1322
  %v1324 = vpop.xlane.xlu0 %1323
  %v1325 = vsel %vm419, %v1316, 0.0
  %1326 = vadd.xlane.f32.xlu0 %v1325
  %v1327 = vpop.xlane.xlu0 %1326
  %v1328 = vsel %vm419, %v1318, 0.0
  %1329 = vadd.xlane.f32.xlu0 %v1328
  %v1330 = vpop.xlane.xlu0 %1329
  %v1331 = vrcp.pop %v1321
  %v1332 = vrcp.pop %v1324
  %v1333 = vrcp.pop %v1327
  %v1334 = vrcp.pop %v1330
  %v1335 = vmul.f32 %v1312, %v1331
  %v1336 = vmul.f32 %v1314, %v1332
  %v1337 = vmul.f32 %v1316, %v1333
  %v1338 = vmul.f32 %v1318, %v1334
  %v1339 = vpack.c.bf16 %v1336, %v1335
  %v1340 = vpack.c.bf16 %v1338, %v1337
  %v1341 = vpack.c.bf16 %v1210, %v1207
  %v1342 = vpack.c.bf16 %v1218, %v1215
  %v1344 = vsel %vm419, %v1339, 0
  %v1347 = vsel %vm419, %v1340, 0
  %1349 = vmatprep.subr.bf16.mxu0 0
  %1350 = vmatpush1.bf16.msra.mxu0 0
  %1351 = vmatprep.subr.bf16.mxu0 0
  %1352 = vmatpush1.bf16.msra.mxu0 0
  %1353 = vmatprep.subr.bf16.mxu0 0
  %1354 = vmatpush1.bf16.msra.mxu0 0
  %1355 = vmatprep.subr.bf16.mxu0 0
  %1356 = vmatpush1.bf16.msra.mxu0 0
  %1357 = vmatprep.subr.bf16.mxu0 0
  %1358 = vmatpush1.bf16.msra.mxu0 0
  %1359 = vmatprep.subr.bf16.mxu0 0
  %1360 = vmatpush1.bf16.msra.mxu0 0
  %1361 = vmatprep.subr.bf16.mxu0 0
  %1362 = vmatpush1.bf16.msra.mxu0 %v1342
  %1363 = vmatprep.subr.bf16.mxu0 0
  %1364 = vmatpush1.bf16.msra.mxu0 %v1341
  %1365 = vmatprep.subr.bf16.mxu0 0
  %1366 = vmatpush2.bf16.msra.mxu0 0
  %1367 = vmatprep.subr.bf16.mxu0 0
  %1368 = vmatpush2.bf16.msra.mxu0 0
  %1369 = vmatprep.subr.bf16.mxu0 0
  %1370 = vmatpush2.bf16.msra.mxu0 0
  %1371 = vmatprep.subr.bf16.mxu0 0
  %1372 = vmatpush2.bf16.msra.mxu0 0
  %1373 = vmatprep.subr.bf16.mxu0 0
  %1374 = vmatpush2.bf16.msra.mxu0 0
  %1375 = vmatprep.subr.bf16.mxu0 0
  %1376 = vmatpush2.bf16.msra.mxu0 0
  %1377 = vmatprep.subr.bf16.mxu0 0
  %1378 = vmatpush2.bf16.msra.mxu0 0
  %1379 = vmatprep.subr.bf16.mxu0 0
  %1380 = vmatpush2.bf16.msra.mxu0 0
  %1381 = vmatprep.mubr.bf16.mxu0 0
  %1382 = vmatmul.mubr.bf16.gmra.mxu0 %v1344
  %v1383 = vpop.f32.mrf.mxu0
  %v1384 = vadd.f32 0.0, %v1383
  %v1385 = vpop.f32.mrf.mxu0
  %v1386 = vpop.f32.mrf.mxu0
  %v1387 = vadd.f32 0.0, %v1386
  %v1388 = vpop.f32.mrf.mxu0
  %1389 = vmatprep.mubr.bf16.mxu0 0
  %1390 = vmatmul.mubr.bf16.gmra.mxu0 %v1347
  %v1391 = vpop.f32.mrf.mxu0
  %v1392 = vadd.f32 0.0, %v1391
  %v1393 = vpop.f32.mrf.mxu0
  %v1394 = vpop.f32.mrf.mxu0
  %v1395 = vadd.f32 0.0, %v1394
  %v1396 = vpop.f32.mrf.mxu0
  %1397 = vdwg.mxu0
  %v1398 = vld [vmem:[%s18] sm:$0xf]
  %v1399 = vpack.c.bf16 %v1387, %v1384
  %v1400 = vpack.c.bf16 %v1395, %v1392
  %s1401 = scalar_lea.vmem %s12, 16
  %v1402 = vld [vmem:[%s1401] sm:$0xf]
  %v1403 = vld [vmem:[%s1401 + $0x4] sm:$0xf]
  %v1404 = vld [vmem:[%s1401 + $0x8] sm:$0xf]
  %v1405 = vld [vmem:[%s1401 + $0xc] sm:$0xf]
  %s1406 = scalar_lea.vmem %s13, 1
  %v1407 = vld [vmem:[%s1406] sm:$0x1]
  %v1409 = vlaneseq
  %v1410 = vshrl.u32 %v1409, 7
  %v1411 = vsub.s32 0, %v1410
  %v1412 = vrot.slane %v1407, %v1411
  %v1418 = vunpack.c.l.b16 %v1402
  %v1419 = vunpack.c.l.b16 %v1403
  %v1420 = vunpack.c.l.b16 %v1404
  %v1421 = vunpack.c.l.b16 %v1405
  %v1422 = vpack.c.b16 %v1419, %v1418
  %v1423 = vpack.c.b16 %v1421, %v1420
  %1426 = vmatprep.subr.bf16.mxu0 0
  %1427 = vmatpush1.bf16.msra.mxu0 0
  %1428 = vmatprep.subr.bf16.mxu0 0
  %1429 = vmatpush1.bf16.msra.mxu0 0
  %1430 = vmatprep.subr.bf16.mxu0 0
  %1431 = vmatpush1.bf16.msra.mxu0 0
  %1432 = vmatprep.subr.bf16.mxu0 0
  %1433 = vmatpush1.bf16.msra.mxu0 0
  %1434 = vmatprep.subr.bf16.mxu0 0
  %1435 = vmatpush1.bf16.msra.mxu0 0
  %1436 = vmatprep.subr.bf16.mxu0 0
  %1437 = vmatpush1.bf16.msra.mxu0 0
  %1438 = vmatprep.subr.bf16.mxu0 0
  %1439 = vmatpush1.bf16.msra.mxu0 %v1423
  %1440 = vmatprep.subr.bf16.mxu0 0
  %1441 = vmatpush1.bf16.msra.mxu0 %v1422
  %1442 = vmatprep.subr.bf16.mxu0 0
  %1443 = vmatpush2.bf16.msra.mxu0 0
  %1444 = vmatprep.subr.bf16.mxu0 0
  %1445 = vmatpush2.bf16.msra.mxu0 0
  %1446 = vmatprep.subr.bf16.mxu0 0
  %1447 = vmatpush2.bf16.msra.mxu0 0
  %1448 = vmatprep.subr.bf16.mxu0 0
  %1449 = vmatpush2.bf16.msra.mxu0 0
  %1450 = vmatprep.subr.bf16.mxu0 0
  %1451 = vmatpush2.bf16.msra.mxu0 0
  %1452 = vmatprep.subr.bf16.mxu0 0
  %1453 = vmatpush2.bf16.msra.mxu0 0
  %1454 = vmatprep.subr.bf16.mxu0 0
  %1455 = vmatpush2.bf16.msra.mxu0 0
  %1456 = vmatprep.subr.bf16.mxu0 0
  %1457 = vmatpush2.bf16.msra.mxu0 0
  %1458 = vmatprep.mubr.bf16.mxu0 0
  %1459 = vmatmul.mubr.bf16.gmra.mxu0 %v1023
  %v1460 = vpop.f32.mrf.mxu0
  %v1461 = vadd.f32 %v1412, %v1460
  %v1462 = vpop.f32.mrf.mxu0
  %v1463 = vpop.f32.mrf.mxu0
  %v1464 = vadd.f32 %v1412, %v1463
  %v1465 = vpop.f32.mrf.mxu0
  %1466 = vmatprep.mubr.bf16.mxu0 0
  %1467 = vmatmul.mubr.bf16.gmra.mxu0 %v1026
  %v1468 = vpop.f32.mrf.mxu0
  %v1469 = vadd.f32 %v1412, %v1468
  %v1470 = vpop.f32.mrf.mxu0
  %v1471 = vpop.f32.mrf.mxu0
  %v1472 = vadd.f32 %v1412, %v1471
  %v1473 = vpop.f32.mrf.mxu0
  %1474 = vdwg.mxu0
  %s1475 = scalar_lea.vmem %s14, 16
  %v1476 = vld [vmem:[%s1475] sm:$0xf]
  %v1477 = vld [vmem:[%s1475 + $0x4] sm:$0xf]
  %v1478 = vld [vmem:[%s1475 + $0x8] sm:$0xf]
  %v1479 = vld [vmem:[%s1475 + $0xc] sm:$0xf]
  %s1480 = scalar_lea.vmem %s15, 1
  %v1481 = vld [vmem:[%s1480] sm:$0x1]
  %v1483 = vlaneseq
  %v1484 = vshrl.u32 %v1483, 7
  %v1485 = vsub.s32 0, %v1484
  %v1486 = vrot.slane %v1481, %v1485
  %v1492 = vunpack.c.l.b16 %v1476
  %v1493 = vunpack.c.l.b16 %v1477
  %v1494 = vunpack.c.l.b16 %v1478
  %v1495 = vunpack.c.l.b16 %v1479
  %v1496 = vpack.c.b16 %v1493, %v1492
  %v1497 = vpack.c.b16 %v1495, %v1494
  %1500 = vmatprep.subr.bf16.mxu0 0
  %1501 = vmatpush1.bf16.msra.mxu0 0
  %1502 = vmatprep.subr.bf16.mxu0 0
  %1503 = vmatpush1.bf16.msra.mxu0 0
  %1504 = vmatprep.subr.bf16.mxu0 0
  %1505 = vmatpush1.bf16.msra.mxu0 0
  %1506 = vmatprep.subr.bf16.mxu0 0
  %1507 = vmatpush1.bf16.msra.mxu0 0
  %1508 = vmatprep.subr.bf16.mxu0 0
  %1509 = vmatpush1.bf16.msra.mxu0 0
  %1510 = vmatprep.subr.bf16.mxu0 0
  %1511 = vmatpush1.bf16.msra.mxu0 0
  %1512 = vmatprep.subr.bf16.mxu0 0
  %1513 = vmatpush1.bf16.msra.mxu0 %v1497
  %1514 = vmatprep.subr.bf16.mxu0 0
  %1515 = vmatpush1.bf16.msra.mxu0 %v1496
  %1516 = vmatprep.subr.bf16.mxu0 0
  %1517 = vmatpush2.bf16.msra.mxu0 0
  %1518 = vmatprep.subr.bf16.mxu0 0
  %1519 = vmatpush2.bf16.msra.mxu0 0
  %1520 = vmatprep.subr.bf16.mxu0 0
  %1521 = vmatpush2.bf16.msra.mxu0 0
  %1522 = vmatprep.subr.bf16.mxu0 0
  %1523 = vmatpush2.bf16.msra.mxu0 0
  %1524 = vmatprep.subr.bf16.mxu0 0
  %1525 = vmatpush2.bf16.msra.mxu0 0
  %1526 = vmatprep.subr.bf16.mxu0 0
  %1527 = vmatpush2.bf16.msra.mxu0 0
  %1528 = vmatprep.subr.bf16.mxu0 0
  %1529 = vmatpush2.bf16.msra.mxu0 0
  %1530 = vmatprep.subr.bf16.mxu0 0
  %1531 = vmatpush2.bf16.msra.mxu0 0
  %1532 = vmatprep.mubr.bf16.mxu0 0
  %1533 = vmatmul.mubr.bf16.gmra.mxu0 %v1023
  %v1534 = vpop.f32.mrf.mxu0
  %v1535 = vadd.f32 %v1486, %v1534
  %v1536 = vpop.f32.mrf.mxu0
  %v1537 = vpop.f32.mrf.mxu0
  %v1538 = vadd.f32 %v1486, %v1537
  %v1539 = vpop.f32.mrf.mxu0
  %1540 = vmatprep.mubr.bf16.mxu0 0
  %1541 = vmatmul.mubr.bf16.gmra.mxu0 %v1026
  %v1542 = vpop.f32.mrf.mxu0
  %v1543 = vadd.f32 %v1486, %v1542
  %v1544 = vpop.f32.mrf.mxu0
  %v1545 = vpop.f32.mrf.mxu0
  %v1546 = vadd.f32 %v1486, %v1545
  %v1547 = vpop.f32.mrf.mxu0
  %1548 = vdwg.mxu0
  %s1549 = scalar_lea.vmem %s16, 16
  %v1550 = vld [vmem:[%s1549] sm:$0xf]
  %v1551 = vld [vmem:[%s1549 + $0x4] sm:$0xf]
  %v1552 = vld [vmem:[%s1549 + $0x8] sm:$0xf]
  %v1553 = vld [vmem:[%s1549 + $0xc] sm:$0xf]
  %s1554 = scalar_lea.vmem %s17, 1
  %v1555 = vld [vmem:[%s1554] sm:$0x1]
  %v1557 = vlaneseq
  %v1558 = vshrl.u32 %v1557, 7
  %v1559 = vsub.s32 0, %v1558
  %v1560 = vrot.slane %v1555, %v1559
  %v1566 = vunpack.c.l.b16 %v1550
  %v1567 = vunpack.c.l.b16 %v1551
  %v1568 = vunpack.c.l.b16 %v1552
  %v1569 = vunpack.c.l.b16 %v1553
  %v1570 = vpack.c.b16 %v1567, %v1566
  %v1571 = vpack.c.b16 %v1569, %v1568
  %1574 = vmatprep.subr.bf16.mxu0 0
  %1575 = vmatpush1.bf16.msra.mxu0 0
  %1576 = vmatprep.subr.bf16.mxu0 0
  %1577 = vmatpush1.bf16.msra.mxu0 0
  %1578 = vmatprep.subr.bf16.mxu0 0
  %1579 = vmatpush1.bf16.msra.mxu0 0
  %1580 = vmatprep.subr.bf16.mxu0 0
  %1581 = vmatpush1.bf16.msra.mxu0 0
  %1582 = vmatprep.subr.bf16.mxu0 0
  %1583 = vmatpush1.bf16.msra.mxu0 0
  %1584 = vmatprep.subr.bf16.mxu0 0
  %1585 = vmatpush1.bf16.msra.mxu0 0
  %1586 = vmatprep.subr.bf16.mxu0 0
  %1587 = vmatpush1.bf16.msra.mxu0 %v1571
  %1588 = vmatprep.subr.bf16.mxu0 0
  %1589 = vmatpush1.bf16.msra.mxu0 %v1570
  %1590 = vmatprep.subr.bf16.mxu0 0
  %1591 = vmatpush2.bf16.msra.mxu0 0
  %1592 = vmatprep.subr.bf16.mxu0 0
  %1593 = vmatpush2.bf16.msra.mxu0 0
  %1594 = vmatprep.subr.bf16.mxu0 0
  %1595 = vmatpush2.bf16.msra.mxu0 0
  %1596 = vmatprep.subr.bf16.mxu0 0
  %1597 = vmatpush2.bf16.msra.mxu0 0
  %1598 = vmatprep.subr.bf16.mxu0 0
  %1599 = vmatpush2.bf16.msra.mxu0 0
  %1600 = vmatprep.subr.bf16.mxu0 0
  %1601 = vmatpush2.bf16.msra.mxu0 0
  %1602 = vmatprep.subr.bf16.mxu0 0
  %1603 = vmatpush2.bf16.msra.mxu0 0
  %1604 = vmatprep.subr.bf16.mxu0 0
  %1605 = vmatpush2.bf16.msra.mxu0 0
  %1606 = vmatprep.mubr.bf16.mxu0 0
  %1607 = vmatmul.mubr.bf16.gmra.mxu0 %v1023
  %v1608 = vpop.f32.mrf.mxu0
  %v1609 = vadd.f32 %v1560, %v1608
  %v1610 = vpop.f32.mrf.mxu0
  %v1611 = vpop.f32.mrf.mxu0
  %v1612 = vadd.f32 %v1560, %v1611
  %v1613 = vpop.f32.mrf.mxu0
  %1614 = vmatprep.mubr.bf16.mxu0 0
  %1615 = vmatmul.mubr.bf16.gmra.mxu0 %v1026
  %v1616 = vpop.f32.mrf.mxu0
  %v1617 = vadd.f32 %v1560, %v1616
  %v1618 = vpop.f32.mrf.mxu0
  %v1619 = vpop.f32.mrf.mxu0
  %v1620 = vadd.f32 %v1560, %v1619
  %v1621 = vpop.f32.mrf.mxu0
  %1622 = vdwg.mxu0
  %v1623 = vpack.c.bf16 %v1464, %v1461
  %v1624 = vpack.c.bf16 %v1472, %v1469
  %v1625 = vpack.c.bf16 %v1538, %v1535
  %v1626 = vpack.c.bf16 %v1546, %v1543
  %v1628 = vsel %vm1225, %v1623, 0
  %v1631 = vsel %vm1225, %v1624, 0
  %v1634 = vsel %vm1225, %v1625, 0
  %v1637 = vsel %vm1225, %v1626, 0
  %1639 = vmatprep.subr.bf16.mxu0 0
  %1640 = vmatpush1.bf16.xpose.msra.mxu0 0
  %1641 = vmatprep.subr.bf16.mxu0 0
  %1642 = vmatpush1.bf16.xpose.msra.mxu0 0
  %1643 = vmatprep.subr.bf16.mxu0 0
  %1644 = vmatpush1.bf16.xpose.msra.mxu0 0
  %1645 = vmatprep.subr.bf16.mxu0 0
  %1646 = vmatpush1.bf16.xpose.msra.mxu0 0
  %1647 = vmatprep.subr.bf16.mxu0 0
  %1648 = vmatpush1.bf16.xpose.msra.mxu0 0
  %1649 = vmatprep.subr.bf16.mxu0 0
  %1650 = vmatpush1.bf16.xpose.msra.mxu0 0
  %1651 = vmatprep.subr.bf16.mxu0 0
  %1652 = vmatpush1.bf16.xpose.msra.mxu0 %v1637
  %1653 = vmatprep.subr.bf16.mxu0 0
  %1654 = vmatpush1.bf16.xpose.msra.mxu0 %v1634
  %1655 = vmatprep.subr.bf16.mxu0 0
  %1656 = vmatpush2.bf16.xpose.msra.mxu0 0
  %1657 = vmatprep.subr.bf16.mxu0 0
  %1658 = vmatpush2.bf16.xpose.msra.mxu0 0
  %1659 = vmatprep.subr.bf16.mxu0 0
  %1660 = vmatpush2.bf16.xpose.msra.mxu0 0
  %1661 = vmatprep.subr.bf16.mxu0 0
  %1662 = vmatpush2.bf16.xpose.msra.mxu0 0
  %1663 = vmatprep.subr.bf16.mxu0 0
  %1664 = vmatpush2.bf16.xpose.msra.mxu0 0
  %1665 = vmatprep.subr.bf16.mxu0 0
  %1666 = vmatpush2.bf16.xpose.msra.mxu0 0
  %1667 = vmatprep.subr.bf16.mxu0 0
  %1668 = vmatpush2.bf16.xpose.msra.mxu0 0
  %1669 = vmatprep.subr.bf16.mxu0 0
  %1670 = vmatpush2.bf16.xpose.msra.mxu0 0
  %1671 = vmatprep.mubr.bf16.mxu0 0
  %1672 = vmatmul.mubr.bf16.gmra.mxu0 %v1628
  %v1673 = vpop.f32.mrf.mxu0
  %v1674 = vadd.f32 0.0, %v1673
  %v1675 = vpop.f32.mrf.mxu0
  %v1676 = vpop.f32.mrf.mxu0
  %v1677 = vadd.f32 0.0, %v1676
  %v1678 = vpop.f32.mrf.mxu0
  %1679 = vmatprep.mubr.bf16.mxu0 0
  %1680 = vmatmul.mubr.bf16.gmra.mxu0 %v1631
  %v1681 = vpop.f32.mrf.mxu0
  %v1682 = vadd.f32 0.0, %v1681
  %v1683 = vpop.f32.mrf.mxu0
  %v1684 = vpop.f32.mrf.mxu0
  %v1685 = vadd.f32 0.0, %v1684
  %v1686 = vpop.f32.mrf.mxu0
  %1687 = vdwg.mxu0
  %v1688 = vmul.f32 %v1674, 0.35355338
  %v1689 = vmul.f32 %v1677, 0.35355338
  %v1690 = vmul.f32 %v1682, 0.35355338
  %v1691 = vmul.f32 %v1685, 0.35355338
  %v1692 = vadd.f32 %v1688, %v480
  %v1693 = vadd.f32 %v1689, %v481
  %v1694 = vadd.f32 %v1690, %v482
  %v1695 = vadd.f32 %v1691, %v483
  %v1696 = vsel %vm419, %v1692, -inf
  %1697 = vmax.xlane.f32.xlu0 %v1696
  %v1698 = vpop.xlane.xlu0 %1697
  %v1699 = vsel %vm419, %v1693, -inf
  %1700 = vmax.xlane.f32.xlu0 %v1699
  %v1701 = vpop.xlane.xlu0 %1700
  %v1702 = vsel %vm419, %v1694, -inf
  %1703 = vmax.xlane.f32.xlu0 %v1702
  %v1704 = vpop.xlane.xlu0 %1703
  %v1705 = vsel %vm419, %v1695, -inf
  %1706 = vmax.xlane.f32.xlu0 %v1705
  %v1707 = vpop.xlane.xlu0 %1706
  %v1708 = vsub.f32 %v1692, %v1698
  %v1709 = vsub.f32 %v1693, %v1701
  %v1710 = vsub.f32 %v1694, %v1704
  %v1711 = vsub.f32 %v1695, %v1707
  %v1712 = vmul.f32 %v1708, 1.442695
  %v1713 = vpow.pop %v1712
  %v1714 = vmul.f32 %v1709, 1.442695
  %v1715 = vpow.pop %v1714
  %v1716 = vmul.f32 %v1710, 1.442695
  %v1717 = vpow.pop %v1716
  %v1718 = vmul.f32 %v1711, 1.442695
  %v1719 = vpow.pop %v1718
  %v1720 = vsel %vm419, %v1713, 0.0
  %1721 = vadd.xlane.f32.xlu0 %v1720
  %v1722 = vpop.xlane.xlu0 %1721
  %v1723 = vsel %vm419, %v1715, 0.0
  %1724 = vadd.xlane.f32.xlu0 %v1723
  %v1725 = vpop.xlane.xlu0 %1724
  %v1726 = vsel %vm419, %v1717, 0.0
  %1727 = vadd.xlane.f32.xlu0 %v1726
  %v1728 = vpop.xlane.xlu0 %1727
  %v1729 = vsel %vm419, %v1719, 0.0
  %1730 = vadd.xlane.f32.xlu0 %v1729
  %v1731 = vpop.xlane.xlu0 %1730
  %v1732 = vrcp.pop %v1722
  %v1733 = vrcp.pop %v1725
  %v1734 = vrcp.pop %v1728
  %v1735 = vrcp.pop %v1731
  %v1736 = vmul.f32 %v1713, %v1732
  %v1737 = vmul.f32 %v1715, %v1733
  %v1738 = vmul.f32 %v1717, %v1734
  %v1739 = vmul.f32 %v1719, %v1735
  %v1740 = vpack.c.bf16 %v1737, %v1736
  %v1741 = vpack.c.bf16 %v1739, %v1738
  %v1742 = vpack.c.bf16 %v1612, %v1609
  %v1743 = vpack.c.bf16 %v1620, %v1617
  %v1745 = vsel %vm419, %v1740, 0
  %v1748 = vsel %vm419, %v1741, 0
  %1750 = vmatprep.subr.bf16.mxu0 0
  %1751 = vmatpush1.bf16.msra.mxu0 0
  %1752 = vmatprep.subr.bf16.mxu0 0
  %1753 = vmatpush1.bf16.msra.mxu0 0
  %1754 = vmatprep.subr.bf16.mxu0 0
  %1755 = vmatpush1.bf16.msra.mxu0 0
  %1756 = vmatprep.subr.bf16.mxu0 0
  %1757 = vmatpush1.bf16.msra.mxu0 0
  %1758 = vmatprep.subr.bf16.mxu0 0
  %1759 = vmatpush1.bf16.msra.mxu0 0
  %1760 = vmatprep.subr.bf16.mxu0 0
  %1761 = vmatpush1.bf16.msra.mxu0 0
  %1762 = vmatprep.subr.bf16.mxu0 0
  %1763 = vmatpush1.bf16.msra.mxu0 %v1743
  %1764 = vmatprep.subr.bf16.mxu0 0
  %1765 = vmatpush1.bf16.msra.mxu0 %v1742
  %1766 = vmatprep.subr.bf16.mxu0 0
  %1767 = vmatpush2.bf16.msra.mxu0 0
  %1768 = vmatprep.subr.bf16.mxu0 0
  %1769 = vmatpush2.bf16.msra.mxu0 0
  %1770 = vmatprep.subr.bf16.mxu0 0
  %1771 = vmatpush2.bf16.msra.mxu0 0
  %1772 = vmatprep.subr.bf16.mxu0 0
  %1773 = vmatpush2.bf16.msra.mxu0 0
  %1774 = vmatprep.subr.bf16.mxu0 0
  %1775 = vmatpush2.bf16.msra.mxu0 0
  %1776 = vmatprep.subr.bf16.mxu0 0
  %1777 = vmatpush2.bf16.msra.mxu0 0
  %1778 = vmatprep.subr.bf16.mxu0 0
  %1779 = vmatpush2.bf16.msra.mxu0 0
  %1780 = vmatprep.subr.bf16.mxu0 0
  %1781 = vmatpush2.bf16.msra.mxu0 0
  %1782 = vmatprep.mubr.bf16.mxu0 0
  %1783 = vmatmul.mubr.bf16.gmra.mxu0 %v1745
  %v1784 = vpop.f32.mrf.mxu0
  %v1785 = vadd.f32 0.0, %v1784
  %v1786 = vpop.f32.mrf.mxu0
  %v1787 = vpop.f32.mrf.mxu0
  %v1788 = vadd.f32 0.0, %v1787
  %v1789 = vpop.f32.mrf.mxu0
  %1790 = vmatprep.mubr.bf16.mxu0 0
  %1791 = vmatmul.mubr.bf16.gmra.mxu0 %v1748
  %v1792 = vpop.f32.mrf.mxu0
  %v1793 = vadd.f32 0.0, %v1792
  %v1794 = vpop.f32.mrf.mxu0
  %v1795 = vpop.f32.mrf.mxu0
  %v1796 = vadd.f32 0.0, %v1795
  %v1797 = vpop.f32.mrf.mxu0
  %1798 = vdwg.mxu0
  %s1799 = scalar_lea.vmem %s18, 4
  %v1800 = vld [vmem:[%s1799] sm:$0xf]
  %v1801 = vpack.c.bf16 %v1788, %v1785
  %v1802 = vpack.c.bf16 %v1796, %v1793
  %v1804 = vsel %vm1225, %v1801, 0
  %v1807 = vsel %vm1225, %v1802, 0
  %vm1809 = vcmask 1043456
  %v1811 = vsel %vm1809, %v1800, 0
  %1813 = vmatprep.subr.bf16.mxu0 0
  %1814 = vmatpush1.bf16.msra.mxu0 0
  %1815 = vmatprep.subr.bf16.mxu0 0
  %1816 = vmatpush1.bf16.msra.mxu0 0
  %1817 = vmatprep.subr.bf16.mxu0 0
  %1818 = vmatpush1.bf16.msra.mxu0 0
  %1819 = vmatprep.subr.bf16.mxu0 0
  %1820 = vmatpush1.bf16.msra.mxu0 0
  %1821 = vmatprep.subr.bf16.mxu0 0
  %1822 = vmatpush1.bf16.msra.mxu0 0
  %1823 = vmatprep.subr.bf16.mxu0 0
  %1824 = vmatpush1.bf16.msra.mxu0 0
  %1825 = vmatprep.subr.bf16.mxu0 0
  %1826 = vmatpush1.bf16.msra.mxu0 0
  %1827 = vmatprep.subr.bf16.mxu0 0
  %1828 = vmatpush1.bf16.msra.mxu0 %v1811
  %1829 = vmatprep.subr.bf16.mxu0 0
  %1830 = vmatpush2.bf16.msra.mxu0 0
  %1831 = vmatprep.subr.bf16.mxu0 0
  %1832 = vmatpush2.bf16.msra.mxu0 0
  %1833 = vmatprep.subr.bf16.mxu0 0
  %1834 = vmatpush2.bf16.msra.mxu0 0
  %1835 = vmatprep.subr.bf16.mxu0 0
  %1836 = vmatpush2.bf16.msra.mxu0 0
  %1837 = vmatprep.subr.bf16.mxu0 0
  %1838 = vmatpush2.bf16.msra.mxu0 0
  %1839 = vmatprep.subr.bf16.mxu0 0
  %1840 = vmatpush2.bf16.msra.mxu0 0
  %1841 = vmatprep.subr.bf16.mxu0 0
  %1842 = vmatpush2.bf16.msra.mxu0 0
  %1843 = vmatprep.subr.bf16.mxu0 0
  %1844 = vmatpush2.bf16.msra.mxu0 0
  %1845 = vmatprep.mubr.bf16.mxu0 0
  %1846 = vmatmul.mubr.bf16.gmra.mxu0 %v1804
  %v1847 = vpop.f32.mrf.mxu0
  %v1848 = vadd.f32 0.0, %v1847
  %v1849 = vpop.f32.mrf.mxu0
  %v1850 = vpop.f32.mrf.mxu0
  %v1851 = vadd.f32 0.0, %v1850
  %v1852 = vpop.f32.mrf.mxu0
  %1853 = vmatprep.mubr.bf16.mxu0 0
  %1854 = vmatmul.mubr.bf16.gmra.mxu0 %v1807
  %v1855 = vpop.f32.mrf.mxu0
  %v1856 = vadd.f32 0.0, %v1855
  %v1857 = vpop.f32.mrf.mxu0
  %v1858 = vpop.f32.mrf.mxu0
  %v1859 = vadd.f32 0.0, %v1858
  %v1860 = vpop.f32.mrf.mxu0
  %1861 = vdwg.mxu0
  %v1863 = vsel %vm1225, %v1399, 0
  %v1866 = vsel %vm1225, %v1400, 0
  %v1869 = vsel %vm1809, %v1398, 0
  %1871 = vmatprep.subr.bf16.mxu0 0
  %1872 = vmatpush1.bf16.msra.mxu0 0
  %1873 = vmatprep.subr.bf16.mxu0 0
  %1874 = vmatpush1.bf16.msra.mxu0 0
  %1875 = vmatprep.subr.bf16.mxu0 0
  %1876 = vmatpush1.bf16.msra.mxu0 0
  %1877 = vmatprep.subr.bf16.mxu0 0
  %1878 = vmatpush1.bf16.msra.mxu0 0
  %1879 = vmatprep.subr.bf16.mxu0 0
  %1880 = vmatpush1.bf16.msra.mxu0 0
  %1881 = vmatprep.subr.bf16.mxu0 0
  %1882 = vmatpush1.bf16.msra.mxu0 0
  %1883 = vmatprep.subr.bf16.mxu0 0
  %1884 = vmatpush1.bf16.msra.mxu0 0
  %1885 = vmatprep.subr.bf16.mxu0 0
  %1886 = vmatpush1.bf16.msra.mxu0 %v1869
  %1887 = vmatprep.subr.bf16.mxu0 0
  %1888 = vmatpush2.bf16.msra.mxu0 0
  %1889 = vmatprep.subr.bf16.mxu0 0
  %1890 = vmatpush2.bf16.msra.mxu0 0
  %1891 = vmatprep.subr.bf16.mxu0 0
  %1892 = vmatpush2.bf16.msra.mxu0 0
  %1893 = vmatprep.subr.bf16.mxu0 0
  %1894 = vmatpush2.bf16.msra.mxu0 0
  %1895 = vmatprep.subr.bf16.mxu0 0
  %1896 = vmatpush2.bf16.msra.mxu0 0
  %1897 = vmatprep.subr.bf16.mxu0 0
  %1898 = vmatpush2.bf16.msra.mxu0 0
  %1899 = vmatprep.subr.bf16.mxu0 0
  %1900 = vmatpush2.bf16.msra.mxu0 0
  %1901 = vmatprep.subr.bf16.mxu0 0
  %1902 = vmatpush2.bf16.msra.mxu0 0
  %1903 = vmatprep.mubr.bf16.mxu0 0
  %1904 = vmatmul.mubr.bf16.gmra.mxu0 %v1863
  %v1905 = vpop.f32.mrf.mxu0
  %v1906 = vadd.f32 %v1848, %v1905
  %v1907 = vpop.f32.mrf.mxu0
  %v1908 = vpop.f32.mrf.mxu0
  %v1909 = vadd.f32 %v1851, %v1908
  %v1910 = vpop.f32.mrf.mxu0
  %1911 = vmatprep.mubr.bf16.mxu0 0
  %1912 = vmatmul.mubr.bf16.gmra.mxu0 %v1866
  %v1913 = vpop.f32.mrf.mxu0
  %v1914 = vadd.f32 %v1856, %v1913
  %v1915 = vpop.f32.mrf.mxu0
  %v1916 = vpop.f32.mrf.mxu0
  %v1917 = vadd.f32 %v1859, %v1916
  %v1918 = vpop.f32.mrf.mxu0
  %1919 = vdwg.mxu0
  %s1920 = scalar_lea.vmem %s12, 32
  %v1921 = vld [vmem:[%s1920] sm:$0xf]
  %v1922 = vld [vmem:[%s1920 + $0x4] sm:$0xf]
  %v1923 = vld [vmem:[%s1920 + $0x8] sm:$0xf]
  %v1924 = vld [vmem:[%s1920 + $0xc] sm:$0xf]
  %s1925 = scalar_lea.vmem %s13, 2
  %v1926 = vld [vmem:[%s1925] sm:$0x1]
  %v1928 = vlaneseq
  %v1929 = vshrl.u32 %v1928, 7
  %v1930 = vsub.s32 0, %v1929
  %v1931 = vrot.slane %v1926, %v1930
  %v1937 = vunpack.c.l.b16 %v1921
  %v1938 = vunpack.c.l.b16 %v1922
  %v1939 = vunpack.c.l.b16 %v1923
  %v1940 = vunpack.c.l.b16 %v1924
  %v1941 = vpack.c.b16 %v1938, %v1937
  %v1942 = vpack.c.b16 %v1940, %v1939
  %1945 = vmatprep.subr.bf16.mxu0 0
  %1946 = vmatpush1.bf16.msra.mxu0 0
  %1947 = vmatprep.subr.bf16.mxu0 0
  %1948 = vmatpush1.bf16.msra.mxu0 0
  %1949 = vmatprep.subr.bf16.mxu0 0
  %1950 = vmatpush1.bf16.msra.mxu0 0
  %1951 = vmatprep.subr.bf16.mxu0 0
  %1952 = vmatpush1.bf16.msra.mxu0 0
  %1953 = vmatprep.subr.bf16.mxu0 0
  %1954 = vmatpush1.bf16.msra.mxu0 0
  %1955 = vmatprep.subr.bf16.mxu0 0
  %1956 = vmatpush1.bf16.msra.mxu0 0
  %1957 = vmatprep.subr.bf16.mxu0 0
  %1958 = vmatpush1.bf16.msra.mxu0 %v1942
  %1959 = vmatprep.subr.bf16.mxu0 0
  %1960 = vmatpush1.bf16.msra.mxu0 %v1941
  %1961 = vmatprep.subr.bf16.mxu0 0
  %1962 = vmatpush2.bf16.msra.mxu0 0
  %1963 = vmatprep.subr.bf16.mxu0 0
  %1964 = vmatpush2.bf16.msra.mxu0 0
  %1965 = vmatprep.subr.bf16.mxu0 0
  %1966 = vmatpush2.bf16.msra.mxu0 0
  %1967 = vmatprep.subr.bf16.mxu0 0
  %1968 = vmatpush2.bf16.msra.mxu0 0
  %1969 = vmatprep.subr.bf16.mxu0 0
  %1970 = vmatpush2.bf16.msra.mxu0 0
  %1971 = vmatprep.subr.bf16.mxu0 0
  %1972 = vmatpush2.bf16.msra.mxu0 0
  %1973 = vmatprep.subr.bf16.mxu0 0
  %1974 = vmatpush2.bf16.msra.mxu0 0
  %1975 = vmatprep.subr.bf16.mxu0 0
  %1976 = vmatpush2.bf16.msra.mxu0 0
  %1977 = vmatprep.mubr.bf16.mxu0 0
  %1978 = vmatmul.mubr.bf16.gmra.mxu0 %v1023
  %v1979 = vpop.f32.mrf.mxu0
  %v1980 = vadd.f32 %v1931, %v1979
  %v1981 = vpop.f32.mrf.mxu0
  %v1982 = vpop.f32.mrf.mxu0
  %v1983 = vadd.f32 %v1931, %v1982
  %v1984 = vpop.f32.mrf.mxu0
  %1985 = vmatprep.mubr.bf16.mxu0 0
  %1986 = vmatmul.mubr.bf16.gmra.mxu0 %v1026
  %v1987 = vpop.f32.mrf.mxu0
  %v1988 = vadd.f32 %v1931, %v1987
  %v1989 = vpop.f32.mrf.mxu0
  %v1990 = vpop.f32.mrf.mxu0
  %v1991 = vadd.f32 %v1931, %v1990
  %v1992 = vpop.f32.mrf.mxu0
  %1993 = vdwg.mxu0
  %s1994 = scalar_lea.vmem %s14, 32
  %v1995 = vld [vmem:[%s1994] sm:$0xf]
  %v1996 = vld [vmem:[%s1994 + $0x4] sm:$0xf]
  %v1997 = vld [vmem:[%s1994 + $0x8] sm:$0xf]
  %v1998 = vld [vmem:[%s1994 + $0xc] sm:$0xf]
  %s1999 = scalar_lea.vmem %s15, 2
  %v2000 = vld [vmem:[%s1999] sm:$0x1]
  %v2002 = vlaneseq
  %v2003 = vshrl.u32 %v2002, 7
  %v2004 = vsub.s32 0, %v2003
  %v2005 = vrot.slane %v2000, %v2004
  %v2011 = vunpack.c.l.b16 %v1995
  %v2012 = vunpack.c.l.b16 %v1996
  %v2013 = vunpack.c.l.b16 %v1997
  %v2014 = vunpack.c.l.b16 %v1998
  %v2015 = vpack.c.b16 %v2012, %v2011
  %v2016 = vpack.c.b16 %v2014, %v2013
  %2019 = vmatprep.subr.bf16.mxu0 0
  %2020 = vmatpush1.bf16.msra.mxu0 0
  %2021 = vmatprep.subr.bf16.mxu0 0
  %2022 = vmatpush1.bf16.msra.mxu0 0
  %2023 = vmatprep.subr.bf16.mxu0 0
  %2024 = vmatpush1.bf16.msra.mxu0 0
  %2025 = vmatprep.subr.bf16.mxu0 0
  %2026 = vmatpush1.bf16.msra.mxu0 0
  %2027 = vmatprep.subr.bf16.mxu0 0
  %2028 = vmatpush1.bf16.msra.mxu0 0
  %2029 = vmatprep.subr.bf16.mxu0 0
  %2030 = vmatpush1.bf16.msra.mxu0 0
  %2031 = vmatprep.subr.bf16.mxu0 0
  %2032 = vmatpush1.bf16.msra.mxu0 %v2016
  %2033 = vmatprep.subr.bf16.mxu0 0
  %2034 = vmatpush1.bf16.msra.mxu0 %v2015
  %2035 = vmatprep.subr.bf16.mxu0 0
  %2036 = vmatpush2.bf16.msra.mxu0 0
  %2037 = vmatprep.subr.bf16.mxu0 0
  %2038 = vmatpush2.bf16.msra.mxu0 0
  %2039 = vmatprep.subr.bf16.mxu0 0
  %2040 = vmatpush2.bf16.msra.mxu0 0
  %2041 = vmatprep.subr.bf16.mxu0 0
  %2042 = vmatpush2.bf16.msra.mxu0 0
  %2043 = vmatprep.subr.bf16.mxu0 0
  %2044 = vmatpush2.bf16.msra.mxu0 0
  %2045 = vmatprep.subr.bf16.mxu0 0
  %2046 = vmatpush2.bf16.msra.mxu0 0
  %2047 = vmatprep.subr.bf16.mxu0 0
  %2048 = vmatpush2.bf16.msra.mxu0 0
  %2049 = vmatprep.subr.bf16.mxu0 0
  %2050 = vmatpush2.bf16.msra.mxu0 0
  %2051 = vmatprep.mubr.bf16.mxu0 0
  %2052 = vmatmul.mubr.bf16.gmra.mxu0 %v1023
  %v2053 = vpop.f32.mrf.mxu0
  %v2054 = vadd.f32 %v2005, %v2053
  %v2055 = vpop.f32.mrf.mxu0
  %v2056 = vpop.f32.mrf.mxu0
  %v2057 = vadd.f32 %v2005, %v2056
  %v2058 = vpop.f32.mrf.mxu0
  %2059 = vmatprep.mubr.bf16.mxu0 0
  %2060 = vmatmul.mubr.bf16.gmra.mxu0 %v1026
  %v2061 = vpop.f32.mrf.mxu0
  %v2062 = vadd.f32 %v2005, %v2061
  %v2063 = vpop.f32.mrf.mxu0
  %v2064 = vpop.f32.mrf.mxu0
  %v2065 = vadd.f32 %v2005, %v2064
  %v2066 = vpop.f32.mrf.mxu0
  %2067 = vdwg.mxu0
  %s2068 = scalar_lea.vmem %s16, 32
  %v2069 = vld [vmem:[%s2068] sm:$0xf]
  %v2070 = vld [vmem:[%s2068 + $0x4] sm:$0xf]
  %v2071 = vld [vmem:[%s2068 + $0x8] sm:$0xf]
  %v2072 = vld [vmem:[%s2068 + $0xc] sm:$0xf]
  %s2073 = scalar_lea.vmem %s17, 2
  %v2074 = vld [vmem:[%s2073] sm:$0x1]
  %v2076 = vlaneseq
  %v2077 = vshrl.u32 %v2076, 7
  %v2078 = vsub.s32 0, %v2077
  %v2079 = vrot.slane %v2074, %v2078
  %v2085 = vunpack.c.l.b16 %v2069
  %v2086 = vunpack.c.l.b16 %v2070
  %v2087 = vunpack.c.l.b16 %v2071
  %v2088 = vunpack.c.l.b16 %v2072
  %v2089 = vpack.c.b16 %v2086, %v2085
  %v2090 = vpack.c.b16 %v2088, %v2087
  %2093 = vmatprep.subr.bf16.mxu0 0
  %2094 = vmatpush1.bf16.msra.mxu0 0
  %2095 = vmatprep.subr.bf16.mxu0 0
  %2096 = vmatpush1.bf16.msra.mxu0 0
  %2097 = vmatprep.subr.bf16.mxu0 0
  %2098 = vmatpush1.bf16.msra.mxu0 0
  %2099 = vmatprep.subr.bf16.mxu0 0
  %2100 = vmatpush1.bf16.msra.mxu0 0
  %2101 = vmatprep.subr.bf16.mxu0 0
  %2102 = vmatpush1.bf16.msra.mxu0 0
  %2103 = vmatprep.subr.bf16.mxu0 0
  %2104 = vmatpush1.bf16.msra.mxu0 0
  %2105 = vmatprep.subr.bf16.mxu0 0
  %2106 = vmatpush1.bf16.msra.mxu0 %v2090
  %2107 = vmatprep.subr.bf16.mxu0 0
  %2108 = vmatpush1.bf16.msra.mxu0 %v2089
  %2109 = vmatprep.subr.bf16.mxu0 0
  %2110 = vmatpush2.bf16.msra.mxu0 0
  %2111 = vmatprep.subr.bf16.mxu0 0
  %2112 = vmatpush2.bf16.msra.mxu0 0
  %2113 = vmatprep.subr.bf16.mxu0 0
  %2114 = vmatpush2.bf16.msra.mxu0 0
  %2115 = vmatprep.subr.bf16.mxu0 0
  %2116 = vmatpush2.bf16.msra.mxu0 0
  %2117 = vmatprep.subr.bf16.mxu0 0
  %2118 = vmatpush2.bf16.msra.mxu0 0
  %2119 = vmatprep.subr.bf16.mxu0 0
  %2120 = vmatpush2.bf16.msra.mxu0 0
  %2121 = vmatprep.subr.bf16.mxu0 0
  %2122 = vmatpush2.bf16.msra.mxu0 0
  %2123 = vmatprep.subr.bf16.mxu0 0
  %2124 = vmatpush2.bf16.msra.mxu0 0
  %2125 = vmatprep.mubr.bf16.mxu0 0
  %2126 = vmatmul.mubr.bf16.gmra.mxu0 %v1023
  %v2127 = vpop.f32.mrf.mxu0
  %v2128 = vadd.f32 %v2079, %v2127
  %v2129 = vpop.f32.mrf.mxu0
  %v2130 = vpop.f32.mrf.mxu0
  %v2131 = vadd.f32 %v2079, %v2130
  %v2132 = vpop.f32.mrf.mxu0
  %2133 = vmatprep.mubr.bf16.mxu0 0
  %2134 = vmatmul.mubr.bf16.gmra.mxu0 %v1026
  %v2135 = vpop.f32.mrf.mxu0
  %v2136 = vadd.f32 %v2079, %v2135
  %v2137 = vpop.f32.mrf.mxu0
  %v2138 = vpop.f32.mrf.mxu0
  %v2139 = vadd.f32 %v2079, %v2138
  %v2140 = vpop.f32.mrf.mxu0
  %2141 = vdwg.mxu0
  %v2142 = vpack.c.bf16 %v1983, %v1980
  %v2143 = vpack.c.bf16 %v1991, %v1988
  %v2144 = vpack.c.bf16 %v2057, %v2054
  %v2145 = vpack.c.bf16 %v2065, %v2062
  %v2147 = vsel %vm1225, %v2142, 0
  %v2150 = vsel %vm1225, %v2143, 0
  %v2153 = vsel %vm1225, %v2144, 0
  %v2156 = vsel %vm1225, %v2145, 0
  %2158 = vmatprep.subr.bf16.mxu0 0
  %2159 = vmatpush1.bf16.xpose.msra.mxu0 0
  %2160 = vmatprep.subr.bf16.mxu0 0
  %2161 = vmatpush1.bf16.xpose.msra.mxu0 0
  %2162 = vmatprep.subr.bf16.mxu0 0
  %2163 = vmatpush1.bf16.xpose.msra.mxu0 0
  %2164 = vmatprep.subr.bf16.mxu0 0
  %2165 = vmatpush1.bf16.xpose.msra.mxu0 0
  %2166 = vmatprep.subr.bf16.mxu0 0
  %2167 = vmatpush1.bf16.xpose.msra.mxu0 0
  %2168 = vmatprep.subr.bf16.mxu0 0
  %2169 = vmatpush1.bf16.xpose.msra.mxu0 0
  %2170 = vmatprep.subr.bf16.mxu0 0
  %2171 = vmatpush1.bf16.xpose.msra.mxu0 %v2156
  %2172 = vmatprep.subr.bf16.mxu0 0
  %2173 = vmatpush1.bf16.xpose.msra.mxu0 %v2153
  %2174 = vmatprep.subr.bf16.mxu0 0
  %2175 = vmatpush2.bf16.xpose.msra.mxu0 0
  %2176 = vmatprep.subr.bf16.mxu0 0
  %2177 = vmatpush2.bf16.xpose.msra.mxu0 0
  %2178 = vmatprep.subr.bf16.mxu0 0
  %2179 = vmatpush2.bf16.xpose.msra.mxu0 0
  %2180 = vmatprep.subr.bf16.mxu0 0
  %2181 = vmatpush2.bf16.xpose.msra.mxu0 0
  %2182 = vmatprep.subr.bf16.mxu0 0
  %2183 = vmatpush2.bf16.xpose.msra.mxu0 0
  %2184 = vmatprep.subr.bf16.mxu0 0
  %2185 = vmatpush2.bf16.xpose.msra.mxu0 0
  %2186 = vmatprep.subr.bf16.mxu0 0
  %2187 = vmatpush2.bf16.xpose.msra.mxu0 0
  %2188 = vmatprep.subr.bf16.mxu0 0
  %2189 = vmatpush2.bf16.xpose.msra.mxu0 0
  %2190 = vmatprep.mubr.bf16.mxu0 0
  %2191 = vmatmul.mubr.bf16.gmra.mxu0 %v2147
  %v2192 = vpop.f32.mrf.mxu0
  %v2193 = vadd.f32 0.0, %v2192
  %v2194 = vpop.f32.mrf.mxu0
  %v2195 = vpop.f32.mrf.mxu0
  %v2196 = vadd.f32 0.0, %v2195
  %v2197 = vpop.f32.mrf.mxu0
  %2198 = vmatprep.mubr.bf16.mxu0 0
  %2199 = vmatmul.mubr.bf16.gmra.mxu0 %v2150
  %v2200 = vpop.f32.mrf.mxu0
  %v2201 = vadd.f32 0.0, %v2200
  %v2202 = vpop.f32.mrf.mxu0
  %v2203 = vpop.f32.mrf.mxu0
  %v2204 = vadd.f32 0.0, %v2203
  %v2205 = vpop.f32.mrf.mxu0
  %2206 = vdwg.mxu0
  %v2207 = vmul.f32 %v2193, 0.35355338
  %v2208 = vmul.f32 %v2196, 0.35355338
  %v2209 = vmul.f32 %v2201, 0.35355338
  %v2210 = vmul.f32 %v2204, 0.35355338
  %v2211 = vadd.f32 %v2207, %v480
  %v2212 = vadd.f32 %v2208, %v481
  %v2213 = vadd.f32 %v2209, %v482
  %v2214 = vadd.f32 %v2210, %v483
  %v2215 = vsel %vm419, %v2211, -inf
  %2216 = vmax.xlane.f32.xlu0 %v2215
  %v2217 = vpop.xlane.xlu0 %2216
  %v2218 = vsel %vm419, %v2212, -inf
  %2219 = vmax.xlane.f32.xlu0 %v2218
  %v2220 = vpop.xlane.xlu0 %2219
  %v2221 = vsel %vm419, %v2213, -inf
  %2222 = vmax.xlane.f32.xlu0 %v2221
  %v2223 = vpop.xlane.xlu0 %2222
  %v2224 = vsel %vm419, %v2214, -inf
  %2225 = vmax.xlane.f32.xlu0 %v2224
  %v2226 = vpop.xlane.xlu0 %2225
  %v2227 = vsub.f32 %v2211, %v2217
  %v2228 = vsub.f32 %v2212, %v2220
  %v2229 = vsub.f32 %v2213, %v2223
  %v2230 = vsub.f32 %v2214, %v2226
  %v2231 = vmul.f32 %v2227, 1.442695
  %v2232 = vpow.pop %v2231
  %v2233 = vmul.f32 %v2228, 1.442695
  %v2234 = vpow.pop %v2233
  %v2235 = vmul.f32 %v2229, 1.442695
  %v2236 = vpow.pop %v2235
  %v2237 = vmul.f32 %v2230, 1.442695
  %v2238 = vpow.pop %v2237
  %v2239 = vsel %vm419, %v2232, 0.0
  %2240 = vadd.xlane.f32.xlu0 %v2239
  %v2241 = vpop.xlane.xlu0 %2240
  %v2242 = vsel %vm419, %v2234, 0.0
  %2243 = vadd.xlane.f32.xlu0 %v2242
  %v2244 = vpop.xlane.xlu0 %2243
  %v2245 = vsel %vm419, %v2236, 0.0
  %2246 = vadd.xlane.f32.xlu0 %v2245
  %v2247 = vpop.xlane.xlu0 %2246
  %v2248 = vsel %vm419, %v2238, 0.0
  %2249 = vadd.xlane.f32.xlu0 %v2248
  %v2250 = vpop.xlane.xlu0 %2249
  %v2251 = vrcp.pop %v2241
  %v2252 = vrcp.pop %v2244
  %v2253 = vrcp.pop %v2247
  %v2254 = vrcp.pop %v2250
  %v2255 = vmul.f32 %v2232, %v2251
  %v2256 = vmul.f32 %v2234, %v2252
  %v2257 = vmul.f32 %v2236, %v2253
  %v2258 = vmul.f32 %v2238, %v2254
  %v2259 = vpack.c.bf16 %v2256, %v2255
  %v2260 = vpack.c.bf16 %v2258, %v2257
  %v2261 = vpack.c.bf16 %v2131, %v2128
  %v2262 = vpack.c.bf16 %v2139, %v2136
  %v2264 = vsel %vm419, %v2259, 0
  %v2267 = vsel %vm419, %v2260, 0
  %2269 = vmatprep.subr.bf16.mxu0 0
  %2270 = vmatpush1.bf16.msra.mxu0 0
  %2271 = vmatprep.subr.bf16.mxu0 0
  %2272 = vmatpush1.bf16.msra.mxu0 0
  %2273 = vmatprep.subr.bf16.mxu0 0
  %2274 = vmatpush1.bf16.msra.mxu0 0
  %2275 = vmatprep.subr.bf16.mxu0 0
  %2276 = vmatpush1.bf16.msra.mxu0 0
  %2277 = vmatprep.subr.bf16.mxu0 0
  %2278 = vmatpush1.bf16.msra.mxu0 0
  %2279 = vmatprep.subr.bf16.mxu0 0
  %2280 = vmatpush1.bf16.msra.mxu0 0
  %2281 = vmatprep.subr.bf16.mxu0 0
  %2282 = vmatpush1.bf16.msra.mxu0 %v2262
  %2283 = vmatprep.subr.bf16.mxu0 0
  %2284 = vmatpush1.bf16.msra.mxu0 %v2261
  %2285 = vmatprep.subr.bf16.mxu0 0
  %2286 = vmatpush2.bf16.msra.mxu0 0
  %2287 = vmatprep.subr.bf16.mxu0 0
  %2288 = vmatpush2.bf16.msra.mxu0 0
  %2289 = vmatprep.subr.bf16.mxu0 0
  %2290 = vmatpush2.bf16.msra.mxu0 0
  %2291 = vmatprep.subr.bf16.mxu0 0
  %2292 = vmatpush2.bf16.msra.mxu0 0
  %2293 = vmatprep.subr.bf16.mxu0 0
  %2294 = vmatpush2.bf16.msra.mxu0 0
  %2295 = vmatprep.subr.bf16.mxu0 0
  %2296 = vmatpush2.bf16.msra.mxu0 0
  %2297 = vmatprep.subr.bf16.mxu0 0
  %2298 = vmatpush2.bf16.msra.mxu0 0
  %2299 = vmatprep.subr.bf16.mxu0 0
  %2300 = vmatpush2.bf16.msra.mxu0 0
  %2301 = vmatprep.mubr.bf16.mxu0 0
  %2302 = vmatmul.mubr.bf16.gmra.mxu0 %v2264
  %v2303 = vpop.f32.mrf.mxu0
  %v2304 = vadd.f32 0.0, %v2303
  %v2305 = vpop.f32.mrf.mxu0
  %v2306 = vpop.f32.mrf.mxu0
  %v2307 = vadd.f32 0.0, %v2306
  %v2308 = vpop.f32.mrf.mxu0
  %2309 = vmatprep.mubr.bf16.mxu0 0
  %2310 = vmatmul.mubr.bf16.gmra.mxu0 %v2267
  %v2311 = vpop.f32.mrf.mxu0
  %v2312 = vadd.f32 0.0, %v2311
  %v2313 = vpop.f32.mrf.mxu0
  %v2314 = vpop.f32.mrf.mxu0
  %v2315 = vadd.f32 0.0, %v2314
  %v2316 = vpop.f32.mrf.mxu0
  %2317 = vdwg.mxu0
  %s2318 = scalar_lea.vmem %s18, 8
  %v2319 = vld [vmem:[%s2318] sm:$0xf]
  %v2320 = vpack.c.bf16 %v2307, %v2304
  %v2321 = vpack.c.bf16 %v2315, %v2312
  %v2323 = vsel %vm1225, %v2320, 0
  %v2326 = vsel %vm1225, %v2321, 0
  %v2329 = vsel %vm1809, %v2319, 0
  %2331 = vmatprep.subr.bf16.mxu0 0
  %2332 = vmatpush1.bf16.msra.mxu0 0
  %2333 = vmatprep.subr.bf16.mxu0 0
  %2334 = vmatpush1.bf16.msra.mxu0 0
  %2335 = vmatprep.subr.bf16.mxu0 0
  %2336 = vmatpush1.bf16.msra.mxu0 0
  %2337 = vmatprep.subr.bf16.mxu0 0
  %2338 = vmatpush1.bf16.msra.mxu0 0
  %2339 = vmatprep.subr.bf16.mxu0 0
  %2340 = vmatpush1.bf16.msra.mxu0 0
  %2341 = vmatprep.subr.bf16.mxu0 0
  %2342 = vmatpush1.bf16.msra.mxu0 0
  %2343 = vmatprep.subr.bf16.mxu0 0
  %2344 = vmatpush1.bf16.msra.mxu0 0
  %2345 = vmatprep.subr.bf16.mxu0 0
  %2346 = vmatpush1.bf16.msra.mxu0 %v2329
  %2347 = vmatprep.subr.bf16.mxu0 0
  %2348 = vmatpush2.bf16.msra.mxu0 0
  %2349 = vmatprep.subr.bf16.mxu0 0
  %2350 = vmatpush2.bf16.msra.mxu0 0
  %2351 = vmatprep.subr.bf16.mxu0 0
  %2352 = vmatpush2.bf16.msra.mxu0 0
  %2353 = vmatprep.subr.bf16.mxu0 0
  %2354 = vmatpush2.bf16.msra.mxu0 0
  %2355 = vmatprep.subr.bf16.mxu0 0
  %2356 = vmatpush2.bf16.msra.mxu0 0
  %2357 = vmatprep.subr.bf16.mxu0 0
  %2358 = vmatpush2.bf16.msra.mxu0 0
  %2359 = vmatprep.subr.bf16.mxu0 0
  %2360 = vmatpush2.bf16.msra.mxu0 0
  %2361 = vmatprep.subr.bf16.mxu0 0
  %2362 = vmatpush2.bf16.msra.mxu0 0
  %2363 = vmatprep.mubr.bf16.mxu0 0
  %2364 = vmatmul.mubr.bf16.gmra.mxu0 %v2323
  %v2365 = vpop.f32.mrf.mxu0
  %v2366 = vadd.f32 0.0, %v2365
  %v2367 = vpop.f32.mrf.mxu0
  %v2368 = vpop.f32.mrf.mxu0
  %v2369 = vadd.f32 0.0, %v2368
  %v2370 = vpop.f32.mrf.mxu0
  %2371 = vmatprep.mubr.bf16.mxu0 0
  %2372 = vmatmul.mubr.bf16.gmra.mxu0 %v2326
  %v2373 = vpop.f32.mrf.mxu0
  %v2374 = vadd.f32 0.0, %v2373
  %v2375 = vpop.f32.mrf.mxu0
  %v2376 = vpop.f32.mrf.mxu0
  %v2377 = vadd.f32 0.0, %v2376
  %v2378 = vpop.f32.mrf.mxu0
  %2379 = vdwg.mxu0
  %v2380 = vadd.f32 %v1906, %v2366
  %v2381 = vadd.f32 %v1909, %v2369
  %v2382 = vadd.f32 %v1914, %v2374
  %v2383 = vadd.f32 %v1917, %v2377
  %s2384 = scalar_lea.vmem %s12, 48
  %v2385 = vld [vmem:[%s2384] sm:$0xf]
  %v2386 = vld [vmem:[%s2384 + $0x4] sm:$0xf]
  %v2387 = vld [vmem:[%s2384 + $0x8] sm:$0xf]
  %v2388 = vld [vmem:[%s2384 + $0xc] sm:$0xf]
  %s2389 = scalar_lea.vmem %s13, 3
  %v2390 = vld [vmem:[%s2389] sm:$0x1]
  %v2392 = vlaneseq
  %v2393 = vshrl.u32 %v2392, 7
  %v2394 = vsub.s32 0, %v2393
  %v2395 = vrot.slane %v2390, %v2394
  %v2401 = vunpack.c.l.b16 %v2385
  %v2402 = vunpack.c.l.b16 %v2386
  %v2403 = vunpack.c.l.b16 %v2387
  %v2404 = vunpack.c.l.b16 %v2388
  %v2405 = vpack.c.b16 %v2402, %v2401
  %v2406 = vpack.c.b16 %v2404, %v2403
  %2409 = vmatprep.subr.bf16.mxu0 0
  %2410 = vmatpush1.bf16.msra.mxu0 0
  %2411 = vmatprep.subr.bf16.mxu0 0
  %2412 = vmatpush1.bf16.msra.mxu0 0
  %2413 = vmatprep.subr.bf16.mxu0 0
  %2414 = vmatpush1.bf16.msra.mxu0 0
  %2415 = vmatprep.subr.bf16.mxu0 0
  %2416 = vmatpush1.bf16.msra.mxu0 0
  %2417 = vmatprep.subr.bf16.mxu0 0
  %2418 = vmatpush1.bf16.msra.mxu0 0
  %2419 = vmatprep.subr.bf16.mxu0 0
  %2420 = vmatpush1.bf16.msra.mxu0 0
  %2421 = vmatprep.subr.bf16.mxu0 0
  %2422 = vmatpush1.bf16.msra.mxu0 %v2406
  %2423 = vmatprep.subr.bf16.mxu0 0
  %2424 = vmatpush1.bf16.msra.mxu0 %v2405
  %2425 = vmatprep.subr.bf16.mxu0 0
  %2426 = vmatpush2.bf16.msra.mxu0 0
  %2427 = vmatprep.subr.bf16.mxu0 0
  %2428 = vmatpush2.bf16.msra.mxu0 0
  %2429 = vmatprep.subr.bf16.mxu0 0
  %2430 = vmatpush2.bf16.msra.mxu0 0
  %2431 = vmatprep.subr.bf16.mxu0 0
  %2432 = vmatpush2.bf16.msra.mxu0 0
  %2433 = vmatprep.subr.bf16.mxu0 0
  %2434 = vmatpush2.bf16.msra.mxu0 0
  %2435 = vmatprep.subr.bf16.mxu0 0
  %2436 = vmatpush2.bf16.msra.mxu0 0
  %2437 = vmatprep.subr.bf16.mxu0 0
  %2438 = vmatpush2.bf16.msra.mxu0 0
  %2439 = vmatprep.subr.bf16.mxu0 0
  %2440 = vmatpush2.bf16.msra.mxu0 0
  %2441 = vmatprep.mubr.bf16.mxu0 0
  %2442 = vmatmul.mubr.bf16.gmra.mxu0 %v1023
  %v2443 = vpop.f32.mrf.mxu0
  %v2444 = vadd.f32 %v2395, %v2443
  %v2445 = vpop.f32.mrf.mxu0
  %v2446 = vpop.f32.mrf.mxu0
  %v2447 = vadd.f32 %v2395, %v2446
  %v2448 = vpop.f32.mrf.mxu0
  %2449 = vmatprep.mubr.bf16.mxu0 0
  %2450 = vmatmul.mubr.bf16.gmra.mxu0 %v1026
  %v2451 = vpop.f32.mrf.mxu0
  %v2452 = vadd.f32 %v2395, %v2451
  %v2453 = vpop.f32.mrf.mxu0
  %v2454 = vpop.f32.mrf.mxu0
  %v2455 = vadd.f32 %v2395, %v2454
  %v2456 = vpop.f32.mrf.mxu0
  %2457 = vdwg.mxu0
  %s2458 = scalar_lea.vmem %s14, 48
  %v2459 = vld [vmem:[%s2458] sm:$0xf]
  %v2460 = vld [vmem:[%s2458 + $0x4] sm:$0xf]
  %v2461 = vld [vmem:[%s2458 + $0x8] sm:$0xf]
  %v2462 = vld [vmem:[%s2458 + $0xc] sm:$0xf]
  %s2463 = scalar_lea.vmem %s15, 3
  %v2464 = vld [vmem:[%s2463] sm:$0x1]
  %v2466 = vlaneseq
  %v2467 = vshrl.u32 %v2466, 7
  %v2468 = vsub.s32 0, %v2467
  %v2469 = vrot.slane %v2464, %v2468
  %v2475 = vunpack.c.l.b16 %v2459
  %v2476 = vunpack.c.l.b16 %v2460
  %v2477 = vunpack.c.l.b16 %v2461
  %v2478 = vunpack.c.l.b16 %v2462
  %v2479 = vpack.c.b16 %v2476, %v2475
  %v2480 = vpack.c.b16 %v2478, %v2477
  %2483 = vmatprep.subr.bf16.mxu0 0
  %2484 = vmatpush1.bf16.msra.mxu0 0
  %2485 = vmatprep.subr.bf16.mxu0 0
  %2486 = vmatpush1.bf16.msra.mxu0 0
  %2487 = vmatprep.subr.bf16.mxu0 0
  %2488 = vmatpush1.bf16.msra.mxu0 0
  %2489 = vmatprep.subr.bf16.mxu0 0
  %2490 = vmatpush1.bf16.msra.mxu0 0
  %2491 = vmatprep.subr.bf16.mxu0 0
  %2492 = vmatpush1.bf16.msra.mxu0 0
  %2493 = vmatprep.subr.bf16.mxu0 0
  %2494 = vmatpush1.bf16.msra.mxu0 0
  %2495 = vmatprep.subr.bf16.mxu0 0
  %2496 = vmatpush1.bf16.msra.mxu0 %v2480
  %2497 = vmatprep.subr.bf16.mxu0 0
  %2498 = vmatpush1.bf16.msra.mxu0 %v2479
  %2499 = vmatprep.subr.bf16.mxu0 0
  %2500 = vmatpush2.bf16.msra.mxu0 0
  %2501 = vmatprep.subr.bf16.mxu0 0
  %2502 = vmatpush2.bf16.msra.mxu0 0
  %2503 = vmatprep.subr.bf16.mxu0 0
  %2504 = vmatpush2.bf16.msra.mxu0 0
  %2505 = vmatprep.subr.bf16.mxu0 0
  %2506 = vmatpush2.bf16.msra.mxu0 0
  %2507 = vmatprep.subr.bf16.mxu0 0
  %2508 = vmatpush2.bf16.msra.mxu0 0
  %2509 = vmatprep.subr.bf16.mxu0 0
  %2510 = vmatpush2.bf16.msra.mxu0 0
  %2511 = vmatprep.subr.bf16.mxu0 0
  %2512 = vmatpush2.bf16.msra.mxu0 0
  %2513 = vmatprep.subr.bf16.mxu0 0
  %2514 = vmatpush2.bf16.msra.mxu0 0
  %2515 = vmatprep.mubr.bf16.mxu0 0
  %2516 = vmatmul.mubr.bf16.gmra.mxu0 %v1023
  %v2517 = vpop.f32.mrf.mxu0
  %v2518 = vadd.f32 %v2469, %v2517
  %v2519 = vpop.f32.mrf.mxu0
  %v2520 = vpop.f32.mrf.mxu0
  %v2521 = vadd.f32 %v2469, %v2520
  %v2522 = vpop.f32.mrf.mxu0
  %2523 = vmatprep.mubr.bf16.mxu0 0
  %2524 = vmatmul.mubr.bf16.gmra.mxu0 %v1026
  %v2525 = vpop.f32.mrf.mxu0
  %v2526 = vadd.f32 %v2469, %v2525
  %v2527 = vpop.f32.mrf.mxu0
  %v2528 = vpop.f32.mrf.mxu0
  %v2529 = vadd.f32 %v2469, %v2528
  %v2530 = vpop.f32.mrf.mxu0
  %2531 = vdwg.mxu0
  %s2532 = scalar_lea.vmem %s16, 48
  %v2533 = vld [vmem:[%s2532] sm:$0xf]
  %v2534 = vld [vmem:[%s2532 + $0x4] sm:$0xf]
  %v2535 = vld [vmem:[%s2532 + $0x8] sm:$0xf]
  %v2536 = vld [vmem:[%s2532 + $0xc] sm:$0xf]
  %s2537 = scalar_lea.vmem %s17, 3
  %v2538 = vld [vmem:[%s2537] sm:$0x1]
  %v2540 = vlaneseq
  %v2541 = vshrl.u32 %v2540, 7
  %v2542 = vsub.s32 0, %v2541
  %v2543 = vrot.slane %v2538, %v2542
  %v2549 = vunpack.c.l.b16 %v2533
  %v2550 = vunpack.c.l.b16 %v2534
  %v2551 = vunpack.c.l.b16 %v2535
  %v2552 = vunpack.c.l.b16 %v2536
  %v2553 = vpack.c.b16 %v2550, %v2549
  %v2554 = vpack.c.b16 %v2552, %v2551
  %2557 = vmatprep.subr.bf16.mxu0 0
  %2558 = vmatpush1.bf16.msra.mxu0 0
  %2559 = vmatprep.subr.bf16.mxu0 0
  %2560 = vmatpush1.bf16.msra.mxu0 0
  %2561 = vmatprep.subr.bf16.mxu0 0
  %2562 = vmatpush1.bf16.msra.mxu0 0
  %2563 = vmatprep.subr.bf16.mxu0 0
  %2564 = vmatpush1.bf16.msra.mxu0 0
  %2565 = vmatprep.subr.bf16.mxu0 0
  %2566 = vmatpush1.bf16.msra.mxu0 0
  %2567 = vmatprep.subr.bf16.mxu0 0
  %2568 = vmatpush1.bf16.msra.mxu0 0
  %2569 = vmatprep.subr.bf16.mxu0 0
  %2570 = vmatpush1.bf16.msra.mxu0 %v2554
  %2571 = vmatprep.subr.bf16.mxu0 0
  %2572 = vmatpush1.bf16.msra.mxu0 %v2553
  %2573 = vmatprep.subr.bf16.mxu0 0
  %2574 = vmatpush2.bf16.msra.mxu0 0
  %2575 = vmatprep.subr.bf16.mxu0 0
  %2576 = vmatpush2.bf16.msra.mxu0 0
  %2577 = vmatprep.subr.bf16.mxu0 0
  %2578 = vmatpush2.bf16.msra.mxu0 0
  %2579 = vmatprep.subr.bf16.mxu0 0
  %2580 = vmatpush2.bf16.msra.mxu0 0
  %2581 = vmatprep.subr.bf16.mxu0 0
  %2582 = vmatpush2.bf16.msra.mxu0 0
  %2583 = vmatprep.subr.bf16.mxu0 0
  %2584 = vmatpush2.bf16.msra.mxu0 0
  %2585 = vmatprep.subr.bf16.mxu0 0
  %2586 = vmatpush2.bf16.msra.mxu0 0
  %2587 = vmatprep.subr.bf16.mxu0 0
  %2588 = vmatpush2.bf16.msra.mxu0 0
  %2589 = vmatprep.mubr.bf16.mxu0 0
  %2590 = vmatmul.mubr.bf16.gmra.mxu0 %v1023
  %v2591 = vpop.f32.mrf.mxu0
  %v2592 = vadd.f32 %v2543, %v2591
  %v2593 = vpop.f32.mrf.mxu0
  %v2594 = vpop.f32.mrf.mxu0
  %v2595 = vadd.f32 %v2543, %v2594
  %v2596 = vpop.f32.mrf.mxu0
  %2597 = vmatprep.mubr.bf16.mxu0 0
  %2598 = vmatmul.mubr.bf16.gmra.mxu0 %v1026
  %v2599 = vpop.f32.mrf.mxu0
  %v2600 = vadd.f32 %v2543, %v2599
  %v2601 = vpop.f32.mrf.mxu0
  %v2602 = vpop.f32.mrf.mxu0
  %v2603 = vadd.f32 %v2543, %v2602
  %v2604 = vpop.f32.mrf.mxu0
  %2605 = vdwg.mxu0
  %v2606 = vpack.c.bf16 %v2447, %v2444
  %v2607 = vpack.c.bf16 %v2455, %v2452
  %v2608 = vpack.c.bf16 %v2521, %v2518
  %v2609 = vpack.c.bf16 %v2529, %v2526
  %v2611 = vsel %vm1225, %v2606, 0
  %v2614 = vsel %vm1225, %v2607, 0
  %v2617 = vsel %vm1225, %v2608, 0
  %v2620 = vsel %vm1225, %v2609, 0
  %2622 = vmatprep.subr.bf16.mxu0 0
  %2623 = vmatpush1.bf16.xpose.msra.mxu0 0
  %2624 = vmatprep.subr.bf16.mxu0 0
  %2625 = vmatpush1.bf16.xpose.msra.mxu0 0
  %2626 = vmatprep.subr.bf16.mxu0 0
  %2627 = vmatpush1.bf16.xpose.msra.mxu0 0
  %2628 = vmatprep.subr.bf16.mxu0 0
  %2629 = vmatpush1.bf16.xpose.msra.mxu0 0
  %2630 = vmatprep.subr.bf16.mxu0 0
  %2631 = vmatpush1.bf16.xpose.msra.mxu0 0
  %2632 = vmatprep.subr.bf16.mxu0 0
  %2633 = vmatpush1.bf16.xpose.msra.mxu0 0
  %2634 = vmatprep.subr.bf16.mxu0 0
  %2635 = vmatpush1.bf16.xpose.msra.mxu0 %v2620
  %2636 = vmatprep.subr.bf16.mxu0 0
  %2637 = vmatpush1.bf16.xpose.msra.mxu0 %v2617
  %2638 = vmatprep.subr.bf16.mxu0 0
  %2639 = vmatpush2.bf16.xpose.msra.mxu0 0
  %2640 = vmatprep.subr.bf16.mxu0 0
  %2641 = vmatpush2.bf16.xpose.msra.mxu0 0
  %2642 = vmatprep.subr.bf16.mxu0 0
  %2643 = vmatpush2.bf16.xpose.msra.mxu0 0
  %2644 = vmatprep.subr.bf16.mxu0 0
  %2645 = vmatpush2.bf16.xpose.msra.mxu0 0
  %2646 = vmatprep.subr.bf16.mxu0 0
  %2647 = vmatpush2.bf16.xpose.msra.mxu0 0
  %2648 = vmatprep.subr.bf16.mxu0 0
  %2649 = vmatpush2.bf16.xpose.msra.mxu0 0
  %2650 = vmatprep.subr.bf16.mxu0 0
  %2651 = vmatpush2.bf16.xpose.msra.mxu0 0
  %2652 = vmatprep.subr.bf16.mxu0 0
  %2653 = vmatpush2.bf16.xpose.msra.mxu0 0
  %2654 = vmatprep.mubr.bf16.mxu0 0
  %2655 = vmatmul.mubr.bf16.gmra.mxu0 %v2611
  %v2656 = vpop.f32.mrf.mxu0
  %v2657 = vadd.f32 0.0, %v2656
  %v2658 = vpop.f32.mrf.mxu0
  %v2659 = vpop.f32.mrf.mxu0
  %v2660 = vadd.f32 0.0, %v2659
  %v2661 = vpop.f32.mrf.mxu0
  %2662 = vmatprep.mubr.bf16.mxu0 0
  %2663 = vmatmul.mubr.bf16.gmra.mxu0 %v2614
  %v2664 = vpop.f32.mrf.mxu0
  %v2665 = vadd.f32 0.0, %v2664
  %v2666 = vpop.f32.mrf.mxu0
  %v2667 = vpop.f32.mrf.mxu0
  %v2668 = vadd.f32 0.0, %v2667
  %v2669 = vpop.f32.mrf.mxu0
  %2670 = vdwg.mxu0
  %v2671 = vmul.f32 %v2657, 0.35355338
  %v2672 = vmul.f32 %v2660, 0.35355338
  %v2673 = vmul.f32 %v2665, 0.35355338
  %v2674 = vmul.f32 %v2668, 0.35355338
  %v2675 = vadd.f32 %v2671, %v480
  %v2676 = vadd.f32 %v2672, %v481
  %v2677 = vadd.f32 %v2673, %v482
  %v2678 = vadd.f32 %v2674, %v483
  %v2679 = vsel %vm419, %v2675, -inf
  %2680 = vmax.xlane.f32.xlu0 %v2679
  %v2681 = vpop.xlane.xlu0 %2680
  %v2682 = vsel %vm419, %v2676, -inf
  %2683 = vmax.xlane.f32.xlu0 %v2682
  %v2684 = vpop.xlane.xlu0 %2683
  %v2685 = vsel %vm419, %v2677, -inf
  %2686 = vmax.xlane.f32.xlu0 %v2685
  %v2687 = vpop.xlane.xlu0 %2686
  %v2688 = vsel %vm419, %v2678, -inf
  %2689 = vmax.xlane.f32.xlu0 %v2688
  %v2690 = vpop.xlane.xlu0 %2689
  %v2691 = vsub.f32 %v2675, %v2681
  %v2692 = vsub.f32 %v2676, %v2684
  %v2693 = vsub.f32 %v2677, %v2687
  %v2694 = vsub.f32 %v2678, %v2690
  %v2695 = vmul.f32 %v2691, 1.442695
  %v2696 = vpow.pop %v2695
  %v2697 = vmul.f32 %v2692, 1.442695
  %v2698 = vpow.pop %v2697
  %v2699 = vmul.f32 %v2693, 1.442695
  %v2700 = vpow.pop %v2699
  %v2701 = vmul.f32 %v2694, 1.442695
  %v2702 = vpow.pop %v2701
  %v2703 = vsel %vm419, %v2696, 0.0
  %2704 = vadd.xlane.f32.xlu0 %v2703
  %v2705 = vpop.xlane.xlu0 %2704
  %v2706 = vsel %vm419, %v2698, 0.0
  %2707 = vadd.xlane.f32.xlu0 %v2706
  %v2708 = vpop.xlane.xlu0 %2707
  %v2709 = vsel %vm419, %v2700, 0.0
  %2710 = vadd.xlane.f32.xlu0 %v2709
  %v2711 = vpop.xlane.xlu0 %2710
  %v2712 = vsel %vm419, %v2702, 0.0
  %2713 = vadd.xlane.f32.xlu0 %v2712
  %v2714 = vpop.xlane.xlu0 %2713
  %v2715 = vrcp.pop %v2705
  %v2716 = vrcp.pop %v2708
  %v2717 = vrcp.pop %v2711
  %v2718 = vrcp.pop %v2714
  %v2719 = vmul.f32 %v2696, %v2715
  %v2720 = vmul.f32 %v2698, %v2716
  %v2721 = vmul.f32 %v2700, %v2717
  %v2722 = vmul.f32 %v2702, %v2718
  %v2723 = vpack.c.bf16 %v2720, %v2719
  %v2724 = vpack.c.bf16 %v2722, %v2721
  %v2725 = vpack.c.bf16 %v2595, %v2592
  %v2726 = vpack.c.bf16 %v2603, %v2600
  %v2728 = vsel %vm419, %v2723, 0
  %v2731 = vsel %vm419, %v2724, 0
  %2733 = vmatprep.subr.bf16.mxu0 0
  %2734 = vmatpush1.bf16.msra.mxu0 0
  %2735 = vmatprep.subr.bf16.mxu0 0
  %2736 = vmatpush1.bf16.msra.mxu0 0
  %2737 = vmatprep.subr.bf16.mxu0 0
  %2738 = vmatpush1.bf16.msra.mxu0 0
  %2739 = vmatprep.subr.bf16.mxu0 0
  %2740 = vmatpush1.bf16.msra.mxu0 0
  %2741 = vmatprep.subr.bf16.mxu0 0
  %2742 = vmatpush1.bf16.msra.mxu0 0
  %2743 = vmatprep.subr.bf16.mxu0 0
  %2744 = vmatpush1.bf16.msra.mxu0 0
  %2745 = vmatprep.subr.bf16.mxu0 0
  %2746 = vmatpush1.bf16.msra.mxu0 %v2726
  %2747 = vmatprep.subr.bf16.mxu0 0
  %2748 = vmatpush1.bf16.msra.mxu0 %v2725
  %2749 = vmatprep.subr.bf16.mxu0 0
  %2750 = vmatpush2.bf16.msra.mxu0 0
  %2751 = vmatprep.subr.bf16.mxu0 0
  %2752 = vmatpush2.bf16.msra.mxu0 0
  %2753 = vmatprep.subr.bf16.mxu0 0
  %2754 = vmatpush2.bf16.msra.mxu0 0
  %2755 = vmatprep.subr.bf16.mxu0 0
  %2756 = vmatpush2.bf16.msra.mxu0 0
  %2757 = vmatprep.subr.bf16.mxu0 0
  %2758 = vmatpush2.bf16.msra.mxu0 0
  %2759 = vmatprep.subr.bf16.mxu0 0
  %2760 = vmatpush2.bf16.msra.mxu0 0
  %2761 = vmatprep.subr.bf16.mxu0 0
  %2762 = vmatpush2.bf16.msra.mxu0 0
  %2763 = vmatprep.subr.bf16.mxu0 0
  %2764 = vmatpush2.bf16.msra.mxu0 0
  %2765 = vmatprep.mubr.bf16.mxu0 0
  %2766 = vmatmul.mubr.bf16.gmra.mxu0 %v2728
  %v2767 = vpop.f32.mrf.mxu0
  %v2768 = vadd.f32 0.0, %v2767
  %v2769 = vpop.f32.mrf.mxu0
  %v2770 = vpop.f32.mrf.mxu0
  %v2771 = vadd.f32 0.0, %v2770
  %v2772 = vpop.f32.mrf.mxu0
  %2773 = vmatprep.mubr.bf16.mxu0 0
  %2774 = vmatmul.mubr.bf16.gmra.mxu0 %v2731
  %v2775 = vpop.f32.mrf.mxu0
  %v2776 = vadd.f32 0.0, %v2775
  %v2777 = vpop.f32.mrf.mxu0
  %v2778 = vpop.f32.mrf.mxu0
  %v2779 = vadd.f32 0.0, %v2778
  %v2780 = vpop.f32.mrf.mxu0
  %2781 = vdwg.mxu0
  %s2782 = scalar_lea.vmem %s18, 12
  %v2783 = vld [vmem:[%s2782] sm:$0xf]
  %v2784 = vpack.c.bf16 %v2771, %v2768
  %v2785 = vpack.c.bf16 %v2779, %v2776
  %v2787 = vsel %vm1225, %v2784, 0
  %v2790 = vsel %vm1225, %v2785, 0
  %v2793 = vsel %vm1809, %v2783, 0
  %2795 = vmatprep.subr.bf16.mxu0 0
  %2796 = vmatpush1.bf16.msra.mxu0 0
  %2797 = vmatprep.subr.bf16.mxu0 0
  %2798 = vmatpush1.bf16.msra.mxu0 0
  %2799 = vmatprep.subr.bf16.mxu0 0
  %2800 = vmatpush1.bf16.msra.mxu0 0
  %2801 = vmatprep.subr.bf16.mxu0 0
  %2802 = vmatpush1.bf16.msra.mxu0 0
  %2803 = vmatprep.subr.bf16.mxu0 0
  %2804 = vmatpush1.bf16.msra.mxu0 0
  %2805 = vmatprep.subr.bf16.mxu0 0
  %2806 = vmatpush1.bf16.msra.mxu0 0
  %2807 = vmatprep.subr.bf16.mxu0 0
  %2808 = vmatpush1.bf16.msra.mxu0 0
  %2809 = vmatprep.subr.bf16.mxu0 0
  %2810 = vmatpush1.bf16.msra.mxu0 %v2793
  %2811 = vmatprep.subr.bf16.mxu0 0
  %2812 = vmatpush2.bf16.msra.mxu0 0
  %2813 = vmatprep.subr.bf16.mxu0 0
  %2814 = vmatpush2.bf16.msra.mxu0 0
  %2815 = vmatprep.subr.bf16.mxu0 0
  %2816 = vmatpush2.bf16.msra.mxu0 0
  %2817 = vmatprep.subr.bf16.mxu0 0
  %2818 = vmatpush2.bf16.msra.mxu0 0
  %2819 = vmatprep.subr.bf16.mxu0 0
  %2820 = vmatpush2.bf16.msra.mxu0 0
  %2821 = vmatprep.subr.bf16.mxu0 0
  %2822 = vmatpush2.bf16.msra.mxu0 0
  %2823 = vmatprep.subr.bf16.mxu0 0
  %2824 = vmatpush2.bf16.msra.mxu0 0
  %2825 = vmatprep.subr.bf16.mxu0 0
  %2826 = vmatpush2.bf16.msra.mxu0 0
  %2827 = vmatprep.mubr.bf16.mxu0 0
  %2828 = vmatmul.mubr.bf16.gmra.mxu0 %v2787
  %v2829 = vpop.f32.mrf.mxu0
  %v2830 = vadd.f32 0.0, %v2829
  %v2831 = vpop.f32.mrf.mxu0
  %v2832 = vpop.f32.mrf.mxu0
  %v2833 = vadd.f32 0.0, %v2832
  %v2834 = vpop.f32.mrf.mxu0
  %2835 = vmatprep.mubr.bf16.mxu0 0
  %2836 = vmatmul.mubr.bf16.gmra.mxu0 %v2790
  %v2837 = vpop.f32.mrf.mxu0
  %v2838 = vadd.f32 0.0, %v2837
  %v2839 = vpop.f32.mrf.mxu0
  %v2840 = vpop.f32.mrf.mxu0
  %v2841 = vadd.f32 0.0, %v2840
  %v2842 = vpop.f32.mrf.mxu0
  %2843 = vdwg.mxu0
  %v2844 = vadd.f32 %v2380, %v2830
  %v2845 = vadd.f32 %v2381, %v2833
  %v2846 = vadd.f32 %v2382, %v2838
  %v2847 = vadd.f32 %v2383, %v2841
  %v2848 = vld [vmem:[%s19] sm:$0x1]
  %v2850 = vlaneseq
  %v2851 = vshrl.u32 %v2850, 7
  %v2852 = vsub.s32 0, %v2851
  %v2853 = vrot.slane %v2848, %v2852
  %v2855 = vadd.f32 %v2844, %v2853
  %v2856 = vadd.f32 %v2845, %v2853
  %v2857 = vadd.f32 %v2846, %v2853
  %v2858 = vadd.f32 %v2847, %v2853
  %v2859 = vmul.f32 %v696, %v2855
  %v2860 = vmul.f32 %v699, %v2856
  %v2861 = vmul.f32 %v704, %v2857
  %v2862 = vmul.f32 %v707, %v2858
  %v2863 = vadd.f32 %v195, %v2859
  %v2864 = vadd.f32 %v196, %v2860
  %v2865 = vadd.f32 %v197, %v2861
  %v2866 = vadd.f32 %v198, %v2862
  %v2867 = vsel %vm419, %v2863, 0.0
  %2868 = vadd.xlane.f32.xlu0 %v2867
  %v2869 = vpop.xlane.xlu0 %2868
  %v2870 = vsel %vm419, %v2864, 0.0
  %2871 = vadd.xlane.f32.xlu0 %v2870
  %v2872 = vpop.xlane.xlu0 %2871
  %v2873 = vsel %vm419, %v2865, 0.0
  %2874 = vadd.xlane.f32.xlu0 %v2873
  %v2875 = vpop.xlane.xlu0 %2874
  %v2876 = vsel %vm419, %v2866, 0.0
  %2877 = vadd.xlane.f32.xlu0 %v2876
  %v2878 = vpop.xlane.xlu0 %2877
  %v2879 = vmul.f32 %v2869, %v944
  %v2880 = vmul.f32 %v2872, %v944
  %v2881 = vmul.f32 %v2875, %v944
  %v2882 = vmul.f32 %v2878, %v944
  %v2883 = vsub.f32 %v2863, %v2879
  %v2884 = vsub.f32 %v2864, %v2880
  %v2885 = vsub.f32 %v2865, %v2881
  %v2886 = vsub.f32 %v2866, %v2882
  %v2887 = vmul.f32 %v2883, %v2883
  %v2888 = vmul.f32 %v2884, %v2884
  %v2889 = vmul.f32 %v2885, %v2885
  %v2890 = vmul.f32 %v2886, %v2886
  %v2891 = vsel %vm419, %v2887, 0.0
  %2892 = vadd.xlane.f32.xlu0 %v2891
  %v2893 = vpop.xlane.xlu0 %2892
  %v2894 = vsel %vm419, %v2888, 0.0
  %2895 = vadd.xlane.f32.xlu0 %v2894
  %v2896 = vpop.xlane.xlu0 %2895
  %v2897 = vsel %vm419, %v2889, 0.0
  %2898 = vadd.xlane.f32.xlu0 %v2897
  %v2899 = vpop.xlane.xlu0 %2898
  %v2900 = vsel %vm419, %v2890, 0.0
  %2901 = vadd.xlane.f32.xlu0 %v2900
  %v2902 = vpop.xlane.xlu0 %2901
  %v2903 = vmul.f32 %v2893, %v944
  %v2904 = vmul.f32 %v2896, %v944
  %v2905 = vmul.f32 %v2899, %v944
  %v2906 = vmul.f32 %v2902, %v944
  %v2907 = vadd.f32 %v2903, 1e-06
  %v2908 = vadd.f32 %v2904, 1e-06
  %v2909 = vadd.f32 %v2905, 1e-06
  %v2910 = vadd.f32 %v2906, 1e-06
  %v2911 = vrsqrt.pop %v2907
  %v2912 = vrsqrt.pop %v2908
  %v2913 = vrsqrt.pop %v2909
  %v2914 = vrsqrt.pop %v2910
  %v2915 = vmul.f32 %v2883, %v2911
  %v2916 = vmul.f32 %v2884, %v2912
  %v2917 = vmul.f32 %v2885, %v2913
  %v2918 = vmul.f32 %v2886, %v2914
  %v2919 = vadd.f32 %v844, 1.0
  %v2920 = vadd.f32 %v847, 1.0
  %v2921 = vadd.f32 %v852, 1.0
  %v2922 = vadd.f32 %v855, 1.0
  %v2923 = vmul.f32 %v2915, %v2919
  %v2924 = vmul.f32 %v2916, %v2920
  %v2925 = vmul.f32 %v2917, %v2921
  %v2926 = vmul.f32 %v2918, %v2922
  %v2927 = vadd.f32 %v2923, %v770
  %v2928 = vadd.f32 %v2924, %v773
  %v2929 = vadd.f32 %v2925, %v778
  %v2930 = vadd.f32 %v2926, %v781
  %v2931 = vld [vmem:[%s20] sm:$0xf]
  %v2932 = vld [vmem:[%s20 + $0x4] sm:$0xf]
  %v2933 = vld [vmem:[%s20 + $0x8] sm:$0xf]
  %v2934 = vld [vmem:[%s20 + $0xc] sm:$0xf]
  %v2935 = vld [vmem:[%s21] sm:$0x1]
  %v2936 = vpack.c.bf16 %v2928, %v2927
  %v2937 = vpack.c.bf16 %v2930, %v2929
  %v2939 = vlaneseq
  %v2940 = vshrl.u32 %v2939, 7
  %v2941 = vsub.s32 0, %v2940
  %v2942 = vrot.slane %v2935, %v2941
  %v2948 = vunpack.c.l.b16 %v2931
  %v2949 = vunpack.c.l.b16 %v2932
  %v2950 = vunpack.c.l.b16 %v2933
  %v2951 = vunpack.c.l.b16 %v2934
  %v2952 = vpack.c.b16 %v2949, %v2948
  %v2953 = vpack.c.b16 %v2951, %v2950
  %v2957 = vsel %vm419, %v2936, 0
  %v2960 = vsel %vm419, %v2937, 0
  %2962 = vmatprep.subr.bf16.mxu0 0
  %2963 = vmatpush1.bf16.msra.mxu0 0
  %2964 = vmatprep.subr.bf16.mxu0 0
  %2965 = vmatpush1.bf16.msra.mxu0 0
  %2966 = vmatprep.subr.bf16.mxu0 0
  %2967 = vmatpush1.bf16.msra.mxu0 0
  %2968 = vmatprep.subr.bf16.mxu0 0
  %2969 = vmatpush1.bf16.msra.mxu0 0
  %2970 = vmatprep.subr.bf16.mxu0 0
  %2971 = vmatpush1.bf16.msra.mxu0 0
  %2972 = vmatprep.subr.bf16.mxu0 0
  %2973 = vmatpush1.bf16.msra.mxu0 0
  %2974 = vmatprep.subr.bf16.mxu0 0
  %2975 = vmatpush1.bf16.msra.mxu0 %v2953
  %2976 = vmatprep.subr.bf16.mxu0 0
  %2977 = vmatpush1.bf16.msra.mxu0 %v2952
  %2978 = vmatprep.subr.bf16.mxu0 0
  %2979 = vmatpush2.bf16.msra.mxu0 0
  %2980 = vmatprep.subr.bf16.mxu0 0
  %2981 = vmatpush2.bf16.msra.mxu0 0
  %2982 = vmatprep.subr.bf16.mxu0 0
  %2983 = vmatpush2.bf16.msra.mxu0 0
  %2984 = vmatprep.subr.bf16.mxu0 0
  %2985 = vmatpush2.bf16.msra.mxu0 0
  %2986 = vmatprep.subr.bf16.mxu0 0
  %2987 = vmatpush2.bf16.msra.mxu0 0
  %2988 = vmatprep.subr.bf16.mxu0 0
  %2989 = vmatpush2.bf16.msra.mxu0 0
  %2990 = vmatprep.subr.bf16.mxu0 0
  %2991 = vmatpush2.bf16.msra.mxu0 0
  %2992 = vmatprep.subr.bf16.mxu0 0
  %2993 = vmatpush2.bf16.msra.mxu0 0
  %2994 = vmatprep.mubr.bf16.mxu0 0
  %2995 = vmatmul.mubr.bf16.gmra.mxu0 %v2957
  %v2996 = vpop.f32.mrf.mxu0
  %v2997 = vadd.f32 %v2942, %v2996
  %v2998 = vpop.f32.mrf.mxu0
  %v2999 = vpop.f32.mrf.mxu0
  %v3000 = vadd.f32 %v2942, %v2999
  %v3001 = vpop.f32.mrf.mxu0
  %3002 = vmatprep.mubr.bf16.mxu0 0
  %3003 = vmatmul.mubr.bf16.gmra.mxu0 %v2960
  %v3004 = vpop.f32.mrf.mxu0
  %v3005 = vadd.f32 %v2942, %v3004
  %v3006 = vpop.f32.mrf.mxu0
  %v3007 = vpop.f32.mrf.mxu0
  %v3008 = vadd.f32 %v2942, %v3007
  %v3009 = vpop.f32.mrf.mxu0
  %3010 = vdwg.mxu0
  %v3011 = vmul.f32 %v2997, 0.5
  %v3012 = vmul.f32 %v3000, 0.5
  %v3013 = vmul.f32 %v3005, 0.5
  %v3014 = vmul.f32 %v3008, 0.5
  %v3015 = vmul.f32 %v2997, 0.044715
  %v3016 = vmul.f32 %v3000, 0.044715
  %v3017 = vmul.f32 %v3005, 0.044715
  %v3018 = vmul.f32 %v3008, 0.044715
  %v3019 = vmul.f32 %v3015, %v2997
  %v3020 = vmul.f32 %v3016, %v3000
  %v3021 = vmul.f32 %v3017, %v3005
  %v3022 = vmul.f32 %v3018, %v3008
  %v3023 = vmul.f32 %v3019, %v2997
  %v3024 = vmul.f32 %v3020, %v3000
  %v3025 = vmul.f32 %v3021, %v3005
  %v3026 = vmul.f32 %v3022, %v3008
  %v3027 = vadd.f32 %v2997, %v3023
  %v3028 = vadd.f32 %v3000, %v3024
  %v3029 = vadd.f32 %v3005, %v3025
  %v3030 = vadd.f32 %v3008, %v3026
  %v3031 = vmul.f32 %v3027, 0.7978846
  %v3032 = vmul.f32 %v3028, 0.7978846
  %v3033 = vmul.f32 %v3029, 0.7978846
  %v3034 = vmul.f32 %v3030, 0.7978846
  %v3035 = vtanh.pop %v3031
  %v3036 = vtanh.pop %v3032
  %v3037 = vtanh.pop %v3033
  %v3038 = vtanh.pop %v3034
  %v3039 = vadd.f32 %v3035, 1.0
  %v3040 = vadd.f32 %v3036, 1.0
  %v3041 = vadd.f32 %v3037, 1.0
  %v3042 = vadd.f32 %v3038, 1.0
  %v3043 = vmul.f32 %v3011, %v3039
  %v3044 = vmul.f32 %v3012, %v3040
  %v3045 = vmul.f32 %v3013, %v3041
  %v3046 = vmul.f32 %v3014, %v3042
  %v3047 = vld [vmem:[%s22] sm:$0xf]
  %v3048 = vld [vmem:[%s22 + $0x4] sm:$0xf]
  %v3049 = vld [vmem:[%s22 + $0x8] sm:$0xf]
  %v3050 = vld [vmem:[%s22 + $0xc] sm:$0xf]
  %v3051 = vld [vmem:[%s22 + $0x10] sm:$0xf]
  %v3052 = vld [vmem:[%s22 + $0x14] sm:$0xf]
  %v3053 = vld [vmem:[%s22 + $0x18] sm:$0xf]
  %v3054 = vld [vmem:[%s22 + $0x1c] sm:$0xf]
  %v3055 = vld [vmem:[%s22 + $0x20] sm:$0xf]
  %v3056 = vld [vmem:[%s22 + $0x24] sm:$0xf]
  %v3057 = vld [vmem:[%s22 + $0x28] sm:$0xf]
  %v3058 = vld [vmem:[%s22 + $0x2c] sm:$0xf]
  %v3059 = vld [vmem:[%s22 + $0x30] sm:$0xf]
  %v3060 = vld [vmem:[%s22 + $0x34] sm:$0xf]
  %v3061 = vld [vmem:[%s22 + $0x38] sm:$0xf]
  %v3062 = vld [vmem:[%s22 + $0x3c] sm:$0xf]
  %v3063 = vld [vmem:[%s23] sm:$0x1]
  %v3064 = vpack.c.bf16 %v3044, %v3043
  %v3065 = vpack.c.bf16 %v3046, %v3045
  %v3067 = vlaneseq
  %v3068 = vshrl.u32 %v3067, 7
  %v3069 = vsub.s32 0, %v3068
  %v3070 = vrot.slane %v3063, %v3069
  %v3088 = vunpack.c.l.b16 %v3047
  %v3089 = vunpack.c.l.b16 %v3048
  %v3090 = vunpack.c.l.b16 %v3049
  %v3091 = vunpack.c.l.b16 %v3050
  %v3092 = vunpack.c.l.b16 %v3051
  %v3093 = vunpack.c.l.b16 %v3052
  %v3094 = vunpack.c.l.b16 %v3053
  %v3095 = vunpack.c.l.b16 %v3054
  %v3096 = vunpack.c.l.b16 %v3055
  %v3097 = vunpack.c.l.b16 %v3056
  %v3098 = vunpack.c.l.b16 %v3057
  %v3099 = vunpack.c.l.b16 %v3058
  %v3100 = vunpack.c.l.b16 %v3059
  %v3101 = vunpack.c.l.b16 %v3060
  %v3102 = vunpack.c.l.b16 %v3061
  %v3103 = vunpack.c.l.b16 %v3062
  %v3104 = vpack.c.b16 %v3089, %v3088
  %v3105 = vpack.c.b16 %v3091, %v3090
  %v3106 = vpack.c.b16 %v3093, %v3092
  %v3107 = vpack.c.b16 %v3095, %v3094
  %v3108 = vpack.c.b16 %v3097, %v3096
  %v3109 = vpack.c.b16 %v3099, %v3098
  %v3110 = vpack.c.b16 %v3101, %v3100
  %v3111 = vpack.c.b16 %v3103, %v3102
  %3120 = vmatprep.subr.bf16.mxu0 0
  %3121 = vmatpush1.bf16.msra.mxu0 %v3111
  %3122 = vmatprep.subr.bf16.mxu0 0
  %3123 = vmatpush1.bf16.msra.mxu0 %v3110
  %3124 = vmatprep.subr.bf16.mxu0 0
  %3125 = vmatpush1.bf16.msra.mxu0 %v3109
  %3126 = vmatprep.subr.bf16.mxu0 0
  %3127 = vmatpush1.bf16.msra.mxu0 %v3108
  %3128 = vmatprep.subr.bf16.mxu0 0
  %3129 = vmatpush1.bf16.msra.mxu0 %v3107
  %3130 = vmatprep.subr.bf16.mxu0 0
  %3131 = vmatpush1.bf16.msra.mxu0 %v3106
  %3132 = vmatprep.subr.bf16.mxu0 0
  %3133 = vmatpush1.bf16.msra.mxu0 %v3105
  %3134 = vmatprep.subr.bf16.mxu0 0
  %3135 = vmatpush1.bf16.msra.mxu0 %v3104
  %3136 = vmatprep.subr.bf16.mxu0 0
  %3137 = vmatpush2.bf16.msra.mxu0 0
  %3138 = vmatprep.subr.bf16.mxu0 0
  %3139 = vmatpush2.bf16.msra.mxu0 0
  %3140 = vmatprep.subr.bf16.mxu0 0
  %3141 = vmatpush2.bf16.msra.mxu0 0
  %3142 = vmatprep.subr.bf16.mxu0 0
  %3143 = vmatpush2.bf16.msra.mxu0 0
  %3144 = vmatprep.subr.bf16.mxu0 0
  %3145 = vmatpush2.bf16.msra.mxu0 0
  %3146 = vmatprep.subr.bf16.mxu0 0
  %3147 = vmatpush2.bf16.msra.mxu0 0
  %3148 = vmatprep.subr.bf16.mxu0 0
  %3149 = vmatpush2.bf16.msra.mxu0 0
  %3150 = vmatprep.subr.bf16.mxu0 0
  %3151 = vmatpush2.bf16.msra.mxu0 0
  %3152 = vmatprep.mubr.bf16.mxu0 0
  %3153 = vmatmul.mubr.bf16.gmra.mxu0 %v3064
  %v3154 = vpop.f32.mrf.mxu0
  %v3155 = vadd.f32 %v3070, %v3154
  %v3156 = vpop.f32.mrf.mxu0
  %v3157 = vpop.f32.mrf.mxu0
  %v3158 = vadd.f32 %v3070, %v3157
  %v3159 = vpop.f32.mrf.mxu0
  %3160 = vmatprep.mubr.bf16.mxu0 0
  %3161 = vmatmul.mubr.bf16.gmra.mxu0 %v3065
  %v3162 = vpop.f32.mrf.mxu0
  %v3163 = vadd.f32 %v3070, %v3162
  %v3164 = vpop.f32.mrf.mxu0
  %v3165 = vpop.f32.mrf.mxu0
  %v3166 = vadd.f32 %v3070, %v3165
  %v3167 = vpop.f32.mrf.mxu0
  %3168 = vdwg.mxu0
  %v3169 = vmul.f32 %v918, %v3155
  %v3170 = vmul.f32 %v921, %v3158
  %v3171 = vmul.f32 %v926, %v3163
  %v3172 = vmul.f32 %v929, %v3166
  %v3173 = vadd.f32 %v2863, %v3169
  %v3174 = vadd.f32 %v2864, %v3170
  %v3175 = vadd.f32 %v2865, %v3171
  %v3176 = vadd.f32 %v2866, %v3172
  %s3177 = scalar_lea.vmem %s10, 96
  %v3178 = vld [vmem:[%s3177] sm:$0xf]
  %v3179 = vld [vmem:[%s3177 + $0x4] sm:$0xf]
  %v3180 = vld [vmem:[%s3177 + $0x8] sm:$0xf]
  %v3181 = vld [vmem:[%s3177 + $0xc] sm:$0xf]
  %s3182 = scalar_lea.vmem %s11, 6
  %v3183 = vld [vmem:[%s3182] sm:$0x1]
  %v3185 = vlaneseq
  %v3186 = vshrl.u32 %v3185, 7
  %v3187 = vsub.s32 0, %v3186
  %v3188 = vrot.slane %v3183, %v3187
  %v3194 = vunpack.c.l.b16 %v3178
  %v3195 = vunpack.c.l.b16 %v3179
  %v3196 = vunpack.c.l.b16 %v3180
  %v3197 = vunpack.c.l.b16 %v3181
  %v3198 = vpack.c.b16 %v3195, %v3194
  %v3199 = vpack.c.b16 %v3197, %v3196
  %3202 = vmatprep.subr.bf16.mxu0 0
  %3203 = vmatpush1.bf16.msra.mxu0 0
  %3204 = vmatprep.subr.bf16.mxu0 0
  %3205 = vmatpush1.bf16.msra.mxu0 0
  %3206 = vmatprep.subr.bf16.mxu0 0
  %3207 = vmatpush1.bf16.msra.mxu0 0
  %3208 = vmatprep.subr.bf16.mxu0 0
  %3209 = vmatpush1.bf16.msra.mxu0 0
  %3210 = vmatprep.subr.bf16.mxu0 0
  %3211 = vmatpush1.bf16.msra.mxu0 0
  %3212 = vmatprep.subr.bf16.mxu0 0
  %3213 = vmatpush1.bf16.msra.mxu0 0
  %3214 = vmatprep.subr.bf16.mxu0 0
  %3215 = vmatpush1.bf16.msra.mxu0 %v3199
  %3216 = vmatprep.subr.bf16.mxu0 0
  %3217 = vmatpush1.bf16.msra.mxu0 %v3198
  %3218 = vmatprep.subr.bf16.mxu0 0
  %3219 = vmatpush2.bf16.msra.mxu0 0
  %3220 = vmatprep.subr.bf16.mxu0 0
  %3221 = vmatpush2.bf16.msra.mxu0 0
  %3222 = vmatprep.subr.bf16.mxu0 0
  %3223 = vmatpush2.bf16.msra.mxu0 0
  %3224 = vmatprep.subr.bf16.mxu0 0
  %3225 = vmatpush2.bf16.msra.mxu0 0
  %3226 = vmatprep.subr.bf16.mxu0 0
  %3227 = vmatpush2.bf16.msra.mxu0 0
  %3228 = vmatprep.subr.bf16.mxu0 0
  %3229 = vmatpush2.bf16.msra.mxu0 0
  %3230 = vmatprep.subr.bf16.mxu0 0
  %3231 = vmatpush2.bf16.msra.mxu0 0
  %3232 = vmatprep.subr.bf16.mxu0 0
  %3233 = vmatpush2.bf16.msra.mxu0 0
  %3234 = vmatprep.mubr.bf16.mxu0 0
  %3235 = vmatmul.mubr.bf16.gmra.mxu0 %v508
  %v3236 = vpop.f32.mrf.mxu0
  %v3237 = vadd.f32 %v3188, %v3236
  %v3238 = vpop.f32.mrf.mxu0
  %v3239 = vpop.f32.mrf.mxu0
  %v3240 = vadd.f32 %v3188, %v3239
  %v3241 = vpop.f32.mrf.mxu0
  %3242 = vmatprep.mubr.bf16.mxu0 0
  %3243 = vmatmul.mubr.bf16.gmra.mxu0 %v511
  %v3244 = vpop.f32.mrf.mxu0
  %v3245 = vadd.f32 %v3188, %v3244
  %v3246 = vpop.f32.mrf.mxu0
  %v3247 = vpop.f32.mrf.mxu0
  %v3248 = vadd.f32 %v3188, %v3247
  %v3249 = vpop.f32.mrf.mxu0
  %3250 = vdwg.mxu0
  %s3251 = scalar_lea.vmem %s10, 112
  %v3252 = vld [vmem:[%s3251] sm:$0xf]
  %v3253 = vld [vmem:[%s3251 + $0x4] sm:$0xf]
  %v3254 = vld [vmem:[%s3251 + $0x8] sm:$0xf]
  %v3255 = vld [vmem:[%s3251 + $0xc] sm:$0xf]
  %s3256 = scalar_lea.vmem %s11, 7
  %v3257 = vld [vmem:[%s3256] sm:$0x1]
  %v3259 = vlaneseq
  %v3260 = vshrl.u32 %v3259, 7
  %v3261 = vsub.s32 0, %v3260
  %v3262 = vrot.slane %v3257, %v3261
  %v3268 = vunpack.c.l.b16 %v3252
  %v3269 = vunpack.c.l.b16 %v3253
  %v3270 = vunpack.c.l.b16 %v3254
  %v3271 = vunpack.c.l.b16 %v3255
  %v3272 = vpack.c.b16 %v3269, %v3268
  %v3273 = vpack.c.b16 %v3271, %v3270
  %3276 = vmatprep.subr.bf16.mxu0 0
  %3277 = vmatpush1.bf16.msra.mxu0 0
  %3278 = vmatprep.subr.bf16.mxu0 0
  %3279 = vmatpush1.bf16.msra.mxu0 0
  %3280 = vmatprep.subr.bf16.mxu0 0
  %3281 = vmatpush1.bf16.msra.mxu0 0
  %3282 = vmatprep.subr.bf16.mxu0 0
  %3283 = vmatpush1.bf16.msra.mxu0 0
  %3284 = vmatprep.subr.bf16.mxu0 0
  %3285 = vmatpush1.bf16.msra.mxu0 0
  %3286 = vmatprep.subr.bf16.mxu0 0
  %3287 = vmatpush1.bf16.msra.mxu0 0
  %3288 = vmatprep.subr.bf16.mxu0 0
  %3289 = vmatpush1.bf16.msra.mxu0 %v3273
  %3290 = vmatprep.subr.bf16.mxu0 0
  %3291 = vmatpush1.bf16.msra.mxu0 %v3272
  %3292 = vmatprep.subr.bf16.mxu0 0
  %3293 = vmatpush2.bf16.msra.mxu0 0
  %3294 = vmatprep.subr.bf16.mxu0 0
  %3295 = vmatpush2.bf16.msra.mxu0 0
  %3296 = vmatprep.subr.bf16.mxu0 0
  %3297 = vmatpush2.bf16.msra.mxu0 0
  %3298 = vmatprep.subr.bf16.mxu0 0
  %3299 = vmatpush2.bf16.msra.mxu0 0
  %3300 = vmatprep.subr.bf16.mxu0 0
  %3301 = vmatpush2.bf16.msra.mxu0 0
  %3302 = vmatprep.subr.bf16.mxu0 0
  %3303 = vmatpush2.bf16.msra.mxu0 0
  %3304 = vmatprep.subr.bf16.mxu0 0
  %3305 = vmatpush2.bf16.msra.mxu0 0
  %3306 = vmatprep.subr.bf16.mxu0 0
  %3307 = vmatpush2.bf16.msra.mxu0 0
  %3308 = vmatprep.mubr.bf16.mxu0 0
  %3309 = vmatmul.mubr.bf16.gmra.mxu0 %v508
  %v3310 = vpop.f32.mrf.mxu0
  %v3311 = vadd.f32 %v3262, %v3310
  %v3312 = vpop.f32.mrf.mxu0
  %v3313 = vpop.f32.mrf.mxu0
  %v3314 = vadd.f32 %v3262, %v3313
  %v3315 = vpop.f32.mrf.mxu0
  %3316 = vmatprep.mubr.bf16.mxu0 0
  %3317 = vmatmul.mubr.bf16.gmra.mxu0 %v511
  %v3318 = vpop.f32.mrf.mxu0
  %v3319 = vadd.f32 %v3262, %v3318
  %v3320 = vpop.f32.mrf.mxu0
  %v3321 = vpop.f32.mrf.mxu0
  %v3322 = vadd.f32 %v3262, %v3321
  %v3323 = vpop.f32.mrf.mxu0
  %3324 = vdwg.mxu0
  %s3325 = scalar_lea.vmem %s10, 128
  %v3326 = vld [vmem:[%s3325] sm:$0xf]
  %v3327 = vld [vmem:[%s3325 + $0x4] sm:$0xf]
  %v3328 = vld [vmem:[%s3325 + $0x8] sm:$0xf]
  %v3329 = vld [vmem:[%s3325 + $0xc] sm:$0xf]
  %s3330 = scalar_lea.vmem %s11, 8
  %v3331 = vld [vmem:[%s3330] sm:$0x1]
  %v3333 = vlaneseq
  %v3334 = vshrl.u32 %v3333, 7
  %v3335 = vsub.s32 0, %v3334
  %v3336 = vrot.slane %v3331, %v3335
  %v3342 = vunpack.c.l.b16 %v3326
  %v3343 = vunpack.c.l.b16 %v3327
  %v3344 = vunpack.c.l.b16 %v3328
  %v3345 = vunpack.c.l.b16 %v3329
  %v3346 = vpack.c.b16 %v3343, %v3342
  %v3347 = vpack.c.b16 %v3345, %v3344
  %3350 = vmatprep.subr.bf16.mxu0 0
  %3351 = vmatpush1.bf16.msra.mxu0 0
  %3352 = vmatprep.subr.bf16.mxu0 0
  %3353 = vmatpush1.bf16.msra.mxu0 0
  %3354 = vmatprep.subr.bf16.mxu0 0
  %3355 = vmatpush1.bf16.msra.mxu0 0
  %3356 = vmatprep.subr.bf16.mxu0 0
  %3357 = vmatpush1.bf16.msra.mxu0 0
  %3358 = vmatprep.subr.bf16.mxu0 0
  %3359 = vmatpush1.bf16.msra.mxu0 0
  %3360 = vmatprep.subr.bf16.mxu0 0
  %3361 = vmatpush1.bf16.msra.mxu0 0
  %3362 = vmatprep.subr.bf16.mxu0 0
  %3363 = vmatpush1.bf16.msra.mxu0 %v3347
  %3364 = vmatprep.subr.bf16.mxu0 0
  %3365 = vmatpush1.bf16.msra.mxu0 %v3346
  %3366 = vmatprep.subr.bf16.mxu0 0
  %3367 = vmatpush2.bf16.msra.mxu0 0
  %3368 = vmatprep.subr.bf16.mxu0 0
  %3369 = vmatpush2.bf16.msra.mxu0 0
  %3370 = vmatprep.subr.bf16.mxu0 0
  %3371 = vmatpush2.bf16.msra.mxu0 0
  %3372 = vmatprep.subr.bf16.mxu0 0
  %3373 = vmatpush2.bf16.msra.mxu0 0
  %3374 = vmatprep.subr.bf16.mxu0 0
  %3375 = vmatpush2.bf16.msra.mxu0 0
  %3376 = vmatprep.subr.bf16.mxu0 0
  %3377 = vmatpush2.bf16.msra.mxu0 0
  %3378 = vmatprep.subr.bf16.mxu0 0
  %3379 = vmatpush2.bf16.msra.mxu0 0
  %3380 = vmatprep.subr.bf16.mxu0 0
  %3381 = vmatpush2.bf16.msra.mxu0 0
  %3382 = vmatprep.mubr.bf16.mxu0 0
  %3383 = vmatmul.mubr.bf16.gmra.mxu0 %v508
  %v3384 = vpop.f32.mrf.mxu0
  %v3385 = vadd.f32 %v3336, %v3384
  %v3386 = vpop.f32.mrf.mxu0
  %v3387 = vpop.f32.mrf.mxu0
  %v3388 = vadd.f32 %v3336, %v3387
  %v3389 = vpop.f32.mrf.mxu0
  %3390 = vmatprep.mubr.bf16.mxu0 0
  %3391 = vmatmul.mubr.bf16.gmra.mxu0 %v511
  %v3392 = vpop.f32.mrf.mxu0
  %v3393 = vadd.f32 %v3336, %v3392
  %v3394 = vpop.f32.mrf.mxu0
  %v3395 = vpop.f32.mrf.mxu0
  %v3396 = vadd.f32 %v3336, %v3395
  %v3397 = vpop.f32.mrf.mxu0
  %3398 = vdwg.mxu0
  %s3399 = scalar_lea.vmem %s10, 144
  %v3400 = vld [vmem:[%s3399] sm:$0xf]
  %v3401 = vld [vmem:[%s3399 + $0x4] sm:$0xf]
  %v3402 = vld [vmem:[%s3399 + $0x8] sm:$0xf]
  %v3403 = vld [vmem:[%s3399 + $0xc] sm:$0xf]
  %s3404 = scalar_lea.vmem %s11, 9
  %v3405 = vld [vmem:[%s3404] sm:$0x1]
  %v3407 = vlaneseq
  %v3408 = vshrl.u32 %v3407, 7
  %v3409 = vsub.s32 0, %v3408
  %v3410 = vrot.slane %v3405, %v3409
  %v3416 = vunpack.c.l.b16 %v3400
  %v3417 = vunpack.c.l.b16 %v3401
  %v3418 = vunpack.c.l.b16 %v3402
  %v3419 = vunpack.c.l.b16 %v3403
  %v3420 = vpack.c.b16 %v3417, %v3416
  %v3421 = vpack.c.b16 %v3419, %v3418
  %3424 = vmatprep.subr.bf16.mxu0 0
  %3425 = vmatpush1.bf16.msra.mxu0 0
  %3426 = vmatprep.subr.bf16.mxu0 0
  %3427 = vmatpush1.bf16.msra.mxu0 0
  %3428 = vmatprep.subr.bf16.mxu0 0
  %3429 = vmatpush1.bf16.msra.mxu0 0
  %3430 = vmatprep.subr.bf16.mxu0 0
  %3431 = vmatpush1.bf16.msra.mxu0 0
  %3432 = vmatprep.subr.bf16.mxu0 0
  %3433 = vmatpush1.bf16.msra.mxu0 0
  %3434 = vmatprep.subr.bf16.mxu0 0
  %3435 = vmatpush1.bf16.msra.mxu0 0
  %3436 = vmatprep.subr.bf16.mxu0 0
  %3437 = vmatpush1.bf16.msra.mxu0 %v3421
  %3438 = vmatprep.subr.bf16.mxu0 0
  %3439 = vmatpush1.bf16.msra.mxu0 %v3420
  %3440 = vmatprep.subr.bf16.mxu0 0
  %3441 = vmatpush2.bf16.msra.mxu0 0
  %3442 = vmatprep.subr.bf16.mxu0 0
  %3443 = vmatpush2.bf16.msra.mxu0 0
  %3444 = vmatprep.subr.bf16.mxu0 0
  %3445 = vmatpush2.bf16.msra.mxu0 0
  %3446 = vmatprep.subr.bf16.mxu0 0
  %3447 = vmatpush2.bf16.msra.mxu0 0
  %3448 = vmatprep.subr.bf16.mxu0 0
  %3449 = vmatpush2.bf16.msra.mxu0 0
  %3450 = vmatprep.subr.bf16.mxu0 0
  %3451 = vmatpush2.bf16.msra.mxu0 0
  %3452 = vmatprep.subr.bf16.mxu0 0
  %3453 = vmatpush2.bf16.msra.mxu0 0
  %3454 = vmatprep.subr.bf16.mxu0 0
  %3455 = vmatpush2.bf16.msra.mxu0 0
  %3456 = vmatprep.mubr.bf16.mxu0 0
  %3457 = vmatmul.mubr.bf16.gmra.mxu0 %v508
  %v3458 = vpop.f32.mrf.mxu0
  %v3459 = vadd.f32 %v3410, %v3458
  %v3460 = vpop.f32.mrf.mxu0
  %v3461 = vpop.f32.mrf.mxu0
  %v3462 = vadd.f32 %v3410, %v3461
  %v3463 = vpop.f32.mrf.mxu0
  %3464 = vmatprep.mubr.bf16.mxu0 0
  %3465 = vmatmul.mubr.bf16.gmra.mxu0 %v511
  %v3466 = vpop.f32.mrf.mxu0
  %v3467 = vadd.f32 %v3410, %v3466
  %v3468 = vpop.f32.mrf.mxu0
  %v3469 = vpop.f32.mrf.mxu0
  %v3470 = vadd.f32 %v3410, %v3469
  %v3471 = vpop.f32.mrf.mxu0
  %3472 = vdwg.mxu0
  %s3473 = scalar_lea.vmem %s10, 160
  %v3474 = vld [vmem:[%s3473] sm:$0xf]
  %v3475 = vld [vmem:[%s3473 + $0x4] sm:$0xf]
  %v3476 = vld [vmem:[%s3473 + $0x8] sm:$0xf]
  %v3477 = vld [vmem:[%s3473 + $0xc] sm:$0xf]
  %s3478 = scalar_lea.vmem %s11, 10
  %v3479 = vld [vmem:[%s3478] sm:$0x1]
  %v3481 = vlaneseq
  %v3482 = vshrl.u32 %v3481, 7
  %v3483 = vsub.s32 0, %v3482
  %v3484 = vrot.slane %v3479, %v3483
  %v3490 = vunpack.c.l.b16 %v3474
  %v3491 = vunpack.c.l.b16 %v3475
  %v3492 = vunpack.c.l.b16 %v3476
  %v3493 = vunpack.c.l.b16 %v3477
  %v3494 = vpack.c.b16 %v3491, %v3490
  %v3495 = vpack.c.b16 %v3493, %v3492
  %3498 = vmatprep.subr.bf16.mxu0 0
  %3499 = vmatpush1.bf16.msra.mxu0 0
  %3500 = vmatprep.subr.bf16.mxu0 0
  %3501 = vmatpush1.bf16.msra.mxu0 0
  %3502 = vmatprep.subr.bf16.mxu0 0
  %3503 = vmatpush1.bf16.msra.mxu0 0
  %3504 = vmatprep.subr.bf16.mxu0 0
  %3505 = vmatpush1.bf16.msra.mxu0 0
  %3506 = vmatprep.subr.bf16.mxu0 0
  %3507 = vmatpush1.bf16.msra.mxu0 0
  %3508 = vmatprep.subr.bf16.mxu0 0
  %3509 = vmatpush1.bf16.msra.mxu0 0
  %3510 = vmatprep.subr.bf16.mxu0 0
  %3511 = vmatpush1.bf16.msra.mxu0 %v3495
  %3512 = vmatprep.subr.bf16.mxu0 0
  %3513 = vmatpush1.bf16.msra.mxu0 %v3494
  %3514 = vmatprep.subr.bf16.mxu0 0
  %3515 = vmatpush2.bf16.msra.mxu0 0
  %3516 = vmatprep.subr.bf16.mxu0 0
  %3517 = vmatpush2.bf16.msra.mxu0 0
  %3518 = vmatprep.subr.bf16.mxu0 0
  %3519 = vmatpush2.bf16.msra.mxu0 0
  %3520 = vmatprep.subr.bf16.mxu0 0
  %3521 = vmatpush2.bf16.msra.mxu0 0
  %3522 = vmatprep.subr.bf16.mxu0 0
  %3523 = vmatpush2.bf16.msra.mxu0 0
  %3524 = vmatprep.subr.bf16.mxu0 0
  %3525 = vmatpush2.bf16.msra.mxu0 0
  %3526 = vmatprep.subr.bf16.mxu0 0
  %3527 = vmatpush2.bf16.msra.mxu0 0
  %3528 = vmatprep.subr.bf16.mxu0 0
  %3529 = vmatpush2.bf16.msra.mxu0 0
  %3530 = vmatprep.mubr.bf16.mxu0 0
  %3531 = vmatmul.mubr.bf16.gmra.mxu0 %v508
  %v3532 = vpop.f32.mrf.mxu0
  %v3533 = vadd.f32 %v3484, %v3532
  %v3534 = vpop.f32.mrf.mxu0
  %v3535 = vpop.f32.mrf.mxu0
  %v3536 = vadd.f32 %v3484, %v3535
  %v3537 = vpop.f32.mrf.mxu0
  %3538 = vmatprep.mubr.bf16.mxu0 0
  %3539 = vmatmul.mubr.bf16.gmra.mxu0 %v511
  %v3540 = vpop.f32.mrf.mxu0
  %v3541 = vadd.f32 %v3484, %v3540
  %v3542 = vpop.f32.mrf.mxu0
  %v3543 = vpop.f32.mrf.mxu0
  %v3544 = vadd.f32 %v3484, %v3543
  %v3545 = vpop.f32.mrf.mxu0
  %3546 = vdwg.mxu0
  %s3547 = scalar_lea.vmem %s10, 176
  %v3548 = vld [vmem:[%s3547] sm:$0xf]
  %v3549 = vld [vmem:[%s3547 + $0x4] sm:$0xf]
  %v3550 = vld [vmem:[%s3547 + $0x8] sm:$0xf]
  %v3551 = vld [vmem:[%s3547 + $0xc] sm:$0xf]
  %s3552 = scalar_lea.vmem %s11, 11
  %v3553 = vld [vmem:[%s3552] sm:$0x1]
  %v3555 = vlaneseq
  %v3556 = vshrl.u32 %v3555, 7
  %v3557 = vsub.s32 0, %v3556
  %v3558 = vrot.slane %v3553, %v3557
  %v3564 = vunpack.c.l.b16 %v3548
  %v3565 = vunpack.c.l.b16 %v3549
  %v3566 = vunpack.c.l.b16 %v3550
  %v3567 = vunpack.c.l.b16 %v3551
  %v3568 = vpack.c.b16 %v3565, %v3564
  %v3569 = vpack.c.b16 %v3567, %v3566
  %3572 = vmatprep.subr.bf16.mxu0 0
  %3573 = vmatpush1.bf16.msra.mxu0 0
  %3574 = vmatprep.subr.bf16.mxu0 0
  %3575 = vmatpush1.bf16.msra.mxu0 0
  %3576 = vmatprep.subr.bf16.mxu0 0
  %3577 = vmatpush1.bf16.msra.mxu0 0
  %3578 = vmatprep.subr.bf16.mxu0 0
  %3579 = vmatpush1.bf16.msra.mxu0 0
  %3580 = vmatprep.subr.bf16.mxu0 0
  %3581 = vmatpush1.bf16.msra.mxu0 0
  %3582 = vmatprep.subr.bf16.mxu0 0
  %3583 = vmatpush1.bf16.msra.mxu0 0
  %3584 = vmatprep.subr.bf16.mxu0 0
  %3585 = vmatpush1.bf16.msra.mxu0 %v3569
  %3586 = vmatprep.subr.bf16.mxu0 0
  %3587 = vmatpush1.bf16.msra.mxu0 %v3568
  %3588 = vmatprep.subr.bf16.mxu0 0
  %3589 = vmatpush2.bf16.msra.mxu0 0
  %3590 = vmatprep.subr.bf16.mxu0 0
  %3591 = vmatpush2.bf16.msra.mxu0 0
  %3592 = vmatprep.subr.bf16.mxu0 0
  %3593 = vmatpush2.bf16.msra.mxu0 0
  %3594 = vmatprep.subr.bf16.mxu0 0
  %3595 = vmatpush2.bf16.msra.mxu0 0
  %3596 = vmatprep.subr.bf16.mxu0 0
  %3597 = vmatpush2.bf16.msra.mxu0 0
  %3598 = vmatprep.subr.bf16.mxu0 0
  %3599 = vmatpush2.bf16.msra.mxu0 0
  %3600 = vmatprep.subr.bf16.mxu0 0
  %3601 = vmatpush2.bf16.msra.mxu0 0
  %3602 = vmatprep.subr.bf16.mxu0 0
  %3603 = vmatpush2.bf16.msra.mxu0 0
  %3604 = vmatprep.mubr.bf16.mxu0 0
  %3605 = vmatmul.mubr.bf16.gmra.mxu0 %v508
  %v3606 = vpop.f32.mrf.mxu0
  %v3607 = vadd.f32 %v3558, %v3606
  %v3608 = vpop.f32.mrf.mxu0
  %v3609 = vpop.f32.mrf.mxu0
  %v3610 = vadd.f32 %v3558, %v3609
  %v3611 = vpop.f32.mrf.mxu0
  %3612 = vmatprep.mubr.bf16.mxu0 0
  %3613 = vmatmul.mubr.bf16.gmra.mxu0 %v511
  %v3614 = vpop.f32.mrf.mxu0
  %v3615 = vadd.f32 %v3558, %v3614
  %v3616 = vpop.f32.mrf.mxu0
  %v3617 = vpop.f32.mrf.mxu0
  %v3618 = vadd.f32 %v3558, %v3617
  %v3619 = vpop.f32.mrf.mxu0
  %3620 = vdwg.mxu0
  %v3621 = vsel %vm419, %v3173, 0.0
  %3622 = vadd.xlane.f32.xlu0 %v3621
  %v3623 = vpop.xlane.xlu0 %3622
  %v3624 = vsel %vm419, %v3174, 0.0
  %3625 = vadd.xlane.f32.xlu0 %v3624
  %v3626 = vpop.xlane.xlu0 %3625
  %v3627 = vsel %vm419, %v3175, 0.0
  %3628 = vadd.xlane.f32.xlu0 %v3627
  %v3629 = vpop.xlane.xlu0 %3628
  %v3630 = vsel %vm419, %v3176, 0.0
  %3631 = vadd.xlane.f32.xlu0 %v3630
  %v3632 = vpop.xlane.xlu0 %3631
  %v3633 = vmul.f32 %v3623, %v944
  %v3634 = vmul.f32 %v3626, %v944
  %v3635 = vmul.f32 %v3629, %v944
  %v3636 = vmul.f32 %v3632, %v944
  %v3637 = vsub.f32 %v3173, %v3633
  %v3638 = vsub.f32 %v3174, %v3634
  %v3639 = vsub.f32 %v3175, %v3635
  %v3640 = vsub.f32 %v3176, %v3636
  %v3641 = vmul.f32 %v3637, %v3637
  %v3642 = vmul.f32 %v3638, %v3638
  %v3643 = vmul.f32 %v3639, %v3639
  %v3644 = vmul.f32 %v3640, %v3640
  %v3645 = vsel %vm419, %v3641, 0.0
  %3646 = vadd.xlane.f32.xlu0 %v3645
  %v3647 = vpop.xlane.xlu0 %3646
  %v3648 = vsel %vm419, %v3642, 0.0
  %3649 = vadd.xlane.f32.xlu0 %v3648
  %v3650 = vpop.xlane.xlu0 %3649
  %v3651 = vsel %vm419, %v3643, 0.0
  %3652 = vadd.xlane.f32.xlu0 %v3651
  %v3653 = vpop.xlane.xlu0 %3652
  %v3654 = vsel %vm419, %v3644, 0.0
  %3655 = vadd.xlane.f32.xlu0 %v3654
  %v3656 = vpop.xlane.xlu0 %3655
  %v3657 = vmul.f32 %v3647, %v944
  %v3658 = vmul.f32 %v3650, %v944
  %v3659 = vmul.f32 %v3653, %v944
  %v3660 = vmul.f32 %v3656, %v944
  %v3661 = vadd.f32 %v3657, 1e-06
  %v3662 = vadd.f32 %v3658, 1e-06
  %v3663 = vadd.f32 %v3659, 1e-06
  %v3664 = vadd.f32 %v3660, 1e-06
  %v3665 = vrsqrt.pop %v3661
  %v3666 = vrsqrt.pop %v3662
  %v3667 = vrsqrt.pop %v3663
  %v3668 = vrsqrt.pop %v3664
  %v3669 = vmul.f32 %v3637, %v3665
  %v3670 = vmul.f32 %v3638, %v3666
  %v3671 = vmul.f32 %v3639, %v3667
  %v3672 = vmul.f32 %v3640, %v3668
  %v3673 = vadd.f32 %v3311, 1.0
  %v3674 = vadd.f32 %v3314, 1.0
  %v3675 = vadd.f32 %v3319, 1.0
  %v3676 = vadd.f32 %v3322, 1.0
  %v3677 = vmul.f32 %v3669, %v3673
  %v3678 = vmul.f32 %v3670, %v3674
  %v3679 = vmul.f32 %v3671, %v3675
  %v3680 = vmul.f32 %v3672, %v3676
  %v3681 = vadd.f32 %v3677, %v3237
  %v3682 = vadd.f32 %v3678, %v3240
  %v3683 = vadd.f32 %v3679, %v3245
  %v3684 = vadd.f32 %v3680, %v3248
  %v3685 = vpack.c.bf16 %v3682, %v3681
  %v3686 = vpack.c.bf16 %v3684, %v3683
  %s3687 = scalar_lea.vmem %s12, 64
  %v3688 = vld [vmem:[%s3687] sm:$0xf]
  %v3689 = vld [vmem:[%s3687 + $0x4] sm:$0xf]
  %v3690 = vld [vmem:[%s3687 + $0x8] sm:$0xf]
  %v3691 = vld [vmem:[%s3687 + $0xc] sm:$0xf]
  %s3692 = scalar_lea.vmem %s13, 4
  %v3693 = vld [vmem:[%s3692] sm:$0x1]
  %v3695 = vlaneseq
  %v3696 = vshrl.u32 %v3695, 7
  %v3697 = vsub.s32 0, %v3696
  %v3698 = vrot.slane %v3693, %v3697
  %v3704 = vunpack.c.l.b16 %v3688
  %v3705 = vunpack.c.l.b16 %v3689
  %v3706 = vunpack.c.l.b16 %v3690
  %v3707 = vunpack.c.l.b16 %v3691
  %v3708 = vpack.c.b16 %v3705, %v3704
  %v3709 = vpack.c.b16 %v3707, %v3706
  %v3713 = vsel %vm419, %v3685, 0
  %v3716 = vsel %vm419, %v3686, 0
  %3718 = vmatprep.subr.bf16.mxu0 0
  %3719 = vmatpush1.bf16.msra.mxu0 0
  %3720 = vmatprep.subr.bf16.mxu0 0
  %3721 = vmatpush1.bf16.msra.mxu0 0
  %3722 = vmatprep.subr.bf16.mxu0 0
  %3723 = vmatpush1.bf16.msra.mxu0 0
  %3724 = vmatprep.subr.bf16.mxu0 0
  %3725 = vmatpush1.bf16.msra.mxu0 0
  %3726 = vmatprep.subr.bf16.mxu0 0
  %3727 = vmatpush1.bf16.msra.mxu0 0
  %3728 = vmatprep.subr.bf16.mxu0 0
  %3729 = vmatpush1.bf16.msra.mxu0 0
  %3730 = vmatprep.subr.bf16.mxu0 0
  %3731 = vmatpush1.bf16.msra.mxu0 %v3709
  %3732 = vmatprep.subr.bf16.mxu0 0
  %3733 = vmatpush1.bf16.msra.mxu0 %v3708
  %3734 = vmatprep.subr.bf16.mxu0 0
  %3735 = vmatpush2.bf16.msra.mxu0 0
  %3736 = vmatprep.subr.bf16.mxu0 0
  %3737 = vmatpush2.bf16.msra.mxu0 0
  %3738 = vmatprep.subr.bf16.mxu0 0
  %3739 = vmatpush2.bf16.msra.mxu0 0
  %3740 = vmatprep.subr.bf16.mxu0 0
  %3741 = vmatpush2.bf16.msra.mxu0 0
  %3742 = vmatprep.subr.bf16.mxu0 0
  %3743 = vmatpush2.bf16.msra.mxu0 0
  %3744 = vmatprep.subr.bf16.mxu0 0
  %3745 = vmatpush2.bf16.msra.mxu0 0
  %3746 = vmatprep.subr.bf16.mxu0 0
  %3747 = vmatpush2.bf16.msra.mxu0 0
  %3748 = vmatprep.subr.bf16.mxu0 0
  %3749 = vmatpush2.bf16.msra.mxu0 0
  %3750 = vmatprep.mubr.bf16.mxu0 0
  %3751 = vmatmul.mubr.bf16.gmra.mxu0 %v3713
  %v3752 = vpop.f32.mrf.mxu0
  %v3753 = vadd.f32 %v3698, %v3752
  %v3754 = vpop.f32.mrf.mxu0
  %v3755 = vpop.f32.mrf.mxu0
  %v3756 = vadd.f32 %v3698, %v3755
  %v3757 = vpop.f32.mrf.mxu0
  %3758 = vmatprep.mubr.bf16.mxu0 0
  %3759 = vmatmul.mubr.bf16.gmra.mxu0 %v3716
  %v3760 = vpop.f32.mrf.mxu0
  %v3761 = vadd.f32 %v3698, %v3760
  %v3762 = vpop.f32.mrf.mxu0
  %v3763 = vpop.f32.mrf.mxu0
  %v3764 = vadd.f32 %v3698, %v3763
  %v3765 = vpop.f32.mrf.mxu0
  %3766 = vdwg.mxu0
  %s3767 = scalar_lea.vmem %s14, 64
  %v3768 = vld [vmem:[%s3767] sm:$0xf]
  %v3769 = vld [vmem:[%s3767 + $0x4] sm:$0xf]
  %v3770 = vld [vmem:[%s3767 + $0x8] sm:$0xf]
  %v3771 = vld [vmem:[%s3767 + $0xc] sm:$0xf]
  %s3772 = scalar_lea.vmem %s15, 4
  %v3773 = vld [vmem:[%s3772] sm:$0x1]
  %v3775 = vlaneseq
  %v3776 = vshrl.u32 %v3775, 7
  %v3777 = vsub.s32 0, %v3776
  %v3778 = vrot.slane %v3773, %v3777
  %v3784 = vunpack.c.l.b16 %v3768
  %v3785 = vunpack.c.l.b16 %v3769
  %v3786 = vunpack.c.l.b16 %v3770
  %v3787 = vunpack.c.l.b16 %v3771
  %v3788 = vpack.c.b16 %v3785, %v3784
  %v3789 = vpack.c.b16 %v3787, %v3786
  %3792 = vmatprep.subr.bf16.mxu0 0
  %3793 = vmatpush1.bf16.msra.mxu0 0
  %3794 = vmatprep.subr.bf16.mxu0 0
  %3795 = vmatpush1.bf16.msra.mxu0 0
  %3796 = vmatprep.subr.bf16.mxu0 0
  %3797 = vmatpush1.bf16.msra.mxu0 0
  %3798 = vmatprep.subr.bf16.mxu0 0
  %3799 = vmatpush1.bf16.msra.mxu0 0
  %3800 = vmatprep.subr.bf16.mxu0 0
  %3801 = vmatpush1.bf16.msra.mxu0 0
  %3802 = vmatprep.subr.bf16.mxu0 0
  %3803 = vmatpush1.bf16.msra.mxu0 0
  %3804 = vmatprep.subr.bf16.mxu0 0
  %3805 = vmatpush1.bf16.msra.mxu0 %v3789
  %3806 = vmatprep.subr.bf16.mxu0 0
  %3807 = vmatpush1.bf16.msra.mxu0 %v3788
  %3808 = vmatprep.subr.bf16.mxu0 0
  %3809 = vmatpush2.bf16.msra.mxu0 0
  %3810 = vmatprep.subr.bf16.mxu0 0
  %3811 = vmatpush2.bf16.msra.mxu0 0
  %3812 = vmatprep.subr.bf16.mxu0 0
  %3813 = vmatpush2.bf16.msra.mxu0 0
  %3814 = vmatprep.subr.bf16.mxu0 0
  %3815 = vmatpush2.bf16.msra.mxu0 0
  %3816 = vmatprep.subr.bf16.mxu0 0
  %3817 = vmatpush2.bf16.msra.mxu0 0
  %3818 = vmatprep.subr.bf16.mxu0 0
  %3819 = vmatpush2.bf16.msra.mxu0 0
  %3820 = vmatprep.subr.bf16.mxu0 0
  %3821 = vmatpush2.bf16.msra.mxu0 0
  %3822 = vmatprep.subr.bf16.mxu0 0
  %3823 = vmatpush2.bf16.msra.mxu0 0
  %3824 = vmatprep.mubr.bf16.mxu0 0
  %3825 = vmatmul.mubr.bf16.gmra.mxu0 %v3713
  %v3826 = vpop.f32.mrf.mxu0
  %v3827 = vadd.f32 %v3778, %v3826
  %v3828 = vpop.f32.mrf.mxu0
  %v3829 = vpop.f32.mrf.mxu0
  %v3830 = vadd.f32 %v3778, %v3829
  %v3831 = vpop.f32.mrf.mxu0
  %3832 = vmatprep.mubr.bf16.mxu0 0
  %3833 = vmatmul.mubr.bf16.gmra.mxu0 %v3716
  %v3834 = vpop.f32.mrf.mxu0
  %v3835 = vadd.f32 %v3778, %v3834
  %v3836 = vpop.f32.mrf.mxu0
  %v3837 = vpop.f32.mrf.mxu0
  %v3838 = vadd.f32 %v3778, %v3837
  %v3839 = vpop.f32.mrf.mxu0
  %3840 = vdwg.mxu0
  %s3841 = scalar_lea.vmem %s16, 64
  %v3842 = vld [vmem:[%s3841] sm:$0xf]
  %v3843 = vld [vmem:[%s3841 + $0x4] sm:$0xf]
  %v3844 = vld [vmem:[%s3841 + $0x8] sm:$0xf]
  %v3845 = vld [vmem:[%s3841 + $0xc] sm:$0xf]
  %s3846 = scalar_lea.vmem %s17, 4
  %v3847 = vld [vmem:[%s3846] sm:$0x1]
  %v3849 = vlaneseq
  %v3850 = vshrl.u32 %v3849, 7
  %v3851 = vsub.s32 0, %v3850
  %v3852 = vrot.slane %v3847, %v3851
  %v3858 = vunpack.c.l.b16 %v3842
  %v3859 = vunpack.c.l.b16 %v3843
  %v3860 = vunpack.c.l.b16 %v3844
  %v3861 = vunpack.c.l.b16 %v3845
  %v3862 = vpack.c.b16 %v3859, %v3858
  %v3863 = vpack.c.b16 %v3861, %v3860
  %3866 = vmatprep.subr.bf16.mxu0 0
  %3867 = vmatpush1.bf16.msra.mxu0 0
  %3868 = vmatprep.subr.bf16.mxu0 0
  %3869 = vmatpush1.bf16.msra.mxu0 0
  %3870 = vmatprep.subr.bf16.mxu0 0
  %3871 = vmatpush1.bf16.msra.mxu0 0
  %3872 = vmatprep.subr.bf16.mxu0 0
  %3873 = vmatpush1.bf16.msra.mxu0 0
  %3874 = vmatprep.subr.bf16.mxu0 0
  %3875 = vmatpush1.bf16.msra.mxu0 0
  %3876 = vmatprep.subr.bf16.mxu0 0
  %3877 = vmatpush1.bf16.msra.mxu0 0
  %3878 = vmatprep.subr.bf16.mxu0 0
  %3879 = vmatpush1.bf16.msra.mxu0 %v3863
  %3880 = vmatprep.subr.bf16.mxu0 0
  %3881 = vmatpush1.bf16.msra.mxu0 %v3862
  %3882 = vmatprep.subr.bf16.mxu0 0
  %3883 = vmatpush2.bf16.msra.mxu0 0
  %3884 = vmatprep.subr.bf16.mxu0 0
  %3885 = vmatpush2.bf16.msra.mxu0 0
  %3886 = vmatprep.subr.bf16.mxu0 0
  %3887 = vmatpush2.bf16.msra.mxu0 0
  %3888 = vmatprep.subr.bf16.mxu0 0
  %3889 = vmatpush2.bf16.msra.mxu0 0
  %3890 = vmatprep.subr.bf16.mxu0 0
  %3891 = vmatpush2.bf16.msra.mxu0 0
  %3892 = vmatprep.subr.bf16.mxu0 0
  %3893 = vmatpush2.bf16.msra.mxu0 0
  %3894 = vmatprep.subr.bf16.mxu0 0
  %3895 = vmatpush2.bf16.msra.mxu0 0
  %3896 = vmatprep.subr.bf16.mxu0 0
  %3897 = vmatpush2.bf16.msra.mxu0 0
  %3898 = vmatprep.mubr.bf16.mxu0 0
  %3899 = vmatmul.mubr.bf16.gmra.mxu0 %v3713
  %v3900 = vpop.f32.mrf.mxu0
  %v3901 = vadd.f32 %v3852, %v3900
  %v3902 = vpop.f32.mrf.mxu0
  %v3903 = vpop.f32.mrf.mxu0
  %v3904 = vadd.f32 %v3852, %v3903
  %v3905 = vpop.f32.mrf.mxu0
  %3906 = vmatprep.mubr.bf16.mxu0 0
  %3907 = vmatmul.mubr.bf16.gmra.mxu0 %v3716
  %v3908 = vpop.f32.mrf.mxu0
  %v3909 = vadd.f32 %v3852, %v3908
  %v3910 = vpop.f32.mrf.mxu0
  %v3911 = vpop.f32.mrf.mxu0
  %v3912 = vadd.f32 %v3852, %v3911
  %v3913 = vpop.f32.mrf.mxu0
  %3914 = vdwg.mxu0
  %v3915 = vpack.c.bf16 %v3756, %v3753
  %v3916 = vpack.c.bf16 %v3764, %v3761
  %v3917 = vpack.c.bf16 %v3830, %v3827
  %v3918 = vpack.c.bf16 %v3838, %v3835
  %v3920 = vsel %vm1225, %v3915, 0
  %v3923 = vsel %vm1225, %v3916, 0
  %v3926 = vsel %vm1225, %v3917, 0
  %v3929 = vsel %vm1225, %v3918, 0
  %3931 = vmatprep.subr.bf16.mxu0 0
  %3932 = vmatpush1.bf16.xpose.msra.mxu0 0
  %3933 = vmatprep.subr.bf16.mxu0 0
  %3934 = vmatpush1.bf16.xpose.msra.mxu0 0
  %3935 = vmatprep.subr.bf16.mxu0 0
  %3936 = vmatpush1.bf16.xpose.msra.mxu0 0
  %3937 = vmatprep.subr.bf16.mxu0 0
  %3938 = vmatpush1.bf16.xpose.msra.mxu0 0
  %3939 = vmatprep.subr.bf16.mxu0 0
  %3940 = vmatpush1.bf16.xpose.msra.mxu0 0
  %3941 = vmatprep.subr.bf16.mxu0 0
  %3942 = vmatpush1.bf16.xpose.msra.mxu0 0
  %3943 = vmatprep.subr.bf16.mxu0 0
  %3944 = vmatpush1.bf16.xpose.msra.mxu0 %v3929
  %3945 = vmatprep.subr.bf16.mxu0 0
  %3946 = vmatpush1.bf16.xpose.msra.mxu0 %v3926
  %3947 = vmatprep.subr.bf16.mxu0 0
  %3948 = vmatpush2.bf16.xpose.msra.mxu0 0
  %3949 = vmatprep.subr.bf16.mxu0 0
  %3950 = vmatpush2.bf16.xpose.msra.mxu0 0
  %3951 = vmatprep.subr.bf16.mxu0 0
  %3952 = vmatpush2.bf16.xpose.msra.mxu0 0
  %3953 = vmatprep.subr.bf16.mxu0 0
  %3954 = vmatpush2.bf16.xpose.msra.mxu0 0
  %3955 = vmatprep.subr.bf16.mxu0 0
  %3956 = vmatpush2.bf16.xpose.msra.mxu0 0
  %3957 = vmatprep.subr.bf16.mxu0 0
  %3958 = vmatpush2.bf16.xpose.msra.mxu0 0
  %3959 = vmatprep.subr.bf16.mxu0 0
  %3960 = vmatpush2.bf16.xpose.msra.mxu0 0
  %3961 = vmatprep.subr.bf16.mxu0 0
  %3962 = vmatpush2.bf16.xpose.msra.mxu0 0
  %3963 = vmatprep.mubr.bf16.mxu0 0
  %3964 = vmatmul.mubr.bf16.gmra.mxu0 %v3920
  %v3965 = vpop.f32.mrf.mxu0
  %v3966 = vadd.f32 0.0, %v3965
  %v3967 = vpop.f32.mrf.mxu0
  %v3968 = vpop.f32.mrf.mxu0
  %v3969 = vadd.f32 0.0, %v3968
  %v3970 = vpop.f32.mrf.mxu0
  %3971 = vmatprep.mubr.bf16.mxu0 0
  %3972 = vmatmul.mubr.bf16.gmra.mxu0 %v3923
  %v3973 = vpop.f32.mrf.mxu0
  %v3974 = vadd.f32 0.0, %v3973
  %v3975 = vpop.f32.mrf.mxu0
  %v3976 = vpop.f32.mrf.mxu0
  %v3977 = vadd.f32 0.0, %v3976
  %v3978 = vpop.f32.mrf.mxu0
  %3979 = vdwg.mxu0
  %v3980 = vmul.f32 %v3966, 0.35355338
  %v3981 = vmul.f32 %v3969, 0.35355338
  %v3982 = vmul.f32 %v3974, 0.35355338
  %v3983 = vmul.f32 %v3977, 0.35355338
  %v3984 = vadd.f32 %v3980, %v480
  %v3985 = vadd.f32 %v3981, %v481
  %v3986 = vadd.f32 %v3982, %v482
  %v3987 = vadd.f32 %v3983, %v483
  %v3988 = vsel %vm419, %v3984, -inf
  %3989 = vmax.xlane.f32.xlu0 %v3988
  %v3990 = vpop.xlane.xlu0 %3989
  %v3991 = vsel %vm419, %v3985, -inf
  %3992 = vmax.xlane.f32.xlu0 %v3991
  %v3993 = vpop.xlane.xlu0 %3992
  %v3994 = vsel %vm419, %v3986, -inf
  %3995 = vmax.xlane.f32.xlu0 %v3994
  %v3996 = vpop.xlane.xlu0 %3995
  %v3997 = vsel %vm419, %v3987, -inf
  %3998 = vmax.xlane.f32.xlu0 %v3997
  %v3999 = vpop.xlane.xlu0 %3998
  %v4000 = vsub.f32 %v3984, %v3990
  %v4001 = vsub.f32 %v3985, %v3993
  %v4002 = vsub.f32 %v3986, %v3996
  %v4003 = vsub.f32 %v3987, %v3999
  %v4004 = vmul.f32 %v4000, 1.442695
  %v4005 = vpow.pop %v4004
  %v4006 = vmul.f32 %v4001, 1.442695
  %v4007 = vpow.pop %v4006
  %v4008 = vmul.f32 %v4002, 1.442695
  %v4009 = vpow.pop %v4008
  %v4010 = vmul.f32 %v4003, 1.442695
  %v4011 = vpow.pop %v4010
  %v4012 = vsel %vm419, %v4005, 0.0
  %4013 = vadd.xlane.f32.xlu0 %v4012
  %v4014 = vpop.xlane.xlu0 %4013
  %v4015 = vsel %vm419, %v4007, 0.0
  %4016 = vadd.xlane.f32.xlu0 %v4015
  %v4017 = vpop.xlane.xlu0 %4016
  %v4018 = vsel %vm419, %v4009, 0.0
  %4019 = vadd.xlane.f32.xlu0 %v4018
  %v4020 = vpop.xlane.xlu0 %4019
  %v4021 = vsel %vm419, %v4011, 0.0
  %4022 = vadd.xlane.f32.xlu0 %v4021
  %v4023 = vpop.xlane.xlu0 %4022
  %v4024 = vrcp.pop %v4014
  %v4025 = vrcp.pop %v4017
  %v4026 = vrcp.pop %v4020
  %v4027 = vrcp.pop %v4023
  %v4028 = vmul.f32 %v4005, %v4024
  %v4029 = vmul.f32 %v4007, %v4025
  %v4030 = vmul.f32 %v4009, %v4026
  %v4031 = vmul.f32 %v4011, %v4027
  %v4032 = vpack.c.bf16 %v4029, %v4028
  %v4033 = vpack.c.bf16 %v4031, %v4030
  %v4034 = vpack.c.bf16 %v3904, %v3901
  %v4035 = vpack.c.bf16 %v3912, %v3909
  %v4037 = vsel %vm419, %v4032, 0
  %v4040 = vsel %vm419, %v4033, 0
  %4042 = vmatprep.subr.bf16.mxu0 0
  %4043 = vmatpush1.bf16.msra.mxu0 0
  %4044 = vmatprep.subr.bf16.mxu0 0
  %4045 = vmatpush1.bf16.msra.mxu0 0
  %4046 = vmatprep.subr.bf16.mxu0 0
  %4047 = vmatpush1.bf16.msra.mxu0 0
  %4048 = vmatprep.subr.bf16.mxu0 0
  %4049 = vmatpush1.bf16.msra.mxu0 0
  %4050 = vmatprep.subr.bf16.mxu0 0
  %4051 = vmatpush1.bf16.msra.mxu0 0
  %4052 = vmatprep.subr.bf16.mxu0 0
  %4053 = vmatpush1.bf16.msra.mxu0 0
  %4054 = vmatprep.subr.bf16.mxu0 0
  %4055 = vmatpush1.bf16.msra.mxu0 %v4035
  %4056 = vmatprep.subr.bf16.mxu0 0
  %4057 = vmatpush1.bf16.msra.mxu0 %v4034
  %4058 = vmatprep.subr.bf16.mxu0 0
  %4059 = vmatpush2.bf16.msra.mxu0 0
  %4060 = vmatprep.subr.bf16.mxu0 0
  %4061 = vmatpush2.bf16.msra.mxu0 0
  %4062 = vmatprep.subr.bf16.mxu0 0
  %4063 = vmatpush2.bf16.msra.mxu0 0
  %4064 = vmatprep.subr.bf16.mxu0 0
  %4065 = vmatpush2.bf16.msra.mxu0 0
  %4066 = vmatprep.subr.bf16.mxu0 0
  %4067 = vmatpush2.bf16.msra.mxu0 0
  %4068 = vmatprep.subr.bf16.mxu0 0
  %4069 = vmatpush2.bf16.msra.mxu0 0
  %4070 = vmatprep.subr.bf16.mxu0 0
  %4071 = vmatpush2.bf16.msra.mxu0 0
  %4072 = vmatprep.subr.bf16.mxu0 0
  %4073 = vmatpush2.bf16.msra.mxu0 0
  %4074 = vmatprep.mubr.bf16.mxu0 0
  %4075 = vmatmul.mubr.bf16.gmra.mxu0 %v4037
  %v4076 = vpop.f32.mrf.mxu0
  %v4077 = vadd.f32 0.0, %v4076
  %v4078 = vpop.f32.mrf.mxu0
  %v4079 = vpop.f32.mrf.mxu0
  %v4080 = vadd.f32 0.0, %v4079
  %v4081 = vpop.f32.mrf.mxu0
  %4082 = vmatprep.mubr.bf16.mxu0 0
  %4083 = vmatmul.mubr.bf16.gmra.mxu0 %v4040
  %v4084 = vpop.f32.mrf.mxu0
  %v4085 = vadd.f32 0.0, %v4084
  %v4086 = vpop.f32.mrf.mxu0
  %v4087 = vpop.f32.mrf.mxu0
  %v4088 = vadd.f32 0.0, %v4087
  %v4089 = vpop.f32.mrf.mxu0
  %4090 = vdwg.mxu0
  %s4091 = scalar_lea.vmem %s18, 16
  %v4092 = vld [vmem:[%s4091] sm:$0xf]
  %v4093 = vpack.c.bf16 %v4080, %v4077
  %v4094 = vpack.c.bf16 %v4088, %v4085
  %s4095 = scalar_lea.vmem %s12, 80
  %v4096 = vld [vmem:[%s4095] sm:$0xf]
  %v4097 = vld [vmem:[%s4095 + $0x4] sm:$0xf]
  %v4098 = vld [vmem:[%s4095 + $0x8] sm:$0xf]
  %v4099 = vld [vmem:[%s4095 + $0xc] sm:$0xf]
  %s4100 = scalar_lea.vmem %s13, 5
  %v4101 = vld [vmem:[%s4100] sm:$0x1]
  %v4103 = vlaneseq
  %v4104 = vshrl.u32 %v4103, 7
  %v4105 = vsub.s32 0, %v4104
  %v4106 = vrot.slane %v4101, %v4105
  %v4112 = vunpack.c.l.b16 %v4096
  %v4113 = vunpack.c.l.b16 %v4097
  %v4114 = vunpack.c.l.b16 %v4098
  %v4115 = vunpack.c.l.b16 %v4099
  %v4116 = vpack.c.b16 %v4113, %v4112
  %v4117 = vpack.c.b16 %v4115, %v4114
  %4120 = vmatprep.subr.bf16.mxu0 0
  %4121 = vmatpush1.bf16.msra.mxu0 0
  %4122 = vmatprep.subr.bf16.mxu0 0
  %4123 = vmatpush1.bf16.msra.mxu0 0
  %4124 = vmatprep.subr.bf16.mxu0 0
  %4125 = vmatpush1.bf16.msra.mxu0 0
  %4126 = vmatprep.subr.bf16.mxu0 0
  %4127 = vmatpush1.bf16.msra.mxu0 0
  %4128 = vmatprep.subr.bf16.mxu0 0
  %4129 = vmatpush1.bf16.msra.mxu0 0
  %4130 = vmatprep.subr.bf16.mxu0 0
  %4131 = vmatpush1.bf16.msra.mxu0 0
  %4132 = vmatprep.subr.bf16.mxu0 0
  %4133 = vmatpush1.bf16.msra.mxu0 %v4117
  %4134 = vmatprep.subr.bf16.mxu0 0
  %4135 = vmatpush1.bf16.msra.mxu0 %v4116
  %4136 = vmatprep.subr.bf16.mxu0 0
  %4137 = vmatpush2.bf16.msra.mxu0 0
  %4138 = vmatprep.subr.bf16.mxu0 0
  %4139 = vmatpush2.bf16.msra.mxu0 0
  %4140 = vmatprep.subr.bf16.mxu0 0
  %4141 = vmatpush2.bf16.msra.mxu0 0
  %4142 = vmatprep.subr.bf16.mxu0 0
  %4143 = vmatpush2.bf16.msra.mxu0 0
  %4144 = vmatprep.subr.bf16.mxu0 0
  %4145 = vmatpush2.bf16.msra.mxu0 0
  %4146 = vmatprep.subr.bf16.mxu0 0
  %4147 = vmatpush2.bf16.msra.mxu0 0
  %4148 = vmatprep.subr.bf16.mxu0 0
  %4149 = vmatpush2.bf16.msra.mxu0 0
  %4150 = vmatprep.subr.bf16.mxu0 0
  %4151 = vmatpush2.bf16.msra.mxu0 0
  %4152 = vmatprep.mubr.bf16.mxu0 0
  %4153 = vmatmul.mubr.bf16.gmra.mxu0 %v3713
  %v4154 = vpop.f32.mrf.mxu0
  %v4155 = vadd.f32 %v4106, %v4154
  %v4156 = vpop.f32.mrf.mxu0
  %v4157 = vpop.f32.mrf.mxu0
  %v4158 = vadd.f32 %v4106, %v4157
  %v4159 = vpop.f32.mrf.mxu0
  %4160 = vmatprep.mubr.bf16.mxu0 0
  %4161 = vmatmul.mubr.bf16.gmra.mxu0 %v3716
  %v4162 = vpop.f32.mrf.mxu0
  %v4163 = vadd.f32 %v4106, %v4162
  %v4164 = vpop.f32.mrf.mxu0
  %v4165 = vpop.f32.mrf.mxu0
  %v4166 = vadd.f32 %v4106, %v4165
  %v4167 = vpop.f32.mrf.mxu0
  %4168 = vdwg.mxu0
  %s4169 = scalar_lea.vmem %s14, 80
  %v4170 = vld [vmem:[%s4169] sm:$0xf]
  %v4171 = vld [vmem:[%s4169 + $0x4] sm:$0xf]
  %v4172 = vld [vmem:[%s4169 + $0x8] sm:$0xf]
  %v4173 = vld [vmem:[%s4169 + $0xc] sm:$0xf]
  %s4174 = scalar_lea.vmem %s15, 5
  %v4175 = vld [vmem:[%s4174] sm:$0x1]
  %v4177 = vlaneseq
  %v4178 = vshrl.u32 %v4177, 7
  %v4179 = vsub.s32 0, %v4178
  %v4180 = vrot.slane %v4175, %v4179
  %v4186 = vunpack.c.l.b16 %v4170
  %v4187 = vunpack.c.l.b16 %v4171
  %v4188 = vunpack.c.l.b16 %v4172
  %v4189 = vunpack.c.l.b16 %v4173
  %v4190 = vpack.c.b16 %v4187, %v4186
  %v4191 = vpack.c.b16 %v4189, %v4188
  %4194 = vmatprep.subr.bf16.mxu0 0
  %4195 = vmatpush1.bf16.msra.mxu0 0
  %4196 = vmatprep.subr.bf16.mxu0 0
  %4197 = vmatpush1.bf16.msra.mxu0 0
  %4198 = vmatprep.subr.bf16.mxu0 0
  %4199 = vmatpush1.bf16.msra.mxu0 0
  %4200 = vmatprep.subr.bf16.mxu0 0
  %4201 = vmatpush1.bf16.msra.mxu0 0
  %4202 = vmatprep.subr.bf16.mxu0 0
  %4203 = vmatpush1.bf16.msra.mxu0 0
  %4204 = vmatprep.subr.bf16.mxu0 0
  %4205 = vmatpush1.bf16.msra.mxu0 0
  %4206 = vmatprep.subr.bf16.mxu0 0
  %4207 = vmatpush1.bf16.msra.mxu0 %v4191
  %4208 = vmatprep.subr.bf16.mxu0 0
  %4209 = vmatpush1.bf16.msra.mxu0 %v4190
  %4210 = vmatprep.subr.bf16.mxu0 0
  %4211 = vmatpush2.bf16.msra.mxu0 0
  %4212 = vmatprep.subr.bf16.mxu0 0
  %4213 = vmatpush2.bf16.msra.mxu0 0
  %4214 = vmatprep.subr.bf16.mxu0 0
  %4215 = vmatpush2.bf16.msra.mxu0 0
  %4216 = vmatprep.subr.bf16.mxu0 0
  %4217 = vmatpush2.bf16.msra.mxu0 0
  %4218 = vmatprep.subr.bf16.mxu0 0
  %4219 = vmatpush2.bf16.msra.mxu0 0
  %4220 = vmatprep.subr.bf16.mxu0 0
  %4221 = vmatpush2.bf16.msra.mxu0 0
  %4222 = vmatprep.subr.bf16.mxu0 0
  %4223 = vmatpush2.bf16.msra.mxu0 0
  %4224 = vmatprep.subr.bf16.mxu0 0
  %4225 = vmatpush2.bf16.msra.mxu0 0
  %4226 = vmatprep.mubr.bf16.mxu0 0
  %4227 = vmatmul.mubr.bf16.gmra.mxu0 %v3713
  %v4228 = vpop.f32.mrf.mxu0
  %v4229 = vadd.f32 %v4180, %v4228
  %v4230 = vpop.f32.mrf.mxu0
  %v4231 = vpop.f32.mrf.mxu0
  %v4232 = vadd.f32 %v4180, %v4231
  %v4233 = vpop.f32.mrf.mxu0
  %4234 = vmatprep.mubr.bf16.mxu0 0
  %4235 = vmatmul.mubr.bf16.gmra.mxu0 %v3716
  %v4236 = vpop.f32.mrf.mxu0
  %v4237 = vadd.f32 %v4180, %v4236
  %v4238 = vpop.f32.mrf.mxu0
  %v4239 = vpop.f32.mrf.mxu0
  %v4240 = vadd.f32 %v4180, %v4239
  %v4241 = vpop.f32.mrf.mxu0
  %4242 = vdwg.mxu0
  %s4243 = scalar_lea.vmem %s16, 80
  %v4244 = vld [vmem:[%s4243] sm:$0xf]
  %v4245 = vld [vmem:[%s4243 + $0x4] sm:$0xf]
  %v4246 = vld [vmem:[%s4243 + $0x8] sm:$0xf]
  %v4247 = vld [vmem:[%s4243 + $0xc] sm:$0xf]
  %s4248 = scalar_lea.vmem %s17, 5
  %v4249 = vld [vmem:[%s4248] sm:$0x1]
  %v4251 = vlaneseq
  %v4252 = vshrl.u32 %v4251, 7
  %v4253 = vsub.s32 0, %v4252
  %v4254 = vrot.slane %v4249, %v4253
  %v4260 = vunpack.c.l.b16 %v4244
  %v4261 = vunpack.c.l.b16 %v4245
  %v4262 = vunpack.c.l.b16 %v4246
  %v4263 = vunpack.c.l.b16 %v4247
  %v4264 = vpack.c.b16 %v4261, %v4260
  %v4265 = vpack.c.b16 %v4263, %v4262
  %4268 = vmatprep.subr.bf16.mxu0 0
  %4269 = vmatpush1.bf16.msra.mxu0 0
  %4270 = vmatprep.subr.bf16.mxu0 0
  %4271 = vmatpush1.bf16.msra.mxu0 0
  %4272 = vmatprep.subr.bf16.mxu0 0
  %4273 = vmatpush1.bf16.msra.mxu0 0
  %4274 = vmatprep.subr.bf16.mxu0 0
  %4275 = vmatpush1.bf16.msra.mxu0 0
  %4276 = vmatprep.subr.bf16.mxu0 0
  %4277 = vmatpush1.bf16.msra.mxu0 0
  %4278 = vmatprep.subr.bf16.mxu0 0
  %4279 = vmatpush1.bf16.msra.mxu0 0
  %4280 = vmatprep.subr.bf16.mxu0 0
  %4281 = vmatpush1.bf16.msra.mxu0 %v4265
  %4282 = vmatprep.subr.bf16.mxu0 0
  %4283 = vmatpush1.bf16.msra.mxu0 %v4264
  %4284 = vmatprep.subr.bf16.mxu0 0
  %4285 = vmatpush2.bf16.msra.mxu0 0
  %4286 = vmatprep.subr.bf16.mxu0 0
  %4287 = vmatpush2.bf16.msra.mxu0 0
  %4288 = vmatprep.subr.bf16.mxu0 0
  %4289 = vmatpush2.bf16.msra.mxu0 0
  %4290 = vmatprep.subr.bf16.mxu0 0
  %4291 = vmatpush2.bf16.msra.mxu0 0
  %4292 = vmatprep.subr.bf16.mxu0 0
  %4293 = vmatpush2.bf16.msra.mxu0 0
  %4294 = vmatprep.subr.bf16.mxu0 0
  %4295 = vmatpush2.bf16.msra.mxu0 0
  %4296 = vmatprep.subr.bf16.mxu0 0
  %4297 = vmatpush2.bf16.msra.mxu0 0
  %4298 = vmatprep.subr.bf16.mxu0 0
  %4299 = vmatpush2.bf16.msra.mxu0 0
  %4300 = vmatprep.mubr.bf16.mxu0 0
  %4301 = vmatmul.mubr.bf16.gmra.mxu0 %v3713
  %v4302 = vpop.f32.mrf.mxu0
  %v4303 = vadd.f32 %v4254, %v4302
  %v4304 = vpop.f32.mrf.mxu0
  %v4305 = vpop.f32.mrf.mxu0
  %v4306 = vadd.f32 %v4254, %v4305
  %v4307 = vpop.f32.mrf.mxu0
  %4308 = vmatprep.mubr.bf16.mxu0 0
  %4309 = vmatmul.mubr.bf16.gmra.mxu0 %v3716
  %v4310 = vpop.f32.mrf.mxu0
  %v4311 = vadd.f32 %v4254, %v4310
  %v4312 = vpop.f32.mrf.mxu0
  %v4313 = vpop.f32.mrf.mxu0
  %v4314 = vadd.f32 %v4254, %v4313
  %v4315 = vpop.f32.mrf.mxu0
  %4316 = vdwg.mxu0
  %v4317 = vpack.c.bf16 %v4158, %v4155
  %v4318 = vpack.c.bf16 %v4166, %v4163
  %v4319 = vpack.c.bf16 %v4232, %v4229
  %v4320 = vpack.c.bf16 %v4240, %v4237
  %v4322 = vsel %vm1225, %v4317, 0
  %v4325 = vsel %vm1225, %v4318, 0
  %v4328 = vsel %vm1225, %v4319, 0
  %v4331 = vsel %vm1225, %v4320, 0
  %4333 = vmatprep.subr.bf16.mxu0 0
  %4334 = vmatpush1.bf16.xpose.msra.mxu0 0
  %4335 = vmatprep.subr.bf16.mxu0 0
  %4336 = vmatpush1.bf16.xpose.msra.mxu0 0
  %4337 = vmatprep.subr.bf16.mxu0 0
  %4338 = vmatpush1.bf16.xpose.msra.mxu0 0
  %4339 = vmatprep.subr.bf16.mxu0 0
  %4340 = vmatpush1.bf16.xpose.msra.mxu0 0
  %4341 = vmatprep.subr.bf16.mxu0 0
  %4342 = vmatpush1.bf16.xpose.msra.mxu0 0
  %4343 = vmatprep.subr.bf16.mxu0 0
  %4344 = vmatpush1.bf16.xpose.msra.mxu0 0
  %4345 = vmatprep.subr.bf16.mxu0 0
  %4346 = vmatpush1.bf16.xpose.msra.mxu0 %v4331
  %4347 = vmatprep.subr.bf16.mxu0 0
  %4348 = vmatpush1.bf16.xpose.msra.mxu0 %v4328
  %4349 = vmatprep.subr.bf16.mxu0 0
  %4350 = vmatpush2.bf16.xpose.msra.mxu0 0
  %4351 = vmatprep.subr.bf16.mxu0 0
  %4352 = vmatpush2.bf16.xpose.msra.mxu0 0
  %4353 = vmatprep.subr.bf16.mxu0 0
  %4354 = vmatpush2.bf16.xpose.msra.mxu0 0
  %4355 = vmatprep.subr.bf16.mxu0 0
  %4356 = vmatpush2.bf16.xpose.msra.mxu0 0
  %4357 = vmatprep.subr.bf16.mxu0 0
  %4358 = vmatpush2.bf16.xpose.msra.mxu0 0
  %4359 = vmatprep.subr.bf16.mxu0 0
  %4360 = vmatpush2.bf16.xpose.msra.mxu0 0
  %4361 = vmatprep.subr.bf16.mxu0 0
  %4362 = vmatpush2.bf16.xpose.msra.mxu0 0
  %4363 = vmatprep.subr.bf16.mxu0 0
  %4364 = vmatpush2.bf16.xpose.msra.mxu0 0
  %4365 = vmatprep.mubr.bf16.mxu0 0
  %4366 = vmatmul.mubr.bf16.gmra.mxu0 %v4322
  %v4367 = vpop.f32.mrf.mxu0
  %v4368 = vadd.f32 0.0, %v4367
  %v4369 = vpop.f32.mrf.mxu0
  %v4370 = vpop.f32.mrf.mxu0
  %v4371 = vadd.f32 0.0, %v4370
  %v4372 = vpop.f32.mrf.mxu0
  %4373 = vmatprep.mubr.bf16.mxu0 0
  %4374 = vmatmul.mubr.bf16.gmra.mxu0 %v4325
  %v4375 = vpop.f32.mrf.mxu0
  %v4376 = vadd.f32 0.0, %v4375
  %v4377 = vpop.f32.mrf.mxu0
  %v4378 = vpop.f32.mrf.mxu0
  %v4379 = vadd.f32 0.0, %v4378
  %v4380 = vpop.f32.mrf.mxu0
  %4381 = vdwg.mxu0
  %v4382 = vmul.f32 %v4368, 0.35355338
  %v4383 = vmul.f32 %v4371, 0.35355338
  %v4384 = vmul.f32 %v4376, 0.35355338
  %v4385 = vmul.f32 %v4379, 0.35355338
  %v4386 = vadd.f32 %v4382, %v480
  %v4387 = vadd.f32 %v4383, %v481
  %v4388 = vadd.f32 %v4384, %v482
  %v4389 = vadd.f32 %v4385, %v483
  %v4390 = vsel %vm419, %v4386, -inf
  %4391 = vmax.xlane.f32.xlu0 %v4390
  %v4392 = vpop.xlane.xlu0 %4391
  %v4393 = vsel %vm419, %v4387, -inf
  %4394 = vmax.xlane.f32.xlu0 %v4393
  %v4395 = vpop.xlane.xlu0 %4394
  %v4396 = vsel %vm419, %v4388, -inf
  %4397 = vmax.xlane.f32.xlu0 %v4396
  %v4398 = vpop.xlane.xlu0 %4397
  %v4399 = vsel %vm419, %v4389, -inf
  %4400 = vmax.xlane.f32.xlu0 %v4399
  %v4401 = vpop.xlane.xlu0 %4400
  %v4402 = vsub.f32 %v4386, %v4392
  %v4403 = vsub.f32 %v4387, %v4395
  %v4404 = vsub.f32 %v4388, %v4398
  %v4405 = vsub.f32 %v4389, %v4401
  %v4406 = vmul.f32 %v4402, 1.442695
  %v4407 = vpow.pop %v4406
  %v4408 = vmul.f32 %v4403, 1.442695
  %v4409 = vpow.pop %v4408
  %v4410 = vmul.f32 %v4404, 1.442695
  %v4411 = vpow.pop %v4410
  %v4412 = vmul.f32 %v4405, 1.442695
  %v4413 = vpow.pop %v4412
  %v4414 = vsel %vm419, %v4407, 0.0
  %4415 = vadd.xlane.f32.xlu0 %v4414
  %v4416 = vpop.xlane.xlu0 %4415
  %v4417 = vsel %vm419, %v4409, 0.0
  %4418 = vadd.xlane.f32.xlu0 %v4417
  %v4419 = vpop.xlane.xlu0 %4418
  %v4420 = vsel %vm419, %v4411, 0.0
  %4421 = vadd.xlane.f32.xlu0 %v4420
  %v4422 = vpop.xlane.xlu0 %4421
  %v4423 = vsel %vm419, %v4413, 0.0
  %4424 = vadd.xlane.f32.xlu0 %v4423
  %v4425 = vpop.xlane.xlu0 %4424
  %v4426 = vrcp.pop %v4416
  %v4427 = vrcp.pop %v4419
  %v4428 = vrcp.pop %v4422
  %v4429 = vrcp.pop %v4425
  %v4430 = vmul.f32 %v4407, %v4426
  %v4431 = vmul.f32 %v4409, %v4427
  %v4432 = vmul.f32 %v4411, %v4428
  %v4433 = vmul.f32 %v4413, %v4429
  %v4434 = vpack.c.bf16 %v4431, %v4430
  %v4435 = vpack.c.bf16 %v4433, %v4432
  %v4436 = vpack.c.bf16 %v4306, %v4303
  %v4437 = vpack.c.bf16 %v4314, %v4311
  %v4439 = vsel %vm419, %v4434, 0
  %v4442 = vsel %vm419, %v4435, 0
  %4444 = vmatprep.subr.bf16.mxu0 0
  %4445 = vmatpush1.bf16.msra.mxu0 0
  %4446 = vmatprep.subr.bf16.mxu0 0
  %4447 = vmatpush1.bf16.msra.mxu0 0
  %4448 = vmatprep.subr.bf16.mxu0 0
  %4449 = vmatpush1.bf16.msra.mxu0 0
  %4450 = vmatprep.subr.bf16.mxu0 0
  %4451 = vmatpush1.bf16.msra.mxu0 0
  %4452 = vmatprep.subr.bf16.mxu0 0
  %4453 = vmatpush1.bf16.msra.mxu0 0
  %4454 = vmatprep.subr.bf16.mxu0 0
  %4455 = vmatpush1.bf16.msra.mxu0 0
  %4456 = vmatprep.subr.bf16.mxu0 0
  %4457 = vmatpush1.bf16.msra.mxu0 %v4437
  %4458 = vmatprep.subr.bf16.mxu0 0
  %4459 = vmatpush1.bf16.msra.mxu0 %v4436
  %4460 = vmatprep.subr.bf16.mxu0 0
  %4461 = vmatpush2.bf16.msra.mxu0 0
  %4462 = vmatprep.subr.bf16.mxu0 0
  %4463 = vmatpush2.bf16.msra.mxu0 0
  %4464 = vmatprep.subr.bf16.mxu0 0
  %4465 = vmatpush2.bf16.msra.mxu0 0
  %4466 = vmatprep.subr.bf16.mxu0 0
  %4467 = vmatpush2.bf16.msra.mxu0 0
  %4468 = vmatprep.subr.bf16.mxu0 0
  %4469 = vmatpush2.bf16.msra.mxu0 0
  %4470 = vmatprep.subr.bf16.mxu0 0
  %4471 = vmatpush2.bf16.msra.mxu0 0
  %4472 = vmatprep.subr.bf16.mxu0 0
  %4473 = vmatpush2.bf16.msra.mxu0 0
  %4474 = vmatprep.subr.bf16.mxu0 0
  %4475 = vmatpush2.bf16.msra.mxu0 0
  %4476 = vmatprep.mubr.bf16.mxu0 0
  %4477 = vmatmul.mubr.bf16.gmra.mxu0 %v4439
  %v4478 = vpop.f32.mrf.mxu0
  %v4479 = vadd.f32 0.0, %v4478
  %v4480 = vpop.f32.mrf.mxu0
  %v4481 = vpop.f32.mrf.mxu0
  %v4482 = vadd.f32 0.0, %v4481
  %v4483 = vpop.f32.mrf.mxu0
  %4484 = vmatprep.mubr.bf16.mxu0 0
  %4485 = vmatmul.mubr.bf16.gmra.mxu0 %v4442
  %v4486 = vpop.f32.mrf.mxu0
  %v4487 = vadd.f32 0.0, %v4486
  %v4488 = vpop.f32.mrf.mxu0
  %v4489 = vpop.f32.mrf.mxu0
  %v4490 = vadd.f32 0.0, %v4489
  %v4491 = vpop.f32.mrf.mxu0
  %4492 = vdwg.mxu0
  %s4493 = scalar_lea.vmem %s18, 20
  %v4494 = vld [vmem:[%s4493] sm:$0xf]
  %v4495 = vpack.c.bf16 %v4482, %v4479
  %v4496 = vpack.c.bf16 %v4490, %v4487
  %v4498 = vsel %vm1225, %v4495, 0
  %v4501 = vsel %vm1225, %v4496, 0
  %v4504 = vsel %vm1809, %v4494, 0
  %4506 = vmatprep.subr.bf16.mxu0 0
  %4507 = vmatpush1.bf16.msra.mxu0 0
  %4508 = vmatprep.subr.bf16.mxu0 0
  %4509 = vmatpush1.bf16.msra.mxu0 0
  %4510 = vmatprep.subr.bf16.mxu0 0
  %4511 = vmatpush1.bf16.msra.mxu0 0
  %4512 = vmatprep.subr.bf16.mxu0 0
  %4513 = vmatpush1.bf16.msra.mxu0 0
  %4514 = vmatprep.subr.bf16.mxu0 0
  %4515 = vmatpush1.bf16.msra.mxu0 0
  %4516 = vmatprep.subr.bf16.mxu0 0
  %4517 = vmatpush1.bf16.msra.mxu0 0
  %4518 = vmatprep.subr.bf16.mxu0 0
  %4519 = vmatpush1.bf16.msra.mxu0 0
  %4520 = vmatprep.subr.bf16.mxu0 0
  %4521 = vmatpush1.bf16.msra.mxu0 %v4504
  %4522 = vmatprep.subr.bf16.mxu0 0
  %4523 = vmatpush2.bf16.msra.mxu0 0
  %4524 = vmatprep.subr.bf16.mxu0 0
  %4525 = vmatpush2.bf16.msra.mxu0 0
  %4526 = vmatprep.subr.bf16.mxu0 0
  %4527 = vmatpush2.bf16.msra.mxu0 0
  %4528 = vmatprep.subr.bf16.mxu0 0
  %4529 = vmatpush2.bf16.msra.mxu0 0
  %4530 = vmatprep.subr.bf16.mxu0 0
  %4531 = vmatpush2.bf16.msra.mxu0 0
  %4532 = vmatprep.subr.bf16.mxu0 0
  %4533 = vmatpush2.bf16.msra.mxu0 0
  %4534 = vmatprep.subr.bf16.mxu0 0
  %4535 = vmatpush2.bf16.msra.mxu0 0
  %4536 = vmatprep.subr.bf16.mxu0 0
  %4537 = vmatpush2.bf16.msra.mxu0 0
  %4538 = vmatprep.mubr.bf16.mxu0 0
  %4539 = vmatmul.mubr.bf16.gmra.mxu0 %v4498
  %v4540 = vpop.f32.mrf.mxu0
  %v4541 = vadd.f32 0.0, %v4540
  %v4542 = vpop.f32.mrf.mxu0
  %v4543 = vpop.f32.mrf.mxu0
  %v4544 = vadd.f32 0.0, %v4543
  %v4545 = vpop.f32.mrf.mxu0
  %4546 = vmatprep.mubr.bf16.mxu0 0
  %4547 = vmatmul.mubr.bf16.gmra.mxu0 %v4501
  %v4548 = vpop.f32.mrf.mxu0
  %v4549 = vadd.f32 0.0, %v4548
  %v4550 = vpop.f32.mrf.mxu0
  %v4551 = vpop.f32.mrf.mxu0
  %v4552 = vadd.f32 0.0, %v4551
  %v4553 = vpop.f32.mrf.mxu0
  %4554 = vdwg.mxu0
  %v4556 = vsel %vm1225, %v4093, 0
  %v4559 = vsel %vm1225, %v4094, 0
  %v4562 = vsel %vm1809, %v4092, 0
  %4564 = vmatprep.subr.bf16.mxu0 0
  %4565 = vmatpush1.bf16.msra.mxu0 0
  %4566 = vmatprep.subr.bf16.mxu0 0
  %4567 = vmatpush1.bf16.msra.mxu0 0
  %4568 = vmatprep.subr.bf16.mxu0 0
  %4569 = vmatpush1.bf16.msra.mxu0 0
  %4570 = vmatprep.subr.bf16.mxu0 0
  %4571 = vmatpush1.bf16.msra.mxu0 0
  %4572 = vmatprep.subr.bf16.mxu0 0
  %4573 = vmatpush1.bf16.msra.mxu0 0
  %4574 = vmatprep.subr.bf16.mxu0 0
  %4575 = vmatpush1.bf16.msra.mxu0 0
  %4576 = vmatprep.subr.bf16.mxu0 0
  %4577 = vmatpush1.bf16.msra.mxu0 0
  %4578 = vmatprep.subr.bf16.mxu0 0
  %4579 = vmatpush1.bf16.msra.mxu0 %v4562
  %4580 = vmatprep.subr.bf16.mxu0 0
  %4581 = vmatpush2.bf16.msra.mxu0 0
  %4582 = vmatprep.subr.bf16.mxu0 0
  %4583 = vmatpush2.bf16.msra.mxu0 0
  %4584 = vmatprep.subr.bf16.mxu0 0
  %4585 = vmatpush2.bf16.msra.mxu0 0
  %4586 = vmatprep.subr.bf16.mxu0 0
  %4587 = vmatpush2.bf16.msra.mxu0 0
  %4588 = vmatprep.subr.bf16.mxu0 0
  %4589 = vmatpush2.bf16.msra.mxu0 0
  %4590 = vmatprep.subr.bf16.mxu0 0
  %4591 = vmatpush2.bf16.msra.mxu0 0
  %4592 = vmatprep.subr.bf16.mxu0 0
  %4593 = vmatpush2.bf16.msra.mxu0 0
  %4594 = vmatprep.subr.bf16.mxu0 0
  %4595 = vmatpush2.bf16.msra.mxu0 0
  %4596 = vmatprep.mubr.bf16.mxu0 0
  %4597 = vmatmul.mubr.bf16.gmra.mxu0 %v4556
  %v4598 = vpop.f32.mrf.mxu0
  %v4599 = vadd.f32 %v4541, %v4598
  %v4600 = vpop.f32.mrf.mxu0
  %v4601 = vpop.f32.mrf.mxu0
  %v4602 = vadd.f32 %v4544, %v4601
  %v4603 = vpop.f32.mrf.mxu0
  %4604 = vmatprep.mubr.bf16.mxu0 0
  %4605 = vmatmul.mubr.bf16.gmra.mxu0 %v4559
  %v4606 = vpop.f32.mrf.mxu0
  %v4607 = vadd.f32 %v4549, %v4606
  %v4608 = vpop.f32.mrf.mxu0
  %v4609 = vpop.f32.mrf.mxu0
  %v4610 = vadd.f32 %v4552, %v4609
  %v4611 = vpop.f32.mrf.mxu0
  %4612 = vdwg.mxu0
  %s4613 = scalar_lea.vmem %s12, 96
  %v4614 = vld [vmem:[%s4613] sm:$0xf]
  %v4615 = vld [vmem:[%s4613 + $0x4] sm:$0xf]
  %v4616 = vld [vmem:[%s4613 + $0x8] sm:$0xf]
  %v4617 = vld [vmem:[%s4613 + $0xc] sm:$0xf]
  %s4618 = scalar_lea.vmem %s13, 6
  %v4619 = vld [vmem:[%s4618] sm:$0x1]
  %v4621 = vlaneseq
  %v4622 = vshrl.u32 %v4621, 7
  %v4623 = vsub.s32 0, %v4622
  %v4624 = vrot.slane %v4619, %v4623
  %v4630 = vunpack.c.l.b16 %v4614
  %v4631 = vunpack.c.l.b16 %v4615
  %v4632 = vunpack.c.l.b16 %v4616
  %v4633 = vunpack.c.l.b16 %v4617
  %v4634 = vpack.c.b16 %v4631, %v4630
  %v4635 = vpack.c.b16 %v4633, %v4632
  %4638 = vmatprep.subr.bf16.mxu0 0
  %4639 = vmatpush1.bf16.msra.mxu0 0
  %4640 = vmatprep.subr.bf16.mxu0 0
  %4641 = vmatpush1.bf16.msra.mxu0 0
  %4642 = vmatprep.subr.bf16.mxu0 0
  %4643 = vmatpush1.bf16.msra.mxu0 0
  %4644 = vmatprep.subr.bf16.mxu0 0
  %4645 = vmatpush1.bf16.msra.mxu0 0
  %4646 = vmatprep.subr.bf16.mxu0 0
  %4647 = vmatpush1.bf16.msra.mxu0 0
  %4648 = vmatprep.subr.bf16.mxu0 0
  %4649 = vmatpush1.bf16.msra.mxu0 0
  %4650 = vmatprep.subr.bf16.mxu0 0
  %4651 = vmatpush1.bf16.msra.mxu0 %v4635
  %4652 = vmatprep.subr.bf16.mxu0 0
  %4653 = vmatpush1.bf16.msra.mxu0 %v4634
  %4654 = vmatprep.subr.bf16.mxu0 0
  %4655 = vmatpush2.bf16.msra.mxu0 0
  %4656 = vmatprep.subr.bf16.mxu0 0
  %4657 = vmatpush2.bf16.msra.mxu0 0
  %4658 = vmatprep.subr.bf16.mxu0 0
  %4659 = vmatpush2.bf16.msra.mxu0 0
  %4660 = vmatprep.subr.bf16.mxu0 0
  %4661 = vmatpush2.bf16.msra.mxu0 0
  %4662 = vmatprep.subr.bf16.mxu0 0
  %4663 = vmatpush2.bf16.msra.mxu0 0
  %4664 = vmatprep.subr.bf16.mxu0 0
  %4665 = vmatpush2.bf16.msra.mxu0 0
  %4666 = vmatprep.subr.bf16.mxu0 0
  %4667 = vmatpush2.bf16.msra.mxu0 0
  %4668 = vmatprep.subr.bf16.mxu0 0
  %4669 = vmatpush2.bf16.msra.mxu0 0
  %4670 = vmatprep.mubr.bf16.mxu0 0
  %4671 = vmatmul.mubr.bf16.gmra.mxu0 %v3713
  %v4672 = vpop.f32.mrf.mxu0
  %v4673 = vadd.f32 %v4624, %v4672
  %v4674 = vpop.f32.mrf.mxu0
  %v4675 = vpop.f32.mrf.mxu0
  %v4676 = vadd.f32 %v4624, %v4675
  %v4677 = vpop.f32.mrf.mxu0
  %4678 = vmatprep.mubr.bf16.mxu0 0
  %4679 = vmatmul.mubr.bf16.gmra.mxu0 %v3716
  %v4680 = vpop.f32.mrf.mxu0
  %v4681 = vadd.f32 %v4624, %v4680
  %v4682 = vpop.f32.mrf.mxu0
  %v4683 = vpop.f32.mrf.mxu0
  %v4684 = vadd.f32 %v4624, %v4683
  %v4685 = vpop.f32.mrf.mxu0
  %4686 = vdwg.mxu0
  %s4687 = scalar_lea.vmem %s14, 96
  %v4688 = vld [vmem:[%s4687] sm:$0xf]
  %v4689 = vld [vmem:[%s4687 + $0x4] sm:$0xf]
  %v4690 = vld [vmem:[%s4687 + $0x8] sm:$0xf]
  %v4691 = vld [vmem:[%s4687 + $0xc] sm:$0xf]
  %s4692 = scalar_lea.vmem %s15, 6
  %v4693 = vld [vmem:[%s4692] sm:$0x1]
  %v4695 = vlaneseq
  %v4696 = vshrl.u32 %v4695, 7
  %v4697 = vsub.s32 0, %v4696
  %v4698 = vrot.slane %v4693, %v4697
  %v4704 = vunpack.c.l.b16 %v4688
  %v4705 = vunpack.c.l.b16 %v4689
  %v4706 = vunpack.c.l.b16 %v4690
  %v4707 = vunpack.c.l.b16 %v4691
  %v4708 = vpack.c.b16 %v4705, %v4704
  %v4709 = vpack.c.b16 %v4707, %v4706
  %4712 = vmatprep.subr.bf16.mxu0 0
  %4713 = vmatpush1.bf16.msra.mxu0 0
  %4714 = vmatprep.subr.bf16.mxu0 0
  %4715 = vmatpush1.bf16.msra.mxu0 0
  %4716 = vmatprep.subr.bf16.mxu0 0
  %4717 = vmatpush1.bf16.msra.mxu0 0
  %4718 = vmatprep.subr.bf16.mxu0 0
  %4719 = vmatpush1.bf16.msra.mxu0 0
  %4720 = vmatprep.subr.bf16.mxu0 0
  %4721 = vmatpush1.bf16.msra.mxu0 0
  %4722 = vmatprep.subr.bf16.mxu0 0
  %4723 = vmatpush1.bf16.msra.mxu0 0
  %4724 = vmatprep.subr.bf16.mxu0 0
  %4725 = vmatpush1.bf16.msra.mxu0 %v4709
  %4726 = vmatprep.subr.bf16.mxu0 0
  %4727 = vmatpush1.bf16.msra.mxu0 %v4708
  %4728 = vmatprep.subr.bf16.mxu0 0
  %4729 = vmatpush2.bf16.msra.mxu0 0
  %4730 = vmatprep.subr.bf16.mxu0 0
  %4731 = vmatpush2.bf16.msra.mxu0 0
  %4732 = vmatprep.subr.bf16.mxu0 0
  %4733 = vmatpush2.bf16.msra.mxu0 0
  %4734 = vmatprep.subr.bf16.mxu0 0
  %4735 = vmatpush2.bf16.msra.mxu0 0
  %4736 = vmatprep.subr.bf16.mxu0 0
  %4737 = vmatpush2.bf16.msra.mxu0 0
  %4738 = vmatprep.subr.bf16.mxu0 0
  %4739 = vmatpush2.bf16.msra.mxu0 0
  %4740 = vmatprep.subr.bf16.mxu0 0
  %4741 = vmatpush2.bf16.msra.mxu0 0
  %4742 = vmatprep.subr.bf16.mxu0 0
  %4743 = vmatpush2.bf16.msra.mxu0 0
  %4744 = vmatprep.mubr.bf16.mxu0 0
  %4745 = vmatmul.mubr.bf16.gmra.mxu0 %v3713
  %v4746 = vpop.f32.mrf.mxu0
  %v4747 = vadd.f32 %v4698, %v4746
  %v4748 = vpop.f32.mrf.mxu0
  %v4749 = vpop.f32.mrf.mxu0
  %v4750 = vadd.f32 %v4698, %v4749
  %v4751 = vpop.f32.mrf.mxu0
  %4752 = vmatprep.mubr.bf16.mxu0 0
  %4753 = vmatmul.mubr.bf16.gmra.mxu0 %v3716
  %v4754 = vpop.f32.mrf.mxu0
  %v4755 = vadd.f32 %v4698, %v4754
  %v4756 = vpop.f32.mrf.mxu0
  %v4757 = vpop.f32.mrf.mxu0
  %v4758 = vadd.f32 %v4698, %v4757
  %v4759 = vpop.f32.mrf.mxu0
  %4760 = vdwg.mxu0
  %s4761 = scalar_lea.vmem %s16, 96
  %v4762 = vld [vmem:[%s4761] sm:$0xf]
  %v4763 = vld [vmem:[%s4761 + $0x4] sm:$0xf]
  %v4764 = vld [vmem:[%s4761 + $0x8] sm:$0xf]
  %v4765 = vld [vmem:[%s4761 + $0xc] sm:$0xf]
  %s4766 = scalar_lea.vmem %s17, 6
  %v4767 = vld [vmem:[%s4766] sm:$0x1]
  %v4769 = vlaneseq
  %v4770 = vshrl.u32 %v4769, 7
  %v4771 = vsub.s32 0, %v4770
  %v4772 = vrot.slane %v4767, %v4771
  %v4778 = vunpack.c.l.b16 %v4762
  %v4779 = vunpack.c.l.b16 %v4763
  %v4780 = vunpack.c.l.b16 %v4764
  %v4781 = vunpack.c.l.b16 %v4765
  %v4782 = vpack.c.b16 %v4779, %v4778
  %v4783 = vpack.c.b16 %v4781, %v4780
  %4786 = vmatprep.subr.bf16.mxu0 0
  %4787 = vmatpush1.bf16.msra.mxu0 0
  %4788 = vmatprep.subr.bf16.mxu0 0
  %4789 = vmatpush1.bf16.msra.mxu0 0
  %4790 = vmatprep.subr.bf16.mxu0 0
  %4791 = vmatpush1.bf16.msra.mxu0 0
  %4792 = vmatprep.subr.bf16.mxu0 0
  %4793 = vmatpush1.bf16.msra.mxu0 0
  %4794 = vmatprep.subr.bf16.mxu0 0
  %4795 = vmatpush1.bf16.msra.mxu0 0
  %4796 = vmatprep.subr.bf16.mxu0 0
  %4797 = vmatpush1.bf16.msra.mxu0 0
  %4798 = vmatprep.subr.bf16.mxu0 0
  %4799 = vmatpush1.bf16.msra.mxu0 %v4783
  %4800 = vmatprep.subr.bf16.mxu0 0
  %4801 = vmatpush1.bf16.msra.mxu0 %v4782
  %4802 = vmatprep.subr.bf16.mxu0 0
  %4803 = vmatpush2.bf16.msra.mxu0 0
  %4804 = vmatprep.subr.bf16.mxu0 0
  %4805 = vmatpush2.bf16.msra.mxu0 0
  %4806 = vmatprep.subr.bf16.mxu0 0
  %4807 = vmatpush2.bf16.msra.mxu0 0
  %4808 = vmatprep.subr.bf16.mxu0 0
  %4809 = vmatpush2.bf16.msra.mxu0 0
  %4810 = vmatprep.subr.bf16.mxu0 0
  %4811 = vmatpush2.bf16.msra.mxu0 0
  %4812 = vmatprep.subr.bf16.mxu0 0
  %4813 = vmatpush2.bf16.msra.mxu0 0
  %4814 = vmatprep.subr.bf16.mxu0 0
  %4815 = vmatpush2.bf16.msra.mxu0 0
  %4816 = vmatprep.subr.bf16.mxu0 0
  %4817 = vmatpush2.bf16.msra.mxu0 0
  %4818 = vmatprep.mubr.bf16.mxu0 0
  %4819 = vmatmul.mubr.bf16.gmra.mxu0 %v3713
  %v4820 = vpop.f32.mrf.mxu0
  %v4821 = vadd.f32 %v4772, %v4820
  %v4822 = vpop.f32.mrf.mxu0
  %v4823 = vpop.f32.mrf.mxu0
  %v4824 = vadd.f32 %v4772, %v4823
  %v4825 = vpop.f32.mrf.mxu0
  %4826 = vmatprep.mubr.bf16.mxu0 0
  %4827 = vmatmul.mubr.bf16.gmra.mxu0 %v3716
  %v4828 = vpop.f32.mrf.mxu0
  %v4829 = vadd.f32 %v4772, %v4828
  %v4830 = vpop.f32.mrf.mxu0
  %v4831 = vpop.f32.mrf.mxu0
  %v4832 = vadd.f32 %v4772, %v4831
  %v4833 = vpop.f32.mrf.mxu0
  %4834 = vdwg.mxu0
  %v4835 = vpack.c.bf16 %v4676, %v4673
  %v4836 = vpack.c.bf16 %v4684, %v4681
  %v4837 = vpack.c.bf16 %v4750, %v4747
  %v4838 = vpack.c.bf16 %v4758, %v4755
  %v4840 = vsel %vm1225, %v4835, 0
  %v4843 = vsel %vm1225, %v4836, 0
  %v4846 = vsel %vm1225, %v4837, 0
  %v4849 = vsel %vm1225, %v4838, 0
  %4851 = vmatprep.subr.bf16.mxu0 0
  %4852 = vmatpush1.bf16.xpose.msra.mxu0 0
  %4853 = vmatprep.subr.bf16.mxu0 0
  %4854 = vmatpush1.bf16.xpose.msra.mxu0 0
  %4855 = vmatprep.subr.bf16.mxu0 0
  %4856 = vmatpush1.bf16.xpose.msra.mxu0 0
  %4857 = vmatprep.subr.bf16.mxu0 0
  %4858 = vmatpush1.bf16.xpose.msra.mxu0 0
  %4859 = vmatprep.subr.bf16.mxu0 0
  %4860 = vmatpush1.bf16.xpose.msra.mxu0 0
  %4861 = vmatprep.subr.bf16.mxu0 0
  %4862 = vmatpush1.bf16.xpose.msra.mxu0 0
  %4863 = vmatprep.subr.bf16.mxu0 0
  %4864 = vmatpush1.bf16.xpose.msra.mxu0 %v4849
  %4865 = vmatprep.subr.bf16.mxu0 0
  %4866 = vmatpush1.bf16.xpose.msra.mxu0 %v4846
  %4867 = vmatprep.subr.bf16.mxu0 0
  %4868 = vmatpush2.bf16.xpose.msra.mxu0 0
  %4869 = vmatprep.subr.bf16.mxu0 0
  %4870 = vmatpush2.bf16.xpose.msra.mxu0 0
  %4871 = vmatprep.subr.bf16.mxu0 0
  %4872 = vmatpush2.bf16.xpose.msra.mxu0 0
  %4873 = vmatprep.subr.bf16.mxu0 0
  %4874 = vmatpush2.bf16.xpose.msra.mxu0 0
  %4875 = vmatprep.subr.bf16.mxu0 0
  %4876 = vmatpush2.bf16.xpose.msra.mxu0 0
  %4877 = vmatprep.subr.bf16.mxu0 0
  %4878 = vmatpush2.bf16.xpose.msra.mxu0 0
  %4879 = vmatprep.subr.bf16.mxu0 0
  %4880 = vmatpush2.bf16.xpose.msra.mxu0 0
  %4881 = vmatprep.subr.bf16.mxu0 0
  %4882 = vmatpush2.bf16.xpose.msra.mxu0 0
  %4883 = vmatprep.mubr.bf16.mxu0 0
  %4884 = vmatmul.mubr.bf16.gmra.mxu0 %v4840
  %v4885 = vpop.f32.mrf.mxu0
  %v4886 = vadd.f32 0.0, %v4885
  %v4887 = vpop.f32.mrf.mxu0
  %v4888 = vpop.f32.mrf.mxu0
  %v4889 = vadd.f32 0.0, %v4888
  %v4890 = vpop.f32.mrf.mxu0
  %4891 = vmatprep.mubr.bf16.mxu0 0
  %4892 = vmatmul.mubr.bf16.gmra.mxu0 %v4843
  %v4893 = vpop.f32.mrf.mxu0
  %v4894 = vadd.f32 0.0, %v4893
  %v4895 = vpop.f32.mrf.mxu0
  %v4896 = vpop.f32.mrf.mxu0
  %v4897 = vadd.f32 0.0, %v4896
  %v4898 = vpop.f32.mrf.mxu0
  %4899 = vdwg.mxu0
  %v4900 = vmul.f32 %v4886, 0.35355338
  %v4901 = vmul.f32 %v4889, 0.35355338
  %v4902 = vmul.f32 %v4894, 0.35355338
  %v4903 = vmul.f32 %v4897, 0.35355338
  %v4904 = vadd.f32 %v4900, %v480
  %v4905 = vadd.f32 %v4901, %v481
  %v4906 = vadd.f32 %v4902, %v482
  %v4907 = vadd.f32 %v4903, %v483
  %v4908 = vsel %vm419, %v4904, -inf
  %4909 = vmax.xlane.f32.xlu0 %v4908
  %v4910 = vpop.xlane.xlu0 %4909
  %v4911 = vsel %vm419, %v4905, -inf
  %4912 = vmax.xlane.f32.xlu0 %v4911
  %v4913 = vpop.xlane.xlu0 %4912
  %v4914 = vsel %vm419, %v4906, -inf
  %4915 = vmax.xlane.f32.xlu0 %v4914
  %v4916 = vpop.xlane.xlu0 %4915
  %v4917 = vsel %vm419, %v4907, -inf
  %4918 = vmax.xlane.f32.xlu0 %v4917
  %v4919 = vpop.xlane.xlu0 %4918
  %v4920 = vsub.f32 %v4904, %v4910
  %v4921 = vsub.f32 %v4905, %v4913
  %v4922 = vsub.f32 %v4906, %v4916
  %v4923 = vsub.f32 %v4907, %v4919
  %v4924 = vmul.f32 %v4920, 1.442695
  %v4925 = vpow.pop %v4924
  %v4926 = vmul.f32 %v4921, 1.442695
  %v4927 = vpow.pop %v4926
  %v4928 = vmul.f32 %v4922, 1.442695
  %v4929 = vpow.pop %v4928
  %v4930 = vmul.f32 %v4923, 1.442695
  %v4931 = vpow.pop %v4930
  %v4932 = vsel %vm419, %v4925, 0.0
  %4933 = vadd.xlane.f32.xlu0 %v4932
  %v4934 = vpop.xlane.xlu0 %4933
  %v4935 = vsel %vm419, %v4927, 0.0
  %4936 = vadd.xlane.f32.xlu0 %v4935
  %v4937 = vpop.xlane.xlu0 %4936
  %v4938 = vsel %vm419, %v4929, 0.0
  %4939 = vadd.xlane.f32.xlu0 %v4938
  %v4940 = vpop.xlane.xlu0 %4939
  %v4941 = vsel %vm419, %v4931, 0.0
  %4942 = vadd.xlane.f32.xlu0 %v4941
  %v4943 = vpop.xlane.xlu0 %4942
  %v4944 = vrcp.pop %v4934
  %v4945 = vrcp.pop %v4937
  %v4946 = vrcp.pop %v4940
  %v4947 = vrcp.pop %v4943
  %v4948 = vmul.f32 %v4925, %v4944
  %v4949 = vmul.f32 %v4927, %v4945
  %v4950 = vmul.f32 %v4929, %v4946
  %v4951 = vmul.f32 %v4931, %v4947
  %v4952 = vpack.c.bf16 %v4949, %v4948
  %v4953 = vpack.c.bf16 %v4951, %v4950
  %v4954 = vpack.c.bf16 %v4824, %v4821
  %v4955 = vpack.c.bf16 %v4832, %v4829
  %v4957 = vsel %vm419, %v4952, 0
  %v4960 = vsel %vm419, %v4953, 0
  %4962 = vmatprep.subr.bf16.mxu0 0
  %4963 = vmatpush1.bf16.msra.mxu0 0
  %4964 = vmatprep.subr.bf16.mxu0 0
  %4965 = vmatpush1.bf16.msra.mxu0 0
  %4966 = vmatprep.subr.bf16.mxu0 0
  %4967 = vmatpush1.bf16.msra.mxu0 0
  %4968 = vmatprep.subr.bf16.mxu0 0
  %4969 = vmatpush1.bf16.msra.mxu0 0
  %4970 = vmatprep.subr.bf16.mxu0 0
  %4971 = vmatpush1.bf16.msra.mxu0 0
  %4972 = vmatprep.subr.bf16.mxu0 0
  %4973 = vmatpush1.bf16.msra.mxu0 0
  %4974 = vmatprep.subr.bf16.mxu0 0
  %4975 = vmatpush1.bf16.msra.mxu0 %v4955
  %4976 = vmatprep.subr.bf16.mxu0 0
  %4977 = vmatpush1.bf16.msra.mxu0 %v4954
  %4978 = vmatprep.subr.bf16.mxu0 0
  %4979 = vmatpush2.bf16.msra.mxu0 0
  %4980 = vmatprep.subr.bf16.mxu0 0
  %4981 = vmatpush2.bf16.msra.mxu0 0
  %4982 = vmatprep.subr.bf16.mxu0 0
  %4983 = vmatpush2.bf16.msra.mxu0 0
  %4984 = vmatprep.subr.bf16.mxu0 0
  %4985 = vmatpush2.bf16.msra.mxu0 0
  %4986 = vmatprep.subr.bf16.mxu0 0
  %4987 = vmatpush2.bf16.msra.mxu0 0
  %4988 = vmatprep.subr.bf16.mxu0 0
  %4989 = vmatpush2.bf16.msra.mxu0 0
  %4990 = vmatprep.subr.bf16.mxu0 0
  %4991 = vmatpush2.bf16.msra.mxu0 0
  %4992 = vmatprep.subr.bf16.mxu0 0
  %4993 = vmatpush2.bf16.msra.mxu0 0
  %4994 = vmatprep.mubr.bf16.mxu0 0
  %4995 = vmatmul.mubr.bf16.gmra.mxu0 %v4957
  %v4996 = vpop.f32.mrf.mxu0
  %v4997 = vadd.f32 0.0, %v4996
  %v4998 = vpop.f32.mrf.mxu0
  %v4999 = vpop.f32.mrf.mxu0
  %v5000 = vadd.f32 0.0, %v4999
  %v5001 = vpop.f32.mrf.mxu0
  %5002 = vmatprep.mubr.bf16.mxu0 0
  %5003 = vmatmul.mubr.bf16.gmra.mxu0 %v4960
  %v5004 = vpop.f32.mrf.mxu0
  %v5005 = vadd.f32 0.0, %v5004
  %v5006 = vpop.f32.mrf.mxu0
  %v5007 = vpop.f32.mrf.mxu0
  %v5008 = vadd.f32 0.0, %v5007
  %v5009 = vpop.f32.mrf.mxu0
  %5010 = vdwg.mxu0
  %s5011 = scalar_lea.vmem %s18, 24
  %v5012 = vld [vmem:[%s5011] sm:$0xf]
  %v5013 = vpack.c.bf16 %v5000, %v4997
  %v5014 = vpack.c.bf16 %v5008, %v5005
  %v5016 = vsel %vm1225, %v5013, 0
  %v5019 = vsel %vm1225, %v5014, 0
  %v5022 = vsel %vm1809, %v5012, 0
  %5024 = vmatprep.subr.bf16.mxu0 0
  %5025 = vmatpush1.bf16.msra.mxu0 0
  %5026 = vmatprep.subr.bf16.mxu0 0
  %5027 = vmatpush1.bf16.msra.mxu0 0
  %5028 = vmatprep.subr.bf16.mxu0 0
  %5029 = vmatpush1.bf16.msra.mxu0 0
  %5030 = vmatprep.subr.bf16.mxu0 0
  %5031 = vmatpush1.bf16.msra.mxu0 0
  %5032 = vmatprep.subr.bf16.mxu0 0
  %5033 = vmatpush1.bf16.msra.mxu0 0
  %5034 = vmatprep.subr.bf16.mxu0 0
  %5035 = vmatpush1.bf16.msra.mxu0 0
  %5036 = vmatprep.subr.bf16.mxu0 0
  %5037 = vmatpush1.bf16.msra.mxu0 0
  %5038 = vmatprep.subr.bf16.mxu0 0
  %5039 = vmatpush1.bf16.msra.mxu0 %v5022
  %5040 = vmatprep.subr.bf16.mxu0 0
  %5041 = vmatpush2.bf16.msra.mxu0 0
  %5042 = vmatprep.subr.bf16.mxu0 0
  %5043 = vmatpush2.bf16.msra.mxu0 0
  %5044 = vmatprep.subr.bf16.mxu0 0
  %5045 = vmatpush2.bf16.msra.mxu0 0
  %5046 = vmatprep.subr.bf16.mxu0 0
  %5047 = vmatpush2.bf16.msra.mxu0 0
  %5048 = vmatprep.subr.bf16.mxu0 0
  %5049 = vmatpush2.bf16.msra.mxu0 0
  %5050 = vmatprep.subr.bf16.mxu0 0
  %5051 = vmatpush2.bf16.msra.mxu0 0
  %5052 = vmatprep.subr.bf16.mxu0 0
  %5053 = vmatpush2.bf16.msra.mxu0 0
  %5054 = vmatprep.subr.bf16.mxu0 0
  %5055 = vmatpush2.bf16.msra.mxu0 0
  %5056 = vmatprep.mubr.bf16.mxu0 0
  %5057 = vmatmul.mubr.bf16.gmra.mxu0 %v5016
  %v5058 = vpop.f32.mrf.mxu0
  %v5059 = vadd.f32 0.0, %v5058
  %v5060 = vpop.f32.mrf.mxu0
  %v5061 = vpop.f32.mrf.mxu0
  %v5062 = vadd.f32 0.0, %v5061
  %v5063 = vpop.f32.mrf.mxu0
  %5064 = vmatprep.mubr.bf16.mxu0 0
  %5065 = vmatmul.mubr.bf16.gmra.mxu0 %v5019
  %v5066 = vpop.f32.mrf.mxu0
  %v5067 = vadd.f32 0.0, %v5066
  %v5068 = vpop.f32.mrf.mxu0
  %v5069 = vpop.f32.mrf.mxu0
  %v5070 = vadd.f32 0.0, %v5069
  %v5071 = vpop.f32.mrf.mxu0
  %5072 = vdwg.mxu0
  %v5073 = vadd.f32 %v4599, %v5059
  %v5074 = vadd.f32 %v4602, %v5062
  %v5075 = vadd.f32 %v4607, %v5067
  %v5076 = vadd.f32 %v4610, %v5070
  %s5077 = scalar_lea.vmem %s12, 112
  %v5078 = vld [vmem:[%s5077] sm:$0xf]
  %v5079 = vld [vmem:[%s5077 + $0x4] sm:$0xf]
  %v5080 = vld [vmem:[%s5077 + $0x8] sm:$0xf]
  %v5081 = vld [vmem:[%s5077 + $0xc] sm:$0xf]
  %s5082 = scalar_lea.vmem %s13, 7
  %v5083 = vld [vmem:[%s5082] sm:$0x1]
  %v5085 = vlaneseq
  %v5086 = vshrl.u32 %v5085, 7
  %v5087 = vsub.s32 0, %v5086
  %v5088 = vrot.slane %v5083, %v5087
  %v5094 = vunpack.c.l.b16 %v5078
  %v5095 = vunpack.c.l.b16 %v5079
  %v5096 = vunpack.c.l.b16 %v5080
  %v5097 = vunpack.c.l.b16 %v5081
  %v5098 = vpack.c.b16 %v5095, %v5094
  %v5099 = vpack.c.b16 %v5097, %v5096
  %5102 = vmatprep.subr.bf16.mxu0 0
  %5103 = vmatpush1.bf16.msra.mxu0 0
  %5104 = vmatprep.subr.bf16.mxu0 0
  %5105 = vmatpush1.bf16.msra.mxu0 0
  %5106 = vmatprep.subr.bf16.mxu0 0
  %5107 = vmatpush1.bf16.msra.mxu0 0
  %5108 = vmatprep.subr.bf16.mxu0 0
  %5109 = vmatpush1.bf16.msra.mxu0 0
  %5110 = vmatprep.subr.bf16.mxu0 0
  %5111 = vmatpush1.bf16.msra.mxu0 0
  %5112 = vmatprep.subr.bf16.mxu0 0
  %5113 = vmatpush1.bf16.msra.mxu0 0
  %5114 = vmatprep.subr.bf16.mxu0 0
  %5115 = vmatpush1.bf16.msra.mxu0 %v5099
  %5116 = vmatprep.subr.bf16.mxu0 0
  %5117 = vmatpush1.bf16.msra.mxu0 %v5098
  %5118 = vmatprep.subr.bf16.mxu0 0
  %5119 = vmatpush2.bf16.msra.mxu0 0
  %5120 = vmatprep.subr.bf16.mxu0 0
  %5121 = vmatpush2.bf16.msra.mxu0 0
  %5122 = vmatprep.subr.bf16.mxu0 0
  %5123 = vmatpush2.bf16.msra.mxu0 0
  %5124 = vmatprep.subr.bf16.mxu0 0
  %5125 = vmatpush2.bf16.msra.mxu0 0
  %5126 = vmatprep.subr.bf16.mxu0 0
  %5127 = vmatpush2.bf16.msra.mxu0 0
  %5128 = vmatprep.subr.bf16.mxu0 0
  %5129 = vmatpush2.bf16.msra.mxu0 0
  %5130 = vmatprep.subr.bf16.mxu0 0
  %5131 = vmatpush2.bf16.msra.mxu0 0
  %5132 = vmatprep.subr.bf16.mxu0 0
  %5133 = vmatpush2.bf16.msra.mxu0 0
  %5134 = vmatprep.mubr.bf16.mxu0 0
  %5135 = vmatmul.mubr.bf16.gmra.mxu0 %v3713
  %v5136 = vpop.f32.mrf.mxu0
  %v5137 = vadd.f32 %v5088, %v5136
  %v5138 = vpop.f32.mrf.mxu0
  %v5139 = vpop.f32.mrf.mxu0
  %v5140 = vadd.f32 %v5088, %v5139
  %v5141 = vpop.f32.mrf.mxu0
  %5142 = vmatprep.mubr.bf16.mxu0 0
  %5143 = vmatmul.mubr.bf16.gmra.mxu0 %v3716
  %v5144 = vpop.f32.mrf.mxu0
  %v5145 = vadd.f32 %v5088, %v5144
  %v5146 = vpop.f32.mrf.mxu0
  %v5147 = vpop.f32.mrf.mxu0
  %v5148 = vadd.f32 %v5088, %v5147
  %v5149 = vpop.f32.mrf.mxu0
  %5150 = vdwg.mxu0
  %s5151 = scalar_lea.vmem %s14, 112
  %v5152 = vld [vmem:[%s5151] sm:$0xf]
  %v5153 = vld [vmem:[%s5151 + $0x4] sm:$0xf]
  %v5154 = vld [vmem:[%s5151 + $0x8] sm:$0xf]
  %v5155 = vld [vmem:[%s5151 + $0xc] sm:$0xf]
  %s5156 = scalar_lea.vmem %s15, 7
  %v5157 = vld [vmem:[%s5156] sm:$0x1]
  %v5159 = vlaneseq
  %v5160 = vshrl.u32 %v5159, 7
  %v5161 = vsub.s32 0, %v5160
  %v5162 = vrot.slane %v5157, %v5161
  %v5168 = vunpack.c.l.b16 %v5152
  %v5169 = vunpack.c.l.b16 %v5153
  %v5170 = vunpack.c.l.b16 %v5154
  %v5171 = vunpack.c.l.b16 %v5155
  %v5172 = vpack.c.b16 %v5169, %v5168
  %v5173 = vpack.c.b16 %v5171, %v5170
  %5176 = vmatprep.subr.bf16.mxu0 0
  %5177 = vmatpush1.bf16.msra.mxu0 0
  %5178 = vmatprep.subr.bf16.mxu0 0
  %5179 = vmatpush1.bf16.msra.mxu0 0
  %5180 = vmatprep.subr.bf16.mxu0 0
  %5181 = vmatpush1.bf16.msra.mxu0 0
  %5182 = vmatprep.subr.bf16.mxu0 0
  %5183 = vmatpush1.bf16.msra.mxu0 0
  %5184 = vmatprep.subr.bf16.mxu0 0
  %5185 = vmatpush1.bf16.msra.mxu0 0
  %5186 = vmatprep.subr.bf16.mxu0 0
  %5187 = vmatpush1.bf16.msra.mxu0 0
  %5188 = vmatprep.subr.bf16.mxu0 0
  %5189 = vmatpush1.bf16.msra.mxu0 %v5173
  %5190 = vmatprep.subr.bf16.mxu0 0
  %5191 = vmatpush1.bf16.msra.mxu0 %v5172
  %5192 = vmatprep.subr.bf16.mxu0 0
  %5193 = vmatpush2.bf16.msra.mxu0 0
  %5194 = vmatprep.subr.bf16.mxu0 0
  %5195 = vmatpush2.bf16.msra.mxu0 0
  %5196 = vmatprep.subr.bf16.mxu0 0
  %5197 = vmatpush2.bf16.msra.mxu0 0
  %5198 = vmatprep.subr.bf16.mxu0 0
  %5199 = vmatpush2.bf16.msra.mxu0 0
  %5200 = vmatprep.subr.bf16.mxu0 0
  %5201 = vmatpush2.bf16.msra.mxu0 0
  %5202 = vmatprep.subr.bf16.mxu0 0
  %5203 = vmatpush2.bf16.msra.mxu0 0
  %5204 = vmatprep.subr.bf16.mxu0 0
  %5205 = vmatpush2.bf16.msra.mxu0 0
  %5206 = vmatprep.subr.bf16.mxu0 0
  %5207 = vmatpush2.bf16.msra.mxu0 0
  %5208 = vmatprep.mubr.bf16.mxu0 0
  %5209 = vmatmul.mubr.bf16.gmra.mxu0 %v3713
  %v5210 = vpop.f32.mrf.mxu0
  %v5211 = vadd.f32 %v5162, %v5210
  %v5212 = vpop.f32.mrf.mxu0
  %v5213 = vpop.f32.mrf.mxu0
  %v5214 = vadd.f32 %v5162, %v5213
  %v5215 = vpop.f32.mrf.mxu0
  %5216 = vmatprep.mubr.bf16.mxu0 0
  %5217 = vmatmul.mubr.bf16.gmra.mxu0 %v3716
  %v5218 = vpop.f32.mrf.mxu0
  %v5219 = vadd.f32 %v5162, %v5218
  %v5220 = vpop.f32.mrf.mxu0
  %v5221 = vpop.f32.mrf.mxu0
  %v5222 = vadd.f32 %v5162, %v5221
  %v5223 = vpop.f32.mrf.mxu0
  %5224 = vdwg.mxu0
  %s5225 = scalar_lea.vmem %s16, 112
  %v5226 = vld [vmem:[%s5225] sm:$0xf]
  %v5227 = vld [vmem:[%s5225 + $0x4] sm:$0xf]
  %v5228 = vld [vmem:[%s5225 + $0x8] sm:$0xf]
  %v5229 = vld [vmem:[%s5225 + $0xc] sm:$0xf]
  %s5230 = scalar_lea.vmem %s17, 7
  %v5231 = vld [vmem:[%s5230] sm:$0x1]
  %v5233 = vlaneseq
  %v5234 = vshrl.u32 %v5233, 7
  %v5235 = vsub.s32 0, %v5234
  %v5236 = vrot.slane %v5231, %v5235
  %v5242 = vunpack.c.l.b16 %v5226
  %v5243 = vunpack.c.l.b16 %v5227
  %v5244 = vunpack.c.l.b16 %v5228
  %v5245 = vunpack.c.l.b16 %v5229
  %v5246 = vpack.c.b16 %v5243, %v5242
  %v5247 = vpack.c.b16 %v5245, %v5244
  %5250 = vmatprep.subr.bf16.mxu0 0
  %5251 = vmatpush1.bf16.msra.mxu0 0
  %5252 = vmatprep.subr.bf16.mxu0 0
  %5253 = vmatpush1.bf16.msra.mxu0 0
  %5254 = vmatprep.subr.bf16.mxu0 0
  %5255 = vmatpush1.bf16.msra.mxu0 0
  %5256 = vmatprep.subr.bf16.mxu0 0
  %5257 = vmatpush1.bf16.msra.mxu0 0
  %5258 = vmatprep.subr.bf16.mxu0 0
  %5259 = vmatpush1.bf16.msra.mxu0 0
  %5260 = vmatprep.subr.bf16.mxu0 0
  %5261 = vmatpush1.bf16.msra.mxu0 0
  %5262 = vmatprep.subr.bf16.mxu0 0
  %5263 = vmatpush1.bf16.msra.mxu0 %v5247
  %5264 = vmatprep.subr.bf16.mxu0 0
  %5265 = vmatpush1.bf16.msra.mxu0 %v5246
  %5266 = vmatprep.subr.bf16.mxu0 0
  %5267 = vmatpush2.bf16.msra.mxu0 0
  %5268 = vmatprep.subr.bf16.mxu0 0
  %5269 = vmatpush2.bf16.msra.mxu0 0
  %5270 = vmatprep.subr.bf16.mxu0 0
  %5271 = vmatpush2.bf16.msra.mxu0 0
  %5272 = vmatprep.subr.bf16.mxu0 0
  %5273 = vmatpush2.bf16.msra.mxu0 0
  %5274 = vmatprep.subr.bf16.mxu0 0
  %5275 = vmatpush2.bf16.msra.mxu0 0
  %5276 = vmatprep.subr.bf16.mxu0 0
  %5277 = vmatpush2.bf16.msra.mxu0 0
  %5278 = vmatprep.subr.bf16.mxu0 0
  %5279 = vmatpush2.bf16.msra.mxu0 0
  %5280 = vmatprep.subr.bf16.mxu0 0
  %5281 = vmatpush2.bf16.msra.mxu0 0
  %5282 = vmatprep.mubr.bf16.mxu0 0
  %5283 = vmatmul.mubr.bf16.gmra.mxu0 %v3713
  %v5284 = vpop.f32.mrf.mxu0
  %v5285 = vadd.f32 %v5236, %v5284
  %v5286 = vpop.f32.mrf.mxu0
  %v5287 = vpop.f32.mrf.mxu0
  %v5288 = vadd.f32 %v5236, %v5287
  %v5289 = vpop.f32.mrf.mxu0
  %5290 = vmatprep.mubr.bf16.mxu0 0
  %5291 = vmatmul.mubr.bf16.gmra.mxu0 %v3716
  %v5292 = vpop.f32.mrf.mxu0
  %v5293 = vadd.f32 %v5236, %v5292
  %v5294 = vpop.f32.mrf.mxu0
  %v5295 = vpop.f32.mrf.mxu0
  %v5296 = vadd.f32 %v5236, %v5295
  %v5297 = vpop.f32.mrf.mxu0
  %5298 = vdwg.mxu0
  %v5299 = vpack.c.bf16 %v5140, %v5137
  %v5300 = vpack.c.bf16 %v5148, %v5145
  %v5301 = vpack.c.bf16 %v5214, %v5211
  %v5302 = vpack.c.bf16 %v5222, %v5219
  %v5304 = vsel %vm1225, %v5299, 0
  %v5307 = vsel %vm1225, %v5300, 0
  %v5310 = vsel %vm1225, %v5301, 0
  %v5313 = vsel %vm1225, %v5302, 0
  %5315 = vmatprep.subr.bf16.mxu0 0
  %5316 = vmatpush1.bf16.xpose.msra.mxu0 0
  %5317 = vmatprep.subr.bf16.mxu0 0
  %5318 = vmatpush1.bf16.xpose.msra.mxu0 0
  %5319 = vmatprep.subr.bf16.mxu0 0
  %5320 = vmatpush1.bf16.xpose.msra.mxu0 0
  %5321 = vmatprep.subr.bf16.mxu0 0
  %5322 = vmatpush1.bf16.xpose.msra.mxu0 0
  %5323 = vmatprep.subr.bf16.mxu0 0
  %5324 = vmatpush1.bf16.xpose.msra.mxu0 0
  %5325 = vmatprep.subr.bf16.mxu0 0
  %5326 = vmatpush1.bf16.xpose.msra.mxu0 0
  %5327 = vmatprep.subr.bf16.mxu0 0
  %5328 = vmatpush1.bf16.xpose.msra.mxu0 %v5313
  %5329 = vmatprep.subr.bf16.mxu0 0
  %5330 = vmatpush1.bf16.xpose.msra.mxu0 %v5310
  %5331 = vmatprep.subr.bf16.mxu0 0
  %5332 = vmatpush2.bf16.xpose.msra.mxu0 0
  %5333 = vmatprep.subr.bf16.mxu0 0
  %5334 = vmatpush2.bf16.xpose.msra.mxu0 0
  %5335 = vmatprep.subr.bf16.mxu0 0
  %5336 = vmatpush2.bf16.xpose.msra.mxu0 0
  %5337 = vmatprep.subr.bf16.mxu0 0
  %5338 = vmatpush2.bf16.xpose.msra.mxu0 0
  %5339 = vmatprep.subr.bf16.mxu0 0
  %5340 = vmatpush2.bf16.xpose.msra.mxu0 0
  %5341 = vmatprep.subr.bf16.mxu0 0
  %5342 = vmatpush2.bf16.xpose.msra.mxu0 0
  %5343 = vmatprep.subr.bf16.mxu0 0
  %5344 = vmatpush2.bf16.xpose.msra.mxu0 0
  %5345 = vmatprep.subr.bf16.mxu0 0
  %5346 = vmatpush2.bf16.xpose.msra.mxu0 0
  %5347 = vmatprep.mubr.bf16.mxu0 0
  %5348 = vmatmul.mubr.bf16.gmra.mxu0 %v5304
  %v5349 = vpop.f32.mrf.mxu0
  %v5350 = vadd.f32 0.0, %v5349
  %v5351 = vpop.f32.mrf.mxu0
  %v5352 = vpop.f32.mrf.mxu0
  %v5353 = vadd.f32 0.0, %v5352
  %v5354 = vpop.f32.mrf.mxu0
  %5355 = vmatprep.mubr.bf16.mxu0 0
  %5356 = vmatmul.mubr.bf16.gmra.mxu0 %v5307
  %v5357 = vpop.f32.mrf.mxu0
  %v5358 = vadd.f32 0.0, %v5357
  %v5359 = vpop.f32.mrf.mxu0
  %v5360 = vpop.f32.mrf.mxu0
  %v5361 = vadd.f32 0.0, %v5360
  %v5362 = vpop.f32.mrf.mxu0
  %5363 = vdwg.mxu0
  %v5364 = vmul.f32 %v5350, 0.35355338
  %v5365 = vmul.f32 %v5353, 0.35355338
  %v5366 = vmul.f32 %v5358, 0.35355338
  %v5367 = vmul.f32 %v5361, 0.35355338
  %v5368 = vadd.f32 %v5364, %v480
  %v5369 = vadd.f32 %v5365, %v481
  %v5370 = vadd.f32 %v5366, %v482
  %v5371 = vadd.f32 %v5367, %v483
  %v5372 = vsel %vm419, %v5368, -inf
  %5373 = vmax.xlane.f32.xlu0 %v5372
  %v5374 = vpop.xlane.xlu0 %5373
  %v5375 = vsel %vm419, %v5369, -inf
  %5376 = vmax.xlane.f32.xlu0 %v5375
  %v5377 = vpop.xlane.xlu0 %5376
  %v5378 = vsel %vm419, %v5370, -inf
  %5379 = vmax.xlane.f32.xlu0 %v5378
  %v5380 = vpop.xlane.xlu0 %5379
  %v5381 = vsel %vm419, %v5371, -inf
  %5382 = vmax.xlane.f32.xlu0 %v5381
  %v5383 = vpop.xlane.xlu0 %5382
  %v5384 = vsub.f32 %v5368, %v5374
  %v5385 = vsub.f32 %v5369, %v5377
  %v5386 = vsub.f32 %v5370, %v5380
  %v5387 = vsub.f32 %v5371, %v5383
  %v5388 = vmul.f32 %v5384, 1.442695
  %v5389 = vpow.pop %v5388
  %v5390 = vmul.f32 %v5385, 1.442695
  %v5391 = vpow.pop %v5390
  %v5392 = vmul.f32 %v5386, 1.442695
  %v5393 = vpow.pop %v5392
  %v5394 = vmul.f32 %v5387, 1.442695
  %v5395 = vpow.pop %v5394
  %v5396 = vsel %vm419, %v5389, 0.0
  %5397 = vadd.xlane.f32.xlu0 %v5396
  %v5398 = vpop.xlane.xlu0 %5397
  %v5399 = vsel %vm419, %v5391, 0.0
  %5400 = vadd.xlane.f32.xlu0 %v5399
  %v5401 = vpop.xlane.xlu0 %5400
  %v5402 = vsel %vm419, %v5393, 0.0
  %5403 = vadd.xlane.f32.xlu0 %v5402
  %v5404 = vpop.xlane.xlu0 %5403
  %v5405 = vsel %vm419, %v5395, 0.0
  %5406 = vadd.xlane.f32.xlu0 %v5405
  %v5407 = vpop.xlane.xlu0 %5406
  %v5408 = vrcp.pop %v5398
  %v5409 = vrcp.pop %v5401
  %v5410 = vrcp.pop %v5404
  %v5411 = vrcp.pop %v5407
  %v5412 = vmul.f32 %v5389, %v5408
  %v5413 = vmul.f32 %v5391, %v5409
  %v5414 = vmul.f32 %v5393, %v5410
  %v5415 = vmul.f32 %v5395, %v5411
  %v5416 = vpack.c.bf16 %v5413, %v5412
  %v5417 = vpack.c.bf16 %v5415, %v5414
  %v5418 = vpack.c.bf16 %v5288, %v5285
  %v5419 = vpack.c.bf16 %v5296, %v5293
  %v5421 = vsel %vm419, %v5416, 0
  %v5424 = vsel %vm419, %v5417, 0
  %5426 = vmatprep.subr.bf16.mxu0 0
  %5427 = vmatpush1.bf16.msra.mxu0 0
  %5428 = vmatprep.subr.bf16.mxu0 0
  %5429 = vmatpush1.bf16.msra.mxu0 0
  %5430 = vmatprep.subr.bf16.mxu0 0
  %5431 = vmatpush1.bf16.msra.mxu0 0
  %5432 = vmatprep.subr.bf16.mxu0 0
  %5433 = vmatpush1.bf16.msra.mxu0 0
  %5434 = vmatprep.subr.bf16.mxu0 0
  %5435 = vmatpush1.bf16.msra.mxu0 0
  %5436 = vmatprep.subr.bf16.mxu0 0
  %5437 = vmatpush1.bf16.msra.mxu0 0
  %5438 = vmatprep.subr.bf16.mxu0 0
  %5439 = vmatpush1.bf16.msra.mxu0 %v5419
  %5440 = vmatprep.subr.bf16.mxu0 0
  %5441 = vmatpush1.bf16.msra.mxu0 %v5418
  %5442 = vmatprep.subr.bf16.mxu0 0
  %5443 = vmatpush2.bf16.msra.mxu0 0
  %5444 = vmatprep.subr.bf16.mxu0 0
  %5445 = vmatpush2.bf16.msra.mxu0 0
  %5446 = vmatprep.subr.bf16.mxu0 0
  %5447 = vmatpush2.bf16.msra.mxu0 0
  %5448 = vmatprep.subr.bf16.mxu0 0
  %5449 = vmatpush2.bf16.msra.mxu0 0
  %5450 = vmatprep.subr.bf16.mxu0 0
  %5451 = vmatpush2.bf16.msra.mxu0 0
  %5452 = vmatprep.subr.bf16.mxu0 0
  %5453 = vmatpush2.bf16.msra.mxu0 0
  %5454 = vmatprep.subr.bf16.mxu0 0
  %5455 = vmatpush2.bf16.msra.mxu0 0
  %5456 = vmatprep.subr.bf16.mxu0 0
  %5457 = vmatpush2.bf16.msra.mxu0 0
  %5458 = vmatprep.mubr.bf16.mxu0 0
  %5459 = vmatmul.mubr.bf16.gmra.mxu0 %v5421
  %v5460 = vpop.f32.mrf.mxu0
  %v5461 = vadd.f32 0.0, %v5460
  %v5462 = vpop.f32.mrf.mxu0
  %v5463 = vpop.f32.mrf.mxu0
  %v5464 = vadd.f32 0.0, %v5463
  %v5465 = vpop.f32.mrf.mxu0
  %5466 = vmatprep.mubr.bf16.mxu0 0
  %5467 = vmatmul.mubr.bf16.gmra.mxu0 %v5424
  %v5468 = vpop.f32.mrf.mxu0
  %v5469 = vadd.f32 0.0, %v5468
  %v5470 = vpop.f32.mrf.mxu0
  %v5471 = vpop.f32.mrf.mxu0
  %v5472 = vadd.f32 0.0, %v5471
  %v5473 = vpop.f32.mrf.mxu0
  %5474 = vdwg.mxu0
  %s5475 = scalar_lea.vmem %s18, 28
  %v5476 = vld [vmem:[%s5475] sm:$0xf]
  %v5477 = vpack.c.bf16 %v5464, %v5461
  %v5478 = vpack.c.bf16 %v5472, %v5469
  %v5480 = vsel %vm1225, %v5477, 0
  %v5483 = vsel %vm1225, %v5478, 0
  %v5486 = vsel %vm1809, %v5476, 0
  %5488 = vmatprep.subr.bf16.mxu0 0
  %5489 = vmatpush1.bf16.msra.mxu0 0
  %5490 = vmatprep.subr.bf16.mxu0 0
  %5491 = vmatpush1.bf16.msra.mxu0 0
  %5492 = vmatprep.subr.bf16.mxu0 0
  %5493 = vmatpush1.bf16.msra.mxu0 0
  %5494 = vmatprep.subr.bf16.mxu0 0
  %5495 = vmatpush1.bf16.msra.mxu0 0
  %5496 = vmatprep.subr.bf16.mxu0 0
  %5497 = vmatpush1.bf16.msra.mxu0 0
  %5498 = vmatprep.subr.bf16.mxu0 0
  %5499 = vmatpush1.bf16.msra.mxu0 0
  %5500 = vmatprep.subr.bf16.mxu0 0
  %5501 = vmatpush1.bf16.msra.mxu0 0
  %5502 = vmatprep.subr.bf16.mxu0 0
  %5503 = vmatpush1.bf16.msra.mxu0 %v5486
  %5504 = vmatprep.subr.bf16.mxu0 0
  %5505 = vmatpush2.bf16.msra.mxu0 0
  %5506 = vmatprep.subr.bf16.mxu0 0
  %5507 = vmatpush2.bf16.msra.mxu0 0
  %5508 = vmatprep.subr.bf16.mxu0 0
  %5509 = vmatpush2.bf16.msra.mxu0 0
  %5510 = vmatprep.subr.bf16.mxu0 0
  %5511 = vmatpush2.bf16.msra.mxu0 0
  %5512 = vmatprep.subr.bf16.mxu0 0
  %5513 = vmatpush2.bf16.msra.mxu0 0
  %5514 = vmatprep.subr.bf16.mxu0 0
  %5515 = vmatpush2.bf16.msra.mxu0 0
  %5516 = vmatprep.subr.bf16.mxu0 0
  %5517 = vmatpush2.bf16.msra.mxu0 0
  %5518 = vmatprep.subr.bf16.mxu0 0
  %5519 = vmatpush2.bf16.msra.mxu0 0
  %5520 = vmatprep.mubr.bf16.mxu0 0
  %5521 = vmatmul.mubr.bf16.gmra.mxu0 %v5480
  %v5522 = vpop.f32.mrf.mxu0
  %v5523 = vadd.f32 0.0, %v5522
  %v5524 = vpop.f32.mrf.mxu0
  %v5525 = vpop.f32.mrf.mxu0
  %v5526 = vadd.f32 0.0, %v5525
  %v5527 = vpop.f32.mrf.mxu0
  %5528 = vmatprep.mubr.bf16.mxu0 0
  %5529 = vmatmul.mubr.bf16.gmra.mxu0 %v5483
  %v5530 = vpop.f32.mrf.mxu0
  %v5531 = vadd.f32 0.0, %v5530
  %v5532 = vpop.f32.mrf.mxu0
  %v5533 = vpop.f32.mrf.mxu0
  %v5534 = vadd.f32 0.0, %v5533
  %v5535 = vpop.f32.mrf.mxu0
  %5536 = vdwg.mxu0
  %v5537 = vadd.f32 %v5073, %v5523
  %v5538 = vadd.f32 %v5074, %v5526
  %v5539 = vadd.f32 %v5075, %v5531
  %v5540 = vadd.f32 %v5076, %v5534
  %s5541 = scalar_lea.vmem %s19, 1
  %v5542 = vld [vmem:[%s5541] sm:$0x1]
  %v5544 = vlaneseq
  %v5545 = vshrl.u32 %v5544, 7
  %v5546 = vsub.s32 0, %v5545
  %v5547 = vrot.slane %v5542, %v5546
  %v5549 = vadd.f32 %v5537, %v5547
  %v5550 = vadd.f32 %v5538, %v5547
  %v5551 = vadd.f32 %v5539, %v5547
  %v5552 = vadd.f32 %v5540, %v5547
  %v5553 = vmul.f32 %v3385, %v5549
  %v5554 = vmul.f32 %v3388, %v5550
  %v5555 = vmul.f32 %v3393, %v5551
  %v5556 = vmul.f32 %v3396, %v5552
  %v5557 = vadd.f32 %v3173, %v5553
  %v5558 = vadd.f32 %v3174, %v5554
  %v5559 = vadd.f32 %v3175, %v5555
  %v5560 = vadd.f32 %v3176, %v5556
  %v5561 = vsel %vm419, %v5557, 0.0
  %5562 = vadd.xlane.f32.xlu0 %v5561
  %v5563 = vpop.xlane.xlu0 %5562
  %v5564 = vsel %vm419, %v5558, 0.0
  %5565 = vadd.xlane.f32.xlu0 %v5564
  %v5566 = vpop.xlane.xlu0 %5565
  %v5567 = vsel %vm419, %v5559, 0.0
  %5568 = vadd.xlane.f32.xlu0 %v5567
  %v5569 = vpop.xlane.xlu0 %5568
  %v5570 = vsel %vm419, %v5560, 0.0
  %5571 = vadd.xlane.f32.xlu0 %v5570
  %v5572 = vpop.xlane.xlu0 %5571
  %v5573 = vmul.f32 %v5563, %v944
  %v5574 = vmul.f32 %v5566, %v944
  %v5575 = vmul.f32 %v5569, %v944
  %v5576 = vmul.f32 %v5572, %v944
  %v5577 = vsub.f32 %v5557, %v5573
  %v5578 = vsub.f32 %v5558, %v5574
  %v5579 = vsub.f32 %v5559, %v5575
  %v5580 = vsub.f32 %v5560, %v5576
  %v5581 = vmul.f32 %v5577, %v5577
  %v5582 = vmul.f32 %v5578, %v5578
  %v5583 = vmul.f32 %v5579, %v5579
  %v5584 = vmul.f32 %v5580, %v5580
  %v5585 = vsel %vm419, %v5581, 0.0
  %5586 = vadd.xlane.f32.xlu0 %v5585
  %v5587 = vpop.xlane.xlu0 %5586
  %v5588 = vsel %vm419, %v5582, 0.0
  %5589 = vadd.xlane.f32.xlu0 %v5588
  %v5590 = vpop.xlane.xlu0 %5589
  %v5591 = vsel %vm419, %v5583, 0.0
  %5592 = vadd.xlane.f32.xlu0 %v5591
  %v5593 = vpop.xlane.xlu0 %5592
  %v5594 = vsel %vm419, %v5584, 0.0
  %5595 = vadd.xlane.f32.xlu0 %v5594
  %v5596 = vpop.xlane.xlu0 %5595
  %v5597 = vmul.f32 %v5587, %v944
  %v5598 = vmul.f32 %v5590, %v944
  %v5599 = vmul.f32 %v5593, %v944
  %v5600 = vmul.f32 %v5596, %v944
  %v5601 = vadd.f32 %v5597, 1e-06
  %v5602 = vadd.f32 %v5598, 1e-06
  %v5603 = vadd.f32 %v5599, 1e-06
  %v5604 = vadd.f32 %v5600, 1e-06
  %v5605 = vrsqrt.pop %v5601
  %v5606 = vrsqrt.pop %v5602
  %v5607 = vrsqrt.pop %v5603
  %v5608 = vrsqrt.pop %v5604
  %v5609 = vmul.f32 %v5577, %v5605
  %v5610 = vmul.f32 %v5578, %v5606
  %v5611 = vmul.f32 %v5579, %v5607
  %v5612 = vmul.f32 %v5580, %v5608
  %v5613 = vadd.f32 %v3533, 1.0
  %v5614 = vadd.f32 %v3536, 1.0
  %v5615 = vadd.f32 %v3541, 1.0
  %v5616 = vadd.f32 %v3544, 1.0
  %v5617 = vmul.f32 %v5609, %v5613
  %v5618 = vmul.f32 %v5610, %v5614
  %v5619 = vmul.f32 %v5611, %v5615
  %v5620 = vmul.f32 %v5612, %v5616
  %v5621 = vadd.f32 %v5617, %v3459
  %v5622 = vadd.f32 %v5618, %v3462
  %v5623 = vadd.f32 %v5619, %v3467
  %v5624 = vadd.f32 %v5620, %v3470
  %s5625 = scalar_lea.vmem %s20, 16
  %v5626 = vld [vmem:[%s5625] sm:$0xf]
  %v5627 = vld [vmem:[%s5625 + $0x4] sm:$0xf]
  %v5628 = vld [vmem:[%s5625 + $0x8] sm:$0xf]
  %v5629 = vld [vmem:[%s5625 + $0xc] sm:$0xf]
  %s5630 = scalar_lea.vmem %s21, 1
  %v5631 = vld [vmem:[%s5630] sm:$0x1]
  %v5632 = vpack.c.bf16 %v5622, %v5621
  %v5633 = vpack.c.bf16 %v5624, %v5623
  %v5635 = vlaneseq
  %v5636 = vshrl.u32 %v5635, 7
  %v5637 = vsub.s32 0, %v5636
  %v5638 = vrot.slane %v5631, %v5637
  %v5644 = vunpack.c.l.b16 %v5626
  %v5645 = vunpack.c.l.b16 %v5627
  %v5646 = vunpack.c.l.b16 %v5628
  %v5647 = vunpack.c.l.b16 %v5629
  %v5648 = vpack.c.b16 %v5645, %v5644
  %v5649 = vpack.c.b16 %v5647, %v5646
  %v5653 = vsel %vm419, %v5632, 0
  %v5656 = vsel %vm419, %v5633, 0
  %5658 = vmatprep.subr.bf16.mxu0 0
  %5659 = vmatpush1.bf16.msra.mxu0 0
  %5660 = vmatprep.subr.bf16.mxu0 0
  %5661 = vmatpush1.bf16.msra.mxu0 0
  %5662 = vmatprep.subr.bf16.mxu0 0
  %5663 = vmatpush1.bf16.msra.mxu0 0
  %5664 = vmatprep.subr.bf16.mxu0 0
  %5665 = vmatpush1.bf16.msra.mxu0 0
  %5666 = vmatprep.subr.bf16.mxu0 0
  %5667 = vmatpush1.bf16.msra.mxu0 0
  %5668 = vmatprep.subr.bf16.mxu0 0
  %5669 = vmatpush1.bf16.msra.mxu0 0
  %5670 = vmatprep.subr.bf16.mxu0 0
  %5671 = vmatpush1.bf16.msra.mxu0 %v5649
  %5672 = vmatprep.subr.bf16.mxu0 0
  %5673 = vmatpush1.bf16.msra.mxu0 %v5648
  %5674 = vmatprep.subr.bf16.mxu0 0
  %5675 = vmatpush2.bf16.msra.mxu0 0
  %5676 = vmatprep.subr.bf16.mxu0 0
  %5677 = vmatpush2.bf16.msra.mxu0 0
  %5678 = vmatprep.subr.bf16.mxu0 0
  %5679 = vmatpush2.bf16.msra.mxu0 0
  %5680 = vmatprep.subr.bf16.mxu0 0
  %5681 = vmatpush2.bf16.msra.mxu0 0
  %5682 = vmatprep.subr.bf16.mxu0 0
  %5683 = vmatpush2.bf16.msra.mxu0 0
  %5684 = vmatprep.subr.bf16.mxu0 0
  %5685 = vmatpush2.bf16.msra.mxu0 0
  %5686 = vmatprep.subr.bf16.mxu0 0
  %5687 = vmatpush2.bf16.msra.mxu0 0
  %5688 = vmatprep.subr.bf16.mxu0 0
  %5689 = vmatpush2.bf16.msra.mxu0 0
  %5690 = vmatprep.mubr.bf16.mxu0 0
  %5691 = vmatmul.mubr.bf16.gmra.mxu0 %v5653
  %v5692 = vpop.f32.mrf.mxu0
  %v5693 = vadd.f32 %v5638, %v5692
  %v5694 = vpop.f32.mrf.mxu0
  %v5695 = vpop.f32.mrf.mxu0
  %v5696 = vadd.f32 %v5638, %v5695
  %v5697 = vpop.f32.mrf.mxu0
  %5698 = vmatprep.mubr.bf16.mxu0 0
  %5699 = vmatmul.mubr.bf16.gmra.mxu0 %v5656
  %v5700 = vpop.f32.mrf.mxu0
  %v5701 = vadd.f32 %v5638, %v5700
  %v5702 = vpop.f32.mrf.mxu0
  %v5703 = vpop.f32.mrf.mxu0
  %v5704 = vadd.f32 %v5638, %v5703
  %v5705 = vpop.f32.mrf.mxu0
  %5706 = vdwg.mxu0
  %v5707 = vmul.f32 %v5693, 0.5
  %v5708 = vmul.f32 %v5696, 0.5
  %v5709 = vmul.f32 %v5701, 0.5
  %v5710 = vmul.f32 %v5704, 0.5
  %v5711 = vmul.f32 %v5693, 0.044715
  %v5712 = vmul.f32 %v5696, 0.044715
  %v5713 = vmul.f32 %v5701, 0.044715
  %v5714 = vmul.f32 %v5704, 0.044715
  %v5715 = vmul.f32 %v5711, %v5693
  %v5716 = vmul.f32 %v5712, %v5696
  %v5717 = vmul.f32 %v5713, %v5701
  %v5718 = vmul.f32 %v5714, %v5704
  %v5719 = vmul.f32 %v5715, %v5693
  %v5720 = vmul.f32 %v5716, %v5696
  %v5721 = vmul.f32 %v5717, %v5701
  %v5722 = vmul.f32 %v5718, %v5704
  %v5723 = vadd.f32 %v5693, %v5719
  %v5724 = vadd.f32 %v5696, %v5720
  %v5725 = vadd.f32 %v5701, %v5721
  %v5726 = vadd.f32 %v5704, %v5722
  %v5727 = vmul.f32 %v5723, 0.7978846
  %v5728 = vmul.f32 %v5724, 0.7978846
  %v5729 = vmul.f32 %v5725, 0.7978846
  %v5730 = vmul.f32 %v5726, 0.7978846
  %v5731 = vtanh.pop %v5727
  %v5732 = vtanh.pop %v5728
  %v5733 = vtanh.pop %v5729
  %v5734 = vtanh.pop %v5730
  %v5735 = vadd.f32 %v5731, 1.0
  %v5736 = vadd.f32 %v5732, 1.0
  %v5737 = vadd.f32 %v5733, 1.0
  %v5738 = vadd.f32 %v5734, 1.0
  %v5739 = vmul.f32 %v5707, %v5735
  %v5740 = vmul.f32 %v5708, %v5736
  %v5741 = vmul.f32 %v5709, %v5737
  %v5742 = vmul.f32 %v5710, %v5738
  %s5743 = scalar_lea.vmem %s22, 64
  %v5744 = vld [vmem:[%s5743] sm:$0xf]
  %v5745 = vld [vmem:[%s5743 + $0x4] sm:$0xf]
  %v5746 = vld [vmem:[%s5743 + $0x8] sm:$0xf]
  %v5747 = vld [vmem:[%s5743 + $0xc] sm:$0xf]
  %v5748 = vld [vmem:[%s5743 + $0x10] sm:$0xf]
  %v5749 = vld [vmem:[%s5743 + $0x14] sm:$0xf]
  %v5750 = vld [vmem:[%s5743 + $0x18] sm:$0xf]
  %v5751 = vld [vmem:[%s5743 + $0x1c] sm:$0xf]
  %v5752 = vld [vmem:[%s5743 + $0x20] sm:$0xf]
  %v5753 = vld [vmem:[%s5743 + $0x24] sm:$0xf]
  %v5754 = vld [vmem:[%s5743 + $0x28] sm:$0xf]
  %v5755 = vld [vmem:[%s5743 + $0x2c] sm:$0xf]
  %v5756 = vld [vmem:[%s5743 + $0x30] sm:$0xf]
  %v5757 = vld [vmem:[%s5743 + $0x34] sm:$0xf]
  %v5758 = vld [vmem:[%s5743 + $0x38] sm:$0xf]
  %v5759 = vld [vmem:[%s5743 + $0x3c] sm:$0xf]
  %s5760 = scalar_lea.vmem %s23, 1
  %v5761 = vld [vmem:[%s5760] sm:$0x1]
  %v5762 = vpack.c.bf16 %v5740, %v5739
  %v5763 = vpack.c.bf16 %v5742, %v5741
  %v5765 = vlaneseq
  %v5766 = vshrl.u32 %v5765, 7
  %v5767 = vsub.s32 0, %v5766
  %v5768 = vrot.slane %v5761, %v5767
  %v5786 = vunpack.c.l.b16 %v5744
  %v5787 = vunpack.c.l.b16 %v5745
  %v5788 = vunpack.c.l.b16 %v5746
  %v5789 = vunpack.c.l.b16 %v5747
  %v5790 = vunpack.c.l.b16 %v5748
  %v5791 = vunpack.c.l.b16 %v5749
  %v5792 = vunpack.c.l.b16 %v5750
  %v5793 = vunpack.c.l.b16 %v5751
  %v5794 = vunpack.c.l.b16 %v5752
  %v5795 = vunpack.c.l.b16 %v5753
  %v5796 = vunpack.c.l.b16 %v5754
  %v5797 = vunpack.c.l.b16 %v5755
  %v5798 = vunpack.c.l.b16 %v5756
  %v5799 = vunpack.c.l.b16 %v5757
  %v5800 = vunpack.c.l.b16 %v5758
  %v5801 = vunpack.c.l.b16 %v5759
  %v5802 = vpack.c.b16 %v5787, %v5786
  %v5803 = vpack.c.b16 %v5789, %v5788
  %v5804 = vpack.c.b16 %v5791, %v5790
  %v5805 = vpack.c.b16 %v5793, %v5792
  %v5806 = vpack.c.b16 %v5795, %v5794
  %v5807 = vpack.c.b16 %v5797, %v5796
  %v5808 = vpack.c.b16 %v5799, %v5798
  %v5809 = vpack.c.b16 %v5801, %v5800
  %5818 = vmatprep.subr.bf16.mxu0 0
  %5819 = vmatpush1.bf16.msra.mxu0 %v5809
  %5820 = vmatprep.subr.bf16.mxu0 0
  %5821 = vmatpush1.bf16.msra.mxu0 %v5808
  %5822 = vmatprep.subr.bf16.mxu0 0
  %5823 = vmatpush1.bf16.msra.mxu0 %v5807
  %5824 = vmatprep.subr.bf16.mxu0 0
  %5825 = vmatpush1.bf16.msra.mxu0 %v5806
  %5826 = vmatprep.subr.bf16.mxu0 0
  %5827 = vmatpush1.bf16.msra.mxu0 %v5805
  %5828 = vmatprep.subr.bf16.mxu0 0
  %5829 = vmatpush1.bf16.msra.mxu0 %v5804
  %5830 = vmatprep.subr.bf16.mxu0 0
  %5831 = vmatpush1.bf16.msra.mxu0 %v5803
  %5832 = vmatprep.subr.bf16.mxu0 0
  %5833 = vmatpush1.bf16.msra.mxu0 %v5802
  %5834 = vmatprep.subr.bf16.mxu0 0
  %5835 = vmatpush2.bf16.msra.mxu0 0
  %5836 = vmatprep.subr.bf16.mxu0 0
  %5837 = vmatpush2.bf16.msra.mxu0 0
  %5838 = vmatprep.subr.bf16.mxu0 0
  %5839 = vmatpush2.bf16.msra.mxu0 0
  %5840 = vmatprep.subr.bf16.mxu0 0
  %5841 = vmatpush2.bf16.msra.mxu0 0
  %5842 = vmatprep.subr.bf16.mxu0 0
  %5843 = vmatpush2.bf16.msra.mxu0 0
  %5844 = vmatprep.subr.bf16.mxu0 0
  %5845 = vmatpush2.bf16.msra.mxu0 0
  %5846 = vmatprep.subr.bf16.mxu0 0
  %5847 = vmatpush2.bf16.msra.mxu0 0
  %5848 = vmatprep.subr.bf16.mxu0 0
  %5849 = vmatpush2.bf16.msra.mxu0 0
  %5850 = vmatprep.mubr.bf16.mxu0 0
  %5851 = vmatmul.mubr.bf16.gmra.mxu0 %v5762
  %v5852 = vpop.f32.mrf.mxu0
  %v5853 = vadd.f32 %v5768, %v5852
  %v5854 = vpop.f32.mrf.mxu0
  %v5855 = vpop.f32.mrf.mxu0
  %v5856 = vadd.f32 %v5768, %v5855
  %v5857 = vpop.f32.mrf.mxu0
  %5858 = vmatprep.mubr.bf16.mxu0 0
  %5859 = vmatmul.mubr.bf16.gmra.mxu0 %v5763
  %v5860 = vpop.f32.mrf.mxu0
  %v5861 = vadd.f32 %v5768, %v5860
  %v5862 = vpop.f32.mrf.mxu0
  %v5863 = vpop.f32.mrf.mxu0
  %v5864 = vadd.f32 %v5768, %v5863
  %v5865 = vpop.f32.mrf.mxu0
  %5866 = vdwg.mxu0
  %v5867 = vmul.f32 %v3607, %v5853
  %v5868 = vmul.f32 %v3610, %v5856
  %v5869 = vmul.f32 %v3615, %v5861
  %v5870 = vmul.f32 %v3618, %v5864
  %v5871 = vadd.f32 %v5557, %v5867
  %v5872 = vadd.f32 %v5558, %v5868
  %v5873 = vadd.f32 %v5559, %v5869
  %v5874 = vadd.f32 %v5560, %v5870
  %v5875 = vld [vmem:[%s24] sm:$0xf]
  %v5876 = vld [vmem:[%s24 + $0x4] sm:$0xf]
  %v5877 = vld [vmem:[%s24 + $0x8] sm:$0xf]
  %v5878 = vld [vmem:[%s24 + $0xc] sm:$0xf]
  %v5879 = vld [vmem:[%s25] sm:$0x1]
  %v5881 = vlaneseq
  %v5882 = vshrl.u32 %v5881, 7
  %v5883 = vsub.s32 0, %v5882
  %v5884 = vrot.slane %v5879, %v5883
  %v5890 = vunpack.c.l.b16 %v5875
  %v5891 = vunpack.c.l.b16 %v5876
  %v5892 = vunpack.c.l.b16 %v5877
  %v5893 = vunpack.c.l.b16 %v5878
  %v5894 = vpack.c.b16 %v5891, %v5890
  %v5895 = vpack.c.b16 %v5893, %v5892
  %5898 = vmatprep.subr.bf16.mxu0 0
  %5899 = vmatpush1.bf16.msra.mxu0 0
  %5900 = vmatprep.subr.bf16.mxu0 0
  %5901 = vmatpush1.bf16.msra.mxu0 0
  %5902 = vmatprep.subr.bf16.mxu0 0
  %5903 = vmatpush1.bf16.msra.mxu0 0
  %5904 = vmatprep.subr.bf16.mxu0 0
  %5905 = vmatpush1.bf16.msra.mxu0 0
  %5906 = vmatprep.subr.bf16.mxu0 0
  %5907 = vmatpush1.bf16.msra.mxu0 0
  %5908 = vmatprep.subr.bf16.mxu0 0
  %5909 = vmatpush1.bf16.msra.mxu0 0
  %5910 = vmatprep.subr.bf16.mxu0 0
  %5911 = vmatpush1.bf16.msra.mxu0 %v5895
  %5912 = vmatprep.subr.bf16.mxu0 0
  %5913 = vmatpush1.bf16.msra.mxu0 %v5894
  %5914 = vmatprep.subr.bf16.mxu0 0
  %5915 = vmatpush2.bf16.msra.mxu0 0
  %5916 = vmatprep.subr.bf16.mxu0 0
  %5917 = vmatpush2.bf16.msra.mxu0 0
  %5918 = vmatprep.subr.bf16.mxu0 0
  %5919 = vmatpush2.bf16.msra.mxu0 0
  %5920 = vmatprep.subr.bf16.mxu0 0
  %5921 = vmatpush2.bf16.msra.mxu0 0
  %5922 = vmatprep.subr.bf16.mxu0 0
  %5923 = vmatpush2.bf16.msra.mxu0 0
  %5924 = vmatprep.subr.bf16.mxu0 0
  %5925 = vmatpush2.bf16.msra.mxu0 0
  %5926 = vmatprep.subr.bf16.mxu0 0
  %5927 = vmatpush2.bf16.msra.mxu0 0
  %5928 = vmatprep.subr.bf16.mxu0 0
  %5929 = vmatpush2.bf16.msra.mxu0 0
  %5930 = vmatprep.mubr.bf16.mxu0 0
  %5931 = vmatmul.mubr.bf16.gmra.mxu0 %v508
  %v5932 = vpop.f32.mrf.mxu0
  %v5933 = vadd.f32 %v5884, %v5932
  %v5934 = vpop.f32.mrf.mxu0
  %v5935 = vpop.f32.mrf.mxu0
  %v5936 = vadd.f32 %v5884, %v5935
  %v5937 = vpop.f32.mrf.mxu0
  %5938 = vmatprep.mubr.bf16.mxu0 0
  %5939 = vmatmul.mubr.bf16.gmra.mxu0 %v511
  %v5940 = vpop.f32.mrf.mxu0
  %v5941 = vadd.f32 %v5884, %v5940
  %v5942 = vpop.f32.mrf.mxu0
  %v5943 = vpop.f32.mrf.mxu0
  %v5944 = vadd.f32 %v5884, %v5943
  %v5945 = vpop.f32.mrf.mxu0
  %5946 = vdwg.mxu0
  %s5947 = scalar_lea.vmem %s24, 16
  %v5948 = vld [vmem:[%s5947] sm:$0xf]
  %v5949 = vld [vmem:[%s5947 + $0x4] sm:$0xf]
  %v5950 = vld [vmem:[%s5947 + $0x8] sm:$0xf]
  %v5951 = vld [vmem:[%s5947 + $0xc] sm:$0xf]
  %s5952 = scalar_lea.vmem %s25, 1
  %v5953 = vld [vmem:[%s5952] sm:$0x1]
  %v5955 = vlaneseq
  %v5956 = vshrl.u32 %v5955, 7
  %v5957 = vsub.s32 0, %v5956
  %v5958 = vrot.slane %v5953, %v5957
  %v5964 = vunpack.c.l.b16 %v5948
  %v5965 = vunpack.c.l.b16 %v5949
  %v5966 = vunpack.c.l.b16 %v5950
  %v5967 = vunpack.c.l.b16 %v5951
  %v5968 = vpack.c.b16 %v5965, %v5964
  %v5969 = vpack.c.b16 %v5967, %v5966
  %5972 = vmatprep.subr.bf16.mxu0 0
  %5973 = vmatpush1.bf16.msra.mxu0 0
  %5974 = vmatprep.subr.bf16.mxu0 0
  %5975 = vmatpush1.bf16.msra.mxu0 0
  %5976 = vmatprep.subr.bf16.mxu0 0
  %5977 = vmatpush1.bf16.msra.mxu0 0
  %5978 = vmatprep.subr.bf16.mxu0 0
  %5979 = vmatpush1.bf16.msra.mxu0 0
  %5980 = vmatprep.subr.bf16.mxu0 0
  %5981 = vmatpush1.bf16.msra.mxu0 0
  %5982 = vmatprep.subr.bf16.mxu0 0
  %5983 = vmatpush1.bf16.msra.mxu0 0
  %5984 = vmatprep.subr.bf16.mxu0 0
  %5985 = vmatpush1.bf16.msra.mxu0 %v5969
  %5986 = vmatprep.subr.bf16.mxu0 0
  %5987 = vmatpush1.bf16.msra.mxu0 %v5968
  %5988 = vmatprep.subr.bf16.mxu0 0
  %5989 = vmatpush2.bf16.msra.mxu0 0
  %5990 = vmatprep.subr.bf16.mxu0 0
  %5991 = vmatpush2.bf16.msra.mxu0 0
  %5992 = vmatprep.subr.bf16.mxu0 0
  %5993 = vmatpush2.bf16.msra.mxu0 0
  %5994 = vmatprep.subr.bf16.mxu0 0
  %5995 = vmatpush2.bf16.msra.mxu0 0
  %5996 = vmatprep.subr.bf16.mxu0 0
  %5997 = vmatpush2.bf16.msra.mxu0 0
  %5998 = vmatprep.subr.bf16.mxu0 0
  %5999 = vmatpush2.bf16.msra.mxu0 0
  %6000 = vmatprep.subr.bf16.mxu0 0
  %6001 = vmatpush2.bf16.msra.mxu0 0
  %6002 = vmatprep.subr.bf16.mxu0 0
  %6003 = vmatpush2.bf16.msra.mxu0 0
  %6004 = vmatprep.mubr.bf16.mxu0 0
  %6005 = vmatmul.mubr.bf16.gmra.mxu0 %v508
  %v6006 = vpop.f32.mrf.mxu0
  %v6007 = vadd.f32 %v5958, %v6006
  %v6008 = vpop.f32.mrf.mxu0
  %v6009 = vpop.f32.mrf.mxu0
  %v6010 = vadd.f32 %v5958, %v6009
  %v6011 = vpop.f32.mrf.mxu0
  %6012 = vmatprep.mubr.bf16.mxu0 0
  %6013 = vmatmul.mubr.bf16.gmra.mxu0 %v511
  %v6014 = vpop.f32.mrf.mxu0
  %v6015 = vadd.f32 %v5958, %v6014
  %v6016 = vpop.f32.mrf.mxu0
  %v6017 = vpop.f32.mrf.mxu0
  %v6018 = vadd.f32 %v5958, %v6017
  %v6019 = vpop.f32.mrf.mxu0
  %6020 = vdwg.mxu0
  %v6021 = vsel %vm419, %v5871, 0.0
  %6022 = vadd.xlane.f32.xlu0 %v6021
  %v6023 = vpop.xlane.xlu0 %6022
  %v6024 = vsel %vm419, %v5872, 0.0
  %6025 = vadd.xlane.f32.xlu0 %v6024
  %v6026 = vpop.xlane.xlu0 %6025
  %v6027 = vsel %vm419, %v5873, 0.0
  %6028 = vadd.xlane.f32.xlu0 %v6027
  %v6029 = vpop.xlane.xlu0 %6028
  %v6030 = vsel %vm419, %v5874, 0.0
  %6031 = vadd.xlane.f32.xlu0 %v6030
  %v6032 = vpop.xlane.xlu0 %6031
  %v6033 = vmul.f32 %v6023, %v944
  %v6034 = vmul.f32 %v6026, %v944
  %v6035 = vmul.f32 %v6029, %v944
  %v6036 = vmul.f32 %v6032, %v944
  %v6037 = vsub.f32 %v5871, %v6033
  %v6038 = vsub.f32 %v5872, %v6034
  %v6039 = vsub.f32 %v5873, %v6035
  %v6040 = vsub.f32 %v5874, %v6036
  %v6041 = vmul.f32 %v6037, %v6037
  %v6042 = vmul.f32 %v6038, %v6038
  %v6043 = vmul.f32 %v6039, %v6039
  %v6044 = vmul.f32 %v6040, %v6040
  %v6045 = vsel %vm419, %v6041, 0.0
  %6046 = vadd.xlane.f32.xlu0 %v6045
  %v6047 = vpop.xlane.xlu0 %6046
  %v6048 = vsel %vm419, %v6042, 0.0
  %6049 = vadd.xlane.f32.xlu0 %v6048
  %v6050 = vpop.xlane.xlu0 %6049
  %v6051 = vsel %vm419, %v6043, 0.0
  %6052 = vadd.xlane.f32.xlu0 %v6051
  %v6053 = vpop.xlane.xlu0 %6052
  %v6054 = vsel %vm419, %v6044, 0.0
  %6055 = vadd.xlane.f32.xlu0 %v6054
  %v6056 = vpop.xlane.xlu0 %6055
  %v6057 = vmul.f32 %v6047, %v944
  %v6058 = vmul.f32 %v6050, %v944
  %v6059 = vmul.f32 %v6053, %v944
  %v6060 = vmul.f32 %v6056, %v944
  %v6061 = vadd.f32 %v6057, 1e-06
  %v6062 = vadd.f32 %v6058, 1e-06
  %v6063 = vadd.f32 %v6059, 1e-06
  %v6064 = vadd.f32 %v6060, 1e-06
  %v6065 = vrsqrt.pop %v6061
  %v6066 = vrsqrt.pop %v6062
  %v6067 = vrsqrt.pop %v6063
  %v6068 = vrsqrt.pop %v6064
  %v6069 = vmul.f32 %v6037, %v6065
  %v6070 = vmul.f32 %v6038, %v6066
  %v6071 = vmul.f32 %v6039, %v6067
  %v6072 = vmul.f32 %v6040, %v6068
  %v6073 = vadd.f32 %v6007, 1.0
  %v6074 = vadd.f32 %v6010, 1.0
  %v6075 = vadd.f32 %v6015, 1.0
  %v6076 = vadd.f32 %v6018, 1.0
  %v6077 = vmul.f32 %v6069, %v6073
  %v6078 = vmul.f32 %v6070, %v6074
  %v6079 = vmul.f32 %v6071, %v6075
  %v6080 = vmul.f32 %v6072, %v6076
  %v6081 = vadd.f32 %v6077, %v5933
  %v6082 = vadd.f32 %v6078, %v5936
  %v6083 = vadd.f32 %v6079, %v5941
  %v6084 = vadd.f32 %v6080, %v5944
  %v6085 = vld [vmem:[%s26] sm:$0xf]
  %v6086 = vld [vmem:[%s26 + $0x4] sm:$0xf]
  %v6087 = vld [vmem:[%s26 + $0x8] sm:$0xf]
  %v6088 = vld [vmem:[%s26 + $0xc] sm:$0xf]
  %v6089 = vld [vmem:[%s27] sm:$0x1]
  %v6090 = vpack.c.bf16 %v6082, %v6081
  %v6091 = vpack.c.bf16 %v6084, %v6083
  %v6093 = vlaneseq
  %v6094 = vshrl.u32 %v6093, 7
  %v6095 = vsub.s32 0, %v6094
  %v6096 = vrot.slane %v6089, %v6095
  %v6102 = vunpack.c.l.b16 %v6085
  %v6103 = vunpack.c.l.b16 %v6086
  %v6104 = vunpack.c.l.b16 %v6087
  %v6105 = vunpack.c.l.b16 %v6088
  %v6106 = vpack.c.b16 %v6103, %v6102
  %v6107 = vpack.c.b16 %v6105, %v6104
  %v6111 = vsel %vm419, %v6090, 0
  %v6114 = vsel %vm419, %v6091, 0
  %6116 = vmatprep.subr.bf16.mxu0 0
  %6117 = vmatpush1.bf16.msra.mxu0 0
  %6118 = vmatprep.subr.bf16.mxu0 0
  %6119 = vmatpush1.bf16.msra.mxu0 0
  %6120 = vmatprep.subr.bf16.mxu0 0
  %6121 = vmatpush1.bf16.msra.mxu0 0
  %6122 = vmatprep.subr.bf16.mxu0 0
  %6123 = vmatpush1.bf16.msra.mxu0 0
  %6124 = vmatprep.subr.bf16.mxu0 0
  %6125 = vmatpush1.bf16.msra.mxu0 0
  %6126 = vmatprep.subr.bf16.mxu0 0
  %6127 = vmatpush1.bf16.msra.mxu0 0
  %6128 = vmatprep.subr.bf16.mxu0 0
  %6129 = vmatpush1.bf16.msra.mxu0 %v6107
  %6130 = vmatprep.subr.bf16.mxu0 0
  %6131 = vmatpush1.bf16.msra.mxu0 %v6106
  %6132 = vmatprep.subr.bf16.mxu0 0
  %6133 = vmatpush2.bf16.msra.mxu0 0
  %6134 = vmatprep.subr.bf16.mxu0 0
  %6135 = vmatpush2.bf16.msra.mxu0 0
  %6136 = vmatprep.subr.bf16.mxu0 0
  %6137 = vmatpush2.bf16.msra.mxu0 0
  %6138 = vmatprep.subr.bf16.mxu0 0
  %6139 = vmatpush2.bf16.msra.mxu0 0
  %6140 = vmatprep.subr.bf16.mxu0 0
  %6141 = vmatpush2.bf16.msra.mxu0 0
  %6142 = vmatprep.subr.bf16.mxu0 0
  %6143 = vmatpush2.bf16.msra.mxu0 0
  %6144 = vmatprep.subr.bf16.mxu0 0
  %6145 = vmatpush2.bf16.msra.mxu0 0
  %6146 = vmatprep.subr.bf16.mxu0 0
  %6147 = vmatpush2.bf16.msra.mxu0 0
  %6148 = vmatprep.mubr.bf16.mxu0 0
  %6149 = vmatmul.mubr.bf16.gmra.mxu0 %v6111
  %v6150 = vpop.f32.mrf.mxu0
  %v6151 = vadd.f32 %v6096, %v6150
  %v6152 = vpop.f32.mrf.mxu0
  %v6153 = vpop.f32.mrf.mxu0
  %v6154 = vadd.f32 %v6096, %v6153
  %v6155 = vpop.f32.mrf.mxu0
  %6156 = vmatprep.mubr.bf16.mxu0 0
  %6157 = vmatmul.mubr.bf16.gmra.mxu0 %v6114
  %v6158 = vpop.f32.mrf.mxu0
  %v6159 = vadd.f32 %v6096, %v6158
  %v6160 = vpop.f32.mrf.mxu0
  %v6161 = vpop.f32.mrf.mxu0
  %v6162 = vadd.f32 %v6096, %v6161
  %v6163 = vpop.f32.mrf.mxu0
  %6164 = vdwg.mxu0
  %6165 = vst.msk [vmem:[%s28] sm:$0xff] %vm135, %v6151
  %6166 = vst.msk [vmem:[%s28 + $0x8] sm:$0xff] %vm135, %v6154
  %6167 = vst.msk [vmem:[%s28 + $0x10] sm:$0xff] %vm135, %v6159
  %6168 = vst.msk [vmem:[%s28 + $0x18] sm:$0xff] %vm135, %v6162
  // Predicated region
  $region114: #{diti_forward.1} parent=0 // pred_check
    _
  $region115: #{diti_forward.1} parent=0 // pred_check_branch
    %6170 = sbr.rel (0) target = $region117
  $region116: #{diti_forward.1} parent=0 // pred_region
    _
  $region117: #{diti_forward.1} parent=0 // pred_fallthru
    _
  // Predicated region
  $region118: #{diti_forward.1} parent=0 // pred_check
    _
  $region119: #{diti_forward.1} parent=0 // pred_check_branch
    %6172 = sbr.rel (0) target = $region121
  $region120: #{diti_forward.1} parent=0 // pred_region
    _
  $region121: #{diti_forward.1} parent=0 // pred_fallthru
    _

</llo_original>
